<compile_context>
chip_gen: v7x
topology: tpu7x:2x2x1
jax: 0.10.0
libtpu: 0.0.40
codegen_flags: <defaults>
</compile_context>

<pallas_src>
import functools

import numpy as np
import jax
import jax.numpy as jnp
from jax.experimental import pallas as pl
from jax.experimental.pallas import tpu as pltpu


def _round_up(x, m):
    return (x + m - 1) // m * m


# ----------------------------------------------------------------------------- kernel


def _attn_decoder_kernel(
    # scalar prefetch
    tok_ref,        # SMEM (T,) int32 — decode-step token ids
    # inputs (all resident for the whole decode)
    emb_ref,        # (V, Hp)        f32  embedding table
    h0_ref,         # (1, Hp)        f32  initial hidden state
    enc_ref,        # (Lp, Hp)       bf16 encoder outputs (zero padded)
    w_emb_ref,      # (Hp, Lp+Hp)    bf16 [attn(embedded part) | attn_combine(embedded part)]
    w_h_ref,        # (Hp, Lp+3Hp)   bf16 [attn(hidden part)   | GRU hh gates (r,z,n)]
    w_ca_ref,       # (Hp, Hp)       bf16 attn_combine(attn_applied part)
    w_ih_ref,       # (Hp, 3Hp)      bf16 GRU input->hidden gates (r,z,n)
    w_out_ref,      # (Hp, Vp)       bf16
    b_ref,          # (1, Lp+5Hp+Vp) f32  packed biases (padded len/vocab slots = -1e30)
    # outputs (whole-decode blocks, written row-by-row inside the loop)
    logp_ref,       # (T, 1, Vp) f32
    hid_ref,        # (T, 1, Hp) f32
    aw_ref,         # (T, 1, Lp) f32
    *, T, Hp, Lp, Vp,
):
    f32 = jnp.float32
    bf16 = jnp.bfloat16

    # Hoist bias-slab slices (all boundaries 128-aligned lane slices).
    b_attn = b_ref[:, 0:Lp]                                  # (1, Lp)
    b_comb = b_ref[:, Lp:Lp + Hp]                            # (1, Hp)
    b_gi = b_ref[:, Lp + Hp:Lp + 4 * Hp]                     # (1, 3Hp)  r,z hold b_ih+b_hh; n holds b_ih
    b_hn = b_ref[:, Lp + 4 * Hp:Lp + 5 * Hp]                 # (1, Hp)   b_hh for the n gate
    b_out = b_ref[:, Lp + 5 * Hp:Lp + 5 * Hp + Vp]           # (1, Vp)

    def step(t, h):
        h_b = h.astype(bf16)                                 # (1, Hp)
        tok = tok_ref[t]
        embedded = emb_ref[pl.ds(tok, 1), :].astype(bf16)    # (1, Hp)
        # TODO(synk): nn.Dropout(p=0.1) is identity in eval mode; training-mode mask not implemented.

        # Two wide dots drive everything the embedded row / hidden state feed.
        emb_part = jnp.dot(embedded, w_emb_ref[...], preferred_element_type=f32)  # (1, Lp+Hp)
        h_part = jnp.dot(h_b, w_h_ref[...], preferred_element_type=f32)           # (1, Lp+3Hp)

        # attn_weights = softmax(attn(cat(embedded, hidden))); padded cols carry -1e30 bias.
        attn_logits = emb_part[:, 0:Lp] + h_part[:, 0:Lp] + b_attn                # (1, Lp)
        m = jnp.max(attn_logits, axis=1, keepdims=True)
        e = jnp.exp(attn_logits - m)
        aw = e / jnp.sum(e, axis=1, keepdims=True)
        aw_ref[t] = aw

        # attn_applied = attn_weights @ encoder_outputs (padded rows of enc are zero).
        attn_applied = jnp.dot(aw.astype(bf16), enc_ref[...],
                               preferred_element_type=f32)                        # (1, Hp)

        # gru_in = relu(attn_combine(cat(embedded, attn_applied)))
        gru_in = (
            emb_part[:, Lp:Lp + Hp]
            + jnp.dot(attn_applied.astype(bf16), w_ca_ref[...], preferred_element_type=f32)
            + b_comb
        )
        gru_in = jnp.maximum(gru_in, 0.0)

        # single-step GRU, fused 3-gate matmuls, PyTorch gate order (r, z, n)
        gi = jnp.dot(gru_in.astype(bf16), w_ih_ref[...],
                     preferred_element_type=f32) + b_gi                           # (1, 3Hp)
        gh = h_part[:, Lp:Lp + 3 * Hp]                                            # (1, 3Hp)
        r = jax.nn.sigmoid(gi[:, 0:Hp] + gh[:, 0:Hp])
        z = jax.nn.sigmoid(gi[:, Hp:2 * Hp] + gh[:, Hp:2 * Hp])
        n = jnp.tanh(gi[:, 2 * Hp:3 * Hp] + r * (gh[:, 2 * Hp:3 * Hp] + b_hn))    # b_hn inside r*(...)
        h_new = (1.0 - z) * n + z * h                                             # (1, Hp)
        hid_ref[t] = h_new

        # output = log_softmax(out(h_new)); padded vocab cols carry -1e30 bias (exp underflows to 0)
        logits = jnp.dot(h_new.astype(bf16), w_out_ref[...],
                         preferred_element_type=f32) + b_out                      # (1, Vp)
        lm = jnp.max(logits, axis=1, keepdims=True)
        shifted = logits - lm
        lse = jnp.log(jnp.sum(jnp.exp(shifted), axis=1, keepdims=True))
        logp_ref[t] = shifted - lse
        return h_new

    jax.lax.fori_loop(0, T, step, h0_ref[...], unroll=(T <= 8))


# ----------------------------------------------------------------------------- params


def init_params(key, hidden_dim, output_dim, max_length):
    """Logical parameters in `y = x @ W + b` orientation (PyTorch Linear weights transposed)."""
    H, V, L = hidden_dim, output_dim, max_length
    ks = jax.random.split(key, 11)
    s = 0.1
    p = {"hidden_dim": H, "output_dim": V, "max_length": L}
    p["emb"]    = jax.random.normal(ks[0], (V, H), jnp.float32) * s
    p["w_attn"] = jax.random.normal(ks[1], (2 * H, L), jnp.float32) * s
    p["b_attn"] = jax.random.normal(ks[2], (L,), jnp.float32) * s
    p["w_comb"] = jax.random.normal(ks[3], (2 * H, H), jnp.float32) * s
    p["b_comb"] = jax.random.normal(ks[4], (H,), jnp.float32) * s
    p["w_ih"]   = jax.random.normal(ks[5], (H, 3 * H), jnp.float32) * s   # gates (r, z, n)
    p["b_ih"]   = jax.random.normal(ks[6], (3 * H,), jnp.float32) * s
    p["w_hh"]   = jax.random.normal(ks[7], (H, 3 * H), jnp.float32) * s
    p["b_hh"]   = jax.random.normal(ks[8], (3 * H,), jnp.float32) * s
    p["w_out"]  = jax.random.normal(ks[9], (H, V), jnp.float32) * s
    p["b_out"]  = jax.random.normal(ks[10], (V,), jnp.float32) * s
    return p


def pack_params(params):
    """Pad / pre-concatenate logical params into lane-dense, kernel-ready buffers (weights bf16)."""
    H, V, L = params["hidden_dim"], params["output_dim"], params["max_length"]
    Hp, Lp, Vp = _round_up(H, 128), _round_up(L, 128), _round_up(V, 128)
    NEG = -1e30

    def f32np(x):
        return np.asarray(x, dtype=np.float32)

    emb, w_attn, b_attn = f32np(params["emb"]), f32np(params["w_attn"]), f32np(params["b_attn"])
    w_comb, b_comb = f32np(params["w_comb"]), f32np(params["b_comb"])
    w_ih, b_ih = f32np(params["w_ih"]), f32np(params["b_ih"])
    w_hh, b_hh = f32np(params["w_hh"]), f32np(params["b_hh"])
    w_out, b_out = f32np(params["w_out"]), f32np(params["b_out"])

    # embedding table stays f32 (dynamic single-row loads; tiny), padded on the lane dim only
    emb_p = np.zeros((V, Hp), np.float32); emb_p[:, :H] = emb

    # W_emb = [attn(embedded part) | attn_combine(embedded part)]
    w_emb_cat = np.zeros((Hp, Lp + Hp), np.float32)
    w_emb_cat[:H, :L] = w_attn[:H]
    w_emb_cat[:H, Lp:Lp + H] = w_comb[:H]

    # W_h = [attn(hidden part) | GRU hidden->hidden gates (r, z, n)]
    w_h_cat = np.zeros((Hp, Lp + 3 * Hp), np.float32)
    w_h_cat[:H, :L] = w_attn[H:2 * H]
    for g in range(3):
        w_h_cat[:H, Lp + g * Hp:Lp + g * Hp + H] = w_hh[:, g * H:(g + 1) * H]

    # attn_combine (attn_applied part)
    w_ca_p = np.zeros((Hp, Hp), np.float32); w_ca_p[:H, :H] = w_comb[H:2 * H]

    # GRU input->hidden gates (r, z, n)
    w_ih_p = np.zeros((Hp, 3 * Hp), np.float32)
    for g in range(3):
        w_ih_p[:H, g * Hp:g * Hp + H] = w_ih[:, g * H:(g + 1) * H]

    w_out_p = np.zeros((Hp, Vp), np.float32); w_out_p[:H, :V] = w_out

    # packed bias slab: [b_attn | b_comb | b_gi(r,z summed, n=ih only) | b_hn | b_out]
    bias = np.zeros((1, Lp + 5 * Hp + Vp), np.float32)
    bias[0, :Lp] = NEG                        # padded attention slots -> softmax weight 0
    bias[0, :L] = b_attn
    bias[0, Lp:Lp + H] = b_comb               # padded hidden lanes stay 0 -> hidden padding stays 0
    off = Lp + Hp
    for g in range(3):
        bg = b_ih[g * H:(g + 1) * H].copy()
        if g < 2:                             # r, z: fold b_hh into b_ih (they're simply summed)
            bg = bg + b_hh[g * H:(g + 1) * H]
        bias[0, off + g * Hp:off + g * Hp + H] = bg
    off = Lp + 4 * Hp
    bias[0, off:off + H] = b_hh[2 * H:3 * H]  # b_hn must stay inside r*(...)
    off = Lp + 5 * Hp
    bias[0, off:] = NEG                       # padded vocab slots -> exp underflows to 0
    bias[0, off:off + V] = b_out

    wdt = jnp.bfloat16                        # bf16 weights, f32 accumulation in the kernel
    return {
        "H": H, "V": V, "L": L, "Hp": Hp, "Lp": Lp, "Vp": Vp,
        "emb": jnp.asarray(emb_p, jnp.float32),
        "w_emb": jnp.asarray(w_emb_cat, wdt),
        "w_h": jnp.asarray(w_h_cat, wdt),
        "w_ca": jnp.asarray(w_ca_p, wdt),
        "w_ih": jnp.asarray(w_ih_p, wdt),
        "w_out": jnp.asarray(w_out_p, wdt),
        "bias": jnp.asarray(bias, jnp.float32),
    }


# ----------------------------------------------------------------------------- wrappers


def attn_decoder_decode(tokens, hidden_0, encoder_outputs, packed):
    """Run T teacher-forced decode steps inside ONE kernel invocation.

    tokens: (T,) int32; hidden_0: (1,1,H); encoder_outputs: (L,H).
    Returns (log_probs (T,V), hiddens (T,1,H), attn_weights (T,L)).
    """
    H, V, L = packed["H"], packed["V"], packed["L"]
    Hp, Lp, Vp = packed["Hp"], packed["Lp"], packed["Vp"]
    tokens = jnp.asarray(tokens, jnp.int32).reshape(-1)
    T = int(tokens.shape[0])

    h0 = jnp.zeros((1, Hp), jnp.float32).at[:, :H].set(
        jnp.asarray(hidden_0, jnp.float32).reshape(1, H))
    enc = jnp.zeros((Lp, Hp), jnp.float32).at[:L, :H].set(
        jnp.asarray(encoder_outputs, jnp.float32)).astype(jnp.bfloat16)

    kernel = functools.partial(_attn_decoder_kernel, T=T, Hp=Hp, Lp=Lp, Vp=Vp)

    grid_spec = pltpu.PrefetchScalarGridSpec(
        num_scalar_prefetch=1,
        grid=(1,),   # single invocation; the decode loop lives inside the kernel
        in_specs=[
            pl.BlockSpec((V, Hp), lambda i, tok: (0, 0)),                  # embedding table
            pl.BlockSpec((1, Hp), lambda i, tok: (0, 0)),                  # h0
            pl.BlockSpec((Lp, Hp), lambda i, tok: (0, 0)),                 # encoder outputs (bf16)
            pl.BlockSpec((Hp, Lp + Hp), lambda i, tok: (0, 0)),            # W_emb
            pl.BlockSpec((Hp, Lp + 3 * Hp), lambda i, tok: (0, 0)),        # W_h
            pl.BlockSpec((Hp, Hp), lambda i, tok: (0, 0)),                 # w_combine(attn part)
            pl.BlockSpec((Hp, 3 * Hp), lambda i, tok: (0, 0)),             # w_ih
            pl.BlockSpec((Hp, Vp), lambda i, tok: (0, 0)),                 # w_out
            pl.BlockSpec((1, Lp + 5 * Hp + Vp), lambda i, tok: (0, 0)),    # packed biases
        ],
        out_specs=[
            pl.BlockSpec((T, 1, Vp), lambda i, tok: (0, 0, 0)),            # per-step log-probs
            pl.BlockSpec((T, 1, Hp), lambda i, tok: (0, 0, 0)),            # per-step hidden
            pl.BlockSpec((T, 1, Lp), lambda i, tok: (0, 0, 0)),            # per-step attn weights
        ],
    )

    out_shapes = (
        jax.ShapeDtypeStruct((T, 1, Vp), jnp.float32),
        jax.ShapeDtypeStruct((T, 1, Hp), jnp.float32),
        jax.ShapeDtypeStruct((T, 1, Lp), jnp.float32),
    )

    logp, hid, aw = pl.pallas_call(
        kernel,
        out_shape=out_shapes,
        grid_spec=grid_spec,
        compiler_params=pltpu.CompilerParams(dimension_semantics=("arbitrary",)),
    )(tokens, packed["emb"], h0, enc,
      packed["w_emb"], packed["w_h"], packed["w_ca"], packed["w_ih"], packed["w_out"],
      packed["bias"])

    return logp[:, 0, :V], hid[:, :, :H], aw[:, 0, :L]


def attn_decoder_forward(token, hidden_0, encoder_outputs, packed):
    """Single-step call matching the PyTorch module forward: (output, hidden, attn_weights)."""
    logp, hiddens, aw = attn_decoder_decode(
        jnp.asarray(token, jnp.int32).reshape(1), hidden_0, encoder_outputs, packed)
    H = packed["H"]
    return logp, hiddens[-1].reshape(1, 1, H), aw


# ----------------------------------------------------------------------------- reference


def _reference_decode(tokens, hidden_0, encoder_outputs, params):
    """Pure-JAX reference (same bf16-quantized weights as the kernel, f32 activations)."""
    H = params["hidden_dim"]
    q = lambda w: jnp.asarray(w, jnp.bfloat16).astype(jnp.float32)
    h = jnp.asarray(hidden_0, jnp.float32).reshape(1, H)
    enc = jnp.asarray(encoder_outputs, jnp.float32)
    logps, hids, aws = [], [], []
    for tok in np.asarray(tokens):
        embedded = jnp.asarray(params["emb"], jnp.float32)[int(tok)][None, :]
        attn_in = jnp.concatenate([embedded, h], axis=1)
        attn_logits = attn_in @ q(params["w_attn"]) + params["b_attn"][None, :]
        aw = jax.nn.softmax(attn_logits, axis=1)
        attn_applied = aw @ enc
        comb_in = jnp.concatenate([embedded, attn_applied], axis=1)
        gru_in = jax.nn.relu(comb_in @ q(params["w_comb"]) + params["b_comb"][None, :])
        gi = gru_in @ q(params["w_ih"]) + params["b_ih"][None, :]
        gh = h @ q(params["w_hh"]) + params["b_hh"][None, :]
        r = jax.nn.sigmoid(gi[:, :H] + gh[:, :H])
        z = jax.nn.sigmoid(gi[:, H:2 * H] + gh[:, H:2 * H])
        n = jnp.tanh(gi[:, 2 * H:] + r * gh[:, 2 * H:])
        h = (1.0 - z) * n + z * h
        logits = h @ q(params["w_out"]) + params["b_out"][None, :]
        logps.append(jax.nn.log_softmax(logits, axis=1)[0])
        hids.append(h[0])
        aws.append(aw[0])
    return jnp.stack(logps), jnp.stack(hids), jnp.stack(aws)


# ----------------------------------------------------------------------------- main


if __name__ == "__main__":
    H, V, L = 256, 256, 40   # hidden_dim (module default 256), output_dim (vocab), max_length (40)
    T = 4                    # teacher-forced decode steps, all inside one kernel invocation

    key = jax.random.PRNGKey(0)
    kp, kh, ke = jax.random.split(key, 3)

    params = init_params(kp, H, V, L)
    packed = pack_params(params)

    tokens = jnp.array([3, 17, 42, 7], dtype=jnp.int32)
    hidden_0 = jax.random.normal(kh, (1, 1, H), dtype=jnp.float32)
    encoder_outputs = jax.random.normal(ke, (L, H), dtype=jnp.float32)

    # multi-step decode: one pallas_call, weights resident, loop inside the kernel
    logp_all, hid_all, aw_all = attn_decoder_decode(tokens, hidden_0, encoder_outputs, packed)
    jax.block_until_ready((logp_all, hid_all, aw_all))
    assert logp_all.shape == (T, V)
    assert hid_all.shape == (T, 1, H)
    assert aw_all.shape == (T, L)

    # single-step call with the PyTorch module's forward() signature/shapes
    output, hidden, attn_weights = attn_decoder_forward(tokens[0], hidden_0, encoder_outputs, packed)
    jax.block_until_ready((output, hidden, attn_weights))
    assert output.shape == (1, V)
    assert hidden.shape == (1, 1, H)
    assert attn_weights.shape == (1, L)

    # sanity: proper (log-)softmax distributions despite lane padding
    np.testing.assert_allclose(np.asarray(jnp.sum(aw_all, axis=1)), np.ones(T), atol=1e-3)
    np.testing.assert_allclose(np.asarray(jnp.sum(jnp.exp(logp_all), axis=1)), np.ones(T), atol=1e-3)

    # numerics vs pure-JAX reference (same bf16-quantized weights; kernel also uses bf16 activations)
    ref_logp, ref_hid, ref_aw = _reference_decode(tokens, hidden_0, encoder_outputs, params)
    np.testing.assert_allclose(np.asarray(logp_all), np.asarray(ref_logp), atol=5e-2, rtol=5e-2)
    np.testing.assert_allclose(np.asarray(hid_all[:, 0, :]), np.asarray(ref_hid), atol=5e-2, rtol=5e-2)
    np.testing.assert_allclose(np.asarray(aw_all), np.asarray(ref_aw), atol=5e-2, rtol=5e-2)

    print("KERNEL_OK")
</pallas_src>

<mosaic_0001>
module attributes {stable_mosaic.version = 11 : i64} {
  func.func @_attn_decoder_kernel(%arg0: i32, %arg1: memref<4xi32, #tpu.memory_space<smem>>, %arg2: memref<256x256xf32, #tpu.memory_space<vmem>>, %arg3: memref<1x256xf32, #tpu.memory_space<vmem>>, %arg4: memref<128x256xbf16, #tpu.memory_space<vmem>>, %arg5: memref<256x384xbf16, #tpu.memory_space<vmem>>, %arg6: memref<256x896xbf16, #tpu.memory_space<vmem>>, %arg7: memref<256x256xbf16, #tpu.memory_space<vmem>>, %arg8: memref<256x768xbf16, #tpu.memory_space<vmem>>, %arg9: memref<256x256xbf16, #tpu.memory_space<vmem>>, %arg10: memref<1x1664xf32, #tpu.memory_space<vmem>>, %arg11: memref<4x1x256xf32, #tpu.memory_space<vmem>>, %arg12: memref<4x1x256xf32, #tpu.memory_space<vmem>>, %arg13: memref<4x1x128xf32, #tpu.memory_space<vmem>>) attributes {dimension_semantics = [#tpu.dimension_semantics<arbitrary>], iteration_bounds = array<i64: 1>, scalar_prefetch = 1 : i64, scratch_operands = 0 : i64, tpu.core_type = #tpu.core_type<tc>, window_params = [{pipeline_mode = #tpu.pipeline_mode<synchronous>, transform_indices = @transform_0, window_bounds = array<i64: 256, 256>}, {pipeline_mode = #tpu.pipeline_mode<synchronous>, transform_indices = @transform_1, window_bounds = array<i64: 1, 256>}, {pipeline_mode = #tpu.pipeline_mode<synchronous>, transform_indices = @transform_2, window_bounds = array<i64: 128, 256>}, {pipeline_mode = #tpu.pipeline_mode<synchronous>, transform_indices = @transform_3, window_bounds = array<i64: 256, 384>}, {pipeline_mode = #tpu.pipeline_mode<synchronous>, transform_indices = @transform_4, window_bounds = array<i64: 256, 896>}, {pipeline_mode = #tpu.pipeline_mode<synchronous>, transform_indices = @transform_5, window_bounds = array<i64: 256, 256>}, {pipeline_mode = #tpu.pipeline_mode<synchronous>, transform_indices = @transform_6, window_bounds = array<i64: 256, 768>}, {pipeline_mode = #tpu.pipeline_mode<synchronous>, transform_indices = @transform_7, window_bounds = array<i64: 256, 256>}, {pipeline_mode = #tpu.pipeline_mode<synchronous>, transform_indices = @transform_8, window_bounds = array<i64: 1, 1664>}, {pipeline_mode = #tpu.pipeline_mode<synchronous>, transform_indices = @transform_9, window_bounds = array<i64: 4, 1, 256>}, {pipeline_mode = #tpu.pipeline_mode<synchronous>, transform_indices = @transform_10, window_bounds = array<i64: 4, 1, 256>}, {pipeline_mode = #tpu.pipeline_mode<synchronous>, transform_indices = @transform_11, window_bounds = array<i64: 4, 1, 128>}]} {
    %c0 = arith.constant 0 : index
    %c0_0 = arith.constant 0 : index
    %0 = vector.load %arg10[%c0, %c0_0] : memref<1x1664xf32, #tpu.memory_space<vmem>>, vector<1x128xf32>
    %c0_1 = arith.constant 0 : index
    %c128 = arith.constant 128 : index
    %1 = vector.load %arg10[%c0_1, %c128] : memref<1x1664xf32, #tpu.memory_space<vmem>>, vector<1x256xf32>
    %c0_2 = arith.constant 0 : index
    %c384 = arith.constant 384 : index
    %2 = vector.load %arg10[%c0_2, %c384] : memref<1x1664xf32, #tpu.memory_space<vmem>>, vector<1x768xf32>
    %c0_3 = arith.constant 0 : index
    %c1152 = arith.constant 1152 : index
    %3 = vector.load %arg10[%c0_3, %c1152] : memref<1x1664xf32, #tpu.memory_space<vmem>>, vector<1x256xf32>
    %c0_4 = arith.constant 0 : index
    %c1408 = arith.constant 1408 : index
    %4 = vector.load %arg10[%c0_4, %c1408] : memref<1x1664xf32, #tpu.memory_space<vmem>>, vector<1x256xf32>
    %c0_5 = arith.constant 0 : index
    %c0_6 = arith.constant 0 : index
    %5 = vector.load %arg3[%c0_5, %c0_6] : memref<1x256xf32, #tpu.memory_space<vmem>>, vector<1x256xf32>
    %c0_i32 = arith.constant 0 : i32
    %6 = arith.truncf %5 : vector<1x256xf32> to vector<1x256xbf16>
    %7 = arith.index_cast %c0_i32 : i32 to index
    %8 = memref.load %arg1[%7] : memref<4xi32, #tpu.memory_space<smem>>
    %9 = arith.index_cast %8 : i32 to index
    %c0_7 = arith.constant 0 : index
    %10 = vector.load %arg2[%9, %c0_7] : memref<256x256xf32, #tpu.memory_space<vmem>>, vector<1x256xf32>
    %11 = arith.truncf %10 : vector<1x256xf32> to vector<1x256xbf16>
    %c0_8 = arith.constant 0 : index
    %c0_9 = arith.constant 0 : index
    %12 = vector.load %arg5[%c0_8, %c0_9] : memref<256x384xbf16, #tpu.memory_space<vmem>>, vector<256x384xbf16>
    %cst = arith.constant dense<0.000000e+00> : vector<1x384xf32>
    %13 = tpu.matmul %11, %12, %cst {dimension_numbers = #tpu.dot_dimension_numbers<[1], [0], [0], [1], [0, 0, 1, 1], [], []>} : vector<1x256xbf16>, vector<256x384xbf16>, vector<1x384xf32> -> vector<1x384xf32>
    %c0_10 = arith.constant 0 : index
    %c0_11 = arith.constant 0 : index
    %14 = vector.load %arg6[%c0_10, %c0_11] : memref<256x896xbf16, #tpu.memory_space<vmem>>, vector<256x896xbf16>
    %cst_12 = arith.constant dense<0.000000e+00> : vector<1x896xf32>
    %15 = tpu.matmul %6, %14, %cst_12 {dimension_numbers = #tpu.dot_dimension_numbers<[1], [0], [0], [1], [0, 0, 1, 1], [], []>} : vector<1x256xbf16>, vector<256x896xbf16>, vector<1x896xf32> -> vector<1x896xf32>
    %16 = vector.extract_strided_slice %13 {offsets = [0, 0], sizes = [1, 128], strides = [1, 1]} : vector<1x384xf32> to vector<1x128xf32>
    %17 = vector.extract_strided_slice %15 {offsets = [0, 0], sizes = [1, 128], strides = [1, 1]} : vector<1x896xf32> to vector<1x128xf32>
    %18 = arith.addf %16, %17 : vector<1x128xf32>
    %19 = arith.addf %18, %0 : vector<1x128xf32>
    %cst_13 = arith.constant dense<0xFF800000> : vector<1xf32>
    %20 = vector.multi_reduction <maximumf>, %19, %cst_13 [1] : vector<1x128xf32> to vector<1xf32>
    %21 = vector.shape_cast %20 : vector<1xf32> to vector<1x1xf32>
    %22 = vector.broadcast %21 : vector<1x1xf32> to vector<1x128xf32>
    %23 = arith.subf %19, %22 : vector<1x128xf32>
    %24 = math.exp %23 : vector<1x128xf32>
    %cst_14 = arith.constant dense<0.000000e+00> : vector<1xf32>
    %25 = vector.multi_reduction <add>, %24, %cst_14 [1] : vector<1x128xf32> to vector<1xf32>
    %26 = vector.shape_cast %25 : vector<1xf32> to vector<1x1xf32>
    %27 = vector.broadcast %26 : vector<1x1xf32> to vector<1x128xf32>
    %28 = arith.divf %24, %27 : vector<1x128xf32>
    %29 = arith.index_cast %c0_i32 : i32 to index
    %c0_15 = arith.constant 0 : index
    %c0_16 = arith.constant 0 : index
    %30 = vector.load %arg13[%29, %c0_15, %c0_16] : memref<4x1x128xf32, #tpu.memory_space<vmem>>, vector<1x1x128xf32>
    %31 = vector.shape_cast %30 : vector<1x1x128xf32> to vector<1x128xf32>
    %32 = vector.shape_cast %28 : vector<1x128xf32> to vector<1x1x128xf32>
    tpu.vector_store %arg13[%29, %c0_15, %c0_16], %32 {strides = array<i32>} : memref<4x1x128xf32, #tpu.memory_space<vmem>>, vector<1x1x128xf32>,
    %33 = arith.truncf %28 : vector<1x128xf32> to vector<1x128xbf16>
    %c0_17 = arith.constant 0 : index
    %c0_18 = arith.constant 0 : index
    %34 = vector.load %arg4[%c0_17, %c0_18] : memref<128x256xbf16, #tpu.memory_space<vmem>>, vector<128x256xbf16>
    %cst_19 = arith.constant dense<0.000000e+00> : vector<1x256xf32>
    %35 = tpu.matmul %33, %34, %cst_19 {dimension_numbers = #tpu.dot_dimension_numbers<[1], [0], [0], [1], [0, 0, 1, 1], [], []>} : vector<1x128xbf16>, vector<128x256xbf16>, vector<1x256xf32> -> vector<1x256xf32>
    %36 = vector.extract_strided_slice %13 {offsets = [0, 128], sizes = [1, 256], strides = [1, 1]} : vector<1x384xf32> to vector<1x256xf32>
    %37 = arith.truncf %35 : vector<1x256xf32> to vector<1x256xbf16>
    %c0_20 = arith.constant 0 : index
    %c0_21 = arith.constant 0 : index
    %38 = vector.load %arg7[%c0_20, %c0_21] : memref<256x256xbf16, #tpu.memory_space<vmem>>, vector<256x256xbf16>
    %cst_22 = arith.constant dense<0.000000e+00> : vector<1x256xf32>
    %39 = tpu.matmul %37, %38, %cst_22 {dimension_numbers = #tpu.dot_dimension_numbers<[1], [0], [0], [1], [0, 0, 1, 1], [], []>} : vector<1x256xbf16>, vector<256x256xbf16>, vector<1x256xf32> -> vector<1x256xf32>
    %40 = arith.addf %36, %39 : vector<1x256xf32>
    %41 = arith.addf %40, %1 : vector<1x256xf32>
    %cst_23 = arith.constant 0.000000e+00 : f32
    %42 = vector.broadcast %cst_23 : f32 to vector<1x256xf32>
    %43 = arith.maximumf %41, %42 : vector<1x256xf32>
    %44 = arith.truncf %43 : vector<1x256xf32> to vector<1x256xbf16>
    %c0_24 = arith.constant 0 : index
    %c0_25 = arith.constant 0 : index
    %45 = vector.load %arg8[%c0_24, %c0_25] : memref<256x768xbf16, #tpu.memory_space<vmem>>, vector<256x768xbf16>
    %cst_26 = arith.constant dense<0.000000e+00> : vector<1x768xf32>
    %46 = tpu.matmul %44, %45, %cst_26 {dimension_numbers = #tpu.dot_dimension_numbers<[1], [0], [0], [1], [0, 0, 1, 1], [], []>} : vector<1x256xbf16>, vector<256x768xbf16>, vector<1x768xf32> -> vector<1x768xf32>
    %47 = arith.addf %46, %2 : vector<1x768xf32>
    %48 = vector.extract_strided_slice %15 {offsets = [0, 128], sizes = [1, 768], strides = [1, 1]} : vector<1x896xf32> to vector<1x768xf32>
    %49 = vector.extract_strided_slice %47 {offsets = [0, 0], sizes = [1, 256], strides = [1, 1]} : vector<1x768xf32> to vector<1x256xf32>
    %50 = vector.extract_strided_slice %48 {offsets = [0, 0], sizes = [1, 256], strides = [1, 1]} : vector<1x768xf32> to vector<1x256xf32>
    %51 = arith.addf %49, %50 : vector<1x256xf32>
    %52 = arith.negf %51 : vector<1x256xf32>
    %53 = math.exp %52 : vector<1x256xf32>
    %cst_27 = arith.constant 1.000000e+00 : f32
    %54 = vector.broadcast %cst_27 : f32 to vector<1x256xf32>
    %55 = arith.addf %54, %53 : vector<1x256xf32>
    %56 = arith.divf %54, %55 : vector<1x256xf32>
    %57 = vector.extract_strided_slice %47 {offsets = [0, 256], sizes = [1, 256], strides = [1, 1]} : vector<1x768xf32> to vector<1x256xf32>
    %58 = vector.extract_strided_slice %48 {offsets = [0, 256], sizes = [1, 256], strides = [1, 1]} : vector<1x768xf32> to vector<1x256xf32>
    %59 = arith.addf %57, %58 : vector<1x256xf32>
    %60 = arith.negf %59 : vector<1x256xf32>
    %61 = math.exp %60 : vector<1x256xf32>
    %cst_28 = arith.constant 1.000000e+00 : f32
    %62 = vector.broadcast %cst_28 : f32 to vector<1x256xf32>
    %63 = arith.addf %62, %61 : vector<1x256xf32>
    %64 = arith.divf %62, %63 : vector<1x256xf32>
    %65 = vector.extract_strided_slice %47 {offsets = [0, 512], sizes = [1, 256], strides = [1, 1]} : vector<1x768xf32> to vector<1x256xf32>
    %66 = vector.extract_strided_slice %48 {offsets = [0, 512], sizes = [1, 256], strides = [1, 1]} : vector<1x768xf32> to vector<1x256xf32>
    %67 = arith.addf %66, %3 : vector<1x256xf32>
    %68 = arith.mulf %56, %67 : vector<1x256xf32>
    %69 = arith.addf %65, %68 : vector<1x256xf32>
    %70 = math.tanh %69 : vector<1x256xf32>
    %cst_29 = arith.constant 1.000000e+00 : f32
    %71 = vector.broadcast %cst_29 : f32 to vector<1x256xf32>
    %72 = arith.subf %71, %64 : vector<1x256xf32>
    %73 = arith.mulf %72, %70 : vector<1x256xf32>
    %74 = arith.mulf %64, %5 : vector<1x256xf32>
    %75 = arith.addf %73, %74 : vector<1x256xf32>
    %76 = arith.index_cast %c0_i32 : i32 to index
    %c0_30 = arith.constant 0 : index
    %c0_31 = arith.constant 0 : index
    %77 = vector.load %arg12[%76, %c0_30, %c0_31] : memref<4x1x256xf32, #tpu.memory_space<vmem>>, vector<1x1x256xf32>
    %78 = vector.shape_cast %77 : vector<1x1x256xf32> to vector<1x256xf32>
    %79 = vector.shape_cast %75 : vector<1x256xf32> to vector<1x1x256xf32>
    tpu.vector_store %arg12[%76, %c0_30, %c0_31], %79 {strides = array<i32>} : memref<4x1x256xf32, #tpu.memory_space<vmem>>, vector<1x1x256xf32>,
    %80 = arith.truncf %75 : vector<1x256xf32> to vector<1x256xbf16>
    %c0_32 = arith.constant 0 : index
    %c0_33 = arith.constant 0 : index
    %81 = vector.load %arg9[%c0_32, %c0_33] : memref<256x256xbf16, #tpu.memory_space<vmem>>, vector<256x256xbf16>
    %cst_34 = arith.constant dense<0.000000e+00> : vector<1x256xf32>
    %82 = tpu.matmul %80, %81, %cst_34 {dimension_numbers = #tpu.dot_dimension_numbers<[1], [0], [0], [1], [0, 0, 1, 1], [], []>} : vector<1x256xbf16>, vector<256x256xbf16>, vector<1x256xf32> -> vector<1x256xf32>
    %83 = arith.addf %82, %4 : vector<1x256xf32>
    %cst_35 = arith.constant dense<0xFF800000> : vector<1xf32>
    %84 = vector.multi_reduction <maximumf>, %83, %cst_35 [1] : vector<1x256xf32> to vector<1xf32>
    %85 = vector.shape_cast %84 : vector<1xf32> to vector<1x1xf32>
    %86 = vector.broadcast %85 : vector<1x1xf32> to vector<1x256xf32>
    %87 = arith.subf %83, %86 : vector<1x256xf32>
    %88 = math.exp %87 : vector<1x256xf32>
    %cst_36 = arith.constant dense<0.000000e+00> : vector<1xf32>
    %89 = vector.multi_reduction <add>, %88, %cst_36 [1] : vector<1x256xf32> to vector<1xf32>
    %90 = vector.shape_cast %89 : vector<1xf32> to vector<1x1xf32>
    %91 = math.log %90 : vector<1x1xf32>
    %92 = vector.broadcast %91 : vector<1x1xf32> to vector<1x256xf32>
    %93 = arith.subf %87, %92 : vector<1x256xf32>
    %94 = arith.index_cast %c0_i32 : i32 to index
    %c0_37 = arith.constant 0 : index
    %c0_38 = arith.constant 0 : index
    %95 = vector.load %arg11[%94, %c0_37, %c0_38] : memref<4x1x256xf32, #tpu.memory_space<vmem>>, vector<1x1x256xf32>
    %96 = vector.shape_cast %95 : vector<1x1x256xf32> to vector<1x256xf32>
    %97 = vector.shape_cast %93 : vector<1x256xf32> to vector<1x1x256xf32>
    tpu.vector_store %arg11[%94, %c0_37, %c0_38], %97 {strides = array<i32>} : memref<4x1x256xf32, #tpu.memory_space<vmem>>, vector<1x1x256xf32>,
    %c1_i32 = arith.constant 1 : i32
    %98 = arith.truncf %75 : vector<1x256xf32> to vector<1x256xbf16>
    %99 = arith.index_cast %c1_i32 : i32 to index
    %100 = memref.load %arg1[%99] : memref<4xi32, #tpu.memory_space<smem>>
    %101 = arith.index_cast %100 : i32 to index
    %c0_39 = arith.constant 0 : index
    %102 = vector.load %arg2[%101, %c0_39] : memref<256x256xf32, #tpu.memory_space<vmem>>, vector<1x256xf32>
    %103 = arith.truncf %102 : vector<1x256xf32> to vector<1x256xbf16>
    %c0_40 = arith.constant 0 : index
    %c0_41 = arith.constant 0 : index
    %104 = vector.load %arg5[%c0_40, %c0_41] : memref<256x384xbf16, #tpu.memory_space<vmem>>, vector<256x384xbf16>
    %cst_42 = arith.constant dense<0.000000e+00> : vector<1x384xf32>
    %105 = tpu.matmul %103, %104, %cst_42 {dimension_numbers = #tpu.dot_dimension_numbers<[1], [0], [0], [1], [0, 0, 1, 1], [], []>} : vector<1x256xbf16>, vector<256x384xbf16>, vector<1x384xf32> -> vector<1x384xf32>
    %c0_43 = arith.constant 0 : index
    %c0_44 = arith.constant 0 : index
    %106 = vector.load %arg6[%c0_43, %c0_44] : memref<256x896xbf16, #tpu.memory_space<vmem>>, vector<256x896xbf16>
    %cst_45 = arith.constant dense<0.000000e+00> : vector<1x896xf32>
    %107 = tpu.matmul %98, %106, %cst_45 {dimension_numbers = #tpu.dot_dimension_numbers<[1], [0], [0], [1], [0, 0, 1, 1], [], []>} : vector<1x256xbf16>, vector<256x896xbf16>, vector<1x896xf32> -> vector<1x896xf32>
    %108 = vector.extract_strided_slice %105 {offsets = [0, 0], sizes = [1, 128], strides = [1, 1]} : vector<1x384xf32> to vector<1x128xf32>
    %109 = vector.extract_strided_slice %107 {offsets = [0, 0], sizes = [1, 128], strides = [1, 1]} : vector<1x896xf32> to vector<1x128xf32>
    %110 = arith.addf %108, %109 : vector<1x128xf32>
    %111 = arith.addf %110, %0 : vector<1x128xf32>
    %cst_46 = arith.constant dense<0xFF800000> : vector<1xf32>
    %112 = vector.multi_reduction <maximumf>, %111, %cst_46 [1] : vector<1x128xf32> to vector<1xf32>
    %113 = vector.shape_cast %112 : vector<1xf32> to vector<1x1xf32>
    %114 = vector.broadcast %113 : vector<1x1xf32> to vector<1x128xf32>
    %115 = arith.subf %111, %114 : vector<1x128xf32>
    %116 = math.exp %115 : vector<1x128xf32>
    %cst_47 = arith.constant dense<0.000000e+00> : vector<1xf32>
    %117 = vector.multi_reduction <add>, %116, %cst_47 [1] : vector<1x128xf32> to vector<1xf32>
    %118 = vector.shape_cast %117 : vector<1xf32> to vector<1x1xf32>
    %119 = vector.broadcast %118 : vector<1x1xf32> to vector<1x128xf32>
    %120 = arith.divf %116, %119 : vector<1x128xf32>
    %121 = arith.index_cast %c1_i32 : i32 to index
    %c0_48 = arith.constant 0 : index
    %c0_49 = arith.constant 0 : index
    %122 = vector.load %arg13[%121, %c0_48, %c0_49] : memref<4x1x128xf32, #tpu.memory_space<vmem>>, vector<1x1x128xf32>
    %123 = vector.shape_cast %122 : vector<1x1x128xf32> to vector<1x128xf32>
    %124 = vector.shape_cast %120 : vector<1x128xf32> to vector<1x1x128xf32>
    tpu.vector_store %arg13[%121, %c0_48, %c0_49], %124 {strides = array<i32>} : memref<4x1x128xf32, #tpu.memory_space<vmem>>, vector<1x1x128xf32>,
    %125 = arith.truncf %120 : vector<1x128xf32> to vector<1x128xbf16>
    %c0_50 = arith.constant 0 : index
    %c0_51 = arith.constant 0 : index
    %126 = vector.load %arg4[%c0_50, %c0_51] : memref<128x256xbf16, #tpu.memory_space<vmem>>, vector<128x256xbf16>
    %cst_52 = arith.constant dense<0.000000e+00> : vector<1x256xf32>
    %127 = tpu.matmul %125, %126, %cst_52 {dimension_numbers = #tpu.dot_dimension_numbers<[1], [0], [0], [1], [0, 0, 1, 1], [], []>} : vector<1x128xbf16>, vector<128x256xbf16>, vector<1x256xf32> -> vector<1x256xf32>
    %128 = vector.extract_strided_slice %105 {offsets = [0, 128], sizes = [1, 256], strides = [1, 1]} : vector<1x384xf32> to vector<1x256xf32>
    %129 = arith.truncf %127 : vector<1x256xf32> to vector<1x256xbf16>
    %c0_53 = arith.constant 0 : index
    %c0_54 = arith.constant 0 : index
    %130 = vector.load %arg7[%c0_53, %c0_54] : memref<256x256xbf16, #tpu.memory_space<vmem>>, vector<256x256xbf16>
    %cst_55 = arith.constant dense<0.000000e+00> : vector<1x256xf32>
    %131 = tpu.matmul %129, %130, %cst_55 {dimension_numbers = #tpu.dot_dimension_numbers<[1], [0], [0], [1], [0, 0, 1, 1], [], []>} : vector<1x256xbf16>, vector<256x256xbf16>, vector<1x256xf32> -> vector<1x256xf32>
    %132 = arith.addf %128, %131 : vector<1x256xf32>
    %133 = arith.addf %132, %1 : vector<1x256xf32>
    %cst_56 = arith.constant 0.000000e+00 : f32
    %134 = vector.broadcast %cst_56 : f32 to vector<1x256xf32>
    %135 = arith.maximumf %133, %134 : vector<1x256xf32>
    %136 = arith.truncf %135 : vector<1x256xf32> to vector<1x256xbf16>
    %c0_57 = arith.constant 0 : index
    %c0_58 = arith.constant 0 : index
    %137 = vector.load %arg8[%c0_57, %c0_58] : memref<256x768xbf16, #tpu.memory_space<vmem>>, vector<256x768xbf16>
    %cst_59 = arith.constant dense<0.000000e+00> : vector<1x768xf32>
    %138 = tpu.matmul %136, %137, %cst_59 {dimension_numbers = #tpu.dot_dimension_numbers<[1], [0], [0], [1], [0, 0, 1, 1], [], []>} : vector<1x256xbf16>, vector<256x768xbf16>, vector<1x768xf32> -> vector<1x768xf32>
    %139 = arith.addf %138, %2 : vector<1x768xf32>
    %140 = vector.extract_strided_slice %107 {offsets = [0, 128], sizes = [1, 768], strides = [1, 1]} : vector<1x896xf32> to vector<1x768xf32>
    %141 = vector.extract_strided_slice %139 {offsets = [0, 0], sizes = [1, 256], strides = [1, 1]} : vector<1x768xf32> to vector<1x256xf32>
    %142 = vector.extract_strided_slice %140 {offsets = [0, 0], sizes = [1, 256], strides = [1, 1]} : vector<1x768xf32> to vector<1x256xf32>
    %143 = arith.addf %141, %142 : vector<1x256xf32>
    %144 = arith.negf %143 : vector<1x256xf32>
    %145 = math.exp %144 : vector<1x256xf32>
    %cst_60 = arith.constant 1.000000e+00 : f32
    %146 = vector.broadcast %cst_60 : f32 to vector<1x256xf32>
    %147 = arith.addf %146, %145 : vector<1x256xf32>
    %148 = arith.divf %146, %147 : vector<1x256xf32>
    %149 = vector.extract_strided_slice %139 {offsets = [0, 256], sizes = [1, 256], strides = [1, 1]} : vector<1x768xf32> to vector<1x256xf32>
    %150 = vector.extract_strided_slice %140 {offsets = [0, 256], sizes = [1, 256], strides = [1, 1]} : vector<1x768xf32> to vector<1x256xf32>
    %151 = arith.addf %149, %150 : vector<1x256xf32>
    %152 = arith.negf %151 : vector<1x256xf32>
    %153 = math.exp %152 : vector<1x256xf32>
    %cst_61 = arith.constant 1.000000e+00 : f32
    %154 = vector.broadcast %cst_61 : f32 to vector<1x256xf32>
    %155 = arith.addf %154, %153 : vector<1x256xf32>
    %156 = arith.divf %154, %155 : vector<1x256xf32>
    %157 = vector.extract_strided_slice %139 {offsets = [0, 512], sizes = [1, 256], strides = [1, 1]} : vector<1x768xf32> to vector<1x256xf32>
    %158 = vector.extract_strided_slice %140 {offsets = [0, 512], sizes = [1, 256], strides = [1, 1]} : vector<1x768xf32> to vector<1x256xf32>
    %159 = arith.addf %158, %3 : vector<1x256xf32>
    %160 = arith.mulf %148, %159 : vector<1x256xf32>
    %161 = arith.addf %157, %160 : vector<1x256xf32>
    %162 = math.tanh %161 : vector<1x256xf32>
    %cst_62 = arith.constant 1.000000e+00 : f32
    %163 = vector.broadcast %cst_62 : f32 to vector<1x256xf32>
    %164 = arith.subf %163, %156 : vector<1x256xf32>
    %165 = arith.mulf %164, %162 : vector<1x256xf32>
    %166 = arith.mulf %156, %75 : vector<1x256xf32>
    %167 = arith.addf %165, %166 : vector<1x256xf32>
    %168 = arith.index_cast %c1_i32 : i32 to index
    %c0_63 = arith.constant 0 : index
    %c0_64 = arith.constant 0 : index
    %169 = vector.load %arg12[%168, %c0_63, %c0_64] : memref<4x1x256xf32, #tpu.memory_space<vmem>>, vector<1x1x256xf32>
    %170 = vector.shape_cast %169 : vector<1x1x256xf32> to vector<1x256xf32>
    %171 = vector.shape_cast %167 : vector<1x256xf32> to vector<1x1x256xf32>
    tpu.vector_store %arg12[%168, %c0_63, %c0_64], %171 {strides = array<i32>} : memref<4x1x256xf32, #tpu.memory_space<vmem>>, vector<1x1x256xf32>,
    %172 = arith.truncf %167 : vector<1x256xf32> to vector<1x256xbf16>
    %c0_65 = arith.constant 0 : index
    %c0_66 = arith.constant 0 : index
    %173 = vector.load %arg9[%c0_65, %c0_66] : memref<256x256xbf16, #tpu.memory_space<vmem>>, vector<256x256xbf16>
    %cst_67 = arith.constant dense<0.000000e+00> : vector<1x256xf32>
    %174 = tpu.matmul %172, %173, %cst_67 {dimension_numbers = #tpu.dot_dimension_numbers<[1], [0], [0], [1], [0, 0, 1, 1], [], []>} : vector<1x256xbf16>, vector<256x256xbf16>, vector<1x256xf32> -> vector<1x256xf32>
    %175 = arith.addf %174, %4 : vector<1x256xf32>
    %cst_68 = arith.constant dense<0xFF800000> : vector<1xf32>
    %176 = vector.multi_reduction <maximumf>, %175, %cst_68 [1] : vector<1x256xf32> to vector<1xf32>
    %177 = vector.shape_cast %176 : vector<1xf32> to vector<1x1xf32>
    %178 = vector.broadcast %177 : vector<1x1xf32> to vector<1x256xf32>
    %179 = arith.subf %175, %178 : vector<1x256xf32>
    %180 = math.exp %179 : vector<1x256xf32>
    %cst_69 = arith.constant dense<0.000000e+00> : vector<1xf32>
    %181 = vector.multi_reduction <add>, %180, %cst_69 [1] : vector<1x256xf32> to vector<1xf32>
    %182 = vector.shape_cast %181 : vector<1xf32> to vector<1x1xf32>
    %183 = math.log %182 : vector<1x1xf32>
    %184 = vector.broadcast %183 : vector<1x1xf32> to vector<1x256xf32>
    %185 = arith.subf %179, %184 : vector<1x256xf32>
    %186 = arith.index_cast %c1_i32 : i32 to index
    %c0_70 = arith.constant 0 : index
    %c0_71 = arith.constant 0 : index
    %187 = vector.load %arg11[%186, %c0_70, %c0_71] : memref<4x1x256xf32, #tpu.memory_space<vmem>>, vector<1x1x256xf32>
    %188 = vector.shape_cast %187 : vector<1x1x256xf32> to vector<1x256xf32>
    %189 = vector.shape_cast %185 : vector<1x256xf32> to vector<1x1x256xf32>
    tpu.vector_store %arg11[%186, %c0_70, %c0_71], %189 {strides = array<i32>} : memref<4x1x256xf32, #tpu.memory_space<vmem>>, vector<1x1x256xf32>,
    %c2_i32 = arith.constant 2 : i32
    %190 = arith.truncf %167 : vector<1x256xf32> to vector<1x256xbf16>
    %191 = arith.index_cast %c2_i32 : i32 to index
    %192 = memref.load %arg1[%191] : memref<4xi32, #tpu.memory_space<smem>>
    %193 = arith.index_cast %192 : i32 to index
    %c0_72 = arith.constant 0 : index
    %194 = vector.load %arg2[%193, %c0_72] : memref<256x256xf32, #tpu.memory_space<vmem>>, vector<1x256xf32>
    %195 = arith.truncf %194 : vector<1x256xf32> to vector<1x256xbf16>
    %c0_73 = arith.constant 0 : index
    %c0_74 = arith.constant 0 : index
    %196 = vector.load %arg5[%c0_73, %c0_74] : memref<256x384xbf16, #tpu.memory_space<vmem>>, vector<256x384xbf16>
    %cst_75 = arith.constant dense<0.000000e+00> : vector<1x384xf32>
    %197 = tpu.matmul %195, %196, %cst_75 {dimension_numbers = #tpu.dot_dimension_numbers<[1], [0], [0], [1], [0, 0, 1, 1], [], []>} : vector<1x256xbf16>, vector<256x384xbf16>, vector<1x384xf32> -> vector<1x384xf32>
    %c0_76 = arith.constant 0 : index
    %c0_77 = arith.constant 0 : index
    %198 = vector.load %arg6[%c0_76, %c0_77] : memref<256x896xbf16, #tpu.memory_space<vmem>>, vector<256x896xbf16>
    %cst_78 = arith.constant dense<0.000000e+00> : vector<1x896xf32>
    %199 = tpu.matmul %190, %198, %cst_78 {dimension_numbers = #tpu.dot_dimension_numbers<[1], [0], [0], [1], [0, 0, 1, 1], [], []>} : vector<1x256xbf16>, vector<256x896xbf16>, vector<1x896xf32> -> vector<1x896xf32>
    %200 = vector.extract_strided_slice %197 {offsets = [0, 0], sizes = [1, 128], strides = [1, 1]} : vector<1x384xf32> to vector<1x128xf32>
    %201 = vector.extract_strided_slice %199 {offsets = [0, 0], sizes = [1, 128], strides = [1, 1]} : vector<1x896xf32> to vector<1x128xf32>
    %202 = arith.addf %200, %201 : vector<1x128xf32>
    %203 = arith.addf %202, %0 : vector<1x128xf32>
    %cst_79 = arith.constant dense<0xFF800000> : vector<1xf32>
    %204 = vector.multi_reduction <maximumf>, %203, %cst_79 [1] : vector<1x128xf32> to vector<1xf32>
    %205 = vector.shape_cast %204 : vector<1xf32> to vector<1x1xf32>
    %206 = vector.broadcast %205 : vector<1x1xf32> to vector<1x128xf32>
    %207 = arith.subf %203, %206 : vector<1x128xf32>
    %208 = math.exp %207 : vector<1x128xf32>
    %cst_80 = arith.constant dense<0.000000e+00> : vector<1xf32>
    %209 = vector.multi_reduction <add>, %208, %cst_80 [1] : vector<1x128xf32> to vector<1xf32>
    %210 = vector.shape_cast %209 : vector<1xf32> to vector<1x1xf32>
    %211 = vector.broadcast %210 : vector<1x1xf32> to vector<1x128xf32>
    %212 = arith.divf %208, %211 : vector<1x128xf32>
    %213 = arith.index_cast %c2_i32 : i32 to index
    %c0_81 = arith.constant 0 : index
    %c0_82 = arith.constant 0 : index
    %214 = vector.load %arg13[%213, %c0_81, %c0_82] : memref<4x1x128xf32, #tpu.memory_space<vmem>>, vector<1x1x128xf32>
    %215 = vector.shape_cast %214 : vector<1x1x128xf32> to vector<1x128xf32>
    %216 = vector.shape_cast %212 : vector<1x128xf32> to vector<1x1x128xf32>
    tpu.vector_store %arg13[%213, %c0_81, %c0_82], %216 {strides = array<i32>} : memref<4x1x128xf32, #tpu.memory_space<vmem>>, vector<1x1x128xf32>,
    %217 = arith.truncf %212 : vector<1x128xf32> to vector<1x128xbf16>
    %c0_83 = arith.constant 0 : index
    %c0_84 = arith.constant 0 : index
    %218 = vector.load %arg4[%c0_83, %c0_84] : memref<128x256xbf16, #tpu.memory_space<vmem>>, vector<128x256xbf16>
    %cst_85 = arith.constant dense<0.000000e+00> : vector<1x256xf32>
    %219 = tpu.matmul %217, %218, %cst_85 {dimension_numbers = #tpu.dot_dimension_numbers<[1], [0], [0], [1], [0, 0, 1, 1], [], []>} : vector<1x128xbf16>, vector<128x256xbf16>, vector<1x256xf32> -> vector<1x256xf32>
    %220 = vector.extract_strided_slice %197 {offsets = [0, 128], sizes = [1, 256], strides = [1, 1]} : vector<1x384xf32> to vector<1x256xf32>
    %221 = arith.truncf %219 : vector<1x256xf32> to vector<1x256xbf16>
    %c0_86 = arith.constant 0 : index
    %c0_87 = arith.constant 0 : index
    %222 = vector.load %arg7[%c0_86, %c0_87] : memref<256x256xbf16, #tpu.memory_space<vmem>>, vector<256x256xbf16>
    %cst_88 = arith.constant dense<0.000000e+00> : vector<1x256xf32>
    %223 = tpu.matmul %221, %222, %cst_88 {dimension_numbers = #tpu.dot_dimension_numbers<[1], [0], [0], [1], [0, 0, 1, 1], [], []>} : vector<1x256xbf16>, vector<256x256xbf16>, vector<1x256xf32> -> vector<1x256xf32>
    %224 = arith.addf %220, %223 : vector<1x256xf32>
    %225 = arith.addf %224, %1 : vector<1x256xf32>
    %cst_89 = arith.constant 0.000000e+00 : f32
    %226 = vector.broadcast %cst_89 : f32 to vector<1x256xf32>
    %227 = arith.maximumf %225, %226 : vector<1x256xf32>
    %228 = arith.truncf %227 : vector<1x256xf32> to vector<1x256xbf16>
    %c0_90 = arith.constant 0 : index
    %c0_91 = arith.constant 0 : index
    %229 = vector.load %arg8[%c0_90, %c0_91] : memref<256x768xbf16, #tpu.memory_space<vmem>>, vector<256x768xbf16>
    %cst_92 = arith.constant dense<0.000000e+00> : vector<1x768xf32>
    %230 = tpu.matmul %228, %229, %cst_92 {dimension_numbers = #tpu.dot_dimension_numbers<[1], [0], [0], [1], [0, 0, 1, 1], [], []>} : vector<1x256xbf16>, vector<256x768xbf16>, vector<1x768xf32> -> vector<1x768xf32>
    %231 = arith.addf %230, %2 : vector<1x768xf32>
    %232 = vector.extract_strided_slice %199 {offsets = [0, 128], sizes = [1, 768], strides = [1, 1]} : vector<1x896xf32> to vector<1x768xf32>
    %233 = vector.extract_strided_slice %231 {offsets = [0, 0], sizes = [1, 256], strides = [1, 1]} : vector<1x768xf32> to vector<1x256xf32>
    %234 = vector.extract_strided_slice %232 {offsets = [0, 0], sizes = [1, 256], strides = [1, 1]} : vector<1x768xf32> to vector<1x256xf32>
    %235 = arith.addf %233, %234 : vector<1x256xf32>
    %236 = arith.negf %235 : vector<1x256xf32>
    %237 = math.exp %236 : vector<1x256xf32>
    %cst_93 = arith.constant 1.000000e+00 : f32
    %238 = vector.broadcast %cst_93 : f32 to vector<1x256xf32>
    %239 = arith.addf %238, %237 : vector<1x256xf32>
    %240 = arith.divf %238, %239 : vector<1x256xf32>
    %241 = vector.extract_strided_slice %231 {offsets = [0, 256], sizes = [1, 256], strides = [1, 1]} : vector<1x768xf32> to vector<1x256xf32>
    %242 = vector.extract_strided_slice %232 {offsets = [0, 256], sizes = [1, 256], strides = [1, 1]} : vector<1x768xf32> to vector<1x256xf32>
    %243 = arith.addf %241, %242 : vector<1x256xf32>
    %244 = arith.negf %243 : vector<1x256xf32>
    %245 = math.exp %244 : vector<1x256xf32>
    %cst_94 = arith.constant 1.000000e+00 : f32
    %246 = vector.broadcast %cst_94 : f32 to vector<1x256xf32>
    %247 = arith.addf %246, %245 : vector<1x256xf32>
    %248 = arith.divf %246, %247 : vector<1x256xf32>
    %249 = vector.extract_strided_slice %231 {offsets = [0, 512], sizes = [1, 256], strides = [1, 1]} : vector<1x768xf32> to vector<1x256xf32>
    %250 = vector.extract_strided_slice %232 {offsets = [0, 512], sizes = [1, 256], strides = [1, 1]} : vector<1x768xf32> to vector<1x256xf32>
    %251 = arith.addf %250, %3 : vector<1x256xf32>
    %252 = arith.mulf %240, %251 : vector<1x256xf32>
    %253 = arith.addf %249, %252 : vector<1x256xf32>
    %254 = math.tanh %253 : vector<1x256xf32>
    %cst_95 = arith.constant 1.000000e+00 : f32
    %255 = vector.broadcast %cst_95 : f32 to vector<1x256xf32>
    %256 = arith.subf %255, %248 : vector<1x256xf32>
    %257 = arith.mulf %256, %254 : vector<1x256xf32>
    %258 = arith.mulf %248, %167 : vector<1x256xf32>
    %259 = arith.addf %257, %258 : vector<1x256xf32>
    %260 = arith.index_cast %c2_i32 : i32 to index
    %c0_96 = arith.constant 0 : index
    %c0_97 = arith.constant 0 : index
    %261 = vector.load %arg12[%260, %c0_96, %c0_97] : memref<4x1x256xf32, #tpu.memory_space<vmem>>, vector<1x1x256xf32>
    %262 = vector.shape_cast %261 : vector<1x1x256xf32> to vector<1x256xf32>
    %263 = vector.shape_cast %259 : vector<1x256xf32> to vector<1x1x256xf32>
    tpu.vector_store %arg12[%260, %c0_96, %c0_97], %263 {strides = array<i32>} : memref<4x1x256xf32, #tpu.memory_space<vmem>>, vector<1x1x256xf32>,
    %264 = arith.truncf %259 : vector<1x256xf32> to vector<1x256xbf16>
    %c0_98 = arith.constant 0 : index
    %c0_99 = arith.constant 0 : index
    %265 = vector.load %arg9[%c0_98, %c0_99] : memref<256x256xbf16, #tpu.memory_space<vmem>>, vector<256x256xbf16>
    %cst_100 = arith.constant dense<0.000000e+00> : vector<1x256xf32>
    %266 = tpu.matmul %264, %265, %cst_100 {dimension_numbers = #tpu.dot_dimension_numbers<[1], [0], [0], [1], [0, 0, 1, 1], [], []>} : vector<1x256xbf16>, vector<256x256xbf16>, vector<1x256xf32> -> vector<1x256xf32>
    %267 = arith.addf %266, %4 : vector<1x256xf32>
    %cst_101 = arith.constant dense<0xFF800000> : vector<1xf32>
    %268 = vector.multi_reduction <maximumf>, %267, %cst_101 [1] : vector<1x256xf32> to vector<1xf32>
    %269 = vector.shape_cast %268 : vector<1xf32> to vector<1x1xf32>
    %270 = vector.broadcast %269 : vector<1x1xf32> to vector<1x256xf32>
    %271 = arith.subf %267, %270 : vector<1x256xf32>
    %272 = math.exp %271 : vector<1x256xf32>
    %cst_102 = arith.constant dense<0.000000e+00> : vector<1xf32>
    %273 = vector.multi_reduction <add>, %272, %cst_102 [1] : vector<1x256xf32> to vector<1xf32>
    %274 = vector.shape_cast %273 : vector<1xf32> to vector<1x1xf32>
    %275 = math.log %274 : vector<1x1xf32>
    %276 = vector.broadcast %275 : vector<1x1xf32> to vector<1x256xf32>
    %277 = arith.subf %271, %276 : vector<1x256xf32>
    %278 = arith.index_cast %c2_i32 : i32 to index
    %c0_103 = arith.constant 0 : index
    %c0_104 = arith.constant 0 : index
    %279 = vector.load %arg11[%278, %c0_103, %c0_104] : memref<4x1x256xf32, #tpu.memory_space<vmem>>, vector<1x1x256xf32>
    %280 = vector.shape_cast %279 : vector<1x1x256xf32> to vector<1x256xf32>
    %281 = vector.shape_cast %277 : vector<1x256xf32> to vector<1x1x256xf32>
    tpu.vector_store %arg11[%278, %c0_103, %c0_104], %281 {strides = array<i32>} : memref<4x1x256xf32, #tpu.memory_space<vmem>>, vector<1x1x256xf32>,
    %c3_i32 = arith.constant 3 : i32
    %282 = arith.truncf %259 : vector<1x256xf32> to vector<1x256xbf16>
    %283 = arith.index_cast %c3_i32 : i32 to index
    %284 = memref.load %arg1[%283] : memref<4xi32, #tpu.memory_space<smem>>
    %285 = arith.index_cast %284 : i32 to index
    %c0_105 = arith.constant 0 : index
    %286 = vector.load %arg2[%285, %c0_105] : memref<256x256xf32, #tpu.memory_space<vmem>>, vector<1x256xf32>
    %287 = arith.truncf %286 : vector<1x256xf32> to vector<1x256xbf16>
    %c0_106 = arith.constant 0 : index
    %c0_107 = arith.constant 0 : index
    %288 = vector.load %arg5[%c0_106, %c0_107] : memref<256x384xbf16, #tpu.memory_space<vmem>>, vector<256x384xbf16>
    %cst_108 = arith.constant dense<0.000000e+00> : vector<1x384xf32>
    %289 = tpu.matmul %287, %288, %cst_108 {dimension_numbers = #tpu.dot_dimension_numbers<[1], [0], [0], [1], [0, 0, 1, 1], [], []>} : vector<1x256xbf16>, vector<256x384xbf16>, vector<1x384xf32> -> vector<1x384xf32>
    %c0_109 = arith.constant 0 : index
    %c0_110 = arith.constant 0 : index
    %290 = vector.load %arg6[%c0_109, %c0_110] : memref<256x896xbf16, #tpu.memory_space<vmem>>, vector<256x896xbf16>
    %cst_111 = arith.constant dense<0.000000e+00> : vector<1x896xf32>
    %291 = tpu.matmul %282, %290, %cst_111 {dimension_numbers = #tpu.dot_dimension_numbers<[1], [0], [0], [1], [0, 0, 1, 1], [], []>} : vector<1x256xbf16>, vector<256x896xbf16>, vector<1x896xf32> -> vector<1x896xf32>
    %292 = vector.extract_strided_slice %289 {offsets = [0, 0], sizes = [1, 128], strides = [1, 1]} : vector<1x384xf32> to vector<1x128xf32>
    %293 = vector.extract_strided_slice %291 {offsets = [0, 0], sizes = [1, 128], strides = [1, 1]} : vector<1x896xf32> to vector<1x128xf32>
    %294 = arith.addf %292, %293 : vector<1x128xf32>
    %295 = arith.addf %294, %0 : vector<1x128xf32>
    %cst_112 = arith.constant dense<0xFF800000> : vector<1xf32>
    %296 = vector.multi_reduction <maximumf>, %295, %cst_112 [1] : vector<1x128xf32> to vector<1xf32>
    %297 = vector.shape_cast %296 : vector<1xf32> to vector<1x1xf32>
    %298 = vector.broadcast %297 : vector<1x1xf32> to vector<1x128xf32>
    %299 = arith.subf %295, %298 : vector<1x128xf32>
    %300 = math.exp %299 : vector<1x128xf32>
    %cst_113 = arith.constant dense<0.000000e+00> : vector<1xf32>
    %301 = vector.multi_reduction <add>, %300, %cst_113 [1] : vector<1x128xf32> to vector<1xf32>
    %302 = vector.shape_cast %301 : vector<1xf32> to vector<1x1xf32>
    %303 = vector.broadcast %302 : vector<1x1xf32> to vector<1x128xf32>
    %304 = arith.divf %300, %303 : vector<1x128xf32>
    %305 = arith.index_cast %c3_i32 : i32 to index
    %c0_114 = arith.constant 0 : index
    %c0_115 = arith.constant 0 : index
    %306 = vector.load %arg13[%305, %c0_114, %c0_115] : memref<4x1x128xf32, #tpu.memory_space<vmem>>, vector<1x1x128xf32>
    %307 = vector.shape_cast %306 : vector<1x1x128xf32> to vector<1x128xf32>
    %308 = vector.shape_cast %304 : vector<1x128xf32> to vector<1x1x128xf32>
    tpu.vector_store %arg13[%305, %c0_114, %c0_115], %308 {strides = array<i32>} : memref<4x1x128xf32, #tpu.memory_space<vmem>>, vector<1x1x128xf32>,
    %309 = arith.truncf %304 : vector<1x128xf32> to vector<1x128xbf16>
    %c0_116 = arith.constant 0 : index
    %c0_117 = arith.constant 0 : index
    %310 = vector.load %arg4[%c0_116, %c0_117] : memref<128x256xbf16, #tpu.memory_space<vmem>>, vector<128x256xbf16>
    %cst_118 = arith.constant dense<0.000000e+00> : vector<1x256xf32>
    %311 = tpu.matmul %309, %310, %cst_118 {dimension_numbers = #tpu.dot_dimension_numbers<[1], [0], [0], [1], [0, 0, 1, 1], [], []>} : vector<1x128xbf16>, vector<128x256xbf16>, vector<1x256xf32> -> vector<1x256xf32>
    %312 = vector.extract_strided_slice %289 {offsets = [0, 128], sizes = [1, 256], strides = [1, 1]} : vector<1x384xf32> to vector<1x256xf32>
    %313 = arith.truncf %311 : vector<1x256xf32> to vector<1x256xbf16>
    %c0_119 = arith.constant 0 : index
    %c0_120 = arith.constant 0 : index
    %314 = vector.load %arg7[%c0_119, %c0_120] : memref<256x256xbf16, #tpu.memory_space<vmem>>, vector<256x256xbf16>
    %cst_121 = arith.constant dense<0.000000e+00> : vector<1x256xf32>
    %315 = tpu.matmul %313, %314, %cst_121 {dimension_numbers = #tpu.dot_dimension_numbers<[1], [0], [0], [1], [0, 0, 1, 1], [], []>} : vector<1x256xbf16>, vector<256x256xbf16>, vector<1x256xf32> -> vector<1x256xf32>
    %316 = arith.addf %312, %315 : vector<1x256xf32>
    %317 = arith.addf %316, %1 : vector<1x256xf32>
    %cst_122 = arith.constant 0.000000e+00 : f32
    %318 = vector.broadcast %cst_122 : f32 to vector<1x256xf32>
    %319 = arith.maximumf %317, %318 : vector<1x256xf32>
    %320 = arith.truncf %319 : vector<1x256xf32> to vector<1x256xbf16>
    %c0_123 = arith.constant 0 : index
    %c0_124 = arith.constant 0 : index
    %321 = vector.load %arg8[%c0_123, %c0_124] : memref<256x768xbf16, #tpu.memory_space<vmem>>, vector<256x768xbf16>
    %cst_125 = arith.constant dense<0.000000e+00> : vector<1x768xf32>
    %322 = tpu.matmul %320, %321, %cst_125 {dimension_numbers = #tpu.dot_dimension_numbers<[1], [0], [0], [1], [0, 0, 1, 1], [], []>} : vector<1x256xbf16>, vector<256x768xbf16>, vector<1x768xf32> -> vector<1x768xf32>
    %323 = arith.addf %322, %2 : vector<1x768xf32>
    %324 = vector.extract_strided_slice %291 {offsets = [0, 128], sizes = [1, 768], strides = [1, 1]} : vector<1x896xf32> to vector<1x768xf32>
    %325 = vector.extract_strided_slice %323 {offsets = [0, 0], sizes = [1, 256], strides = [1, 1]} : vector<1x768xf32> to vector<1x256xf32>
    %326 = vector.extract_strided_slice %324 {offsets = [0, 0], sizes = [1, 256], strides = [1, 1]} : vector<1x768xf32> to vector<1x256xf32>
    %327 = arith.addf %325, %326 : vector<1x256xf32>
    %328 = arith.negf %327 : vector<1x256xf32>
    %329 = math.exp %328 : vector<1x256xf32>
    %cst_126 = arith.constant 1.000000e+00 : f32
    %330 = vector.broadcast %cst_126 : f32 to vector<1x256xf32>
    %331 = arith.addf %330, %329 : vector<1x256xf32>
    %332 = arith.divf %330, %331 : vector<1x256xf32>
    %333 = vector.extract_strided_slice %323 {offsets = [0, 256], sizes = [1, 256], strides = [1, 1]} : vector<1x768xf32> to vector<1x256xf32>
    %334 = vector.extract_strided_slice %324 {offsets = [0, 256], sizes = [1, 256], strides = [1, 1]} : vector<1x768xf32> to vector<1x256xf32>
    %335 = arith.addf %333, %334 : vector<1x256xf32>
    %336 = arith.negf %335 : vector<1x256xf32>
    %337 = math.exp %336 : vector<1x256xf32>
    %cst_127 = arith.constant 1.000000e+00 : f32
    %338 = vector.broadcast %cst_127 : f32 to vector<1x256xf32>
    %339 = arith.addf %338, %337 : vector<1x256xf32>
    %340 = arith.divf %338, %339 : vector<1x256xf32>
    %341 = vector.extract_strided_slice %323 {offsets = [0, 512], sizes = [1, 256], strides = [1, 1]} : vector<1x768xf32> to vector<1x256xf32>
    %342 = vector.extract_strided_slice %324 {offsets = [0, 512], sizes = [1, 256], strides = [1, 1]} : vector<1x768xf32> to vector<1x256xf32>
    %343 = arith.addf %342, %3 : vector<1x256xf32>
    %344 = arith.mulf %332, %343 : vector<1x256xf32>
    %345 = arith.addf %341, %344 : vector<1x256xf32>
    %346 = math.tanh %345 : vector<1x256xf32>
    %cst_128 = arith.constant 1.000000e+00 : f32
    %347 = vector.broadcast %cst_128 : f32 to vector<1x256xf32>
    %348 = arith.subf %347, %340 : vector<1x256xf32>
    %349 = arith.mulf %348, %346 : vector<1x256xf32>
    %350 = arith.mulf %340, %259 : vector<1x256xf32>
    %351 = arith.addf %349, %350 : vector<1x256xf32>
    %352 = arith.index_cast %c3_i32 : i32 to index
    %c0_129 = arith.constant 0 : index
    %c0_130 = arith.constant 0 : index
    %353 = vector.load %arg12[%352, %c0_129, %c0_130] : memref<4x1x256xf32, #tpu.memory_space<vmem>>, vector<1x1x256xf32>
    %354 = vector.shape_cast %353 : vector<1x1x256xf32> to vector<1x256xf32>
    %355 = vector.shape_cast %351 : vector<1x256xf32> to vector<1x1x256xf32>
    tpu.vector_store %arg12[%352, %c0_129, %c0_130], %355 {strides = array<i32>} : memref<4x1x256xf32, #tpu.memory_space<vmem>>, vector<1x1x256xf32>,
    %356 = arith.truncf %351 : vector<1x256xf32> to vector<1x256xbf16>
    %c0_131 = arith.constant 0 : index
    %c0_132 = arith.constant 0 : index
    %357 = vector.load %arg9[%c0_131, %c0_132] : memref<256x256xbf16, #tpu.memory_space<vmem>>, vector<256x256xbf16>
    %cst_133 = arith.constant dense<0.000000e+00> : vector<1x256xf32>
    %358 = tpu.matmul %356, %357, %cst_133 {dimension_numbers = #tpu.dot_dimension_numbers<[1], [0], [0], [1], [0, 0, 1, 1], [], []>} : vector<1x256xbf16>, vector<256x256xbf16>, vector<1x256xf32> -> vector<1x256xf32>
    %359 = arith.addf %358, %4 : vector<1x256xf32>
    %cst_134 = arith.constant dense<0xFF800000> : vector<1xf32>
    %360 = vector.multi_reduction <maximumf>, %359, %cst_134 [1] : vector<1x256xf32> to vector<1xf32>
    %361 = vector.shape_cast %360 : vector<1xf32> to vector<1x1xf32>
    %362 = vector.broadcast %361 : vector<1x1xf32> to vector<1x256xf32>
    %363 = arith.subf %359, %362 : vector<1x256xf32>
    %364 = math.exp %363 : vector<1x256xf32>
    %cst_135 = arith.constant dense<0.000000e+00> : vector<1xf32>
    %365 = vector.multi_reduction <add>, %364, %cst_135 [1] : vector<1x256xf32> to vector<1xf32>
    %366 = vector.shape_cast %365 : vector<1xf32> to vector<1x1xf32>
    %367 = math.log %366 : vector<1x1xf32>
    %368 = vector.broadcast %367 : vector<1x1xf32> to vector<1x256xf32>
    %369 = arith.subf %363, %368 : vector<1x256xf32>
    %370 = arith.index_cast %c3_i32 : i32 to index
    %c0_136 = arith.constant 0 : index
    %c0_137 = arith.constant 0 : index
    %371 = vector.load %arg11[%370, %c0_136, %c0_137] : memref<4x1x256xf32, #tpu.memory_space<vmem>>, vector<1x1x256xf32>
    %372 = vector.shape_cast %371 : vector<1x1x256xf32> to vector<1x256xf32>
    %373 = vector.shape_cast %369 : vector<1x256xf32> to vector<1x1x256xf32>
    tpu.vector_store %arg11[%370, %c0_136, %c0_137], %373 {strides = array<i32>} : memref<4x1x256xf32, #tpu.memory_space<vmem>>, vector<1x1x256xf32>,
    %c4_i32 = arith.constant 4 : i32
    return
  }
  func.func @transform_0(%arg0: i32, %arg1: memref<4xi32, #tpu.memory_space<smem>>) -> (i32, i32) {
    %c0_i32 = arith.constant 0 : i32
    %c0_i32_0 = arith.constant 0 : i32
    %c0_i32_1 = arith.constant 0 : i32
    return %c0_i32, %c0_i32_0 : i32, i32
  }
  func.func @transform_1(%arg0: i32, %arg1: memref<4xi32, #tpu.memory_space<smem>>) -> (i32, i32) {
    %c0_i32 = arith.constant 0 : i32
    %c0_i32_0 = arith.constant 0 : i32
    %c0_i32_1 = arith.constant 0 : i32
    return %c0_i32, %c0_i32_0 : i32, i32
  }
  func.func @transform_2(%arg0: i32, %arg1: memref<4xi32, #tpu.memory_space<smem>>) -> (i32, i32) {
    %c0_i32 = arith.constant 0 : i32
    %c0_i32_0 = arith.constant 0 : i32
    %c0_i32_1 = arith.constant 0 : i32
    return %c0_i32, %c0_i32_0 : i32, i32
  }
  func.func @transform_3(%arg0: i32, %arg1: memref<4xi32, #tpu.memory_space<smem>>) -> (i32, i32) {
    %c0_i32 = arith.constant 0 : i32
    %c0_i32_0 = arith.constant 0 : i32
    %c0_i32_1 = arith.constant 0 : i32
    return %c0_i32, %c0_i32_0 : i32, i32
  }
  func.func @transform_4(%arg0: i32, %arg1: memref<4xi32, #tpu.memory_space<smem>>) -> (i32, i32) {
    %c0_i32 = arith.constant 0 : i32
    %c0_i32_0 = arith.constant 0 : i32
    %c0_i32_1 = arith.constant 0 : i32
    return %c0_i32, %c0_i32_0 : i32, i32
  }
  func.func @transform_5(%arg0: i32, %arg1: memref<4xi32, #tpu.memory_space<smem>>) -> (i32, i32) {
    %c0_i32 = arith.constant 0 : i32
    %c0_i32_0 = arith.constant 0 : i32
    %c0_i32_1 = arith.constant 0 : i32
    return %c0_i32, %c0_i32_0 : i32, i32
  }
  func.func @transform_6(%arg0: i32, %arg1: memref<4xi32, #tpu.memory_space<smem>>) -> (i32, i32) {
    %c0_i32 = arith.constant 0 : i32
    %c0_i32_0 = arith.constant 0 : i32
    %c0_i32_1 = arith.constant 0 : i32
    return %c0_i32, %c0_i32_0 : i32, i32
  }
  func.func @transform_7(%arg0: i32, %arg1: memref<4xi32, #tpu.memory_space<smem>>) -> (i32, i32) {
    %c0_i32 = arith.constant 0 : i32
    %c0_i32_0 = arith.constant 0 : i32
    %c0_i32_1 = arith.constant 0 : i32
    return %c0_i32, %c0_i32_0 : i32, i32
  }
  func.func @transform_8(%arg0: i32, %arg1: memref<4xi32, #tpu.memory_space<smem>>) -> (i32, i32) {
    %c0_i32 = arith.constant 0 : i32
    %c0_i32_0 = arith.constant 0 : i32
    %c0_i32_1 = arith.constant 0 : i32
    return %c0_i32, %c0_i32_0 : i32, i32
  }
  func.func @transform_9(%arg0: i32, %arg1: memref<4xi32, #tpu.memory_space<smem>>) -> (i32, i32, i32) {
    %c0_i32 = arith.constant 0 : i32
    %c0_i32_0 = arith.constant 0 : i32
    %c0_i32_1 = arith.constant 0 : i32
    %c0_i32_2 = arith.constant 0 : i32
    return %c0_i32, %c0_i32_0, %c0_i32_1 : i32, i32, i32
  }
  func.func @transform_10(%arg0: i32, %arg1: memref<4xi32, #tpu.memory_space<smem>>) -> (i32, i32, i32) {
    %c0_i32 = arith.constant 0 : i32
    %c0_i32_0 = arith.constant 0 : i32
    %c0_i32_1 = arith.constant 0 : i32
    %c0_i32_2 = arith.constant 0 : i32
    return %c0_i32, %c0_i32_0, %c0_i32_1 : i32, i32, i32
  }
  func.func @transform_11(%arg0: i32, %arg1: memref<4xi32, #tpu.memory_space<smem>>) -> (i32, i32, i32) {
    %c0_i32 = arith.constant 0 : i32
    %c0_i32_0 = arith.constant 0 : i32
    %c0_i32_1 = arith.constant 0 : i32
    %c0_i32_2 = arith.constant 0 : i32
    return %c0_i32, %c0_i32_0, %c0_i32_1 : i32, i32, i32
  }
}

</mosaic_0001>

<llo_original>
// kernel: tpu_custom_call.1
$region0: #{tpu_custom_call.1}
  #allocation0 [shape = 'u32[]', space=smem, size = 0x4, offset = 0x4, fixed_abs, tag = 'smem constant byte address 0x4 - core index']
  #allocation1 [shape = 'u32[144,128]{1,0:T(1,128)}', space=vmem, size = 0x12000, scoped, tag = 'internal scratch']
  #allocation2 [shape = 's32[1]{0}', space=sflag, size = 0x4, scoped, tag = 'scoped memory for tpu_custom_call.1']
  #allocation3 [shape = 'u8[512]{0}', space=smem, size = 0x200, scoped, tag = 'prefetched SMEM operand 0']
  %s0 = inlined_call_operand.hbm [shape: s32[4], index: 0, kind: input, shape index: {}]
  %s1 = inlined_call_operand.hbm [shape: f32[256,256], index: 1, kind: input, shape index: {}]
  %s2 = inlined_call_operand.vmem [shape: f32[1,256], index: 2, kind: input, shape index: {}]
  %s3 = inlined_call_operand.hbm [shape: bf16[128,256], index: 3, kind: input, shape index: {}]
  %s4 = inlined_call_operand.hbm [shape: bf16[256,384], index: 4, kind: input, shape index: {}]
  %s5 = inlined_call_operand.hbm [shape: bf16[256,896], index: 5, kind: input, shape index: {}]
  %s6 = inlined_call_operand.hbm [shape: bf16[256,256], index: 6, kind: input, shape index: {}]
  %s7 = inlined_call_operand.hbm [shape: bf16[256,768], index: 7, kind: input, shape index: {}]
  %s8 = inlined_call_operand.hbm [shape: bf16[256,256], index: 8, kind: input, shape index: {}]
  %s9 = inlined_call_operand.vmem [shape: f32[1,1664], index: 9, kind: input, shape index: {}]
  %s10 = inlined_call_operand.hbm [shape: f32[4,1,256], index: 10, kind: output, shape index: {0}]
  %s11 = inlined_call_operand.hbm [shape: f32[4,1,256], index: 11, kind: output, shape index: {1}]
  %s12 = inlined_call_operand.hbm [shape: f32[4,1,128], index: 12, kind: output, shape index: {2}]
  %13 = xla_tuple %s10, %s11, %s12
  %s14 = sld [smem:[#allocation0]]
  $region90: #{tpu_custom_call.1} parent=0
    _
  %s16 = ssub.s32 1, %s14
  %s17 = scalar_select 0, %s16, %s14
  %19 = dma.hbm_to_smem %s0, 16, [#allocation3], [#allocation2]
  %20 = dma.done [#allocation2], 16
  %21 = sfence
  $region1: #{tpu_custom_call.1} parent=0
    #allocation4 [shape = 'u8[262144]{0}', space=vmem, size = 0x40000, scoped, tag = 'input window, operand 1, single buffered']
    #allocation5 [shape = 's32[1]{0}', space=sflag, size = 0x4, scoped, tag = 'scoped memory for tpu_custom_call.1']
    #allocation6 [shape = 's32[1]{0}', space=sflag, size = 0x4, scoped, tag = 'scoped memory for tpu_custom_call.1']
    #allocation7 [shape = 'u8[65536]{0}', space=vmem, size = 0x10000, scoped, tag = 'input window, operand 3, single buffered']
    #allocation8 [shape = 's32[1]{0}', space=sflag, size = 0x4, scoped, tag = 'scoped memory for tpu_custom_call.1']
    #allocation9 [shape = 'u8[196608]{0}', space=vmem, size = 0x30000, scoped, tag = 'input window, operand 4, single buffered']
    #allocation10 [shape = 'u8[458752]{0}', space=vmem, size = 0x70000, scoped, tag = 'input window, operand 5, single buffered']
    #allocation11 [shape = 's32[1]{0}', space=sflag, size = 0x4, scoped, tag = 'scoped memory for tpu_custom_call.1']
    #allocation12 [shape = 'u8[131072]{0}', space=vmem, size = 0x20000, scoped, tag = 'input window, operand 6, single buffered']
    #allocation13 [shape = 'u8[393216]{0}', space=vmem, size = 0x60000, scoped, tag = 'input window, operand 7, single buffered']
    #allocation14 [shape = 's32[1]{0}', space=sflag, size = 0x4, scoped, tag = 'scoped memory for tpu_custom_call.1']
    #allocation15 [shape = 'u8[131072]{0}', space=vmem, size = 0x20000, scoped, tag = 'input window, operand 8, single buffered']
    #allocation16 [shape = 'u8[4096]{0}', space=vmem, size = 0x1000, scoped, tag = 'output window, operand 0, single buffered']
    #allocation17 [shape = 'u8[4096]{0}', space=vmem, size = 0x1000, scoped, tag = 'output window, operand 1, single buffered']
    #allocation18 [shape = 's32[1]{0}', space=sflag, size = 0x4, scoped, tag = 'scoped memory for tpu_custom_call.1']
    #allocation19 [shape = 'u8[2048]{0}', space=vmem, size = 0x800, scoped, tag = 'output window, operand 2, single buffered']
    %22 = vsyncpa [#allocation5], 0
    %23 = vsyncpa [#allocation8], 0
    %24 = vsyncpa [#allocation11], 0
    %25 = vsyncpa [#allocation14], 0
    %26 = vsyncpa [#allocation6], 0
    %27 = vsyncpa [#allocation18], 0
    // Predicated region
    $region2: #{tpu_custom_call.1} parent=1 // pred_check
      _
    $region3: #{tpu_custom_call.1} parent=1 // pred_check_branch
      %29 = sbr.rel (0) target = $region5
    $region4: #{tpu_custom_call.1} parent=1 // pred_region
      %s31 = ssub.s32 8192, 8192
      %32 = vsyncadd [#allocation5], %s31
      %s33 = sshll.u32 [#allocation4], 4
      %s34 = int_to_ptr.vmem [resolvable:$true] %s33
      %39 = dma.hbm_to_vmem [thread:$0]  %s1, 8192, %s34, [#allocation5], 256, 256, 16
    $region5: #{tpu_custom_call.1} parent=1 // pred_fallthru
      _
    // Predicated region
    $region6: #{tpu_custom_call.1} parent=1 // pred_check
      _
    $region7: #{tpu_custom_call.1} parent=1 // pred_check_branch
      %41 = sbr.rel (0) target = $region9
    $region8: #{tpu_custom_call.1} parent=1 // pred_region
      _
    $region9: #{tpu_custom_call.1} parent=1 // pred_fallthru
      _
    // Predicated region
    $region10: #{tpu_custom_call.1} parent=1 // pred_check
      _
    $region11: #{tpu_custom_call.1} parent=1 // pred_check_branch
      %43 = sbr.rel (0) target = $region13
    $region12: #{tpu_custom_call.1} parent=1 // pred_region
      %s45 = ssub.s32 2048, 2048
      %46 = vsyncadd [#allocation8], %s45
      %s47 = sshll.u32 [#allocation7], 4
      %s48 = int_to_ptr.vmem [resolvable:$true] %s47
      %53 = dma.hbm_to_vmem [thread:$0]  %s3, 2048, %s48, [#allocation8], 128, 128, 8
    $region13: #{tpu_custom_call.1} parent=1 // pred_fallthru
      _
    // Predicated region
    $region14: #{tpu_custom_call.1} parent=1 // pred_check
      _
    $region15: #{tpu_custom_call.1} parent=1 // pred_check_branch
      %55 = sbr.rel (0) target = $region17
    $region16: #{tpu_custom_call.1} parent=1 // pred_region
      %s57 = ssub.s32 6144, 6144
      %58 = vsyncadd [#allocation8], %s57
      %s59 = sshll.u32 [#allocation9], 4
      %s60 = int_to_ptr.vmem [resolvable:$true] %s59
      %65 = dma.hbm_to_vmem [thread:$0]  %s4, 6144, %s60, [#allocation8], 192, 192, 12
    $region17: #{tpu_custom_call.1} parent=1 // pred_fallthru
      _
    // Predicated region
    $region18: #{tpu_custom_call.1} parent=1 // pred_check
      _
    $region19: #{tpu_custom_call.1} parent=1 // pred_check_branch
      %67 = sbr.rel (0) target = $region21
    $region20: #{tpu_custom_call.1} parent=1 // pred_region
      %s69 = ssub.s32 14336, 14336
      %70 = vsyncadd [#allocation11], %s69
      %s71 = sshll.u32 [#allocation10], 4
      %s72 = int_to_ptr.vmem [resolvable:$true] %s71
      %77 = dma.hbm_to_vmem [thread:$0]  %s5, 14336, %s72, [#allocation11], 448, 448, 28
    $region21: #{tpu_custom_call.1} parent=1 // pred_fallthru
      _
    // Predicated region
    $region22: #{tpu_custom_call.1} parent=1 // pred_check
      _
    $region23: #{tpu_custom_call.1} parent=1 // pred_check_branch
      %79 = sbr.rel (0) target = $region25
    $region24: #{tpu_custom_call.1} parent=1 // pred_region
      %s81 = ssub.s32 4096, 4096
      %82 = vsyncadd [#allocation11], %s81
      %s83 = sshll.u32 [#allocation12], 4
      %s84 = int_to_ptr.vmem [resolvable:$true] %s83
      %89 = dma.hbm_to_vmem [thread:$0]  %s6, 4096, %s84, [#allocation11], 128, 128, 8
    $region25: #{tpu_custom_call.1} parent=1 // pred_fallthru
      _
    // Predicated region
    $region26: #{tpu_custom_call.1} parent=1 // pred_check
      _
    $region27: #{tpu_custom_call.1} parent=1 // pred_check_branch
      %91 = sbr.rel (0) target = $region29
    $region28: #{tpu_custom_call.1} parent=1 // pred_region
      %s93 = ssub.s32 12288, 12288
      %94 = vsyncadd [#allocation14], %s93
      %s95 = sshll.u32 [#allocation13], 4
      %s96 = int_to_ptr.vmem [resolvable:$true] %s95
      %101 = dma.hbm_to_vmem [thread:$0]  %s7, 12288, %s96, [#allocation14], 384, 384, 24
    $region29: #{tpu_custom_call.1} parent=1 // pred_fallthru
      _
    // Predicated region
    $region30: #{tpu_custom_call.1} parent=1 // pred_check
      _
    $region31: #{tpu_custom_call.1} parent=1 // pred_check_branch
      %103 = sbr.rel (0) target = $region33
    $region32: #{tpu_custom_call.1} parent=1 // pred_region
      %s105 = ssub.s32 4096, 4096
      %106 = vsyncadd [#allocation14], %s105
      %s107 = sshll.u32 [#allocation15], 4
      %s108 = int_to_ptr.vmem [resolvable:$true] %s107
      %113 = dma.hbm_to_vmem [thread:$0]  %s8, 4096, %s108, [#allocation14], 128, 128, 8
    $region33: #{tpu_custom_call.1} parent=1 // pred_fallthru
      _
    // Predicated region
    $region34: #{tpu_custom_call.1} parent=1 // pred_check
      _
    $region35: #{tpu_custom_call.1} parent=1 // pred_check_branch
      %115 = sbr.rel (0) target = $region37
    $region36: #{tpu_custom_call.1} parent=1 // pred_region
      _
    $region37: #{tpu_custom_call.1} parent=1 // pred_fallthru
      _
    // Predicated region
    $region38: #{tpu_custom_call.1} parent=1 // pred_check
      _
    $region39: #{tpu_custom_call.1} parent=1 // pred_check_branch
      %117 = sbr.rel (0) target = $region41
    $region40: #{tpu_custom_call.1} parent=1 // pred_region
      %118 = dma.done [#allocation5], 8192
    $region41: #{tpu_custom_call.1} parent=1 // pred_fallthru
      _
    // Predicated region
    $region42: #{tpu_custom_call.1} parent=1 // pred_check
      _
    $region43: #{tpu_custom_call.1} parent=1 // pred_check_branch
      %120 = sbr.rel (0) target = $region45
    $region44: #{tpu_custom_call.1} parent=1 // pred_region
      %121 = dma.done [#allocation8], 2048
    $region45: #{tpu_custom_call.1} parent=1 // pred_fallthru
      _
    // Predicated region
    $region46: #{tpu_custom_call.1} parent=1 // pred_check
      _
    $region47: #{tpu_custom_call.1} parent=1 // pred_check_branch
      %123 = sbr.rel (0) target = $region49
    $region48: #{tpu_custom_call.1} parent=1 // pred_region
      %124 = dma.done [#allocation8], 6144
    $region49: #{tpu_custom_call.1} parent=1 // pred_fallthru
      _
    // Predicated region
    $region50: #{tpu_custom_call.1} parent=1 // pred_check
      _
    $region51: #{tpu_custom_call.1} parent=1 // pred_check_branch
      %126 = sbr.rel (0) target = $region53
    $region52: #{tpu_custom_call.1} parent=1 // pred_region
      %127 = dma.done [#allocation11], 14336
    $region53: #{tpu_custom_call.1} parent=1 // pred_fallthru
      _
    // Predicated region
    $region54: #{tpu_custom_call.1} parent=1 // pred_check
      _
    $region55: #{tpu_custom_call.1} parent=1 // pred_check_branch
      %129 = sbr.rel (0) target = $region57
    $region56: #{tpu_custom_call.1} parent=1 // pred_region
      %130 = dma.done [#allocation11], 4096
    $region57: #{tpu_custom_call.1} parent=1 // pred_fallthru
      _
    // Predicated region
    $region58: #{tpu_custom_call.1} parent=1 // pred_check
      _
    $region59: #{tpu_custom_call.1} parent=1 // pred_check_branch
      %132 = sbr.rel (0) target = $region61
    $region60: #{tpu_custom_call.1} parent=1 // pred_region
      %133 = dma.done [#allocation14], 12288
    $region61: #{tpu_custom_call.1} parent=1 // pred_fallthru
      _
    // Predicated region
    $region62: #{tpu_custom_call.1} parent=1 // pred_check
      _
    $region63: #{tpu_custom_call.1} parent=1 // pred_check_branch
      %135 = sbr.rel (0) target = $region65
    $region64: #{tpu_custom_call.1} parent=1 // pred_region
      %136 = dma.done [#allocation14], 4096
    $region65: #{tpu_custom_call.1} parent=1 // pred_fallthru
      _
    %v138 = vld [vmem:[%s9] sm:$0x1]
    %v139 = vld [vmem:[%s9 + $0x1] sm:$0x3]
    %v140 = vld [vmem:[%s9 + $0x3] sm:$0x3f]
    %v141 = vld [vmem:[%s9 + $0x9] sm:$0x3]
    %v142 = vld [vmem:[%s9 + $0xb] sm:$0x3]
    %v143 = vld [vmem:[%s2] sm:$0x3]
    %v145 = vlaneseq
    %v146 = vshrl.u32 %v145, 7
    %v147 = vsub.s32 0, %v146
    %v148 = vrot.slane %v143, %v147
    %v149 = vlaneseq
    %v150 = vshrl.u32 %v149, 7
    %v151 = vsub.s32 1, %v150
    %v152 = vrot.slane %v143, %v151
    %v155 = vpack.c.bf16 %v148, %v148
    %v156 = vpack.c.bf16 %v152, %v152
    %s157 = sld [smem:[#allocation3]]
    %s158 = sshra.s32 %s157, 3
    %s159 = sand.u32 %s157, 7
    %s160 = sshra.s32 %s157, 3
    %s161 = sand.u32 %s157, 7
    %s162 = smul.u32 %s158, 2
    %s163 = smul.u32 %s162, 8
    %s164 = sadd.s32 %s163, %s161
    %s165 = scalar_lea.vmem [#allocation4], %s164
    %v166 = vld [vmem:[%s165] ss:$8 sm:$0x3]
    %v168 = vlaneseq
    %v169 = vshrl.u32 %v168, 7
    %v170 = vsub.s32 0, %v169
    %v171 = vrot.slane %v166, %v170
    %v172 = vlaneseq
    %v173 = vshrl.u32 %v172, 7
    %v174 = vsub.s32 1, %v173
    %v175 = vrot.slane %v166, %v174
    %v178 = vpack.c.bf16 %v171, %v171
    %v179 = vpack.c.bf16 %v175, %v175
    %v180 = vld [vmem:[#allocation9] sm:$0xff]
    %v181 = vld [vmem:[#allocation9 + $0x8] sm:$0xf]
    %v182 = vld [vmem:[#allocation9 + $0xc] sm:$0xff]
    %v183 = vld [vmem:[#allocation9 + $0x14] sm:$0xf]
    %v184 = vld [vmem:[#allocation9 + $0x18] sm:$0xff]
    %v185 = vld [vmem:[#allocation9 + $0x20] sm:$0xf]
    %v186 = vld [vmem:[#allocation9 + $0x24] sm:$0xff]
    %v187 = vld [vmem:[#allocation9 + $0x2c] sm:$0xf]
    %v188 = vld [vmem:[#allocation9 + $0x30] sm:$0xff]
    %v189 = vld [vmem:[#allocation9 + $0x38] sm:$0xf]
    %v190 = vld [vmem:[#allocation9 + $0x3c] sm:$0xff]
    %v191 = vld [vmem:[#allocation9 + $0x44] sm:$0xf]
    %v192 = vld [vmem:[#allocation9 + $0x48] sm:$0xff]
    %v193 = vld [vmem:[#allocation9 + $0x50] sm:$0xf]
    %v194 = vld [vmem:[#allocation9 + $0x54] sm:$0xff]
    %v195 = vld [vmem:[#allocation9 + $0x5c] sm:$0xf]
    %v196 = vld [vmem:[#allocation9 + $0x60] sm:$0xff]
    %v197 = vld [vmem:[#allocation9 + $0x68] sm:$0xf]
    %v198 = vld [vmem:[#allocation9 + $0x6c] sm:$0xff]
    %v199 = vld [vmem:[#allocation9 + $0x74] sm:$0xf]
    %v200 = vld [vmem:[#allocation9 + $0x78] sm:$0xff]
    %v201 = vld [vmem:[#allocation9 + $0x80] sm:$0xf]
    %v202 = vld [vmem:[#allocation9 + $0x84] sm:$0xff]
    %v203 = vld [vmem:[#allocation9 + $0x8c] sm:$0xf]
    %v204 = vld [vmem:[#allocation9 + $0x90] sm:$0xff]
    %v205 = vld [vmem:[#allocation9 + $0x98] sm:$0xf]
    %v206 = vld [vmem:[#allocation9 + $0x9c] sm:$0xff]
    %v207 = vld [vmem:[#allocation9 + $0xa4] sm:$0xf]
    %v208 = vld [vmem:[#allocation9 + $0xa8] sm:$0xff]
    %v209 = vld [vmem:[#allocation9 + $0xb0] sm:$0xf]
    %v210 = vld [vmem:[#allocation9 + $0xb4] sm:$0xff]
    %v211 = vld [vmem:[#allocation9 + $0xbc] sm:$0xf]
    %v212 = vld [vmem:[#allocation9 + $0xc0] sm:$0xff]
    %v213 = vld [vmem:[#allocation9 + $0xc8] sm:$0xf]
    %v214 = vld [vmem:[#allocation9 + $0xcc] sm:$0xff]
    %v215 = vld [vmem:[#allocation9 + $0xd4] sm:$0xf]
    %v216 = vld [vmem:[#allocation9 + $0xd8] sm:$0xff]
    %v217 = vld [vmem:[#allocation9 + $0xe0] sm:$0xf]
    %v218 = vld [vmem:[#allocation9 + $0xe4] sm:$0xff]
    %v219 = vld [vmem:[#allocation9 + $0xec] sm:$0xf]
    %v220 = vld [vmem:[#allocation9 + $0xf0] sm:$0xff]
    %v221 = vld [vmem:[#allocation9 + $0xf8] sm:$0xf]
    %v222 = vld [vmem:[#allocation9 + $0xfc] sm:$0xff]
    %v223 = vld [vmem:[#allocation9 + $0x104] sm:$0xf]
    %v224 = vld [vmem:[#allocation9 + $0x108] sm:$0xff]
    %v225 = vld [vmem:[#allocation9 + $0x110] sm:$0xf]
    %v226 = vld [vmem:[#allocation9 + $0x114] sm:$0xff]
    %v227 = vld [vmem:[#allocation9 + $0x11c] sm:$0xf]
    %v228 = vld [vmem:[#allocation9 + $0x120] sm:$0xff]
    %v229 = vld [vmem:[#allocation9 + $0x128] sm:$0xf]
    %v230 = vld [vmem:[#allocation9 + $0x12c] sm:$0xff]
    %v231 = vld [vmem:[#allocation9 + $0x134] sm:$0xf]
    %v232 = vld [vmem:[#allocation9 + $0x138] sm:$0xff]
    %v233 = vld [vmem:[#allocation9 + $0x140] sm:$0xf]
    %v234 = vld [vmem:[#allocation9 + $0x144] sm:$0xff]
    %v235 = vld [vmem:[#allocation9 + $0x14c] sm:$0xf]
    %v236 = vld [vmem:[#allocation9 + $0x150] sm:$0xff]
    %v237 = vld [vmem:[#allocation9 + $0x158] sm:$0xf]
    %v238 = vld [vmem:[#allocation9 + $0x15c] sm:$0xff]
    %v239 = vld [vmem:[#allocation9 + $0x164] sm:$0xf]
    %v240 = vld [vmem:[#allocation9 + $0x168] sm:$0xff]
    %v241 = vld [vmem:[#allocation9 + $0x170] sm:$0xf]
    %v242 = vld [vmem:[#allocation9 + $0x174] sm:$0xff]
    %v243 = vld [vmem:[#allocation9 + $0x17c] sm:$0xf]
    %v308 = vunpack.c.l.b16 %v180
    %v309 = vunpack.c.h.b16 %v180
    %v310 = vunpack.c.l.b16 %v181
    %v311 = vunpack.c.l.b16 %v182
    %v312 = vunpack.c.h.b16 %v182
    %v313 = vunpack.c.l.b16 %v183
    %v314 = vunpack.c.l.b16 %v184
    %v315 = vunpack.c.h.b16 %v184
    %v316 = vunpack.c.l.b16 %v185
    %v317 = vunpack.c.l.b16 %v186
    %v318 = vunpack.c.h.b16 %v186
    %v319 = vunpack.c.l.b16 %v187
    %v320 = vunpack.c.l.b16 %v188
    %v321 = vunpack.c.h.b16 %v188
    %v322 = vunpack.c.l.b16 %v189
    %v323 = vunpack.c.l.b16 %v190
    %v324 = vunpack.c.h.b16 %v190
    %v325 = vunpack.c.l.b16 %v191
    %v326 = vunpack.c.l.b16 %v192
    %v327 = vunpack.c.h.b16 %v192
    %v328 = vunpack.c.l.b16 %v193
    %v329 = vunpack.c.l.b16 %v194
    %v330 = vunpack.c.h.b16 %v194
    %v331 = vunpack.c.l.b16 %v195
    %v332 = vunpack.c.l.b16 %v196
    %v333 = vunpack.c.h.b16 %v196
    %v334 = vunpack.c.l.b16 %v197
    %v335 = vunpack.c.l.b16 %v198
    %v336 = vunpack.c.h.b16 %v198
    %v337 = vunpack.c.l.b16 %v199
    %v338 = vunpack.c.l.b16 %v200
    %v339 = vunpack.c.h.b16 %v200
    %v340 = vunpack.c.l.b16 %v201
    %v341 = vunpack.c.l.b16 %v202
    %v342 = vunpack.c.h.b16 %v202
    %v343 = vunpack.c.l.b16 %v203
    %v344 = vunpack.c.l.b16 %v204
    %v345 = vunpack.c.h.b16 %v204
    %v346 = vunpack.c.l.b16 %v205
    %v347 = vunpack.c.l.b16 %v206
    %v348 = vunpack.c.h.b16 %v206
    %v349 = vunpack.c.l.b16 %v207
    %v350 = vunpack.c.l.b16 %v208
    %v351 = vunpack.c.h.b16 %v208
    %v352 = vunpack.c.l.b16 %v209
    %v353 = vunpack.c.l.b16 %v210
    %v354 = vunpack.c.h.b16 %v210
    %v355 = vunpack.c.l.b16 %v211
    %v356 = vunpack.c.l.b16 %v212
    %v357 = vunpack.c.h.b16 %v212
    %v358 = vunpack.c.l.b16 %v213
    %v359 = vunpack.c.l.b16 %v214
    %v360 = vunpack.c.h.b16 %v214
    %v361 = vunpack.c.l.b16 %v215
    %v362 = vunpack.c.l.b16 %v216
    %v363 = vunpack.c.h.b16 %v216
    %v364 = vunpack.c.l.b16 %v217
    %v365 = vunpack.c.l.b16 %v218
    %v366 = vunpack.c.h.b16 %v218
    %v367 = vunpack.c.l.b16 %v219
    %v368 = vunpack.c.l.b16 %v220
    %v369 = vunpack.c.h.b16 %v220
    %v370 = vunpack.c.l.b16 %v221
    %v371 = vunpack.c.l.b16 %v222
    %v372 = vunpack.c.h.b16 %v222
    %v373 = vunpack.c.l.b16 %v223
    %v374 = vunpack.c.l.b16 %v224
    %v375 = vunpack.c.h.b16 %v224
    %v376 = vunpack.c.l.b16 %v225
    %v377 = vunpack.c.l.b16 %v226
    %v378 = vunpack.c.h.b16 %v226
    %v379 = vunpack.c.l.b16 %v227
    %v380 = vunpack.c.l.b16 %v228
    %v381 = vunpack.c.h.b16 %v228
    %v382 = vunpack.c.l.b16 %v229
    %v383 = vunpack.c.l.b16 %v230
    %v384 = vunpack.c.h.b16 %v230
    %v385 = vunpack.c.l.b16 %v231
    %v386 = vunpack.c.l.b16 %v232
    %v387 = vunpack.c.h.b16 %v232
    %v388 = vunpack.c.l.b16 %v233
    %v389 = vunpack.c.l.b16 %v234
    %v390 = vunpack.c.h.b16 %v234
    %v391 = vunpack.c.l.b16 %v235
    %v392 = vunpack.c.l.b16 %v236
    %v393 = vunpack.c.h.b16 %v236
    %v394 = vunpack.c.l.b16 %v237
    %v395 = vunpack.c.l.b16 %v238
    %v396 = vunpack.c.h.b16 %v238
    %v397 = vunpack.c.l.b16 %v239
    %v398 = vunpack.c.l.b16 %v240
    %v399 = vunpack.c.h.b16 %v240
    %v400 = vunpack.c.l.b16 %v241
    %v401 = vunpack.c.l.b16 %v242
    %v402 = vunpack.c.h.b16 %v242
    %v403 = vunpack.c.l.b16 %v243
    %v404 = vpack.c.b16 %v311, %v308
    %v405 = vpack.c.b16 %v312, %v309
    %v406 = vpack.c.b16 %v313, %v310
    %v407 = vpack.c.b16 %v317, %v314
    %v408 = vpack.c.b16 %v318, %v315
    %v409 = vpack.c.b16 %v319, %v316
    %v410 = vpack.c.b16 %v323, %v320
    %v411 = vpack.c.b16 %v324, %v321
    %v412 = vpack.c.b16 %v325, %v322
    %v413 = vpack.c.b16 %v329, %v326
    %v414 = vpack.c.b16 %v330, %v327
    %v415 = vpack.c.b16 %v331, %v328
    %v416 = vpack.c.b16 %v335, %v332
    %v417 = vpack.c.b16 %v336, %v333
    %v418 = vpack.c.b16 %v337, %v334
    %v419 = vpack.c.b16 %v341, %v338
    %v420 = vpack.c.b16 %v342, %v339
    %v421 = vpack.c.b16 %v343, %v340
    %v422 = vpack.c.b16 %v347, %v344
    %v423 = vpack.c.b16 %v348, %v345
    %v424 = vpack.c.b16 %v349, %v346
    %v425 = vpack.c.b16 %v353, %v350
    %v426 = vpack.c.b16 %v354, %v351
    %v427 = vpack.c.b16 %v355, %v352
    %v428 = vpack.c.b16 %v359, %v356
    %v429 = vpack.c.b16 %v360, %v357
    %v430 = vpack.c.b16 %v361, %v358
    %v431 = vpack.c.b16 %v365, %v362
    %v432 = vpack.c.b16 %v366, %v363
    %v433 = vpack.c.b16 %v367, %v364
    %v434 = vpack.c.b16 %v371, %v368
    %v435 = vpack.c.b16 %v372, %v369
    %v436 = vpack.c.b16 %v373, %v370
    %v437 = vpack.c.b16 %v377, %v374
    %v438 = vpack.c.b16 %v378, %v375
    %v439 = vpack.c.b16 %v379, %v376
    %v440 = vpack.c.b16 %v383, %v380
    %v441 = vpack.c.b16 %v384, %v381
    %v442 = vpack.c.b16 %v385, %v382
    %v443 = vpack.c.b16 %v389, %v386
    %v444 = vpack.c.b16 %v390, %v387
    %v445 = vpack.c.b16 %v391, %v388
    %v446 = vpack.c.b16 %v395, %v392
    %v447 = vpack.c.b16 %v396, %v393
    %v448 = vpack.c.b16 %v397, %v394
    %v449 = vpack.c.b16 %v401, %v398
    %v450 = vpack.c.b16 %v402, %v399
    %v451 = vpack.c.b16 %v403, %v400
    %500 = vmatprep.subr.bf16.mxu0 %v405
    %501 = vmatpush1.bf16.msra.mxu0 %v404
    %502 = vmatprep.subr.bf16.mxu0 %v408
    %503 = vmatpush1.bf16.msra.mxu0 %v407
    %504 = vmatprep.subr.bf16.mxu0 %v411
    %505 = vmatpush1.bf16.msra.mxu0 %v410
    %506 = vmatprep.subr.bf16.mxu0 %v414
    %507 = vmatpush1.bf16.msra.mxu0 %v413
    %508 = vmatprep.subr.bf16.mxu0 %v417
    %509 = vmatpush1.bf16.msra.mxu0 %v416
    %510 = vmatprep.subr.bf16.mxu0 %v420
    %511 = vmatpush1.bf16.msra.mxu0 %v419
    %512 = vmatprep.subr.bf16.mxu0 %v423
    %513 = vmatpush1.bf16.msra.mxu0 %v422
    %514 = vmatprep.subr.bf16.mxu0 %v426
    %515 = vmatpush1.bf16.msra.mxu0 %v425
    %516 = vmatprep.subr.bf16.mxu0 %v429
    %517 = vmatpush1.bf16.msra.mxu0 %v428
    %518 = vmatprep.subr.bf16.mxu0 %v432
    %519 = vmatpush1.bf16.msra.mxu0 %v431
    %520 = vmatprep.subr.bf16.mxu0 %v435
    %521 = vmatpush1.bf16.msra.mxu0 %v434
    %522 = vmatprep.subr.bf16.mxu0 %v438
    %523 = vmatpush1.bf16.msra.mxu0 %v437
    %524 = vmatprep.subr.bf16.mxu0 %v441
    %525 = vmatpush1.bf16.msra.mxu0 %v440
    %526 = vmatprep.subr.bf16.mxu0 %v444
    %527 = vmatpush1.bf16.msra.mxu0 %v443
    %528 = vmatprep.subr.bf16.mxu0 %v447
    %529 = vmatpush1.bf16.msra.mxu0 %v446
    %530 = vmatprep.subr.bf16.mxu0 %v450
    %531 = vmatpush1.bf16.msra.mxu0 %v449
    %532 = vmatprep.mubr.bf16.mxu0 %v179
    %533 = vmatmul.mubr.bf16.gmra.mrb[0].mxu0 %v178
    %v534 = vpop.f32.mrb[0].mxu0
    %v535 = vadd.f32 0.0, %v534
    %v536 = vpop.f32.mrb[0].mxu0
    %v537 = vadd.f32 0.0, %v536
    %v538 = vpop.f32.mrb[0].mxu0
    %v539 = vpop.f32.mrb[0].mxu0
    %540 = vdwg.mxu0
    %541 = vmatprep.subr.bf16.mxu0 0
    %542 = vmatpush1.bf16.msra.mxu0 %v406
    %543 = vmatprep.subr.bf16.mxu0 0
    %544 = vmatpush1.bf16.msra.mxu0 %v409
    %545 = vmatprep.subr.bf16.mxu0 0
    %546 = vmatpush1.bf16.msra.mxu0 %v412
    %547 = vmatprep.subr.bf16.mxu0 0
    %548 = vmatpush1.bf16.msra.mxu0 %v415
    %549 = vmatprep.subr.bf16.mxu0 0
    %550 = vmatpush1.bf16.msra.mxu0 %v418
    %551 = vmatprep.subr.bf16.mxu0 0
    %552 = vmatpush1.bf16.msra.mxu0 %v421
    %553 = vmatprep.subr.bf16.mxu0 0
    %554 = vmatpush1.bf16.msra.mxu0 %v424
    %555 = vmatprep.subr.bf16.mxu0 0
    %556 = vmatpush1.bf16.msra.mxu0 %v427
    %557 = vmatprep.subr.bf16.mxu0 0
    %558 = vmatpush1.bf16.msra.mxu0 %v430
    %559 = vmatprep.subr.bf16.mxu0 0
    %560 = vmatpush1.bf16.msra.mxu0 %v433
    %561 = vmatprep.subr.bf16.mxu0 0
    %562 = vmatpush1.bf16.msra.mxu0 %v436
    %563 = vmatprep.subr.bf16.mxu0 0
    %564 = vmatpush1.bf16.msra.mxu0 %v439
    %565 = vmatprep.subr.bf16.mxu0 0
    %566 = vmatpush1.bf16.msra.mxu0 %v442
    %567 = vmatprep.subr.bf16.mxu0 0
    %568 = vmatpush1.bf16.msra.mxu0 %v445
    %569 = vmatprep.subr.bf16.mxu0 0
    %570 = vmatpush1.bf16.msra.mxu0 %v448
    %571 = vmatprep.subr.bf16.mxu0 0
    %572 = vmatpush1.bf16.msra.mxu0 %v451
    %573 = vmatprep.mubr.bf16.mxu0 %v179
    %574 = vmatmul.mubr.bf16.gmra.mrb[0].mxu0 %v178
    %v575 = vpop.f32.mrb[0].mxu0
    %v576 = vadd.f32 0.0, %v575
    %v577 = vpop.f32.mrb[0].mxu0
    %v578 = vpop.f32.mrb[0].mxu0
    %v579 = vpop.f32.mrb[0].mxu0
    %580 = vdwg.mxu0
    %v581 = vld [vmem:[#allocation10] sm:$0xff]
    %v582 = vld [vmem:[#allocation10 + $0x8] sm:$0xff]
    %v583 = vld [vmem:[#allocation10 + $0x10] sm:$0xff]
    %v584 = vld [vmem:[#allocation10 + $0x18] sm:$0xf]
    %v585 = vld [vmem:[#allocation10 + $0x1c] sm:$0xff]
    %v586 = vld [vmem:[#allocation10 + $0x24] sm:$0xff]
    %v587 = vld [vmem:[#allocation10 + $0x2c] sm:$0xff]
    %v588 = vld [vmem:[#allocation10 + $0x34] sm:$0xf]
    %v589 = vld [vmem:[#allocation10 + $0x38] sm:$0xff]
    %v590 = vld [vmem:[#allocation10 + $0x40] sm:$0xff]
    %v591 = vld [vmem:[#allocation10 + $0x48] sm:$0xff]
    %v592 = vld [vmem:[#allocation10 + $0x50] sm:$0xf]
    %v593 = vld [vmem:[#allocation10 + $0x54] sm:$0xff]
    %v594 = vld [vmem:[#allocation10 + $0x5c] sm:$0xff]
    %v595 = vld [vmem:[#allocation10 + $0x64] sm:$0xff]
    %v596 = vld [vmem:[#allocation10 + $0x6c] sm:$0xf]
    %v597 = vld [vmem:[#allocation10 + $0x70] sm:$0xff]
    %v598 = vld [vmem:[#allocation10 + $0x78] sm:$0xff]
    %v599 = vld [vmem:[#allocation10 + $0x80] sm:$0xff]
    %v600 = vld [vmem:[#allocation10 + $0x88] sm:$0xf]
    %v601 = vld [vmem:[#allocation10 + $0x8c] sm:$0xff]
    %v602 = vld [vmem:[#allocation10 + $0x94] sm:$0xff]
    %v603 = vld [vmem:[#allocation10 + $0x9c] sm:$0xff]
    %v604 = vld [vmem:[#allocation10 + $0xa4] sm:$0xf]
    %v605 = vld [vmem:[#allocation10 + $0xa8] sm:$0xff]
    %v606 = vld [vmem:[#allocation10 + $0xb0] sm:$0xff]
    %v607 = vld [vmem:[#allocation10 + $0xb8] sm:$0xff]
    %v608 = vld [vmem:[#allocation10 + $0xc0] sm:$0xf]
    %v609 = vld [vmem:[#allocation10 + $0xc4] sm:$0xff]
    %v610 = vld [vmem:[#allocation10 + $0xcc] sm:$0xff]
    %v611 = vld [vmem:[#allocation10 + $0xd4] sm:$0xff]
    %v612 = vld [vmem:[#allocation10 + $0xdc] sm:$0xf]
    %v613 = vld [vmem:[#allocation10 + $0xe0] sm:$0xff]
    %v614 = vld [vmem:[#allocation10 + $0xe8] sm:$0xff]
    %v615 = vld [vmem:[#allocation10 + $0xf0] sm:$0xff]
    %v616 = vld [vmem:[#allocation10 + $0xf8] sm:$0xf]
    %v617 = vld [vmem:[#allocation10 + $0xfc] sm:$0xff]
    %v618 = vld [vmem:[#allocation10 + $0x104] sm:$0xff]
    %v619 = vld [vmem:[#allocation10 + $0x10c] sm:$0xff]
    %v620 = vld [vmem:[#allocation10 + $0x114] sm:$0xf]
    %v621 = vld [vmem:[#allocation10 + $0x118] sm:$0xff]
    %v622 = vld [vmem:[#allocation10 + $0x120] sm:$0xff]
    %v623 = vld [vmem:[#allocation10 + $0x128] sm:$0xff]
    %v624 = vld [vmem:[#allocation10 + $0x130] sm:$0xf]
    %v625 = vld [vmem:[#allocation10 + $0x134] sm:$0xff]
    %v626 = vld [vmem:[#allocation10 + $0x13c] sm:$0xff]
    %v627 = vld [vmem:[#allocation10 + $0x144] sm:$0xff]
    %v628 = vld [vmem:[#allocation10 + $0x14c] sm:$0xf]
    %v629 = vld [vmem:[#allocation10 + $0x150] sm:$0xff]
    %v630 = vld [vmem:[#allocation10 + $0x158] sm:$0xff]
    %v631 = vld [vmem:[#allocation10 + $0x160] sm:$0xff]
    %v632 = vld [vmem:[#allocation10 + $0x168] sm:$0xf]
    %v633 = vld [vmem:[#allocation10 + $0x16c] sm:$0xff]
    %v634 = vld [vmem:[#allocation10 + $0x174] sm:$0xff]
    %v635 = vld [vmem:[#allocation10 + $0x17c] sm:$0xff]
    %v636 = vld [vmem:[#allocation10 + $0x184] sm:$0xf]
    %v637 = vld [vmem:[#allocation10 + $0x188] sm:$0xff]
    %v638 = vld [vmem:[#allocation10 + $0x190] sm:$0xff]
    %v639 = vld [vmem:[#allocation10 + $0x198] sm:$0xff]
    %v640 = vld [vmem:[#allocation10 + $0x1a0] sm:$0xf]
    %v641 = vld [vmem:[#allocation10 + $0x1a4] sm:$0xff]
    %v642 = vld [vmem:[#allocation10 + $0x1ac] sm:$0xff]
    %v643 = vld [vmem:[#allocation10 + $0x1b4] sm:$0xff]
    %v644 = vld [vmem:[#allocation10 + $0x1bc] sm:$0xf]
    %v645 = vld [vmem:[#allocation10 + $0x1c0] sm:$0xff]
    %v646 = vld [vmem:[#allocation10 + $0x1c8] sm:$0xff]
    %v647 = vld [vmem:[#allocation10 + $0x1d0] sm:$0xff]
    %v648 = vld [vmem:[#allocation10 + $0x1d8] sm:$0xf]
    %v649 = vld [vmem:[#allocation10 + $0x1dc] sm:$0xff]
    %v650 = vld [vmem:[#allocation10 + $0x1e4] sm:$0xff]
    %v651 = vld [vmem:[#allocation10 + $0x1ec] sm:$0xff]
    %v652 = vld [vmem:[#allocation10 + $0x1f4] sm:$0xf]
    %v653 = vld [vmem:[#allocation10 + $0x1f8] sm:$0xff]
    %v654 = vld [vmem:[#allocation10 + $0x200] sm:$0xff]
    %v655 = vld [vmem:[#allocation10 + $0x208] sm:$0xff]
    %v656 = vld [vmem:[#allocation10 + $0x210] sm:$0xf]
    %v657 = vld [vmem:[#allocation10 + $0x214] sm:$0xff]
    %v658 = vld [vmem:[#allocation10 + $0x21c] sm:$0xff]
    %v659 = vld [vmem:[#allocation10 + $0x224] sm:$0xff]
    %v660 = vld [vmem:[#allocation10 + $0x22c] sm:$0xf]
    %v661 = vld [vmem:[#allocation10 + $0x230] sm:$0xff]
    %v662 = vld [vmem:[#allocation10 + $0x238] sm:$0xff]
    %v663 = vld [vmem:[#allocation10 + $0x240] sm:$0xff]
    %v664 = vld [vmem:[#allocation10 + $0x248] sm:$0xf]
    %v665 = vld [vmem:[#allocation10 + $0x24c] sm:$0xff]
    %v666 = vld [vmem:[#allocation10 + $0x254] sm:$0xff]
    %v667 = vld [vmem:[#allocation10 + $0x25c] sm:$0xff]
    %v668 = vld [vmem:[#allocation10 + $0x264] sm:$0xf]
    %v669 = vld [vmem:[#allocation10 + $0x268] sm:$0xff]
    %v670 = vld [vmem:[#allocation10 + $0x270] sm:$0xff]
    %v671 = vld [vmem:[#allocation10 + $0x278] sm:$0xff]
    %v672 = vld [vmem:[#allocation10 + $0x280] sm:$0xf]
    %v673 = vld [vmem:[#allocation10 + $0x284] sm:$0xff]
    %v674 = vld [vmem:[#allocation10 + $0x28c] sm:$0xff]
    %v675 = vld [vmem:[#allocation10 + $0x294] sm:$0xff]
    %v676 = vld [vmem:[#allocation10 + $0x29c] sm:$0xf]
    %v677 = vld [vmem:[#allocation10 + $0x2a0] sm:$0xff]
    %v678 = vld [vmem:[#allocation10 + $0x2a8] sm:$0xff]
    %v679 = vld [vmem:[#allocation10 + $0x2b0] sm:$0xff]
    %v680 = vld [vmem:[#allocation10 + $0x2b8] sm:$0xf]
    %v681 = vld [vmem:[#allocation10 + $0x2bc] sm:$0xff]
    %v682 = vld [vmem:[#allocation10 + $0x2c4] sm:$0xff]
    %v683 = vld [vmem:[#allocation10 + $0x2cc] sm:$0xff]
    %v684 = vld [vmem:[#allocation10 + $0x2d4] sm:$0xf]
    %v685 = vld [vmem:[#allocation10 + $0x2d8] sm:$0xff]
    %v686 = vld [vmem:[#allocation10 + $0x2e0] sm:$0xff]
    %v687 = vld [vmem:[#allocation10 + $0x2e8] sm:$0xff]
    %v688 = vld [vmem:[#allocation10 + $0x2f0] sm:$0xf]
    %v689 = vld [vmem:[#allocation10 + $0x2f4] sm:$0xff]
    %v690 = vld [vmem:[#allocation10 + $0x2fc] sm:$0xff]
    %v691 = vld [vmem:[#allocation10 + $0x304] sm:$0xff]
    %v692 = vld [vmem:[#allocation10 + $0x30c] sm:$0xf]
    %v693 = vld [vmem:[#allocation10 + $0x310] sm:$0xff]
    %v694 = vld [vmem:[#allocation10 + $0x318] sm:$0xff]
    %v695 = vld [vmem:[#allocation10 + $0x320] sm:$0xff]
    %v696 = vld [vmem:[#allocation10 + $0x328] sm:$0xf]
    %v697 = vld [vmem:[#allocation10 + $0x32c] sm:$0xff]
    %v698 = vld [vmem:[#allocation10 + $0x334] sm:$0xff]
    %v699 = vld [vmem:[#allocation10 + $0x33c] sm:$0xff]
    %v700 = vld [vmem:[#allocation10 + $0x344] sm:$0xf]
    %v701 = vld [vmem:[#allocation10 + $0x348] sm:$0xff]
    %v702 = vld [vmem:[#allocation10 + $0x350] sm:$0xff]
    %v703 = vld [vmem:[#allocation10 + $0x358] sm:$0xff]
    %v704 = vld [vmem:[#allocation10 + $0x360] sm:$0xf]
    %v705 = vld [vmem:[#allocation10 + $0x364] sm:$0xff]
    %v706 = vld [vmem:[#allocation10 + $0x36c] sm:$0xff]
    %v707 = vld [vmem:[#allocation10 + $0x374] sm:$0xff]
    %v708 = vld [vmem:[#allocation10 + $0x37c] sm:$0xf]
    %v837 = vunpack.c.l.b16 %v581
    %v838 = vunpack.c.h.b16 %v581
    %v839 = vunpack.c.l.b16 %v582
    %v840 = vunpack.c.h.b16 %v582
    %v841 = vunpack.c.l.b16 %v583
    %v842 = vunpack.c.h.b16 %v583
    %v843 = vunpack.c.l.b16 %v584
    %v844 = vunpack.c.l.b16 %v585
    %v845 = vunpack.c.h.b16 %v585
    %v846 = vunpack.c.l.b16 %v586
    %v847 = vunpack.c.h.b16 %v586
    %v848 = vunpack.c.l.b16 %v587
    %v849 = vunpack.c.h.b16 %v587
    %v850 = vunpack.c.l.b16 %v588
    %v851 = vunpack.c.l.b16 %v589
    %v852 = vunpack.c.h.b16 %v589
    %v853 = vunpack.c.l.b16 %v590
    %v854 = vunpack.c.h.b16 %v590
    %v855 = vunpack.c.l.b16 %v591
    %v856 = vunpack.c.h.b16 %v591
    %v857 = vunpack.c.l.b16 %v592
    %v858 = vunpack.c.l.b16 %v593
    %v859 = vunpack.c.h.b16 %v593
    %v860 = vunpack.c.l.b16 %v594
    %v861 = vunpack.c.h.b16 %v594
    %v862 = vunpack.c.l.b16 %v595
    %v863 = vunpack.c.h.b16 %v595
    %v864 = vunpack.c.l.b16 %v596
    %v865 = vunpack.c.l.b16 %v597
    %v866 = vunpack.c.h.b16 %v597
    %v867 = vunpack.c.l.b16 %v598
    %v868 = vunpack.c.h.b16 %v598
    %v869 = vunpack.c.l.b16 %v599
    %v870 = vunpack.c.h.b16 %v599
    %v871 = vunpack.c.l.b16 %v600
    %v872 = vunpack.c.l.b16 %v601
    %v873 = vunpack.c.h.b16 %v601
    %v874 = vunpack.c.l.b16 %v602
    %v875 = vunpack.c.h.b16 %v602
    %v876 = vunpack.c.l.b16 %v603
    %v877 = vunpack.c.h.b16 %v603
    %v878 = vunpack.c.l.b16 %v604
    %v879 = vunpack.c.l.b16 %v605
    %v880 = vunpack.c.h.b16 %v605
    %v881 = vunpack.c.l.b16 %v606
    %v882 = vunpack.c.h.b16 %v606
    %v883 = vunpack.c.l.b16 %v607
    %v884 = vunpack.c.h.b16 %v607
    %v885 = vunpack.c.l.b16 %v608
    %v886 = vunpack.c.l.b16 %v609
    %v887 = vunpack.c.h.b16 %v609
    %v888 = vunpack.c.l.b16 %v610
    %v889 = vunpack.c.h.b16 %v610
    %v890 = vunpack.c.l.b16 %v611
    %v891 = vunpack.c.h.b16 %v611
    %v892 = vunpack.c.l.b16 %v612
    %v893 = vunpack.c.l.b16 %v613
    %v894 = vunpack.c.h.b16 %v613
    %v895 = vunpack.c.l.b16 %v614
    %v896 = vunpack.c.h.b16 %v614
    %v897 = vunpack.c.l.b16 %v615
    %v898 = vunpack.c.h.b16 %v615
    %v899 = vunpack.c.l.b16 %v616
    %v900 = vunpack.c.l.b16 %v617
    %v901 = vunpack.c.h.b16 %v617
    %v902 = vunpack.c.l.b16 %v618
    %v903 = vunpack.c.h.b16 %v618
    %v904 = vunpack.c.l.b16 %v619
    %v905 = vunpack.c.h.b16 %v619
    %v906 = vunpack.c.l.b16 %v620
    %v907 = vunpack.c.l.b16 %v621
    %v908 = vunpack.c.h.b16 %v621
    %v909 = vunpack.c.l.b16 %v622
    %v910 = vunpack.c.h.b16 %v622
    %v911 = vunpack.c.l.b16 %v623
    %v912 = vunpack.c.h.b16 %v623
    %v913 = vunpack.c.l.b16 %v624
    %v914 = vunpack.c.l.b16 %v625
    %v915 = vunpack.c.h.b16 %v625
    %v916 = vunpack.c.l.b16 %v626
    %v917 = vunpack.c.h.b16 %v626
    %v918 = vunpack.c.l.b16 %v627
    %v919 = vunpack.c.h.b16 %v627
    %v920 = vunpack.c.l.b16 %v628
    %v921 = vunpack.c.l.b16 %v629
    %v922 = vunpack.c.h.b16 %v629
    %v923 = vunpack.c.l.b16 %v630
    %v924 = vunpack.c.h.b16 %v630
    %v925 = vunpack.c.l.b16 %v631
    %v926 = vunpack.c.h.b16 %v631
    %v927 = vunpack.c.l.b16 %v632
    %v928 = vunpack.c.l.b16 %v633
    %v929 = vunpack.c.h.b16 %v633
    %v930 = vunpack.c.l.b16 %v634
    %v931 = vunpack.c.h.b16 %v634
    %v932 = vunpack.c.l.b16 %v635
    %v933 = vunpack.c.h.b16 %v635
    %v934 = vunpack.c.l.b16 %v636
    %v935 = vunpack.c.l.b16 %v637
    %v936 = vunpack.c.h.b16 %v637
    %v937 = vunpack.c.l.b16 %v638
    %v938 = vunpack.c.h.b16 %v638
    %v939 = vunpack.c.l.b16 %v639
    %v940 = vunpack.c.h.b16 %v639
    %v941 = vunpack.c.l.b16 %v640
    %v942 = vunpack.c.l.b16 %v641
    %v943 = vunpack.c.h.b16 %v641
    %v944 = vunpack.c.l.b16 %v642
    %v945 = vunpack.c.h.b16 %v642
    %v946 = vunpack.c.l.b16 %v643
    %v947 = vunpack.c.h.b16 %v643
    %v948 = vunpack.c.l.b16 %v644
    %v949 = vunpack.c.l.b16 %v645
    %v950 = vunpack.c.h.b16 %v645
    %v951 = vunpack.c.l.b16 %v646
    %v952 = vunpack.c.h.b16 %v646
    %v953 = vunpack.c.l.b16 %v647
    %v954 = vunpack.c.h.b16 %v647
    %v955 = vunpack.c.l.b16 %v648
    %v956 = vunpack.c.l.b16 %v649
    %v957 = vunpack.c.h.b16 %v649
    %v958 = vunpack.c.l.b16 %v650
    %v959 = vunpack.c.h.b16 %v650
    %v960 = vunpack.c.l.b16 %v651
    %v961 = vunpack.c.h.b16 %v651
    %v962 = vunpack.c.l.b16 %v652
    %v963 = vunpack.c.l.b16 %v653
    %v964 = vunpack.c.h.b16 %v653
    %v965 = vunpack.c.l.b16 %v654
    %v966 = vunpack.c.h.b16 %v654
    %v967 = vunpack.c.l.b16 %v655
    %v968 = vunpack.c.h.b16 %v655
    %v969 = vunpack.c.l.b16 %v656
    %v970 = vunpack.c.l.b16 %v657
    %v971 = vunpack.c.h.b16 %v657
    %v972 = vunpack.c.l.b16 %v658
    %v973 = vunpack.c.h.b16 %v658
    %v974 = vunpack.c.l.b16 %v659
    %v975 = vunpack.c.h.b16 %v659
    %v976 = vunpack.c.l.b16 %v660
    %v977 = vunpack.c.l.b16 %v661
    %v978 = vunpack.c.h.b16 %v661
    %v979 = vunpack.c.l.b16 %v662
    %v980 = vunpack.c.h.b16 %v662
    %v981 = vunpack.c.l.b16 %v663
    %v982 = vunpack.c.h.b16 %v663
    %v983 = vunpack.c.l.b16 %v664
    %v984 = vunpack.c.l.b16 %v665
    %v985 = vunpack.c.h.b16 %v665
    %v986 = vunpack.c.l.b16 %v666
    %v987 = vunpack.c.h.b16 %v666
    %v988 = vunpack.c.l.b16 %v667
    %v989 = vunpack.c.h.b16 %v667
    %v990 = vunpack.c.l.b16 %v668
    %v991 = vunpack.c.l.b16 %v669
    %v992 = vunpack.c.h.b16 %v669
    %v993 = vunpack.c.l.b16 %v670
    %v994 = vunpack.c.h.b16 %v670
    %v995 = vunpack.c.l.b16 %v671
    %v996 = vunpack.c.h.b16 %v671
    %v997 = vunpack.c.l.b16 %v672
    %v998 = vunpack.c.l.b16 %v673
    %v999 = vunpack.c.h.b16 %v673
    %v1000 = vunpack.c.l.b16 %v674
    %v1001 = vunpack.c.h.b16 %v674
    %v1002 = vunpack.c.l.b16 %v675
    %v1003 = vunpack.c.h.b16 %v675
    %v1004 = vunpack.c.l.b16 %v676
    %v1005 = vunpack.c.l.b16 %v677
    %v1006 = vunpack.c.h.b16 %v677
    %v1007 = vunpack.c.l.b16 %v678
    %v1008 = vunpack.c.h.b16 %v678
    %v1009 = vunpack.c.l.b16 %v679
    %v1010 = vunpack.c.h.b16 %v679
    %v1011 = vunpack.c.l.b16 %v680
    %v1012 = vunpack.c.l.b16 %v681
    %v1013 = vunpack.c.h.b16 %v681
    %v1014 = vunpack.c.l.b16 %v682
    %v1015 = vunpack.c.h.b16 %v682
    %v1016 = vunpack.c.l.b16 %v683
    %v1017 = vunpack.c.h.b16 %v683
    %v1018 = vunpack.c.l.b16 %v684
    %v1019 = vunpack.c.l.b16 %v685
    %v1020 = vunpack.c.h.b16 %v685
    %v1021 = vunpack.c.l.b16 %v686
    %v1022 = vunpack.c.h.b16 %v686
    %v1023 = vunpack.c.l.b16 %v687
    %v1024 = vunpack.c.h.b16 %v687
    %v1025 = vunpack.c.l.b16 %v688
    %v1026 = vunpack.c.l.b16 %v689
    %v1027 = vunpack.c.h.b16 %v689
    %v1028 = vunpack.c.l.b16 %v690
    %v1029 = vunpack.c.h.b16 %v690
    %v1030 = vunpack.c.l.b16 %v691
    %v1031 = vunpack.c.h.b16 %v691
    %v1032 = vunpack.c.l.b16 %v692
    %v1033 = vunpack.c.l.b16 %v693
    %v1034 = vunpack.c.h.b16 %v693
    %v1035 = vunpack.c.l.b16 %v694
    %v1036 = vunpack.c.h.b16 %v694
    %v1037 = vunpack.c.l.b16 %v695
    %v1038 = vunpack.c.h.b16 %v695
    %v1039 = vunpack.c.l.b16 %v696
    %v1040 = vunpack.c.l.b16 %v697
    %v1041 = vunpack.c.h.b16 %v697
    %v1042 = vunpack.c.l.b16 %v698
    %v1043 = vunpack.c.h.b16 %v698
    %v1044 = vunpack.c.l.b16 %v699
    %v1045 = vunpack.c.h.b16 %v699
    %v1046 = vunpack.c.l.b16 %v700
    %v1047 = vunpack.c.l.b16 %v701
    %v1048 = vunpack.c.h.b16 %v701
    %v1049 = vunpack.c.l.b16 %v702
    %v1050 = vunpack.c.h.b16 %v702
    %v1051 = vunpack.c.l.b16 %v703
    %v1052 = vunpack.c.h.b16 %v703
    %v1053 = vunpack.c.l.b16 %v704
    %v1054 = vunpack.c.l.b16 %v705
    %v1055 = vunpack.c.h.b16 %v705
    %v1056 = vunpack.c.l.b16 %v706
    %v1057 = vunpack.c.h.b16 %v706
    %v1058 = vunpack.c.l.b16 %v707
    %v1059 = vunpack.c.h.b16 %v707
    %v1060 = vunpack.c.l.b16 %v708
    %v1061 = vpack.c.b16 %v844, %v837
    %v1062 = vpack.c.b16 %v845, %v838
    %v1063 = vpack.c.b16 %v846, %v839
    %v1064 = vpack.c.b16 %v847, %v840
    %v1065 = vpack.c.b16 %v848, %v841
    %v1066 = vpack.c.b16 %v849, %v842
    %v1067 = vpack.c.b16 %v850, %v843
    %v1068 = vpack.c.b16 %v858, %v851
    %v1069 = vpack.c.b16 %v859, %v852
    %v1070 = vpack.c.b16 %v860, %v853
    %v1071 = vpack.c.b16 %v861, %v854
    %v1072 = vpack.c.b16 %v862, %v855
    %v1073 = vpack.c.b16 %v863, %v856
    %v1074 = vpack.c.b16 %v864, %v857
    %v1075 = vpack.c.b16 %v872, %v865
    %v1076 = vpack.c.b16 %v873, %v866
    %v1077 = vpack.c.b16 %v874, %v867
    %v1078 = vpack.c.b16 %v875, %v868
    %v1079 = vpack.c.b16 %v876, %v869
    %v1080 = vpack.c.b16 %v877, %v870
    %v1081 = vpack.c.b16 %v878, %v871
    %v1082 = vpack.c.b16 %v886, %v879
    %v1083 = vpack.c.b16 %v887, %v880
    %v1084 = vpack.c.b16 %v888, %v881
    %v1085 = vpack.c.b16 %v889, %v882
    %v1086 = vpack.c.b16 %v890, %v883
    %v1087 = vpack.c.b16 %v891, %v884
    %v1088 = vpack.c.b16 %v892, %v885
    %v1089 = vpack.c.b16 %v900, %v893
    %v1090 = vpack.c.b16 %v901, %v894
    %v1091 = vpack.c.b16 %v902, %v895
    %v1092 = vpack.c.b16 %v903, %v896
    %v1093 = vpack.c.b16 %v904, %v897
    %v1094 = vpack.c.b16 %v905, %v898
    %v1095 = vpack.c.b16 %v906, %v899
    %v1096 = vpack.c.b16 %v914, %v907
    %v1097 = vpack.c.b16 %v915, %v908
    %v1098 = vpack.c.b16 %v916, %v909
    %v1099 = vpack.c.b16 %v917, %v910
    %v1100 = vpack.c.b16 %v918, %v911
    %v1101 = vpack.c.b16 %v919, %v912
    %v1102 = vpack.c.b16 %v920, %v913
    %v1103 = vpack.c.b16 %v928, %v921
    %v1104 = vpack.c.b16 %v929, %v922
    %v1105 = vpack.c.b16 %v930, %v923
    %v1106 = vpack.c.b16 %v931, %v924
    %v1107 = vpack.c.b16 %v932, %v925
    %v1108 = vpack.c.b16 %v933, %v926
    %v1109 = vpack.c.b16 %v934, %v927
    %v1110 = vpack.c.b16 %v942, %v935
    %v1111 = vpack.c.b16 %v943, %v936
    %v1112 = vpack.c.b16 %v944, %v937
    %v1113 = vpack.c.b16 %v945, %v938
    %v1114 = vpack.c.b16 %v946, %v939
    %v1115 = vpack.c.b16 %v947, %v940
    %v1116 = vpack.c.b16 %v948, %v941
    %v1117 = vpack.c.b16 %v956, %v949
    %v1118 = vpack.c.b16 %v957, %v950
    %v1119 = vpack.c.b16 %v958, %v951
    %v1120 = vpack.c.b16 %v959, %v952
    %v1121 = vpack.c.b16 %v960, %v953
    %v1122 = vpack.c.b16 %v961, %v954
    %v1123 = vpack.c.b16 %v962, %v955
    %v1124 = vpack.c.b16 %v970, %v963
    %v1125 = vpack.c.b16 %v971, %v964
    %v1126 = vpack.c.b16 %v972, %v965
    %v1127 = vpack.c.b16 %v973, %v966
    %v1128 = vpack.c.b16 %v974, %v967
    %v1129 = vpack.c.b16 %v975, %v968
    %v1130 = vpack.c.b16 %v976, %v969
    %v1131 = vpack.c.b16 %v984, %v977
    %v1132 = vpack.c.b16 %v985, %v978
    %v1133 = vpack.c.b16 %v986, %v979
    %v1134 = vpack.c.b16 %v987, %v980
    %v1135 = vpack.c.b16 %v988, %v981
    %v1136 = vpack.c.b16 %v989, %v982
    %v1137 = vpack.c.b16 %v990, %v983
    %v1138 = vpack.c.b16 %v998, %v991
    %v1139 = vpack.c.b16 %v999, %v992
    %v1140 = vpack.c.b16 %v1000, %v993
    %v1141 = vpack.c.b16 %v1001, %v994
    %v1142 = vpack.c.b16 %v1002, %v995
    %v1143 = vpack.c.b16 %v1003, %v996
    %v1144 = vpack.c.b16 %v1004, %v997
    %v1145 = vpack.c.b16 %v1012, %v1005
    %v1146 = vpack.c.b16 %v1013, %v1006
    %v1147 = vpack.c.b16 %v1014, %v1007
    %v1148 = vpack.c.b16 %v1015, %v1008
    %v1149 = vpack.c.b16 %v1016, %v1009
    %v1150 = vpack.c.b16 %v1017, %v1010
    %v1151 = vpack.c.b16 %v1018, %v1011
    %v1152 = vpack.c.b16 %v1026, %v1019
    %v1153 = vpack.c.b16 %v1027, %v1020
    %v1154 = vpack.c.b16 %v1028, %v1021
    %v1155 = vpack.c.b16 %v1029, %v1022
    %v1156 = vpack.c.b16 %v1030, %v1023
    %v1157 = vpack.c.b16 %v1031, %v1024
    %v1158 = vpack.c.b16 %v1032, %v1025
    %v1159 = vpack.c.b16 %v1040, %v1033
    %v1160 = vpack.c.b16 %v1041, %v1034
    %v1161 = vpack.c.b16 %v1042, %v1035
    %v1162 = vpack.c.b16 %v1043, %v1036
    %v1163 = vpack.c.b16 %v1044, %v1037
    %v1164 = vpack.c.b16 %v1045, %v1038
    %v1165 = vpack.c.b16 %v1046, %v1039
    %v1166 = vpack.c.b16 %v1054, %v1047
    %v1167 = vpack.c.b16 %v1055, %v1048
    %v1168 = vpack.c.b16 %v1056, %v1049
    %v1169 = vpack.c.b16 %v1057, %v1050
    %v1170 = vpack.c.b16 %v1058, %v1051
    %v1171 = vpack.c.b16 %v1059, %v1052
    %v1172 = vpack.c.b16 %v1060, %v1053
    %1285 = vmatprep.subr.bf16.mxu0 %v1062
    %1286 = vmatpush1.bf16.msra.mxu0 %v1061
    %1287 = vmatprep.subr.bf16.mxu0 %v1069
    %1288 = vmatpush1.bf16.msra.mxu0 %v1068
    %1289 = vmatprep.subr.bf16.mxu0 %v1076
    %1290 = vmatpush1.bf16.msra.mxu0 %v1075
    %1291 = vmatprep.subr.bf16.mxu0 %v1083
    %1292 = vmatpush1.bf16.msra.mxu0 %v1082
    %1293 = vmatprep.subr.bf16.mxu0 %v1090
    %1294 = vmatpush1.bf16.msra.mxu0 %v1089
    %1295 = vmatprep.subr.bf16.mxu0 %v1097
    %1296 = vmatpush1.bf16.msra.mxu0 %v1096
    %1297 = vmatprep.subr.bf16.mxu0 %v1104
    %1298 = vmatpush1.bf16.msra.mxu0 %v1103
    %1299 = vmatprep.subr.bf16.mxu0 %v1111
    %1300 = vmatpush1.bf16.msra.mxu0 %v1110
    %1301 = vmatprep.subr.bf16.mxu0 %v1118
    %1302 = vmatpush1.bf16.msra.mxu0 %v1117
    %1303 = vmatprep.subr.bf16.mxu0 %v1125
    %1304 = vmatpush1.bf16.msra.mxu0 %v1124
    %1305 = vmatprep.subr.bf16.mxu0 %v1132
    %1306 = vmatpush1.bf16.msra.mxu0 %v1131
    %1307 = vmatprep.subr.bf16.mxu0 %v1139
    %1308 = vmatpush1.bf16.msra.mxu0 %v1138
    %1309 = vmatprep.subr.bf16.mxu0 %v1146
    %1310 = vmatpush1.bf16.msra.mxu0 %v1145
    %1311 = vmatprep.subr.bf16.mxu0 %v1153
    %1312 = vmatpush1.bf16.msra.mxu0 %v1152
    %1313 = vmatprep.subr.bf16.mxu0 %v1160
    %1314 = vmatpush1.bf16.msra.mxu0 %v1159
    %1315 = vmatprep.subr.bf16.mxu0 %v1167
    %1316 = vmatpush1.bf16.msra.mxu0 %v1166
    %1317 = vmatprep.mubr.bf16.mxu0 %v156
    %1318 = vmatmul.mubr.bf16.gmra.mrb[0].mxu0 %v155
    %v1319 = vpop.f32.mrb[0].mxu0
    %v1320 = vadd.f32 0.0, %v1319
    %v1321 = vpop.f32.mrb[0].mxu0
    %v1322 = vadd.f32 0.0, %v1321
    %v1323 = vpop.f32.mrb[0].mxu0
    %v1324 = vpop.f32.mrb[0].mxu0
    %1325 = vdwg.mxu0
    %1326 = vmatprep.subr.bf16.mxu0 %v1064
    %1327 = vmatpush1.bf16.msra.mxu0 %v1063
    %1328 = vmatprep.subr.bf16.mxu0 %v1071
    %1329 = vmatpush1.bf16.msra.mxu0 %v1070
    %1330 = vmatprep.subr.bf16.mxu0 %v1078
    %1331 = vmatpush1.bf16.msra.mxu0 %v1077
    %1332 = vmatprep.subr.bf16.mxu0 %v1085
    %1333 = vmatpush1.bf16.msra.mxu0 %v1084
    %1334 = vmatprep.subr.bf16.mxu0 %v1092
    %1335 = vmatpush1.bf16.msra.mxu0 %v1091
    %1336 = vmatprep.subr.bf16.mxu0 %v1099
    %1337 = vmatpush1.bf16.msra.mxu0 %v1098
    %1338 = vmatprep.subr.bf16.mxu0 %v1106
    %1339 = vmatpush1.bf16.msra.mxu0 %v1105
    %1340 = vmatprep.subr.bf16.mxu0 %v1113
    %1341 = vmatpush1.bf16.msra.mxu0 %v1112
    %1342 = vmatprep.subr.bf16.mxu0 %v1120
    %1343 = vmatpush1.bf16.msra.mxu0 %v1119
    %1344 = vmatprep.subr.bf16.mxu0 %v1127
    %1345 = vmatpush1.bf16.msra.mxu0 %v1126
    %1346 = vmatprep.subr.bf16.mxu0 %v1134
    %1347 = vmatpush1.bf16.msra.mxu0 %v1133
    %1348 = vmatprep.subr.bf16.mxu0 %v1141
    %1349 = vmatpush1.bf16.msra.mxu0 %v1140
    %1350 = vmatprep.subr.bf16.mxu0 %v1148
    %1351 = vmatpush1.bf16.msra.mxu0 %v1147
    %1352 = vmatprep.subr.bf16.mxu0 %v1155
    %1353 = vmatpush1.bf16.msra.mxu0 %v1154
    %1354 = vmatprep.subr.bf16.mxu0 %v1162
    %1355 = vmatpush1.bf16.msra.mxu0 %v1161
    %1356 = vmatprep.subr.bf16.mxu0 %v1169
    %1357 = vmatpush1.bf16.msra.mxu0 %v1168
    %1358 = vmatprep.mubr.bf16.mxu0 %v156
    %1359 = vmatmul.mubr.bf16.gmra.mrb[0].mxu0 %v155
    %v1360 = vpop.f32.mrb[0].mxu0
    %v1361 = vadd.f32 0.0, %v1360
    %v1362 = vpop.f32.mrb[0].mxu0
    %v1363 = vadd.f32 0.0, %v1362
    %v1364 = vpop.f32.mrb[0].mxu0
    %v1365 = vpop.f32.mrb[0].mxu0
    %1366 = vdwg.mxu0
    %1367 = vmatprep.subr.bf16.mxu0 %v1066
    %1368 = vmatpush1.bf16.msra.mxu0 %v1065
    %1369 = vmatprep.subr.bf16.mxu0 %v1073
    %1370 = vmatpush1.bf16.msra.mxu0 %v1072
    %1371 = vmatprep.subr.bf16.mxu0 %v1080
    %1372 = vmatpush1.bf16.msra.mxu0 %v1079
    %1373 = vmatprep.subr.bf16.mxu0 %v1087
    %1374 = vmatpush1.bf16.msra.mxu0 %v1086
    %1375 = vmatprep.subr.bf16.mxu0 %v1094
    %1376 = vmatpush1.bf16.msra.mxu0 %v1093
    %1377 = vmatprep.subr.bf16.mxu0 %v1101
    %1378 = vmatpush1.bf16.msra.mxu0 %v1100
    %1379 = vmatprep.subr.bf16.mxu0 %v1108
    %1380 = vmatpush1.bf16.msra.mxu0 %v1107
    %1381 = vmatprep.subr.bf16.mxu0 %v1115
    %1382 = vmatpush1.bf16.msra.mxu0 %v1114
    %1383 = vmatprep.subr.bf16.mxu0 %v1122
    %1384 = vmatpush1.bf16.msra.mxu0 %v1121
    %1385 = vmatprep.subr.bf16.mxu0 %v1129
    %1386 = vmatpush1.bf16.msra.mxu0 %v1128
    %1387 = vmatprep.subr.bf16.mxu0 %v1136
    %1388 = vmatpush1.bf16.msra.mxu0 %v1135
    %1389 = vmatprep.subr.bf16.mxu0 %v1143
    %1390 = vmatpush1.bf16.msra.mxu0 %v1142
    %1391 = vmatprep.subr.bf16.mxu0 %v1150
    %1392 = vmatpush1.bf16.msra.mxu0 %v1149
    %1393 = vmatprep.subr.bf16.mxu0 %v1157
    %1394 = vmatpush1.bf16.msra.mxu0 %v1156
    %1395 = vmatprep.subr.bf16.mxu0 %v1164
    %1396 = vmatpush1.bf16.msra.mxu0 %v1163
    %1397 = vmatprep.subr.bf16.mxu0 %v1171
    %1398 = vmatpush1.bf16.msra.mxu0 %v1170
    %1399 = vmatprep.mubr.bf16.mxu0 %v156
    %1400 = vmatmul.mubr.bf16.gmra.mrb[0].mxu0 %v155
    %v1401 = vpop.f32.mrb[0].mxu0
    %v1402 = vadd.f32 0.0, %v1401
    %v1403 = vpop.f32.mrb[0].mxu0
    %v1404 = vadd.f32 0.0, %v1403
    %v1405 = vpop.f32.mrb[0].mxu0
    %v1406 = vpop.f32.mrb[0].mxu0
    %1407 = vdwg.mxu0
    %1408 = vmatprep.subr.bf16.mxu0 0
    %1409 = vmatpush1.bf16.msra.mxu0 %v1067
    %1410 = vmatprep.subr.bf16.mxu0 0
    %1411 = vmatpush1.bf16.msra.mxu0 %v1074
    %1412 = vmatprep.subr.bf16.mxu0 0
    %1413 = vmatpush1.bf16.msra.mxu0 %v1081
    %1414 = vmatprep.subr.bf16.mxu0 0
    %1415 = vmatpush1.bf16.msra.mxu0 %v1088
    %1416 = vmatprep.subr.bf16.mxu0 0
    %1417 = vmatpush1.bf16.msra.mxu0 %v1095
    %1418 = vmatprep.subr.bf16.mxu0 0
    %1419 = vmatpush1.bf16.msra.mxu0 %v1102
    %1420 = vmatprep.subr.bf16.mxu0 0
    %1421 = vmatpush1.bf16.msra.mxu0 %v1109
    %1422 = vmatprep.subr.bf16.mxu0 0
    %1423 = vmatpush1.bf16.msra.mxu0 %v1116
    %1424 = vmatprep.subr.bf16.mxu0 0
    %1425 = vmatpush1.bf16.msra.mxu0 %v1123
    %1426 = vmatprep.subr.bf16.mxu0 0
    %1427 = vmatpush1.bf16.msra.mxu0 %v1130
    %1428 = vmatprep.subr.bf16.mxu0 0
    %1429 = vmatpush1.bf16.msra.mxu0 %v1137
    %1430 = vmatprep.subr.bf16.mxu0 0
    %1431 = vmatpush1.bf16.msra.mxu0 %v1144
    %1432 = vmatprep.subr.bf16.mxu0 0
    %1433 = vmatpush1.bf16.msra.mxu0 %v1151
    %1434 = vmatprep.subr.bf16.mxu0 0
    %1435 = vmatpush1.bf16.msra.mxu0 %v1158
    %1436 = vmatprep.subr.bf16.mxu0 0
    %1437 = vmatpush1.bf16.msra.mxu0 %v1165
    %1438 = vmatprep.subr.bf16.mxu0 0
    %1439 = vmatpush1.bf16.msra.mxu0 %v1172
    %1440 = vmatprep.mubr.bf16.mxu0 %v156
    %1441 = vmatmul.mubr.bf16.gmra.mrb[0].mxu0 %v155
    %v1442 = vpop.f32.mrb[0].mxu0
    %v1443 = vadd.f32 0.0, %v1442
    %v1444 = vpop.f32.mrb[0].mxu0
    %v1445 = vpop.f32.mrb[0].mxu0
    %v1446 = vpop.f32.mrb[0].mxu0
    %1447 = vdwg.mxu0
    %v1448 = vadd.f32 %v535, %v1320
    %v1449 = vadd.f32 %v1448, %v138
    %vm1450 = vcmask 1040384
    %v1451 = vsel %vm1450, %v1449, -inf
    %1452 = vmax.xlane.f32.xlu0 %v1451
    %v1453 = vpop.xlane.xlu0 %1452
    %v1454 = vsub.f32 %v1449, %v1453
    %v1455 = vmul.f32 %v1454, 1.442695
    %v1456 = vpow.pop %v1455
    %v1457 = vsel %vm1450, %v1456, 0.0
    %1458 = vadd.xlane.f32.xlu0 %v1457
    %v1459 = vpop.xlane.xlu0 %1458
    %v1460 = vrcp.pop %v1459
    %v1461 = vmul.f32 %v1456, %v1460
    %1462 = vst [vmem:[#allocation19] sm:$0x1] %v1461
    %v1463 = vpack.c.bf16 %v1461, %v1461
    %v1464 = vld [vmem:[#allocation7] sm:$0xff]
    %v1465 = vld [vmem:[#allocation7 + $0x8] sm:$0xff]
    %v1466 = vld [vmem:[#allocation7 + $0x10] sm:$0xff]
    %v1467 = vld [vmem:[#allocation7 + $0x18] sm:$0xff]
    %v1468 = vld [vmem:[#allocation7 + $0x20] sm:$0xff]
    %v1469 = vld [vmem:[#allocation7 + $0x28] sm:$0xff]
    %v1470 = vld [vmem:[#allocation7 + $0x30] sm:$0xff]
    %v1471 = vld [vmem:[#allocation7 + $0x38] sm:$0xff]
    %v1472 = vld [vmem:[#allocation7 + $0x40] sm:$0xff]
    %v1473 = vld [vmem:[#allocation7 + $0x48] sm:$0xff]
    %v1474 = vld [vmem:[#allocation7 + $0x50] sm:$0xff]
    %v1475 = vld [vmem:[#allocation7 + $0x58] sm:$0xff]
    %v1476 = vld [vmem:[#allocation7 + $0x60] sm:$0xff]
    %v1477 = vld [vmem:[#allocation7 + $0x68] sm:$0xff]
    %v1478 = vld [vmem:[#allocation7 + $0x70] sm:$0xff]
    %v1479 = vld [vmem:[#allocation7 + $0x78] sm:$0xff]
    %v1496 = vunpack.c.l.b16 %v1464
    %v1497 = vunpack.c.h.b16 %v1464
    %v1498 = vunpack.c.l.b16 %v1465
    %v1499 = vunpack.c.h.b16 %v1465
    %v1500 = vunpack.c.l.b16 %v1466
    %v1501 = vunpack.c.h.b16 %v1466
    %v1502 = vunpack.c.l.b16 %v1467
    %v1503 = vunpack.c.h.b16 %v1467
    %v1504 = vunpack.c.l.b16 %v1468
    %v1505 = vunpack.c.h.b16 %v1468
    %v1506 = vunpack.c.l.b16 %v1469
    %v1507 = vunpack.c.h.b16 %v1469
    %v1508 = vunpack.c.l.b16 %v1470
    %v1509 = vunpack.c.h.b16 %v1470
    %v1510 = vunpack.c.l.b16 %v1471
    %v1511 = vunpack.c.h.b16 %v1471
    %v1512 = vunpack.c.l.b16 %v1472
    %v1513 = vunpack.c.h.b16 %v1472
    %v1514 = vunpack.c.l.b16 %v1473
    %v1515 = vunpack.c.h.b16 %v1473
    %v1516 = vunpack.c.l.b16 %v1474
    %v1517 = vunpack.c.h.b16 %v1474
    %v1518 = vunpack.c.l.b16 %v1475
    %v1519 = vunpack.c.h.b16 %v1475
    %v1520 = vunpack.c.l.b16 %v1476
    %v1521 = vunpack.c.h.b16 %v1476
    %v1522 = vunpack.c.l.b16 %v1477
    %v1523 = vunpack.c.h.b16 %v1477
    %v1524 = vunpack.c.l.b16 %v1478
    %v1525 = vunpack.c.h.b16 %v1478
    %v1526 = vunpack.c.l.b16 %v1479
    %v1527 = vunpack.c.h.b16 %v1479
    %v1528 = vpack.c.b16 %v1498, %v1496
    %v1529 = vpack.c.b16 %v1499, %v1497
    %v1530 = vpack.c.b16 %v1502, %v1500
    %v1531 = vpack.c.b16 %v1503, %v1501
    %v1532 = vpack.c.b16 %v1506, %v1504
    %v1533 = vpack.c.b16 %v1507, %v1505
    %v1534 = vpack.c.b16 %v1510, %v1508
    %v1535 = vpack.c.b16 %v1511, %v1509
    %v1536 = vpack.c.b16 %v1514, %v1512
    %v1537 = vpack.c.b16 %v1515, %v1513
    %v1538 = vpack.c.b16 %v1518, %v1516
    %v1539 = vpack.c.b16 %v1519, %v1517
    %v1540 = vpack.c.b16 %v1522, %v1520
    %v1541 = vpack.c.b16 %v1523, %v1521
    %v1542 = vpack.c.b16 %v1526, %v1524
    %v1543 = vpack.c.b16 %v1527, %v1525
    %1560 = vmatprep.subr.bf16.mxu0 %v1529
    %1561 = vmatpush1.bf16.msra.mxu0 %v1528
    %1562 = vmatprep.subr.bf16.mxu0 %v1531
    %1563 = vmatpush1.bf16.msra.mxu0 %v1530
    %1564 = vmatprep.subr.bf16.mxu0 %v1533
    %1565 = vmatpush1.bf16.msra.mxu0 %v1532
    %1566 = vmatprep.subr.bf16.mxu0 %v1535
    %1567 = vmatpush1.bf16.msra.mxu0 %v1534
    %1568 = vmatprep.subr.bf16.mxu0 %v1537
    %1569 = vmatpush1.bf16.msra.mxu0 %v1536
    %1570 = vmatprep.subr.bf16.mxu0 %v1539
    %1571 = vmatpush1.bf16.msra.mxu0 %v1538
    %1572 = vmatprep.subr.bf16.mxu0 %v1541
    %1573 = vmatpush1.bf16.msra.mxu0 %v1540
    %1574 = vmatprep.subr.bf16.mxu0 %v1543
    %1575 = vmatpush1.bf16.msra.mxu0 %v1542
    %1576 = vmatprep.subr.bf16.mxu0 0
    %1577 = vmatpush1.bf16.msra.mxu0 0
    %1578 = vmatprep.subr.bf16.mxu0 0
    %1579 = vmatpush1.bf16.msra.mxu0 0
    %1580 = vmatprep.subr.bf16.mxu0 0
    %1581 = vmatpush1.bf16.msra.mxu0 0
    %1582 = vmatprep.subr.bf16.mxu0 0
    %1583 = vmatpush1.bf16.msra.mxu0 0
    %1584 = vmatprep.subr.bf16.mxu0 0
    %1585 = vmatpush1.bf16.msra.mxu0 0
    %1586 = vmatprep.subr.bf16.mxu0 0
    %1587 = vmatpush1.bf16.msra.mxu0 0
    %1588 = vmatprep.subr.bf16.mxu0 0
    %1589 = vmatpush1.bf16.msra.mxu0 0
    %1590 = vmatprep.subr.bf16.mxu0 0
    %1591 = vmatpush1.bf16.msra.mxu0 0
    %1592 = vmatprep.mubr.bf16.mxu0 0
    %1593 = vmatmul.mubr.bf16.gmra.mrb[0].mxu0 %v1463
    %v1594 = vpop.f32.mrb[0].mxu0
    %v1595 = vadd.f32 0.0, %v1594
    %v1596 = vpop.f32.mrb[0].mxu0
    %v1597 = vadd.f32 0.0, %v1596
    %v1598 = vpop.f32.mrb[0].mxu0
    %v1599 = vpop.f32.mrb[0].mxu0
    %1600 = vdwg.mxu0
    %v1601 = vpack.c.bf16 %v1595, %v1595
    %v1602 = vpack.c.bf16 %v1597, %v1597
    %v1603 = vld [vmem:[#allocation12] sm:$0xff]
    %v1604 = vld [vmem:[#allocation12 + $0x8] sm:$0xff]
    %v1605 = vld [vmem:[#allocation12 + $0x10] sm:$0xff]
    %v1606 = vld [vmem:[#allocation12 + $0x18] sm:$0xff]
    %v1607 = vld [vmem:[#allocation12 + $0x20] sm:$0xff]
    %v1608 = vld [vmem:[#allocation12 + $0x28] sm:$0xff]
    %v1609 = vld [vmem:[#allocation12 + $0x30] sm:$0xff]
    %v1610 = vld [vmem:[#allocation12 + $0x38] sm:$0xff]
    %v1611 = vld [vmem:[#allocation12 + $0x40] sm:$0xff]
    %v1612 = vld [vmem:[#allocation12 + $0x48] sm:$0xff]
    %v1613 = vld [vmem:[#allocation12 + $0x50] sm:$0xff]
    %v1614 = vld [vmem:[#allocation12 + $0x58] sm:$0xff]
    %v1615 = vld [vmem:[#allocation12 + $0x60] sm:$0xff]
    %v1616 = vld [vmem:[#allocation12 + $0x68] sm:$0xff]
    %v1617 = vld [vmem:[#allocation12 + $0x70] sm:$0xff]
    %v1618 = vld [vmem:[#allocation12 + $0x78] sm:$0xff]
    %v1619 = vld [vmem:[#allocation12 + $0x80] sm:$0xff]
    %v1620 = vld [vmem:[#allocation12 + $0x88] sm:$0xff]
    %v1621 = vld [vmem:[#allocation12 + $0x90] sm:$0xff]
    %v1622 = vld [vmem:[#allocation12 + $0x98] sm:$0xff]
    %v1623 = vld [vmem:[#allocation12 + $0xa0] sm:$0xff]
    %v1624 = vld [vmem:[#allocation12 + $0xa8] sm:$0xff]
    %v1625 = vld [vmem:[#allocation12 + $0xb0] sm:$0xff]
    %v1626 = vld [vmem:[#allocation12 + $0xb8] sm:$0xff]
    %v1627 = vld [vmem:[#allocation12 + $0xc0] sm:$0xff]
    %v1628 = vld [vmem:[#allocation12 + $0xc8] sm:$0xff]
    %v1629 = vld [vmem:[#allocation12 + $0xd0] sm:$0xff]
    %v1630 = vld [vmem:[#allocation12 + $0xd8] sm:$0xff]
    %v1631 = vld [vmem:[#allocation12 + $0xe0] sm:$0xff]
    %v1632 = vld [vmem:[#allocation12 + $0xe8] sm:$0xff]
    %v1633 = vld [vmem:[#allocation12 + $0xf0] sm:$0xff]
    %v1634 = vld [vmem:[#allocation12 + $0xf8] sm:$0xff]
    %v1667 = vunpack.c.l.b16 %v1603
    %v1668 = vunpack.c.h.b16 %v1603
    %v1669 = vunpack.c.l.b16 %v1604
    %v1670 = vunpack.c.h.b16 %v1604
    %v1671 = vunpack.c.l.b16 %v1605
    %v1672 = vunpack.c.h.b16 %v1605
    %v1673 = vunpack.c.l.b16 %v1606
    %v1674 = vunpack.c.h.b16 %v1606
    %v1675 = vunpack.c.l.b16 %v1607
    %v1676 = vunpack.c.h.b16 %v1607
    %v1677 = vunpack.c.l.b16 %v1608
    %v1678 = vunpack.c.h.b16 %v1608
    %v1679 = vunpack.c.l.b16 %v1609
    %v1680 = vunpack.c.h.b16 %v1609
    %v1681 = vunpack.c.l.b16 %v1610
    %v1682 = vunpack.c.h.b16 %v1610
    %v1683 = vunpack.c.l.b16 %v1611
    %v1684 = vunpack.c.h.b16 %v1611
    %v1685 = vunpack.c.l.b16 %v1612
    %v1686 = vunpack.c.h.b16 %v1612
    %v1687 = vunpack.c.l.b16 %v1613
    %v1688 = vunpack.c.h.b16 %v1613
    %v1689 = vunpack.c.l.b16 %v1614
    %v1690 = vunpack.c.h.b16 %v1614
    %v1691 = vunpack.c.l.b16 %v1615
    %v1692 = vunpack.c.h.b16 %v1615
    %v1693 = vunpack.c.l.b16 %v1616
    %v1694 = vunpack.c.h.b16 %v1616
    %v1695 = vunpack.c.l.b16 %v1617
    %v1696 = vunpack.c.h.b16 %v1617
    %v1697 = vunpack.c.l.b16 %v1618
    %v1698 = vunpack.c.h.b16 %v1618
    %v1699 = vunpack.c.l.b16 %v1619
    %v1700 = vunpack.c.h.b16 %v1619
    %v1701 = vunpack.c.l.b16 %v1620
    %v1702 = vunpack.c.h.b16 %v1620
    %v1703 = vunpack.c.l.b16 %v1621
    %v1704 = vunpack.c.h.b16 %v1621
    %v1705 = vunpack.c.l.b16 %v1622
    %v1706 = vunpack.c.h.b16 %v1622
    %v1707 = vunpack.c.l.b16 %v1623
    %v1708 = vunpack.c.h.b16 %v1623
    %v1709 = vunpack.c.l.b16 %v1624
    %v1710 = vunpack.c.h.b16 %v1624
    %v1711 = vunpack.c.l.b16 %v1625
    %v1712 = vunpack.c.h.b16 %v1625
    %v1713 = vunpack.c.l.b16 %v1626
    %v1714 = vunpack.c.h.b16 %v1626
    %v1715 = vunpack.c.l.b16 %v1627
    %v1716 = vunpack.c.h.b16 %v1627
    %v1717 = vunpack.c.l.b16 %v1628
    %v1718 = vunpack.c.h.b16 %v1628
    %v1719 = vunpack.c.l.b16 %v1629
    %v1720 = vunpack.c.h.b16 %v1629
    %v1721 = vunpack.c.l.b16 %v1630
    %v1722 = vunpack.c.h.b16 %v1630
    %v1723 = vunpack.c.l.b16 %v1631
    %v1724 = vunpack.c.h.b16 %v1631
    %v1725 = vunpack.c.l.b16 %v1632
    %v1726 = vunpack.c.h.b16 %v1632
    %v1727 = vunpack.c.l.b16 %v1633
    %v1728 = vunpack.c.h.b16 %v1633
    %v1729 = vunpack.c.l.b16 %v1634
    %v1730 = vunpack.c.h.b16 %v1634
    %v1731 = vpack.c.b16 %v1669, %v1667
    %v1732 = vpack.c.b16 %v1670, %v1668
    %v1733 = vpack.c.b16 %v1673, %v1671
    %v1734 = vpack.c.b16 %v1674, %v1672
    %v1735 = vpack.c.b16 %v1677, %v1675
    %v1736 = vpack.c.b16 %v1678, %v1676
    %v1737 = vpack.c.b16 %v1681, %v1679
    %v1738 = vpack.c.b16 %v1682, %v1680
    %v1739 = vpack.c.b16 %v1685, %v1683
    %v1740 = vpack.c.b16 %v1686, %v1684
    %v1741 = vpack.c.b16 %v1689, %v1687
    %v1742 = vpack.c.b16 %v1690, %v1688
    %v1743 = vpack.c.b16 %v1693, %v1691
    %v1744 = vpack.c.b16 %v1694, %v1692
    %v1745 = vpack.c.b16 %v1697, %v1695
    %v1746 = vpack.c.b16 %v1698, %v1696
    %v1747 = vpack.c.b16 %v1701, %v1699
    %v1748 = vpack.c.b16 %v1702, %v1700
    %v1749 = vpack.c.b16 %v1705, %v1703
    %v1750 = vpack.c.b16 %v1706, %v1704
    %v1751 = vpack.c.b16 %v1709, %v1707
    %v1752 = vpack.c.b16 %v1710, %v1708
    %v1753 = vpack.c.b16 %v1713, %v1711
    %v1754 = vpack.c.b16 %v1714, %v1712
    %v1755 = vpack.c.b16 %v1717, %v1715
    %v1756 = vpack.c.b16 %v1718, %v1716
    %v1757 = vpack.c.b16 %v1721, %v1719
    %v1758 = vpack.c.b16 %v1722, %v1720
    %v1759 = vpack.c.b16 %v1725, %v1723
    %v1760 = vpack.c.b16 %v1726, %v1724
    %v1761 = vpack.c.b16 %v1729, %v1727
    %v1762 = vpack.c.b16 %v1730, %v1728
    %1795 = vmatprep.subr.bf16.mxu0 %v1732
    %1796 = vmatpush1.bf16.msra.mxu0 %v1731
    %1797 = vmatprep.subr.bf16.mxu0 %v1734
    %1798 = vmatpush1.bf16.msra.mxu0 %v1733
    %1799 = vmatprep.subr.bf16.mxu0 %v1736
    %1800 = vmatpush1.bf16.msra.mxu0 %v1735
    %1801 = vmatprep.subr.bf16.mxu0 %v1738
    %1802 = vmatpush1.bf16.msra.mxu0 %v1737
    %1803 = vmatprep.subr.bf16.mxu0 %v1740
    %1804 = vmatpush1.bf16.msra.mxu0 %v1739
    %1805 = vmatprep.subr.bf16.mxu0 %v1742
    %1806 = vmatpush1.bf16.msra.mxu0 %v1741
    %1807 = vmatprep.subr.bf16.mxu0 %v1744
    %1808 = vmatpush1.bf16.msra.mxu0 %v1743
    %1809 = vmatprep.subr.bf16.mxu0 %v1746
    %1810 = vmatpush1.bf16.msra.mxu0 %v1745
    %1811 = vmatprep.subr.bf16.mxu0 %v1748
    %1812 = vmatpush1.bf16.msra.mxu0 %v1747
    %1813 = vmatprep.subr.bf16.mxu0 %v1750
    %1814 = vmatpush1.bf16.msra.mxu0 %v1749
    %1815 = vmatprep.subr.bf16.mxu0 %v1752
    %1816 = vmatpush1.bf16.msra.mxu0 %v1751
    %1817 = vmatprep.subr.bf16.mxu0 %v1754
    %1818 = vmatpush1.bf16.msra.mxu0 %v1753
    %1819 = vmatprep.subr.bf16.mxu0 %v1756
    %1820 = vmatpush1.bf16.msra.mxu0 %v1755
    %1821 = vmatprep.subr.bf16.mxu0 %v1758
    %1822 = vmatpush1.bf16.msra.mxu0 %v1757
    %1823 = vmatprep.subr.bf16.mxu0 %v1760
    %1824 = vmatpush1.bf16.msra.mxu0 %v1759
    %1825 = vmatprep.subr.bf16.mxu0 %v1762
    %1826 = vmatpush1.bf16.msra.mxu0 %v1761
    %1827 = vmatprep.mubr.bf16.mxu0 %v1602
    %1828 = vmatmul.mubr.bf16.gmra.mrb[0].mxu0 %v1601
    %v1829 = vpop.f32.mrb[0].mxu0
    %v1830 = vadd.f32 0.0, %v1829
    %v1831 = vpop.f32.mrb[0].mxu0
    %v1832 = vadd.f32 0.0, %v1831
    %v1833 = vpop.f32.mrb[0].mxu0
    %v1834 = vpop.f32.mrb[0].mxu0
    %1835 = vdwg.mxu0
    %v1836 = vadd.f32 %v537, %v1830
    %v1837 = vadd.f32 %v576, %v1832
    %v1839 = vlaneseq
    %v1840 = vshrl.u32 %v1839, 7
    %v1841 = vsub.s32 0, %v1840
    %v1842 = vrot.slane %v139, %v1841
    %v1843 = vlaneseq
    %v1844 = vshrl.u32 %v1843, 7
    %v1845 = vsub.s32 1, %v1844
    %v1846 = vrot.slane %v139, %v1845
    %v1849 = vadd.f32 %v1836, %v1842
    %v1850 = vadd.f32 %v1837, %v1846
    %v1851 = vmax.f32 %v1849, 0.0
    %v1852 = vmax.f32 %v1850, 0.0
    %v1853 = vpack.c.bf16 %v1851, %v1851
    %v1854 = vpack.c.bf16 %v1852, %v1852
    %v1855 = vld [vmem:[#allocation13] sm:$0xff]
    %v1856 = vld [vmem:[#allocation13 + $0x8] sm:$0xff]
    %v1857 = vld [vmem:[#allocation13 + $0x10] sm:$0xff]
    %v1858 = vld [vmem:[#allocation13 + $0x18] sm:$0xff]
    %v1859 = vld [vmem:[#allocation13 + $0x20] sm:$0xff]
    %v1860 = vld [vmem:[#allocation13 + $0x28] sm:$0xff]
    %v1861 = vld [vmem:[#allocation13 + $0x30] sm:$0xff]
    %v1862 = vld [vmem:[#allocation13 + $0x38] sm:$0xff]
    %v1863 = vld [vmem:[#allocation13 + $0x40] sm:$0xff]
    %v1864 = vld [vmem:[#allocation13 + $0x48] sm:$0xff]
    %v1865 = vld [vmem:[#allocation13 + $0x50] sm:$0xff]
    %v1866 = vld [vmem:[#allocation13 + $0x58] sm:$0xff]
    %v1867 = vld [vmem:[#allocation13 + $0x60] sm:$0xff]
    %v1868 = vld [vmem:[#allocation13 + $0x68] sm:$0xff]
    %v1869 = vld [vmem:[#allocation13 + $0x70] sm:$0xff]
    %v1870 = vld [vmem:[#allocation13 + $0x78] sm:$0xff]
    %v1871 = vld [vmem:[#allocation13 + $0x80] sm:$0xff]
    %v1872 = vld [vmem:[#allocation13 + $0x88] sm:$0xff]
    %v1873 = vld [vmem:[#allocation13 + $0x90] sm:$0xff]
    %v1874 = vld [vmem:[#allocation13 + $0x98] sm:$0xff]
    %v1875 = vld [vmem:[#allocation13 + $0xa0] sm:$0xff]
    %v1876 = vld [vmem:[#allocation13 + $0xa8] sm:$0xff]
    %v1877 = vld [vmem:[#allocation13 + $0xb0] sm:$0xff]
    %v1878 = vld [vmem:[#allocation13 + $0xb8] sm:$0xff]
    %v1879 = vld [vmem:[#allocation13 + $0xc0] sm:$0xff]
    %v1880 = vld [vmem:[#allocation13 + $0xc8] sm:$0xff]
    %v1881 = vld [vmem:[#allocation13 + $0xd0] sm:$0xff]
    %v1882 = vld [vmem:[#allocation13 + $0xd8] sm:$0xff]
    %v1883 = vld [vmem:[#allocation13 + $0xe0] sm:$0xff]
    %v1884 = vld [vmem:[#allocation13 + $0xe8] sm:$0xff]
    %v1885 = vld [vmem:[#allocation13 + $0xf0] sm:$0xff]
    %v1886 = vld [vmem:[#allocation13 + $0xf8] sm:$0xff]
    %v1887 = vld [vmem:[#allocation13 + $0x100] sm:$0xff]
    %v1888 = vld [vmem:[#allocation13 + $0x108] sm:$0xff]
    %v1889 = vld [vmem:[#allocation13 + $0x110] sm:$0xff]
    %v1890 = vld [vmem:[#allocation13 + $0x118] sm:$0xff]
    %v1891 = vld [vmem:[#allocation13 + $0x120] sm:$0xff]
    %v1892 = vld [vmem:[#allocation13 + $0x128] sm:$0xff]
    %v1893 = vld [vmem:[#allocation13 + $0x130] sm:$0xff]
    %v1894 = vld [vmem:[#allocation13 + $0x138] sm:$0xff]
    %v1895 = vld [vmem:[#allocation13 + $0x140] sm:$0xff]
    %v1896 = vld [vmem:[#allocation13 + $0x148] sm:$0xff]
    %v1897 = vld [vmem:[#allocation13 + $0x150] sm:$0xff]
    %v1898 = vld [vmem:[#allocation13 + $0x158] sm:$0xff]
    %v1899 = vld [vmem:[#allocation13 + $0x160] sm:$0xff]
    %v1900 = vld [vmem:[#allocation13 + $0x168] sm:$0xff]
    %v1901 = vld [vmem:[#allocation13 + $0x170] sm:$0xff]
    %v1902 = vld [vmem:[#allocation13 + $0x178] sm:$0xff]
    %v1903 = vld [vmem:[#allocation13 + $0x180] sm:$0xff]
    %v1904 = vld [vmem:[#allocation13 + $0x188] sm:$0xff]
    %v1905 = vld [vmem:[#allocation13 + $0x190] sm:$0xff]
    %v1906 = vld [vmem:[#allocation13 + $0x198] sm:$0xff]
    %v1907 = vld [vmem:[#allocation13 + $0x1a0] sm:$0xff]
    %v1908 = vld [vmem:[#allocation13 + $0x1a8] sm:$0xff]
    %v1909 = vld [vmem:[#allocation13 + $0x1b0] sm:$0xff]
    %v1910 = vld [vmem:[#allocation13 + $0x1b8] sm:$0xff]
    %v1911 = vld [vmem:[#allocation13 + $0x1c0] sm:$0xff]
    %v1912 = vld [vmem:[#allocation13 + $0x1c8] sm:$0xff]
    %v1913 = vld [vmem:[#allocation13 + $0x1d0] sm:$0xff]
    %v1914 = vld [vmem:[#allocation13 + $0x1d8] sm:$0xff]
    %v1915 = vld [vmem:[#allocation13 + $0x1e0] sm:$0xff]
    %v1916 = vld [vmem:[#allocation13 + $0x1e8] sm:$0xff]
    %v1917 = vld [vmem:[#allocation13 + $0x1f0] sm:$0xff]
    %v1918 = vld [vmem:[#allocation13 + $0x1f8] sm:$0xff]
    %v1919 = vld [vmem:[#allocation13 + $0x200] sm:$0xff]
    %v1920 = vld [vmem:[#allocation13 + $0x208] sm:$0xff]
    %v1921 = vld [vmem:[#allocation13 + $0x210] sm:$0xff]
    %v1922 = vld [vmem:[#allocation13 + $0x218] sm:$0xff]
    %v1923 = vld [vmem:[#allocation13 + $0x220] sm:$0xff]
    %v1924 = vld [vmem:[#allocation13 + $0x228] sm:$0xff]
    %v1925 = vld [vmem:[#allocation13 + $0x230] sm:$0xff]
    %v1926 = vld [vmem:[#allocation13 + $0x238] sm:$0xff]
    %v1927 = vld [vmem:[#allocation13 + $0x240] sm:$0xff]
    %v1928 = vld [vmem:[#allocation13 + $0x248] sm:$0xff]
    %v1929 = vld [vmem:[#allocation13 + $0x250] sm:$0xff]
    %v1930 = vld [vmem:[#allocation13 + $0x258] sm:$0xff]
    %v1931 = vld [vmem:[#allocation13 + $0x260] sm:$0xff]
    %v1932 = vld [vmem:[#allocation13 + $0x268] sm:$0xff]
    %v1933 = vld [vmem:[#allocation13 + $0x270] sm:$0xff]
    %v1934 = vld [vmem:[#allocation13 + $0x278] sm:$0xff]
    %v1935 = vld [vmem:[#allocation13 + $0x280] sm:$0xff]
    %v1936 = vld [vmem:[#allocation13 + $0x288] sm:$0xff]
    %v1937 = vld [vmem:[#allocation13 + $0x290] sm:$0xff]
    %v1938 = vld [vmem:[#allocation13 + $0x298] sm:$0xff]
    %v1939 = vld [vmem:[#allocation13 + $0x2a0] sm:$0xff]
    %v1940 = vld [vmem:[#allocation13 + $0x2a8] sm:$0xff]
    %v1941 = vld [vmem:[#allocation13 + $0x2b0] sm:$0xff]
    %v1942 = vld [vmem:[#allocation13 + $0x2b8] sm:$0xff]
    %v1943 = vld [vmem:[#allocation13 + $0x2c0] sm:$0xff]
    %v1944 = vld [vmem:[#allocation13 + $0x2c8] sm:$0xff]
    %v1945 = vld [vmem:[#allocation13 + $0x2d0] sm:$0xff]
    %v1946 = vld [vmem:[#allocation13 + $0x2d8] sm:$0xff]
    %v1947 = vld [vmem:[#allocation13 + $0x2e0] sm:$0xff]
    %v1948 = vld [vmem:[#allocation13 + $0x2e8] sm:$0xff]
    %v1949 = vld [vmem:[#allocation13 + $0x2f0] sm:$0xff]
    %v1950 = vld [vmem:[#allocation13 + $0x2f8] sm:$0xff]
    %v2047 = vunpack.c.l.b16 %v1855
    %v2048 = vunpack.c.h.b16 %v1855
    %v2049 = vunpack.c.l.b16 %v1856
    %v2050 = vunpack.c.h.b16 %v1856
    %v2051 = vunpack.c.l.b16 %v1857
    %v2052 = vunpack.c.h.b16 %v1857
    %v2053 = vunpack.c.l.b16 %v1858
    %v2054 = vunpack.c.h.b16 %v1858
    %v2055 = vunpack.c.l.b16 %v1859
    %v2056 = vunpack.c.h.b16 %v1859
    %v2057 = vunpack.c.l.b16 %v1860
    %v2058 = vunpack.c.h.b16 %v1860
    %v2059 = vunpack.c.l.b16 %v1861
    %v2060 = vunpack.c.h.b16 %v1861
    %v2061 = vunpack.c.l.b16 %v1862
    %v2062 = vunpack.c.h.b16 %v1862
    %v2063 = vunpack.c.l.b16 %v1863
    %v2064 = vunpack.c.h.b16 %v1863
    %v2065 = vunpack.c.l.b16 %v1864
    %v2066 = vunpack.c.h.b16 %v1864
    %v2067 = vunpack.c.l.b16 %v1865
    %v2068 = vunpack.c.h.b16 %v1865
    %v2069 = vunpack.c.l.b16 %v1866
    %v2070 = vunpack.c.h.b16 %v1866
    %v2071 = vunpack.c.l.b16 %v1867
    %v2072 = vunpack.c.h.b16 %v1867
    %v2073 = vunpack.c.l.b16 %v1868
    %v2074 = vunpack.c.h.b16 %v1868
    %v2075 = vunpack.c.l.b16 %v1869
    %v2076 = vunpack.c.h.b16 %v1869
    %v2077 = vunpack.c.l.b16 %v1870
    %v2078 = vunpack.c.h.b16 %v1870
    %v2079 = vunpack.c.l.b16 %v1871
    %v2080 = vunpack.c.h.b16 %v1871
    %v2081 = vunpack.c.l.b16 %v1872
    %v2082 = vunpack.c.h.b16 %v1872
    %v2083 = vunpack.c.l.b16 %v1873
    %v2084 = vunpack.c.h.b16 %v1873
    %v2085 = vunpack.c.l.b16 %v1874
    %v2086 = vunpack.c.h.b16 %v1874
    %v2087 = vunpack.c.l.b16 %v1875
    %v2088 = vunpack.c.h.b16 %v1875
    %v2089 = vunpack.c.l.b16 %v1876
    %v2090 = vunpack.c.h.b16 %v1876
    %v2091 = vunpack.c.l.b16 %v1877
    %v2092 = vunpack.c.h.b16 %v1877
    %v2093 = vunpack.c.l.b16 %v1878
    %v2094 = vunpack.c.h.b16 %v1878
    %v2095 = vunpack.c.l.b16 %v1879
    %v2096 = vunpack.c.h.b16 %v1879
    %v2097 = vunpack.c.l.b16 %v1880
    %v2098 = vunpack.c.h.b16 %v1880
    %v2099 = vunpack.c.l.b16 %v1881
    %v2100 = vunpack.c.h.b16 %v1881
    %v2101 = vunpack.c.l.b16 %v1882
    %v2102 = vunpack.c.h.b16 %v1882
    %v2103 = vunpack.c.l.b16 %v1883
    %v2104 = vunpack.c.h.b16 %v1883
    %v2105 = vunpack.c.l.b16 %v1884
    %v2106 = vunpack.c.h.b16 %v1884
    %v2107 = vunpack.c.l.b16 %v1885
    %v2108 = vunpack.c.h.b16 %v1885
    %v2109 = vunpack.c.l.b16 %v1886
    %v2110 = vunpack.c.h.b16 %v1886
    %v2111 = vunpack.c.l.b16 %v1887
    %v2112 = vunpack.c.h.b16 %v1887
    %v2113 = vunpack.c.l.b16 %v1888
    %v2114 = vunpack.c.h.b16 %v1888
    %v2115 = vunpack.c.l.b16 %v1889
    %v2116 = vunpack.c.h.b16 %v1889
    %v2117 = vunpack.c.l.b16 %v1890
    %v2118 = vunpack.c.h.b16 %v1890
    %v2119 = vunpack.c.l.b16 %v1891
    %v2120 = vunpack.c.h.b16 %v1891
    %v2121 = vunpack.c.l.b16 %v1892
    %v2122 = vunpack.c.h.b16 %v1892
    %v2123 = vunpack.c.l.b16 %v1893
    %v2124 = vunpack.c.h.b16 %v1893
    %v2125 = vunpack.c.l.b16 %v1894
    %v2126 = vunpack.c.h.b16 %v1894
    %v2127 = vunpack.c.l.b16 %v1895
    %v2128 = vunpack.c.h.b16 %v1895
    %v2129 = vunpack.c.l.b16 %v1896
    %v2130 = vunpack.c.h.b16 %v1896
    %v2131 = vunpack.c.l.b16 %v1897
    %v2132 = vunpack.c.h.b16 %v1897
    %v2133 = vunpack.c.l.b16 %v1898
    %v2134 = vunpack.c.h.b16 %v1898
    %v2135 = vunpack.c.l.b16 %v1899
    %v2136 = vunpack.c.h.b16 %v1899
    %v2137 = vunpack.c.l.b16 %v1900
    %v2138 = vunpack.c.h.b16 %v1900
    %v2139 = vunpack.c.l.b16 %v1901
    %v2140 = vunpack.c.h.b16 %v1901
    %v2141 = vunpack.c.l.b16 %v1902
    %v2142 = vunpack.c.h.b16 %v1902
    %v2143 = vunpack.c.l.b16 %v1903
    %v2144 = vunpack.c.h.b16 %v1903
    %v2145 = vunpack.c.l.b16 %v1904
    %v2146 = vunpack.c.h.b16 %v1904
    %v2147 = vunpack.c.l.b16 %v1905
    %v2148 = vunpack.c.h.b16 %v1905
    %v2149 = vunpack.c.l.b16 %v1906
    %v2150 = vunpack.c.h.b16 %v1906
    %v2151 = vunpack.c.l.b16 %v1907
    %v2152 = vunpack.c.h.b16 %v1907
    %v2153 = vunpack.c.l.b16 %v1908
    %v2154 = vunpack.c.h.b16 %v1908
    %v2155 = vunpack.c.l.b16 %v1909
    %v2156 = vunpack.c.h.b16 %v1909
    %v2157 = vunpack.c.l.b16 %v1910
    %v2158 = vunpack.c.h.b16 %v1910
    %v2159 = vunpack.c.l.b16 %v1911
    %v2160 = vunpack.c.h.b16 %v1911
    %v2161 = vunpack.c.l.b16 %v1912
    %v2162 = vunpack.c.h.b16 %v1912
    %v2163 = vunpack.c.l.b16 %v1913
    %v2164 = vunpack.c.h.b16 %v1913
    %v2165 = vunpack.c.l.b16 %v1914
    %v2166 = vunpack.c.h.b16 %v1914
    %v2167 = vunpack.c.l.b16 %v1915
    %v2168 = vunpack.c.h.b16 %v1915
    %v2169 = vunpack.c.l.b16 %v1916
    %v2170 = vunpack.c.h.b16 %v1916
    %v2171 = vunpack.c.l.b16 %v1917
    %v2172 = vunpack.c.h.b16 %v1917
    %v2173 = vunpack.c.l.b16 %v1918
    %v2174 = vunpack.c.h.b16 %v1918
    %v2175 = vunpack.c.l.b16 %v1919
    %v2176 = vunpack.c.h.b16 %v1919
    %v2177 = vunpack.c.l.b16 %v1920
    %v2178 = vunpack.c.h.b16 %v1920
    %v2179 = vunpack.c.l.b16 %v1921
    %v2180 = vunpack.c.h.b16 %v1921
    %v2181 = vunpack.c.l.b16 %v1922
    %v2182 = vunpack.c.h.b16 %v1922
    %v2183 = vunpack.c.l.b16 %v1923
    %v2184 = vunpack.c.h.b16 %v1923
    %v2185 = vunpack.c.l.b16 %v1924
    %v2186 = vunpack.c.h.b16 %v1924
    %v2187 = vunpack.c.l.b16 %v1925
    %v2188 = vunpack.c.h.b16 %v1925
    %v2189 = vunpack.c.l.b16 %v1926
    %v2190 = vunpack.c.h.b16 %v1926
    %v2191 = vunpack.c.l.b16 %v1927
    %v2192 = vunpack.c.h.b16 %v1927
    %v2193 = vunpack.c.l.b16 %v1928
    %v2194 = vunpack.c.h.b16 %v1928
    %v2195 = vunpack.c.l.b16 %v1929
    %v2196 = vunpack.c.h.b16 %v1929
    %v2197 = vunpack.c.l.b16 %v1930
    %v2198 = vunpack.c.h.b16 %v1930
    %v2199 = vunpack.c.l.b16 %v1931
    %v2200 = vunpack.c.h.b16 %v1931
    %v2201 = vunpack.c.l.b16 %v1932
    %v2202 = vunpack.c.h.b16 %v1932
    %v2203 = vunpack.c.l.b16 %v1933
    %v2204 = vunpack.c.h.b16 %v1933
    %v2205 = vunpack.c.l.b16 %v1934
    %v2206 = vunpack.c.h.b16 %v1934
    %v2207 = vunpack.c.l.b16 %v1935
    %v2208 = vunpack.c.h.b16 %v1935
    %v2209 = vunpack.c.l.b16 %v1936
    %v2210 = vunpack.c.h.b16 %v1936
    %v2211 = vunpack.c.l.b16 %v1937
    %v2212 = vunpack.c.h.b16 %v1937
    %v2213 = vunpack.c.l.b16 %v1938
    %v2214 = vunpack.c.h.b16 %v1938
    %v2215 = vunpack.c.l.b16 %v1939
    %v2216 = vunpack.c.h.b16 %v1939
    %v2217 = vunpack.c.l.b16 %v1940
    %v2218 = vunpack.c.h.b16 %v1940
    %v2219 = vunpack.c.l.b16 %v1941
    %v2220 = vunpack.c.h.b16 %v1941
    %v2221 = vunpack.c.l.b16 %v1942
    %v2222 = vunpack.c.h.b16 %v1942
    %v2223 = vunpack.c.l.b16 %v1943
    %v2224 = vunpack.c.h.b16 %v1943
    %v2225 = vunpack.c.l.b16 %v1944
    %v2226 = vunpack.c.h.b16 %v1944
    %v2227 = vunpack.c.l.b16 %v1945
    %v2228 = vunpack.c.h.b16 %v1945
    %v2229 = vunpack.c.l.b16 %v1946
    %v2230 = vunpack.c.h.b16 %v1946
    %v2231 = vunpack.c.l.b16 %v1947
    %v2232 = vunpack.c.h.b16 %v1947
    %v2233 = vunpack.c.l.b16 %v1948
    %v2234 = vunpack.c.h.b16 %v1948
    %v2235 = vunpack.c.l.b16 %v1949
    %v2236 = vunpack.c.h.b16 %v1949
    %v2237 = vunpack.c.l.b16 %v1950
    %v2238 = vunpack.c.h.b16 %v1950
    %v2239 = vpack.c.b16 %v2053, %v2047
    %v2240 = vpack.c.b16 %v2054, %v2048
    %v2241 = vpack.c.b16 %v2055, %v2049
    %v2242 = vpack.c.b16 %v2056, %v2050
    %v2243 = vpack.c.b16 %v2057, %v2051
    %v2244 = vpack.c.b16 %v2058, %v2052
    %v2245 = vpack.c.b16 %v2065, %v2059
    %v2246 = vpack.c.b16 %v2066, %v2060
    %v2247 = vpack.c.b16 %v2067, %v2061
    %v2248 = vpack.c.b16 %v2068, %v2062
    %v2249 = vpack.c.b16 %v2069, %v2063
    %v2250 = vpack.c.b16 %v2070, %v2064
    %v2251 = vpack.c.b16 %v2077, %v2071
    %v2252 = vpack.c.b16 %v2078, %v2072
    %v2253 = vpack.c.b16 %v2079, %v2073
    %v2254 = vpack.c.b16 %v2080, %v2074
    %v2255 = vpack.c.b16 %v2081, %v2075
    %v2256 = vpack.c.b16 %v2082, %v2076
    %v2257 = vpack.c.b16 %v2089, %v2083
    %v2258 = vpack.c.b16 %v2090, %v2084
    %v2259 = vpack.c.b16 %v2091, %v2085
    %v2260 = vpack.c.b16 %v2092, %v2086
    %v2261 = vpack.c.b16 %v2093, %v2087
    %v2262 = vpack.c.b16 %v2094, %v2088
    %v2263 = vpack.c.b16 %v2101, %v2095
    %v2264 = vpack.c.b16 %v2102, %v2096
    %v2265 = vpack.c.b16 %v2103, %v2097
    %v2266 = vpack.c.b16 %v2104, %v2098
    %v2267 = vpack.c.b16 %v2105, %v2099
    %v2268 = vpack.c.b16 %v2106, %v2100
    %v2269 = vpack.c.b16 %v2113, %v2107
    %v2270 = vpack.c.b16 %v2114, %v2108
    %v2271 = vpack.c.b16 %v2115, %v2109
    %v2272 = vpack.c.b16 %v2116, %v2110
    %v2273 = vpack.c.b16 %v2117, %v2111
    %v2274 = vpack.c.b16 %v2118, %v2112
    %v2275 = vpack.c.b16 %v2125, %v2119
    %v2276 = vpack.c.b16 %v2126, %v2120
    %v2277 = vpack.c.b16 %v2127, %v2121
    %v2278 = vpack.c.b16 %v2128, %v2122
    %v2279 = vpack.c.b16 %v2129, %v2123
    %v2280 = vpack.c.b16 %v2130, %v2124
    %v2281 = vpack.c.b16 %v2137, %v2131
    %v2282 = vpack.c.b16 %v2138, %v2132
    %v2283 = vpack.c.b16 %v2139, %v2133
    %v2284 = vpack.c.b16 %v2140, %v2134
    %v2285 = vpack.c.b16 %v2141, %v2135
    %v2286 = vpack.c.b16 %v2142, %v2136
    %v2287 = vpack.c.b16 %v2149, %v2143
    %v2288 = vpack.c.b16 %v2150, %v2144
    %v2289 = vpack.c.b16 %v2151, %v2145
    %v2290 = vpack.c.b16 %v2152, %v2146
    %v2291 = vpack.c.b16 %v2153, %v2147
    %v2292 = vpack.c.b16 %v2154, %v2148
    %v2293 = vpack.c.b16 %v2161, %v2155
    %v2294 = vpack.c.b16 %v2162, %v2156
    %v2295 = vpack.c.b16 %v2163, %v2157
    %v2296 = vpack.c.b16 %v2164, %v2158
    %v2297 = vpack.c.b16 %v2165, %v2159
    %v2298 = vpack.c.b16 %v2166, %v2160
    %v2299 = vpack.c.b16 %v2173, %v2167
    %v2300 = vpack.c.b16 %v2174, %v2168
    %v2301 = vpack.c.b16 %v2175, %v2169
    %v2302 = vpack.c.b16 %v2176, %v2170
    %v2303 = vpack.c.b16 %v2177, %v2171
    %v2304 = vpack.c.b16 %v2178, %v2172
    %v2305 = vpack.c.b16 %v2185, %v2179
    %v2306 = vpack.c.b16 %v2186, %v2180
    %v2307 = vpack.c.b16 %v2187, %v2181
    %v2308 = vpack.c.b16 %v2188, %v2182
    %v2309 = vpack.c.b16 %v2189, %v2183
    %v2310 = vpack.c.b16 %v2190, %v2184
    %v2311 = vpack.c.b16 %v2197, %v2191
    %v2312 = vpack.c.b16 %v2198, %v2192
    %v2313 = vpack.c.b16 %v2199, %v2193
    %v2314 = vpack.c.b16 %v2200, %v2194
    %v2315 = vpack.c.b16 %v2201, %v2195
    %v2316 = vpack.c.b16 %v2202, %v2196
    %v2317 = vpack.c.b16 %v2209, %v2203
    %v2318 = vpack.c.b16 %v2210, %v2204
    %v2319 = vpack.c.b16 %v2211, %v2205
    %v2320 = vpack.c.b16 %v2212, %v2206
    %v2321 = vpack.c.b16 %v2213, %v2207
    %v2322 = vpack.c.b16 %v2214, %v2208
    %v2323 = vpack.c.b16 %v2221, %v2215
    %v2324 = vpack.c.b16 %v2222, %v2216
    %v2325 = vpack.c.b16 %v2223, %v2217
    %v2326 = vpack.c.b16 %v2224, %v2218
    %v2327 = vpack.c.b16 %v2225, %v2219
    %v2328 = vpack.c.b16 %v2226, %v2220
    %v2329 = vpack.c.b16 %v2233, %v2227
    %v2330 = vpack.c.b16 %v2234, %v2228
    %v2331 = vpack.c.b16 %v2235, %v2229
    %v2332 = vpack.c.b16 %v2236, %v2230
    %v2333 = vpack.c.b16 %v2237, %v2231
    %v2334 = vpack.c.b16 %v2238, %v2232
    %v2432 = vlaneseq
    %v2433 = vshrl.u32 %v2432, 7
    %v2434 = vsub.s32 0, %v2433
    %v2435 = vrot.slane %v140, %v2434
    %v2436 = vlaneseq
    %v2437 = vshrl.u32 %v2436, 7
    %v2438 = vsub.s32 1, %v2437
    %v2439 = vrot.slane %v140, %v2438
    %v2440 = vlaneseq
    %v2441 = vshrl.u32 %v2440, 7
    %v2442 = vsub.s32 2, %v2441
    %v2443 = vrot.slane %v140, %v2442
    %v2444 = vlaneseq
    %v2445 = vshrl.u32 %v2444, 7
    %v2446 = vsub.s32 3, %v2445
    %v2447 = vrot.slane %v140, %v2446
    %v2448 = vlaneseq
    %v2449 = vshrl.u32 %v2448, 7
    %v2450 = vsub.s32 4, %v2449
    %v2451 = vrot.slane %v140, %v2450
    %v2452 = vlaneseq
    %v2453 = vshrl.u32 %v2452, 7
    %v2454 = vsub.s32 5, %v2453
    %v2455 = vrot.slane %v140, %v2454
    %2462 = vmatprep.subr.bf16.mxu0 %v2240
    %2463 = vmatpush1.bf16.msra.mxu0 %v2239
    %2464 = vmatprep.subr.bf16.mxu0 %v2246
    %2465 = vmatpush1.bf16.msra.mxu0 %v2245
    %2466 = vmatprep.subr.bf16.mxu0 %v2252
    %2467 = vmatpush1.bf16.msra.mxu0 %v2251
    %2468 = vmatprep.subr.bf16.mxu0 %v2258
    %2469 = vmatpush1.bf16.msra.mxu0 %v2257
    %2470 = vmatprep.subr.bf16.mxu0 %v2264
    %2471 = vmatpush1.bf16.msra.mxu0 %v2263
    %2472 = vmatprep.subr.bf16.mxu0 %v2270
    %2473 = vmatpush1.bf16.msra.mxu0 %v2269
    %2474 = vmatprep.subr.bf16.mxu0 %v2276
    %2475 = vmatpush1.bf16.msra.mxu0 %v2275
    %2476 = vmatprep.subr.bf16.mxu0 %v2282
    %2477 = vmatpush1.bf16.msra.mxu0 %v2281
    %2478 = vmatprep.subr.bf16.mxu0 %v2288
    %2479 = vmatpush1.bf16.msra.mxu0 %v2287
    %2480 = vmatprep.subr.bf16.mxu0 %v2294
    %2481 = vmatpush1.bf16.msra.mxu0 %v2293
    %2482 = vmatprep.subr.bf16.mxu0 %v2300
    %2483 = vmatpush1.bf16.msra.mxu0 %v2299
    %2484 = vmatprep.subr.bf16.mxu0 %v2306
    %2485 = vmatpush1.bf16.msra.mxu0 %v2305
    %2486 = vmatprep.subr.bf16.mxu0 %v2312
    %2487 = vmatpush1.bf16.msra.mxu0 %v2311
    %2488 = vmatprep.subr.bf16.mxu0 %v2318
    %2489 = vmatpush1.bf16.msra.mxu0 %v2317
    %2490 = vmatprep.subr.bf16.mxu0 %v2324
    %2491 = vmatpush1.bf16.msra.mxu0 %v2323
    %2492 = vmatprep.subr.bf16.mxu0 %v2330
    %2493 = vmatpush1.bf16.msra.mxu0 %v2329
    %2494 = vmatprep.mubr.bf16.mxu0 %v1854
    %2495 = vmatmul.mubr.bf16.gmra.mrb[0].mxu0 %v1853
    %v2496 = vpop.f32.mrb[0].mxu0
    %v2497 = vadd.f32 %v2435, %v2496
    %v2498 = vpop.f32.mrb[0].mxu0
    %v2499 = vadd.f32 %v2439, %v2498
    %v2500 = vpop.f32.mrb[0].mxu0
    %v2501 = vpop.f32.mrb[0].mxu0
    %2502 = vdwg.mxu0
    %2503 = vmatprep.subr.bf16.mxu0 %v2242
    %2504 = vmatpush1.bf16.msra.mxu0 %v2241
    %2505 = vmatprep.subr.bf16.mxu0 %v2248
    %2506 = vmatpush1.bf16.msra.mxu0 %v2247
    %2507 = vmatprep.subr.bf16.mxu0 %v2254
    %2508 = vmatpush1.bf16.msra.mxu0 %v2253
    %2509 = vmatprep.subr.bf16.mxu0 %v2260
    %2510 = vmatpush1.bf16.msra.mxu0 %v2259
    %2511 = vmatprep.subr.bf16.mxu0 %v2266
    %2512 = vmatpush1.bf16.msra.mxu0 %v2265
    %2513 = vmatprep.subr.bf16.mxu0 %v2272
    %2514 = vmatpush1.bf16.msra.mxu0 %v2271
    %2515 = vmatprep.subr.bf16.mxu0 %v2278
    %2516 = vmatpush1.bf16.msra.mxu0 %v2277
    %2517 = vmatprep.subr.bf16.mxu0 %v2284
    %2518 = vmatpush1.bf16.msra.mxu0 %v2283
    %2519 = vmatprep.subr.bf16.mxu0 %v2290
    %2520 = vmatpush1.bf16.msra.mxu0 %v2289
    %2521 = vmatprep.subr.bf16.mxu0 %v2296
    %2522 = vmatpush1.bf16.msra.mxu0 %v2295
    %2523 = vmatprep.subr.bf16.mxu0 %v2302
    %2524 = vmatpush1.bf16.msra.mxu0 %v2301
    %2525 = vmatprep.subr.bf16.mxu0 %v2308
    %2526 = vmatpush1.bf16.msra.mxu0 %v2307
    %2527 = vmatprep.subr.bf16.mxu0 %v2314
    %2528 = vmatpush1.bf16.msra.mxu0 %v2313
    %2529 = vmatprep.subr.bf16.mxu0 %v2320
    %2530 = vmatpush1.bf16.msra.mxu0 %v2319
    %2531 = vmatprep.subr.bf16.mxu0 %v2326
    %2532 = vmatpush1.bf16.msra.mxu0 %v2325
    %2533 = vmatprep.subr.bf16.mxu0 %v2332
    %2534 = vmatpush1.bf16.msra.mxu0 %v2331
    %2535 = vmatprep.mubr.bf16.mxu0 %v1854
    %2536 = vmatmul.mubr.bf16.gmra.mrb[0].mxu0 %v1853
    %v2537 = vpop.f32.mrb[0].mxu0
    %v2538 = vadd.f32 %v2443, %v2537
    %v2539 = vpop.f32.mrb[0].mxu0
    %v2540 = vadd.f32 %v2447, %v2539
    %v2541 = vpop.f32.mrb[0].mxu0
    %v2542 = vpop.f32.mrb[0].mxu0
    %2543 = vdwg.mxu0
    %2544 = vmatprep.subr.bf16.mxu0 %v2244
    %2545 = vmatpush1.bf16.msra.mxu0 %v2243
    %2546 = vmatprep.subr.bf16.mxu0 %v2250
    %2547 = vmatpush1.bf16.msra.mxu0 %v2249
    %2548 = vmatprep.subr.bf16.mxu0 %v2256
    %2549 = vmatpush1.bf16.msra.mxu0 %v2255
    %2550 = vmatprep.subr.bf16.mxu0 %v2262
    %2551 = vmatpush1.bf16.msra.mxu0 %v2261
    %2552 = vmatprep.subr.bf16.mxu0 %v2268
    %2553 = vmatpush1.bf16.msra.mxu0 %v2267
    %2554 = vmatprep.subr.bf16.mxu0 %v2274
    %2555 = vmatpush1.bf16.msra.mxu0 %v2273
    %2556 = vmatprep.subr.bf16.mxu0 %v2280
    %2557 = vmatpush1.bf16.msra.mxu0 %v2279
    %2558 = vmatprep.subr.bf16.mxu0 %v2286
    %2559 = vmatpush1.bf16.msra.mxu0 %v2285
    %2560 = vmatprep.subr.bf16.mxu0 %v2292
    %2561 = vmatpush1.bf16.msra.mxu0 %v2291
    %2562 = vmatprep.subr.bf16.mxu0 %v2298
    %2563 = vmatpush1.bf16.msra.mxu0 %v2297
    %2564 = vmatprep.subr.bf16.mxu0 %v2304
    %2565 = vmatpush1.bf16.msra.mxu0 %v2303
    %2566 = vmatprep.subr.bf16.mxu0 %v2310
    %2567 = vmatpush1.bf16.msra.mxu0 %v2309
    %2568 = vmatprep.subr.bf16.mxu0 %v2316
    %2569 = vmatpush1.bf16.msra.mxu0 %v2315
    %2570 = vmatprep.subr.bf16.mxu0 %v2322
    %2571 = vmatpush1.bf16.msra.mxu0 %v2321
    %2572 = vmatprep.subr.bf16.mxu0 %v2328
    %2573 = vmatpush1.bf16.msra.mxu0 %v2327
    %2574 = vmatprep.subr.bf16.mxu0 %v2334
    %2575 = vmatpush1.bf16.msra.mxu0 %v2333
    %2576 = vmatprep.mubr.bf16.mxu0 %v1854
    %2577 = vmatmul.mubr.bf16.gmra.mrb[0].mxu0 %v1853
    %v2578 = vpop.f32.mrb[0].mxu0
    %v2579 = vadd.f32 %v2451, %v2578
    %v2580 = vpop.f32.mrb[0].mxu0
    %v2581 = vadd.f32 %v2455, %v2580
    %v2582 = vpop.f32.mrb[0].mxu0
    %v2583 = vpop.f32.mrb[0].mxu0
    %2584 = vdwg.mxu0
    %v2585 = vadd.f32 %v2497, %v1322
    %v2586 = vadd.f32 %v2499, %v1361
    %v2587 = vxor.u32 %v2585, 2147483648
    %v2588 = vxor.u32 %v2586, 2147483648
    %v2589 = vmul.f32 %v2587, 1.442695
    %v2590 = vpow.pop %v2589
    %v2591 = vmul.f32 %v2588, 1.442695
    %v2592 = vpow.pop %v2591
    %v2593 = vadd.f32 %v2590, 1.0
    %v2594 = vadd.f32 %v2592, 1.0
    %v2595 = vrcp.pop %v2593
    %v2596 = vmul.f32 1.0, %v2595
    %v2597 = vrcp.pop %v2594
    %v2598 = vmul.f32 1.0, %v2597
    %v2599 = vadd.f32 %v2538, %v1363
    %v2600 = vadd.f32 %v2540, %v1402
    %v2601 = vxor.u32 %v2599, 2147483648
    %v2602 = vxor.u32 %v2600, 2147483648
    %v2603 = vmul.f32 %v2601, 1.442695
    %v2604 = vpow.pop %v2603
    %v2605 = vmul.f32 %v2602, 1.442695
    %v2606 = vpow.pop %v2605
    %v2607 = vadd.f32 %v2604, 1.0
    %v2608 = vadd.f32 %v2606, 1.0
    %v2609 = vrcp.pop %v2607
    %v2610 = vmul.f32 1.0, %v2609
    %v2611 = vrcp.pop %v2608
    %v2612 = vmul.f32 1.0, %v2611
    %v2614 = vlaneseq
    %v2615 = vshrl.u32 %v2614, 7
    %v2616 = vsub.s32 0, %v2615
    %v2617 = vrot.slane %v141, %v2616
    %v2618 = vlaneseq
    %v2619 = vshrl.u32 %v2618, 7
    %v2620 = vsub.s32 1, %v2619
    %v2621 = vrot.slane %v141, %v2620
    %v2624 = vadd.f32 %v1404, %v2617
    %v2625 = vadd.f32 %v1443, %v2621
    %v2626 = vmul.f32 %v2596, %v2624
    %v2627 = vmul.f32 %v2598, %v2625
    %v2628 = vadd.f32 %v2579, %v2626
    %v2629 = vadd.f32 %v2581, %v2627
    %v2630 = vtanh.pop %v2628
    %v2631 = vtanh.pop %v2629
    %v2632 = vsub.f32 1.0, %v2610
    %v2633 = vsub.f32 1.0, %v2612
    %v2634 = vmul.f32 %v2632, %v2630
    %v2635 = vmul.f32 %v2633, %v2631
    %v2636 = vmul.f32 %v2610, %v148
    %v2637 = vmul.f32 %v2612, %v152
    %v2638 = vadd.f32 %v2634, %v2636
    %v2639 = vadd.f32 %v2635, %v2637
    %v2642 = vcombine.low %v2638, %v2639
    %v2644 = vunpack.c.l.s4 1966171168
    %v2645 = vunpack.c.0.s8 %v2644
    %v2646 = vlaneseq
    %v2647 = vshrl.u32 %v2646, 7
    %v2648 = vsub.s32 %v2645, %v2647
    %v2649 = vrot.slane %v2642, %v2648
    %v2651 = vunpack.c.l.s4 1966171168
    %v2652 = vunpack.c.0.s8 %v2651
    %v2653 = vlaneseq
    %v2654 = vshrl.u32 %v2653, 7
    %v2655 = vsub.s32 %v2652, %v2654
    %v2656 = vrot.slane %v2649, %v2655
    %v2658 = vlaneseq
    %vm2659 = vcmp.ge.s32.totalorder %v2658, 0
    %vm2660 = vcmp.lt.s32.totalorder %v2658, 256
    %vm2661 = vmand %vm2659, %vm2660
    %2662 = vst.msk [vmem:[#allocation17] sm:$0x3] %vm2661, %v2656
    %v2663 = vpack.c.bf16 %v2638, %v2638
    %v2664 = vpack.c.bf16 %v2639, %v2639
    %v2665 = vld [vmem:[#allocation15] sm:$0xff]
    %v2666 = vld [vmem:[#allocation15 + $0x8] sm:$0xff]
    %v2667 = vld [vmem:[#allocation15 + $0x10] sm:$0xff]
    %v2668 = vld [vmem:[#allocation15 + $0x18] sm:$0xff]
    %v2669 = vld [vmem:[#allocation15 + $0x20] sm:$0xff]
    %v2670 = vld [vmem:[#allocation15 + $0x28] sm:$0xff]
    %v2671 = vld [vmem:[#allocation15 + $0x30] sm:$0xff]
    %v2672 = vld [vmem:[#allocation15 + $0x38] sm:$0xff]
    %v2673 = vld [vmem:[#allocation15 + $0x40] sm:$0xff]
    %v2674 = vld [vmem:[#allocation15 + $0x48] sm:$0xff]
    %v2675 = vld [vmem:[#allocation15 + $0x50] sm:$0xff]
    %v2676 = vld [vmem:[#allocation15 + $0x58] sm:$0xff]
    %v2677 = vld [vmem:[#allocation15 + $0x60] sm:$0xff]
    %v2678 = vld [vmem:[#allocation15 + $0x68] sm:$0xff]
    %v2679 = vld [vmem:[#allocation15 + $0x70] sm:$0xff]
    %v2680 = vld [vmem:[#allocation15 + $0x78] sm:$0xff]
    %v2681 = vld [vmem:[#allocation15 + $0x80] sm:$0xff]
    %v2682 = vld [vmem:[#allocation15 + $0x88] sm:$0xff]
    %v2683 = vld [vmem:[#allocation15 + $0x90] sm:$0xff]
    %v2684 = vld [vmem:[#allocation15 + $0x98] sm:$0xff]
    %v2685 = vld [vmem:[#allocation15 + $0xa0] sm:$0xff]
    %v2686 = vld [vmem:[#allocation15 + $0xa8] sm:$0xff]
    %v2687 = vld [vmem:[#allocation15 + $0xb0] sm:$0xff]
    %v2688 = vld [vmem:[#allocation15 + $0xb8] sm:$0xff]
    %v2689 = vld [vmem:[#allocation15 + $0xc0] sm:$0xff]
    %v2690 = vld [vmem:[#allocation15 + $0xc8] sm:$0xff]
    %v2691 = vld [vmem:[#allocation15 + $0xd0] sm:$0xff]
    %v2692 = vld [vmem:[#allocation15 + $0xd8] sm:$0xff]
    %v2693 = vld [vmem:[#allocation15 + $0xe0] sm:$0xff]
    %v2694 = vld [vmem:[#allocation15 + $0xe8] sm:$0xff]
    %v2695 = vld [vmem:[#allocation15 + $0xf0] sm:$0xff]
    %v2696 = vld [vmem:[#allocation15 + $0xf8] sm:$0xff]
    %v2729 = vunpack.c.l.b16 %v2665
    %v2730 = vunpack.c.h.b16 %v2665
    %v2731 = vunpack.c.l.b16 %v2666
    %v2732 = vunpack.c.h.b16 %v2666
    %v2733 = vunpack.c.l.b16 %v2667
    %v2734 = vunpack.c.h.b16 %v2667
    %v2735 = vunpack.c.l.b16 %v2668
    %v2736 = vunpack.c.h.b16 %v2668
    %v2737 = vunpack.c.l.b16 %v2669
    %v2738 = vunpack.c.h.b16 %v2669
    %v2739 = vunpack.c.l.b16 %v2670
    %v2740 = vunpack.c.h.b16 %v2670
    %v2741 = vunpack.c.l.b16 %v2671
    %v2742 = vunpack.c.h.b16 %v2671
    %v2743 = vunpack.c.l.b16 %v2672
    %v2744 = vunpack.c.h.b16 %v2672
    %v2745 = vunpack.c.l.b16 %v2673
    %v2746 = vunpack.c.h.b16 %v2673
    %v2747 = vunpack.c.l.b16 %v2674
    %v2748 = vunpack.c.h.b16 %v2674
    %v2749 = vunpack.c.l.b16 %v2675
    %v2750 = vunpack.c.h.b16 %v2675
    %v2751 = vunpack.c.l.b16 %v2676
    %v2752 = vunpack.c.h.b16 %v2676
    %v2753 = vunpack.c.l.b16 %v2677
    %v2754 = vunpack.c.h.b16 %v2677
    %v2755 = vunpack.c.l.b16 %v2678
    %v2756 = vunpack.c.h.b16 %v2678
    %v2757 = vunpack.c.l.b16 %v2679
    %v2758 = vunpack.c.h.b16 %v2679
    %v2759 = vunpack.c.l.b16 %v2680
    %v2760 = vunpack.c.h.b16 %v2680
    %v2761 = vunpack.c.l.b16 %v2681
    %v2762 = vunpack.c.h.b16 %v2681
    %v2763 = vunpack.c.l.b16 %v2682
    %v2764 = vunpack.c.h.b16 %v2682
    %v2765 = vunpack.c.l.b16 %v2683
    %v2766 = vunpack.c.h.b16 %v2683
    %v2767 = vunpack.c.l.b16 %v2684
    %v2768 = vunpack.c.h.b16 %v2684
    %v2769 = vunpack.c.l.b16 %v2685
    %v2770 = vunpack.c.h.b16 %v2685
    %v2771 = vunpack.c.l.b16 %v2686
    %v2772 = vunpack.c.h.b16 %v2686
    %v2773 = vunpack.c.l.b16 %v2687
    %v2774 = vunpack.c.h.b16 %v2687
    %v2775 = vunpack.c.l.b16 %v2688
    %v2776 = vunpack.c.h.b16 %v2688
    %v2777 = vunpack.c.l.b16 %v2689
    %v2778 = vunpack.c.h.b16 %v2689
    %v2779 = vunpack.c.l.b16 %v2690
    %v2780 = vunpack.c.h.b16 %v2690
    %v2781 = vunpack.c.l.b16 %v2691
    %v2782 = vunpack.c.h.b16 %v2691
    %v2783 = vunpack.c.l.b16 %v2692
    %v2784 = vunpack.c.h.b16 %v2692
    %v2785 = vunpack.c.l.b16 %v2693
    %v2786 = vunpack.c.h.b16 %v2693
    %v2787 = vunpack.c.l.b16 %v2694
    %v2788 = vunpack.c.h.b16 %v2694
    %v2789 = vunpack.c.l.b16 %v2695
    %v2790 = vunpack.c.h.b16 %v2695
    %v2791 = vunpack.c.l.b16 %v2696
    %v2792 = vunpack.c.h.b16 %v2696
    %v2793 = vpack.c.b16 %v2731, %v2729
    %v2794 = vpack.c.b16 %v2732, %v2730
    %v2795 = vpack.c.b16 %v2735, %v2733
    %v2796 = vpack.c.b16 %v2736, %v2734
    %v2797 = vpack.c.b16 %v2739, %v2737
    %v2798 = vpack.c.b16 %v2740, %v2738
    %v2799 = vpack.c.b16 %v2743, %v2741
    %v2800 = vpack.c.b16 %v2744, %v2742
    %v2801 = vpack.c.b16 %v2747, %v2745
    %v2802 = vpack.c.b16 %v2748, %v2746
    %v2803 = vpack.c.b16 %v2751, %v2749
    %v2804 = vpack.c.b16 %v2752, %v2750
    %v2805 = vpack.c.b16 %v2755, %v2753
    %v2806 = vpack.c.b16 %v2756, %v2754
    %v2807 = vpack.c.b16 %v2759, %v2757
    %v2808 = vpack.c.b16 %v2760, %v2758
    %v2809 = vpack.c.b16 %v2763, %v2761
    %v2810 = vpack.c.b16 %v2764, %v2762
    %v2811 = vpack.c.b16 %v2767, %v2765
    %v2812 = vpack.c.b16 %v2768, %v2766
    %v2813 = vpack.c.b16 %v2771, %v2769
    %v2814 = vpack.c.b16 %v2772, %v2770
    %v2815 = vpack.c.b16 %v2775, %v2773
    %v2816 = vpack.c.b16 %v2776, %v2774
    %v2817 = vpack.c.b16 %v2779, %v2777
    %v2818 = vpack.c.b16 %v2780, %v2778
    %v2819 = vpack.c.b16 %v2783, %v2781
    %v2820 = vpack.c.b16 %v2784, %v2782
    %v2821 = vpack.c.b16 %v2787, %v2785
    %v2822 = vpack.c.b16 %v2788, %v2786
    %v2823 = vpack.c.b16 %v2791, %v2789
    %v2824 = vpack.c.b16 %v2792, %v2790
    %v2858 = vlaneseq
    %v2859 = vshrl.u32 %v2858, 7
    %v2860 = vsub.s32 0, %v2859
    %v2861 = vrot.slane %v142, %v2860
    %v2862 = vlaneseq
    %v2863 = vshrl.u32 %v2862, 7
    %v2864 = vsub.s32 1, %v2863
    %v2865 = vrot.slane %v142, %v2864
    %2868 = vmatprep.subr.bf16.mxu0 %v2794
    %2869 = vmatpush1.bf16.msra.mxu0 %v2793
    %2870 = vmatprep.subr.bf16.mxu0 %v2796
    %2871 = vmatpush1.bf16.msra.mxu0 %v2795
    %2872 = vmatprep.subr.bf16.mxu0 %v2798
    %2873 = vmatpush1.bf16.msra.mxu0 %v2797
    %2874 = vmatprep.subr.bf16.mxu0 %v2800
    %2875 = vmatpush1.bf16.msra.mxu0 %v2799
    %2876 = vmatprep.subr.bf16.mxu0 %v2802
    %2877 = vmatpush1.bf16.msra.mxu0 %v2801
    %2878 = vmatprep.subr.bf16.mxu0 %v2804
    %2879 = vmatpush1.bf16.msra.mxu0 %v2803
    %2880 = vmatprep.subr.bf16.mxu0 %v2806
    %2881 = vmatpush1.bf16.msra.mxu0 %v2805
    %2882 = vmatprep.subr.bf16.mxu0 %v2808
    %2883 = vmatpush1.bf16.msra.mxu0 %v2807
    %2884 = vmatprep.subr.bf16.mxu0 %v2810
    %2885 = vmatpush1.bf16.msra.mxu0 %v2809
    %2886 = vmatprep.subr.bf16.mxu0 %v2812
    %2887 = vmatpush1.bf16.msra.mxu0 %v2811
    %2888 = vmatprep.subr.bf16.mxu0 %v2814
    %2889 = vmatpush1.bf16.msra.mxu0 %v2813
    %2890 = vmatprep.subr.bf16.mxu0 %v2816
    %2891 = vmatpush1.bf16.msra.mxu0 %v2815
    %2892 = vmatprep.subr.bf16.mxu0 %v2818
    %2893 = vmatpush1.bf16.msra.mxu0 %v2817
    %2894 = vmatprep.subr.bf16.mxu0 %v2820
    %2895 = vmatpush1.bf16.msra.mxu0 %v2819
    %2896 = vmatprep.subr.bf16.mxu0 %v2822
    %2897 = vmatpush1.bf16.msra.mxu0 %v2821
    %2898 = vmatprep.subr.bf16.mxu0 %v2824
    %2899 = vmatpush1.bf16.msra.mxu0 %v2823
    %2900 = vmatprep.mubr.bf16.mxu0 %v2664
    %2901 = vmatmul.mubr.bf16.gmra.mrb[0].mxu0 %v2663
    %v2902 = vpop.f32.mrb[0].mxu0
    %v2903 = vadd.f32 %v2861, %v2902
    %v2904 = vpop.f32.mrb[0].mxu0
    %v2905 = vadd.f32 %v2865, %v2904
    %v2906 = vpop.f32.mrb[0].mxu0
    %v2907 = vpop.f32.mrb[0].mxu0
    %2908 = vdwg.mxu0
    %v2909 = vsel %vm1450, %v2903, -inf
    %v2910 = vsel %vm1450, %v2905, -inf
    %v2911 = vmax.f32 %v2909, %v2910
    %2912 = vmax.xlane.f32.xlu0 %v2911
    %v2913 = vpop.xlane.xlu0 %2912
    %v2914 = vsub.f32 %v2903, %v2913
    %v2915 = vsub.f32 %v2905, %v2913
    %v2916 = vmul.f32 %v2914, 1.442695
    %v2917 = vpow.pop %v2916
    %v2918 = vmul.f32 %v2915, 1.442695
    %v2919 = vpow.pop %v2918
    %v2920 = vsel %vm1450, %v2917, 0.0
    %v2921 = vsel %vm1450, %v2919, 0.0
    %v2922 = vadd.f32 %v2920, %v2921
    %2923 = vadd.xlane.f32.xlu0 %v2922
    %v2924 = vpop.xlane.xlu0 %2923
    %v2925 = vlog2.pop %v2924
    %v2926 = vmul.f32 %v2925, 0.6931472
    %v2927 = vsub.f32 %v2914, %v2926
    %v2928 = vsub.f32 %v2915, %v2926
    %v2931 = vcombine.low %v2927, %v2928
    %v2933 = vunpack.c.l.s4 1966171168
    %v2934 = vunpack.c.0.s8 %v2933
    %v2935 = vlaneseq
    %v2936 = vshrl.u32 %v2935, 7
    %v2937 = vsub.s32 %v2934, %v2936
    %v2938 = vrot.slane %v2931, %v2937
    %v2940 = vunpack.c.l.s4 1966171168
    %v2941 = vunpack.c.0.s8 %v2940
    %v2942 = vlaneseq
    %v2943 = vshrl.u32 %v2942, 7
    %v2944 = vsub.s32 %v2941, %v2943
    %v2945 = vrot.slane %v2938, %v2944
    %2947 = vst.msk [vmem:[#allocation16] sm:$0x3] %vm2661, %v2945
    %s2948 = sld [smem:[#allocation3 + $0x1]]
    %s2949 = sshra.s32 %s2948, 3
    %s2950 = sand.u32 %s2948, 7
    %s2951 = sshra.s32 %s2948, 3
    %s2952 = sand.u32 %s2948, 7
    %s2953 = smul.u32 %s2949, 2
    %s2954 = smul.u32 %s2953, 8
    %s2955 = sadd.s32 %s2954, %s2952
    %s2956 = scalar_lea.vmem [#allocation4], %s2955
    %v2957 = vld [vmem:[%s2956] ss:$8 sm:$0x3]
    %v2959 = vlaneseq
    %v2960 = vshrl.u32 %v2959, 7
    %v2961 = vsub.s32 0, %v2960
    %v2962 = vrot.slane %v2957, %v2961
    %v2963 = vlaneseq
    %v2964 = vshrl.u32 %v2963, 7
    %v2965 = vsub.s32 1, %v2964
    %v2966 = vrot.slane %v2957, %v2965
    %v2969 = vpack.c.bf16 %v2962, %v2962
    %v2970 = vpack.c.bf16 %v2966, %v2966
    %v2971 = vld [vmem:[#allocation9] sm:$0xff]
    %v2972 = vld [vmem:[#allocation9 + $0x8] sm:$0xf]
    %v2973 = vld [vmem:[#allocation9 + $0xc] sm:$0xff]
    %v2974 = vld [vmem:[#allocation9 + $0x14] sm:$0xf]
    %v2975 = vld [vmem:[#allocation9 + $0x18] sm:$0xff]
    %v2976 = vld [vmem:[#allocation9 + $0x20] sm:$0xf]
    %v2977 = vld [vmem:[#allocation9 + $0x24] sm:$0xff]
    %v2978 = vld [vmem:[#allocation9 + $0x2c] sm:$0xf]
    %v2979 = vld [vmem:[#allocation9 + $0x30] sm:$0xff]
    %v2980 = vld [vmem:[#allocation9 + $0x38] sm:$0xf]
    %v2981 = vld [vmem:[#allocation9 + $0x3c] sm:$0xff]
    %v2982 = vld [vmem:[#allocation9 + $0x44] sm:$0xf]
    %v2983 = vld [vmem:[#allocation9 + $0x48] sm:$0xff]
    %v2984 = vld [vmem:[#allocation9 + $0x50] sm:$0xf]
    %v2985 = vld [vmem:[#allocation9 + $0x54] sm:$0xff]
    %v2986 = vld [vmem:[#allocation9 + $0x5c] sm:$0xf]
    %v2987 = vld [vmem:[#allocation9 + $0x60] sm:$0xff]
    %v2988 = vld [vmem:[#allocation9 + $0x68] sm:$0xf]
    %v2989 = vld [vmem:[#allocation9 + $0x6c] sm:$0xff]
    %v2990 = vld [vmem:[#allocation9 + $0x74] sm:$0xf]
    %v2991 = vld [vmem:[#allocation9 + $0x78] sm:$0xff]
    %v2992 = vld [vmem:[#allocation9 + $0x80] sm:$0xf]
    %v2993 = vld [vmem:[#allocation9 + $0x84] sm:$0xff]
    %v2994 = vld [vmem:[#allocation9 + $0x8c] sm:$0xf]
    %v2995 = vld [vmem:[#allocation9 + $0x90] sm:$0xff]
    %v2996 = vld [vmem:[#allocation9 + $0x98] sm:$0xf]
    %v2997 = vld [vmem:[#allocation9 + $0x9c] sm:$0xff]
    %v2998 = vld [vmem:[#allocation9 + $0xa4] sm:$0xf]
    %v2999 = vld [vmem:[#allocation9 + $0xa8] sm:$0xff]
    %v3000 = vld [vmem:[#allocation9 + $0xb0] sm:$0xf]
    %v3001 = vld [vmem:[#allocation9 + $0xb4] sm:$0xff]
    %v3002 = vld [vmem:[#allocation9 + $0xbc] sm:$0xf]
    %v3003 = vld [vmem:[#allocation9 + $0xc0] sm:$0xff]
    %v3004 = vld [vmem:[#allocation9 + $0xc8] sm:$0xf]
    %v3005 = vld [vmem:[#allocation9 + $0xcc] sm:$0xff]
    %v3006 = vld [vmem:[#allocation9 + $0xd4] sm:$0xf]
    %v3007 = vld [vmem:[#allocation9 + $0xd8] sm:$0xff]
    %v3008 = vld [vmem:[#allocation9 + $0xe0] sm:$0xf]
    %v3009 = vld [vmem:[#allocation9 + $0xe4] sm:$0xff]
    %v3010 = vld [vmem:[#allocation9 + $0xec] sm:$0xf]
    %v3011 = vld [vmem:[#allocation9 + $0xf0] sm:$0xff]
    %v3012 = vld [vmem:[#allocation9 + $0xf8] sm:$0xf]
    %v3013 = vld [vmem:[#allocation9 + $0xfc] sm:$0xff]
    %v3014 = vld [vmem:[#allocation9 + $0x104] sm:$0xf]
    %v3015 = vld [vmem:[#allocation9 + $0x108] sm:$0xff]
    %v3016 = vld [vmem:[#allocation9 + $0x110] sm:$0xf]
    %v3017 = vld [vmem:[#allocation9 + $0x114] sm:$0xff]
    %v3018 = vld [vmem:[#allocation9 + $0x11c] sm:$0xf]
    %v3019 = vld [vmem:[#allocation9 + $0x120] sm:$0xff]
    %v3020 = vld [vmem:[#allocation9 + $0x128] sm:$0xf]
    %v3021 = vld [vmem:[#allocation9 + $0x12c] sm:$0xff]
    %v3022 = vld [vmem:[#allocation9 + $0x134] sm:$0xf]
    %v3023 = vld [vmem:[#allocation9 + $0x138] sm:$0xff]
    %v3024 = vld [vmem:[#allocation9 + $0x140] sm:$0xf]
    %v3025 = vld [vmem:[#allocation9 + $0x144] sm:$0xff]
    %v3026 = vld [vmem:[#allocation9 + $0x14c] sm:$0xf]
    %v3027 = vld [vmem:[#allocation9 + $0x150] sm:$0xff]
    %v3028 = vld [vmem:[#allocation9 + $0x158] sm:$0xf]
    %v3029 = vld [vmem:[#allocation9 + $0x15c] sm:$0xff]
    %v3030 = vld [vmem:[#allocation9 + $0x164] sm:$0xf]
    %v3031 = vld [vmem:[#allocation9 + $0x168] sm:$0xff]
    %v3032 = vld [vmem:[#allocation9 + $0x170] sm:$0xf]
    %v3033 = vld [vmem:[#allocation9 + $0x174] sm:$0xff]
    %v3034 = vld [vmem:[#allocation9 + $0x17c] sm:$0xf]
    %v3099 = vunpack.c.l.b16 %v2971
    %v3100 = vunpack.c.h.b16 %v2971
    %v3101 = vunpack.c.l.b16 %v2972
    %v3102 = vunpack.c.l.b16 %v2973
    %v3103 = vunpack.c.h.b16 %v2973
    %v3104 = vunpack.c.l.b16 %v2974
    %v3105 = vunpack.c.l.b16 %v2975
    %v3106 = vunpack.c.h.b16 %v2975
    %v3107 = vunpack.c.l.b16 %v2976
    %v3108 = vunpack.c.l.b16 %v2977
    %v3109 = vunpack.c.h.b16 %v2977
    %v3110 = vunpack.c.l.b16 %v2978
    %v3111 = vunpack.c.l.b16 %v2979
    %v3112 = vunpack.c.h.b16 %v2979
    %v3113 = vunpack.c.l.b16 %v2980
    %v3114 = vunpack.c.l.b16 %v2981
    %v3115 = vunpack.c.h.b16 %v2981
    %v3116 = vunpack.c.l.b16 %v2982
    %v3117 = vunpack.c.l.b16 %v2983
    %v3118 = vunpack.c.h.b16 %v2983
    %v3119 = vunpack.c.l.b16 %v2984
    %v3120 = vunpack.c.l.b16 %v2985
    %v3121 = vunpack.c.h.b16 %v2985
    %v3122 = vunpack.c.l.b16 %v2986
    %v3123 = vunpack.c.l.b16 %v2987
    %v3124 = vunpack.c.h.b16 %v2987
    %v3125 = vunpack.c.l.b16 %v2988
    %v3126 = vunpack.c.l.b16 %v2989
    %v3127 = vunpack.c.h.b16 %v2989
    %v3128 = vunpack.c.l.b16 %v2990
    %v3129 = vunpack.c.l.b16 %v2991
    %v3130 = vunpack.c.h.b16 %v2991
    %v3131 = vunpack.c.l.b16 %v2992
    %v3132 = vunpack.c.l.b16 %v2993
    %v3133 = vunpack.c.h.b16 %v2993
    %v3134 = vunpack.c.l.b16 %v2994
    %v3135 = vunpack.c.l.b16 %v2995
    %v3136 = vunpack.c.h.b16 %v2995
    %v3137 = vunpack.c.l.b16 %v2996
    %v3138 = vunpack.c.l.b16 %v2997
    %v3139 = vunpack.c.h.b16 %v2997
    %v3140 = vunpack.c.l.b16 %v2998
    %v3141 = vunpack.c.l.b16 %v2999
    %v3142 = vunpack.c.h.b16 %v2999
    %v3143 = vunpack.c.l.b16 %v3000
    %v3144 = vunpack.c.l.b16 %v3001
    %v3145 = vunpack.c.h.b16 %v3001
    %v3146 = vunpack.c.l.b16 %v3002
    %v3147 = vunpack.c.l.b16 %v3003
    %v3148 = vunpack.c.h.b16 %v3003
    %v3149 = vunpack.c.l.b16 %v3004
    %v3150 = vunpack.c.l.b16 %v3005
    %v3151 = vunpack.c.h.b16 %v3005
    %v3152 = vunpack.c.l.b16 %v3006
    %v3153 = vunpack.c.l.b16 %v3007
    %v3154 = vunpack.c.h.b16 %v3007
    %v3155 = vunpack.c.l.b16 %v3008
    %v3156 = vunpack.c.l.b16 %v3009
    %v3157 = vunpack.c.h.b16 %v3009
    %v3158 = vunpack.c.l.b16 %v3010
    %v3159 = vunpack.c.l.b16 %v3011
    %v3160 = vunpack.c.h.b16 %v3011
    %v3161 = vunpack.c.l.b16 %v3012
    %v3162 = vunpack.c.l.b16 %v3013
    %v3163 = vunpack.c.h.b16 %v3013
    %v3164 = vunpack.c.l.b16 %v3014
    %v3165 = vunpack.c.l.b16 %v3015
    %v3166 = vunpack.c.h.b16 %v3015
    %v3167 = vunpack.c.l.b16 %v3016
    %v3168 = vunpack.c.l.b16 %v3017
    %v3169 = vunpack.c.h.b16 %v3017
    %v3170 = vunpack.c.l.b16 %v3018
    %v3171 = vunpack.c.l.b16 %v3019
    %v3172 = vunpack.c.h.b16 %v3019
    %v3173 = vunpack.c.l.b16 %v3020
    %v3174 = vunpack.c.l.b16 %v3021
    %v3175 = vunpack.c.h.b16 %v3021
    %v3176 = vunpack.c.l.b16 %v3022
    %v3177 = vunpack.c.l.b16 %v3023
    %v3178 = vunpack.c.h.b16 %v3023
    %v3179 = vunpack.c.l.b16 %v3024
    %v3180 = vunpack.c.l.b16 %v3025
    %v3181 = vunpack.c.h.b16 %v3025
    %v3182 = vunpack.c.l.b16 %v3026
    %v3183 = vunpack.c.l.b16 %v3027
    %v3184 = vunpack.c.h.b16 %v3027
    %v3185 = vunpack.c.l.b16 %v3028
    %v3186 = vunpack.c.l.b16 %v3029
    %v3187 = vunpack.c.h.b16 %v3029
    %v3188 = vunpack.c.l.b16 %v3030
    %v3189 = vunpack.c.l.b16 %v3031
    %v3190 = vunpack.c.h.b16 %v3031
    %v3191 = vunpack.c.l.b16 %v3032
    %v3192 = vunpack.c.l.b16 %v3033
    %v3193 = vunpack.c.h.b16 %v3033
    %v3194 = vunpack.c.l.b16 %v3034
    %v3195 = vpack.c.b16 %v3102, %v3099
    %v3196 = vpack.c.b16 %v3103, %v3100
    %v3197 = vpack.c.b16 %v3104, %v3101
    %v3198 = vpack.c.b16 %v3108, %v3105
    %v3199 = vpack.c.b16 %v3109, %v3106
    %v3200 = vpack.c.b16 %v3110, %v3107
    %v3201 = vpack.c.b16 %v3114, %v3111
    %v3202 = vpack.c.b16 %v3115, %v3112
    %v3203 = vpack.c.b16 %v3116, %v3113
    %v3204 = vpack.c.b16 %v3120, %v3117
    %v3205 = vpack.c.b16 %v3121, %v3118
    %v3206 = vpack.c.b16 %v3122, %v3119
    %v3207 = vpack.c.b16 %v3126, %v3123
    %v3208 = vpack.c.b16 %v3127, %v3124
    %v3209 = vpack.c.b16 %v3128, %v3125
    %v3210 = vpack.c.b16 %v3132, %v3129
    %v3211 = vpack.c.b16 %v3133, %v3130
    %v3212 = vpack.c.b16 %v3134, %v3131
    %v3213 = vpack.c.b16 %v3138, %v3135
    %v3214 = vpack.c.b16 %v3139, %v3136
    %v3215 = vpack.c.b16 %v3140, %v3137
    %v3216 = vpack.c.b16 %v3144, %v3141
    %v3217 = vpack.c.b16 %v3145, %v3142
    %v3218 = vpack.c.b16 %v3146, %v3143
    %v3219 = vpack.c.b16 %v3150, %v3147
    %v3220 = vpack.c.b16 %v3151, %v3148
    %v3221 = vpack.c.b16 %v3152, %v3149
    %v3222 = vpack.c.b16 %v3156, %v3153
    %v3223 = vpack.c.b16 %v3157, %v3154
    %v3224 = vpack.c.b16 %v3158, %v3155
    %v3225 = vpack.c.b16 %v3162, %v3159
    %v3226 = vpack.c.b16 %v3163, %v3160
    %v3227 = vpack.c.b16 %v3164, %v3161
    %v3228 = vpack.c.b16 %v3168, %v3165
    %v3229 = vpack.c.b16 %v3169, %v3166
    %v3230 = vpack.c.b16 %v3170, %v3167
    %v3231 = vpack.c.b16 %v3174, %v3171
    %v3232 = vpack.c.b16 %v3175, %v3172
    %v3233 = vpack.c.b16 %v3176, %v3173
    %v3234 = vpack.c.b16 %v3180, %v3177
    %v3235 = vpack.c.b16 %v3181, %v3178
    %v3236 = vpack.c.b16 %v3182, %v3179
    %v3237 = vpack.c.b16 %v3186, %v3183
    %v3238 = vpack.c.b16 %v3187, %v3184
    %v3239 = vpack.c.b16 %v3188, %v3185
    %v3240 = vpack.c.b16 %v3192, %v3189
    %v3241 = vpack.c.b16 %v3193, %v3190
    %v3242 = vpack.c.b16 %v3194, %v3191
    %3291 = vmatprep.subr.bf16.mxu0 %v3196
    %3292 = vmatpush1.bf16.msra.mxu0 %v3195
    %3293 = vmatprep.subr.bf16.mxu0 %v3199
    %3294 = vmatpush1.bf16.msra.mxu0 %v3198
    %3295 = vmatprep.subr.bf16.mxu0 %v3202
    %3296 = vmatpush1.bf16.msra.mxu0 %v3201
    %3297 = vmatprep.subr.bf16.mxu0 %v3205
    %3298 = vmatpush1.bf16.msra.mxu0 %v3204
    %3299 = vmatprep.subr.bf16.mxu0 %v3208
    %3300 = vmatpush1.bf16.msra.mxu0 %v3207
    %3301 = vmatprep.subr.bf16.mxu0 %v3211
    %3302 = vmatpush1.bf16.msra.mxu0 %v3210
    %3303 = vmatprep.subr.bf16.mxu0 %v3214
    %3304 = vmatpush1.bf16.msra.mxu0 %v3213
    %3305 = vmatprep.subr.bf16.mxu0 %v3217
    %3306 = vmatpush1.bf16.msra.mxu0 %v3216
    %3307 = vmatprep.subr.bf16.mxu0 %v3220
    %3308 = vmatpush1.bf16.msra.mxu0 %v3219
    %3309 = vmatprep.subr.bf16.mxu0 %v3223
    %3310 = vmatpush1.bf16.msra.mxu0 %v3222
    %3311 = vmatprep.subr.bf16.mxu0 %v3226
    %3312 = vmatpush1.bf16.msra.mxu0 %v3225
    %3313 = vmatprep.subr.bf16.mxu0 %v3229
    %3314 = vmatpush1.bf16.msra.mxu0 %v3228
    %3315 = vmatprep.subr.bf16.mxu0 %v3232
    %3316 = vmatpush1.bf16.msra.mxu0 %v3231
    %3317 = vmatprep.subr.bf16.mxu0 %v3235
    %3318 = vmatpush1.bf16.msra.mxu0 %v3234
    %3319 = vmatprep.subr.bf16.mxu0 %v3238
    %3320 = vmatpush1.bf16.msra.mxu0 %v3237
    %3321 = vmatprep.subr.bf16.mxu0 %v3241
    %3322 = vmatpush1.bf16.msra.mxu0 %v3240
    %3323 = vmatprep.mubr.bf16.mxu0 %v2970
    %3324 = vmatmul.mubr.bf16.gmra.mrb[0].mxu0 %v2969
    %v3325 = vpop.f32.mrb[0].mxu0
    %v3326 = vadd.f32 0.0, %v3325
    %v3327 = vpop.f32.mrb[0].mxu0
    %v3328 = vadd.f32 0.0, %v3327
    %v3329 = vpop.f32.mrb[0].mxu0
    %v3330 = vpop.f32.mrb[0].mxu0
    %3331 = vdwg.mxu0
    %3332 = vmatprep.subr.bf16.mxu0 0
    %3333 = vmatpush1.bf16.msra.mxu0 %v3197
    %3334 = vmatprep.subr.bf16.mxu0 0
    %3335 = vmatpush1.bf16.msra.mxu0 %v3200
    %3336 = vmatprep.subr.bf16.mxu0 0
    %3337 = vmatpush1.bf16.msra.mxu0 %v3203
    %3338 = vmatprep.subr.bf16.mxu0 0
    %3339 = vmatpush1.bf16.msra.mxu0 %v3206
    %3340 = vmatprep.subr.bf16.mxu0 0
    %3341 = vmatpush1.bf16.msra.mxu0 %v3209
    %3342 = vmatprep.subr.bf16.mxu0 0
    %3343 = vmatpush1.bf16.msra.mxu0 %v3212
    %3344 = vmatprep.subr.bf16.mxu0 0
    %3345 = vmatpush1.bf16.msra.mxu0 %v3215
    %3346 = vmatprep.subr.bf16.mxu0 0
    %3347 = vmatpush1.bf16.msra.mxu0 %v3218
    %3348 = vmatprep.subr.bf16.mxu0 0
    %3349 = vmatpush1.bf16.msra.mxu0 %v3221
    %3350 = vmatprep.subr.bf16.mxu0 0
    %3351 = vmatpush1.bf16.msra.mxu0 %v3224
    %3352 = vmatprep.subr.bf16.mxu0 0
    %3353 = vmatpush1.bf16.msra.mxu0 %v3227
    %3354 = vmatprep.subr.bf16.mxu0 0
    %3355 = vmatpush1.bf16.msra.mxu0 %v3230
    %3356 = vmatprep.subr.bf16.mxu0 0
    %3357 = vmatpush1.bf16.msra.mxu0 %v3233
    %3358 = vmatprep.subr.bf16.mxu0 0
    %3359 = vmatpush1.bf16.msra.mxu0 %v3236
    %3360 = vmatprep.subr.bf16.mxu0 0
    %3361 = vmatpush1.bf16.msra.mxu0 %v3239
    %3362 = vmatprep.subr.bf16.mxu0 0
    %3363 = vmatpush1.bf16.msra.mxu0 %v3242
    %3364 = vmatprep.mubr.bf16.mxu0 %v2970
    %3365 = vmatmul.mubr.bf16.gmra.mrb[0].mxu0 %v2969
    %v3366 = vpop.f32.mrb[0].mxu0
    %v3367 = vadd.f32 0.0, %v3366
    %v3368 = vpop.f32.mrb[0].mxu0
    %v3369 = vpop.f32.mrb[0].mxu0
    %v3370 = vpop.f32.mrb[0].mxu0
    %3371 = vdwg.mxu0
    %v3372 = vld [vmem:[#allocation10] sm:$0xff]
    %v3373 = vld [vmem:[#allocation10 + $0x8] sm:$0xff]
    %v3374 = vld [vmem:[#allocation10 + $0x10] sm:$0xff]
    %v3375 = vld [vmem:[#allocation10 + $0x18] sm:$0xf]
    %v3376 = vld [vmem:[#allocation10 + $0x1c] sm:$0xff]
    %v3377 = vld [vmem:[#allocation10 + $0x24] sm:$0xff]
    %v3378 = vld [vmem:[#allocation10 + $0x2c] sm:$0xff]
    %v3379 = vld [vmem:[#allocation10 + $0x34] sm:$0xf]
    %v3380 = vld [vmem:[#allocation10 + $0x38] sm:$0xff]
    %v3381 = vld [vmem:[#allocation10 + $0x40] sm:$0xff]
    %v3382 = vld [vmem:[#allocation10 + $0x48] sm:$0xff]
    %v3383 = vld [vmem:[#allocation10 + $0x50] sm:$0xf]
    %v3384 = vld [vmem:[#allocation10 + $0x54] sm:$0xff]
    %v3385 = vld [vmem:[#allocation10 + $0x5c] sm:$0xff]
    %v3386 = vld [vmem:[#allocation10 + $0x64] sm:$0xff]
    %v3387 = vld [vmem:[#allocation10 + $0x6c] sm:$0xf]
    %v3388 = vld [vmem:[#allocation10 + $0x70] sm:$0xff]
    %v3389 = vld [vmem:[#allocation10 + $0x78] sm:$0xff]
    %v3390 = vld [vmem:[#allocation10 + $0x80] sm:$0xff]
    %v3391 = vld [vmem:[#allocation10 + $0x88] sm:$0xf]
    %v3392 = vld [vmem:[#allocation10 + $0x8c] sm:$0xff]
    %v3393 = vld [vmem:[#allocation10 + $0x94] sm:$0xff]
    %v3394 = vld [vmem:[#allocation10 + $0x9c] sm:$0xff]
    %v3395 = vld [vmem:[#allocation10 + $0xa4] sm:$0xf]
    %v3396 = vld [vmem:[#allocation10 + $0xa8] sm:$0xff]
    %v3397 = vld [vmem:[#allocation10 + $0xb0] sm:$0xff]
    %v3398 = vld [vmem:[#allocation10 + $0xb8] sm:$0xff]
    %v3399 = vld [vmem:[#allocation10 + $0xc0] sm:$0xf]
    %v3400 = vld [vmem:[#allocation10 + $0xc4] sm:$0xff]
    %v3401 = vld [vmem:[#allocation10 + $0xcc] sm:$0xff]
    %v3402 = vld [vmem:[#allocation10 + $0xd4] sm:$0xff]
    %v3403 = vld [vmem:[#allocation10 + $0xdc] sm:$0xf]
    %v3404 = vld [vmem:[#allocation10 + $0xe0] sm:$0xff]
    %v3405 = vld [vmem:[#allocation10 + $0xe8] sm:$0xff]
    %v3406 = vld [vmem:[#allocation10 + $0xf0] sm:$0xff]
    %v3407 = vld [vmem:[#allocation10 + $0xf8] sm:$0xf]
    %v3408 = vld [vmem:[#allocation10 + $0xfc] sm:$0xff]
    %v3409 = vld [vmem:[#allocation10 + $0x104] sm:$0xff]
    %v3410 = vld [vmem:[#allocation10 + $0x10c] sm:$0xff]
    %v3411 = vld [vmem:[#allocation10 + $0x114] sm:$0xf]
    %v3412 = vld [vmem:[#allocation10 + $0x118] sm:$0xff]
    %v3413 = vld [vmem:[#allocation10 + $0x120] sm:$0xff]
    %v3414 = vld [vmem:[#allocation10 + $0x128] sm:$0xff]
    %v3415 = vld [vmem:[#allocation10 + $0x130] sm:$0xf]
    %v3416 = vld [vmem:[#allocation10 + $0x134] sm:$0xff]
    %v3417 = vld [vmem:[#allocation10 + $0x13c] sm:$0xff]
    %v3418 = vld [vmem:[#allocation10 + $0x144] sm:$0xff]
    %v3419 = vld [vmem:[#allocation10 + $0x14c] sm:$0xf]
    %v3420 = vld [vmem:[#allocation10 + $0x150] sm:$0xff]
    %v3421 = vld [vmem:[#allocation10 + $0x158] sm:$0xff]
    %v3422 = vld [vmem:[#allocation10 + $0x160] sm:$0xff]
    %v3423 = vld [vmem:[#allocation10 + $0x168] sm:$0xf]
    %v3424 = vld [vmem:[#allocation10 + $0x16c] sm:$0xff]
    %v3425 = vld [vmem:[#allocation10 + $0x174] sm:$0xff]
    %v3426 = vld [vmem:[#allocation10 + $0x17c] sm:$0xff]
    %v3427 = vld [vmem:[#allocation10 + $0x184] sm:$0xf]
    %v3428 = vld [vmem:[#allocation10 + $0x188] sm:$0xff]
    %v3429 = vld [vmem:[#allocation10 + $0x190] sm:$0xff]
    %v3430 = vld [vmem:[#allocation10 + $0x198] sm:$0xff]
    %v3431 = vld [vmem:[#allocation10 + $0x1a0] sm:$0xf]
    %v3432 = vld [vmem:[#allocation10 + $0x1a4] sm:$0xff]
    %v3433 = vld [vmem:[#allocation10 + $0x1ac] sm:$0xff]
    %v3434 = vld [vmem:[#allocation10 + $0x1b4] sm:$0xff]
    %v3435 = vld [vmem:[#allocation10 + $0x1bc] sm:$0xf]
    %v3436 = vld [vmem:[#allocation10 + $0x1c0] sm:$0xff]
    %v3437 = vld [vmem:[#allocation10 + $0x1c8] sm:$0xff]
    %v3438 = vld [vmem:[#allocation10 + $0x1d0] sm:$0xff]
    %v3439 = vld [vmem:[#allocation10 + $0x1d8] sm:$0xf]
    %v3440 = vld [vmem:[#allocation10 + $0x1dc] sm:$0xff]
    %v3441 = vld [vmem:[#allocation10 + $0x1e4] sm:$0xff]
    %v3442 = vld [vmem:[#allocation10 + $0x1ec] sm:$0xff]
    %v3443 = vld [vmem:[#allocation10 + $0x1f4] sm:$0xf]
    %v3444 = vld [vmem:[#allocation10 + $0x1f8] sm:$0xff]
    %v3445 = vld [vmem:[#allocation10 + $0x200] sm:$0xff]
    %v3446 = vld [vmem:[#allocation10 + $0x208] sm:$0xff]
    %v3447 = vld [vmem:[#allocation10 + $0x210] sm:$0xf]
    %v3448 = vld [vmem:[#allocation10 + $0x214] sm:$0xff]
    %v3449 = vld [vmem:[#allocation10 + $0x21c] sm:$0xff]
    %v3450 = vld [vmem:[#allocation10 + $0x224] sm:$0xff]
    %v3451 = vld [vmem:[#allocation10 + $0x22c] sm:$0xf]
    %v3452 = vld [vmem:[#allocation10 + $0x230] sm:$0xff]
    %v3453 = vld [vmem:[#allocation10 + $0x238] sm:$0xff]
    %v3454 = vld [vmem:[#allocation10 + $0x240] sm:$0xff]
    %v3455 = vld [vmem:[#allocation10 + $0x248] sm:$0xf]
    %v3456 = vld [vmem:[#allocation10 + $0x24c] sm:$0xff]
    %v3457 = vld [vmem:[#allocation10 + $0x254] sm:$0xff]
    %v3458 = vld [vmem:[#allocation10 + $0x25c] sm:$0xff]
    %v3459 = vld [vmem:[#allocation10 + $0x264] sm:$0xf]
    %v3460 = vld [vmem:[#allocation10 + $0x268] sm:$0xff]
    %v3461 = vld [vmem:[#allocation10 + $0x270] sm:$0xff]
    %v3462 = vld [vmem:[#allocation10 + $0x278] sm:$0xff]
    %v3463 = vld [vmem:[#allocation10 + $0x280] sm:$0xf]
    %v3464 = vld [vmem:[#allocation10 + $0x284] sm:$0xff]
    %v3465 = vld [vmem:[#allocation10 + $0x28c] sm:$0xff]
    %v3466 = vld [vmem:[#allocation10 + $0x294] sm:$0xff]
    %v3467 = vld [vmem:[#allocation10 + $0x29c] sm:$0xf]
    %v3468 = vld [vmem:[#allocation10 + $0x2a0] sm:$0xff]
    %v3469 = vld [vmem:[#allocation10 + $0x2a8] sm:$0xff]
    %v3470 = vld [vmem:[#allocation10 + $0x2b0] sm:$0xff]
    %v3471 = vld [vmem:[#allocation10 + $0x2b8] sm:$0xf]
    %v3472 = vld [vmem:[#allocation10 + $0x2bc] sm:$0xff]
    %v3473 = vld [vmem:[#allocation10 + $0x2c4] sm:$0xff]
    %v3474 = vld [vmem:[#allocation10 + $0x2cc] sm:$0xff]
    %v3475 = vld [vmem:[#allocation10 + $0x2d4] sm:$0xf]
    %v3476 = vld [vmem:[#allocation10 + $0x2d8] sm:$0xff]
    %v3477 = vld [vmem:[#allocation10 + $0x2e0] sm:$0xff]
    %v3478 = vld [vmem:[#allocation10 + $0x2e8] sm:$0xff]
    %v3479 = vld [vmem:[#allocation10 + $0x2f0] sm:$0xf]
    %v3480 = vld [vmem:[#allocation10 + $0x2f4] sm:$0xff]
    %v3481 = vld [vmem:[#allocation10 + $0x2fc] sm:$0xff]
    %v3482 = vld [vmem:[#allocation10 + $0x304] sm:$0xff]
    %v3483 = vld [vmem:[#allocation10 + $0x30c] sm:$0xf]
    %v3484 = vld [vmem:[#allocation10 + $0x310] sm:$0xff]
    %v3485 = vld [vmem:[#allocation10 + $0x318] sm:$0xff]
    %v3486 = vld [vmem:[#allocation10 + $0x320] sm:$0xff]
    %v3487 = vld [vmem:[#allocation10 + $0x328] sm:$0xf]
    %v3488 = vld [vmem:[#allocation10 + $0x32c] sm:$0xff]
    %v3489 = vld [vmem:[#allocation10 + $0x334] sm:$0xff]
    %v3490 = vld [vmem:[#allocation10 + $0x33c] sm:$0xff]
    %v3491 = vld [vmem:[#allocation10 + $0x344] sm:$0xf]
    %v3492 = vld [vmem:[#allocation10 + $0x348] sm:$0xff]
    %v3493 = vld [vmem:[#allocation10 + $0x350] sm:$0xff]
    %v3494 = vld [vmem:[#allocation10 + $0x358] sm:$0xff]
    %v3495 = vld [vmem:[#allocation10 + $0x360] sm:$0xf]
    %v3496 = vld [vmem:[#allocation10 + $0x364] sm:$0xff]
    %v3497 = vld [vmem:[#allocation10 + $0x36c] sm:$0xff]
    %v3498 = vld [vmem:[#allocation10 + $0x374] sm:$0xff]
    %v3499 = vld [vmem:[#allocation10 + $0x37c] sm:$0xf]
    %v3628 = vunpack.c.l.b16 %v3372
    %v3629 = vunpack.c.h.b16 %v3372
    %v3630 = vunpack.c.l.b16 %v3373
    %v3631 = vunpack.c.h.b16 %v3373
    %v3632 = vunpack.c.l.b16 %v3374
    %v3633 = vunpack.c.h.b16 %v3374
    %v3634 = vunpack.c.l.b16 %v3375
    %v3635 = vunpack.c.l.b16 %v3376
    %v3636 = vunpack.c.h.b16 %v3376
    %v3637 = vunpack.c.l.b16 %v3377
    %v3638 = vunpack.c.h.b16 %v3377
    %v3639 = vunpack.c.l.b16 %v3378
    %v3640 = vunpack.c.h.b16 %v3378
    %v3641 = vunpack.c.l.b16 %v3379
    %v3642 = vunpack.c.l.b16 %v3380
    %v3643 = vunpack.c.h.b16 %v3380
    %v3644 = vunpack.c.l.b16 %v3381
    %v3645 = vunpack.c.h.b16 %v3381
    %v3646 = vunpack.c.l.b16 %v3382
    %v3647 = vunpack.c.h.b16 %v3382
    %v3648 = vunpack.c.l.b16 %v3383
    %v3649 = vunpack.c.l.b16 %v3384
    %v3650 = vunpack.c.h.b16 %v3384
    %v3651 = vunpack.c.l.b16 %v3385
    %v3652 = vunpack.c.h.b16 %v3385
    %v3653 = vunpack.c.l.b16 %v3386
    %v3654 = vunpack.c.h.b16 %v3386
    %v3655 = vunpack.c.l.b16 %v3387
    %v3656 = vunpack.c.l.b16 %v3388
    %v3657 = vunpack.c.h.b16 %v3388
    %v3658 = vunpack.c.l.b16 %v3389
    %v3659 = vunpack.c.h.b16 %v3389
    %v3660 = vunpack.c.l.b16 %v3390
    %v3661 = vunpack.c.h.b16 %v3390
    %v3662 = vunpack.c.l.b16 %v3391
    %v3663 = vunpack.c.l.b16 %v3392
    %v3664 = vunpack.c.h.b16 %v3392
    %v3665 = vunpack.c.l.b16 %v3393
    %v3666 = vunpack.c.h.b16 %v3393
    %v3667 = vunpack.c.l.b16 %v3394
    %v3668 = vunpack.c.h.b16 %v3394
    %v3669 = vunpack.c.l.b16 %v3395
    %v3670 = vunpack.c.l.b16 %v3396
    %v3671 = vunpack.c.h.b16 %v3396
    %v3672 = vunpack.c.l.b16 %v3397
    %v3673 = vunpack.c.h.b16 %v3397
    %v3674 = vunpack.c.l.b16 %v3398
    %v3675 = vunpack.c.h.b16 %v3398
    %v3676 = vunpack.c.l.b16 %v3399
    %v3677 = vunpack.c.l.b16 %v3400
    %v3678 = vunpack.c.h.b16 %v3400
    %v3679 = vunpack.c.l.b16 %v3401
    %v3680 = vunpack.c.h.b16 %v3401
    %v3681 = vunpack.c.l.b16 %v3402
    %v3682 = vunpack.c.h.b16 %v3402
    %v3683 = vunpack.c.l.b16 %v3403
    %v3684 = vunpack.c.l.b16 %v3404
    %v3685 = vunpack.c.h.b16 %v3404
    %v3686 = vunpack.c.l.b16 %v3405
    %v3687 = vunpack.c.h.b16 %v3405
    %v3688 = vunpack.c.l.b16 %v3406
    %v3689 = vunpack.c.h.b16 %v3406
    %v3690 = vunpack.c.l.b16 %v3407
    %v3691 = vunpack.c.l.b16 %v3408
    %v3692 = vunpack.c.h.b16 %v3408
    %v3693 = vunpack.c.l.b16 %v3409
    %v3694 = vunpack.c.h.b16 %v3409
    %v3695 = vunpack.c.l.b16 %v3410
    %v3696 = vunpack.c.h.b16 %v3410
    %v3697 = vunpack.c.l.b16 %v3411
    %v3698 = vunpack.c.l.b16 %v3412
    %v3699 = vunpack.c.h.b16 %v3412
    %v3700 = vunpack.c.l.b16 %v3413
    %v3701 = vunpack.c.h.b16 %v3413
    %v3702 = vunpack.c.l.b16 %v3414
    %v3703 = vunpack.c.h.b16 %v3414
    %v3704 = vunpack.c.l.b16 %v3415
    %v3705 = vunpack.c.l.b16 %v3416
    %v3706 = vunpack.c.h.b16 %v3416
    %v3707 = vunpack.c.l.b16 %v3417
    %v3708 = vunpack.c.h.b16 %v3417
    %v3709 = vunpack.c.l.b16 %v3418
    %v3710 = vunpack.c.h.b16 %v3418
    %v3711 = vunpack.c.l.b16 %v3419
    %v3712 = vunpack.c.l.b16 %v3420
    %v3713 = vunpack.c.h.b16 %v3420
    %v3714 = vunpack.c.l.b16 %v3421
    %v3715 = vunpack.c.h.b16 %v3421
    %v3716 = vunpack.c.l.b16 %v3422
    %v3717 = vunpack.c.h.b16 %v3422
    %v3718 = vunpack.c.l.b16 %v3423
    %v3719 = vunpack.c.l.b16 %v3424
    %v3720 = vunpack.c.h.b16 %v3424
    %v3721 = vunpack.c.l.b16 %v3425
    %v3722 = vunpack.c.h.b16 %v3425
    %v3723 = vunpack.c.l.b16 %v3426
    %v3724 = vunpack.c.h.b16 %v3426
    %v3725 = vunpack.c.l.b16 %v3427
    %v3726 = vunpack.c.l.b16 %v3428
    %v3727 = vunpack.c.h.b16 %v3428
    %v3728 = vunpack.c.l.b16 %v3429
    %v3729 = vunpack.c.h.b16 %v3429
    %v3730 = vunpack.c.l.b16 %v3430
    %v3731 = vunpack.c.h.b16 %v3430
    %v3732 = vunpack.c.l.b16 %v3431
    %v3733 = vunpack.c.l.b16 %v3432
    %v3734 = vunpack.c.h.b16 %v3432
    %v3735 = vunpack.c.l.b16 %v3433
    %v3736 = vunpack.c.h.b16 %v3433
    %v3737 = vunpack.c.l.b16 %v3434
    %v3738 = vunpack.c.h.b16 %v3434
    %v3739 = vunpack.c.l.b16 %v3435
    %v3740 = vunpack.c.l.b16 %v3436
    %v3741 = vunpack.c.h.b16 %v3436
    %v3742 = vunpack.c.l.b16 %v3437
    %v3743 = vunpack.c.h.b16 %v3437
    %v3744 = vunpack.c.l.b16 %v3438
    %v3745 = vunpack.c.h.b16 %v3438
    %v3746 = vunpack.c.l.b16 %v3439
    %v3747 = vunpack.c.l.b16 %v3440
    %v3748 = vunpack.c.h.b16 %v3440
    %v3749 = vunpack.c.l.b16 %v3441
    %v3750 = vunpack.c.h.b16 %v3441
    %v3751 = vunpack.c.l.b16 %v3442
    %v3752 = vunpack.c.h.b16 %v3442
    %v3753 = vunpack.c.l.b16 %v3443
    %v3754 = vunpack.c.l.b16 %v3444
    %v3755 = vunpack.c.h.b16 %v3444
    %v3756 = vunpack.c.l.b16 %v3445
    %v3757 = vunpack.c.h.b16 %v3445
    %v3758 = vunpack.c.l.b16 %v3446
    %v3759 = vunpack.c.h.b16 %v3446
    %v3760 = vunpack.c.l.b16 %v3447
    %v3761 = vunpack.c.l.b16 %v3448
    %v3762 = vunpack.c.h.b16 %v3448
    %v3763 = vunpack.c.l.b16 %v3449
    %v3764 = vunpack.c.h.b16 %v3449
    %v3765 = vunpack.c.l.b16 %v3450
    %v3766 = vunpack.c.h.b16 %v3450
    %v3767 = vunpack.c.l.b16 %v3451
    %v3768 = vunpack.c.l.b16 %v3452
    %v3769 = vunpack.c.h.b16 %v3452
    %v3770 = vunpack.c.l.b16 %v3453
    %v3771 = vunpack.c.h.b16 %v3453
    %v3772 = vunpack.c.l.b16 %v3454
    %v3773 = vunpack.c.h.b16 %v3454
    %v3774 = vunpack.c.l.b16 %v3455
    %v3775 = vunpack.c.l.b16 %v3456
    %v3776 = vunpack.c.h.b16 %v3456
    %v3777 = vunpack.c.l.b16 %v3457
    %v3778 = vunpack.c.h.b16 %v3457
    %v3779 = vunpack.c.l.b16 %v3458
    %v3780 = vunpack.c.h.b16 %v3458
    %v3781 = vunpack.c.l.b16 %v3459
    %v3782 = vunpack.c.l.b16 %v3460
    %v3783 = vunpack.c.h.b16 %v3460
    %v3784 = vunpack.c.l.b16 %v3461
    %v3785 = vunpack.c.h.b16 %v3461
    %v3786 = vunpack.c.l.b16 %v3462
    %v3787 = vunpack.c.h.b16 %v3462
    %v3788 = vunpack.c.l.b16 %v3463
    %v3789 = vunpack.c.l.b16 %v3464
    %v3790 = vunpack.c.h.b16 %v3464
    %v3791 = vunpack.c.l.b16 %v3465
    %v3792 = vunpack.c.h.b16 %v3465
    %v3793 = vunpack.c.l.b16 %v3466
    %v3794 = vunpack.c.h.b16 %v3466
    %v3795 = vunpack.c.l.b16 %v3467
    %v3796 = vunpack.c.l.b16 %v3468
    %v3797 = vunpack.c.h.b16 %v3468
    %v3798 = vunpack.c.l.b16 %v3469
    %v3799 = vunpack.c.h.b16 %v3469
    %v3800 = vunpack.c.l.b16 %v3470
    %v3801 = vunpack.c.h.b16 %v3470
    %v3802 = vunpack.c.l.b16 %v3471
    %v3803 = vunpack.c.l.b16 %v3472
    %v3804 = vunpack.c.h.b16 %v3472
    %v3805 = vunpack.c.l.b16 %v3473
    %v3806 = vunpack.c.h.b16 %v3473
    %v3807 = vunpack.c.l.b16 %v3474
    %v3808 = vunpack.c.h.b16 %v3474
    %v3809 = vunpack.c.l.b16 %v3475
    %v3810 = vunpack.c.l.b16 %v3476
    %v3811 = vunpack.c.h.b16 %v3476
    %v3812 = vunpack.c.l.b16 %v3477
    %v3813 = vunpack.c.h.b16 %v3477
    %v3814 = vunpack.c.l.b16 %v3478
    %v3815 = vunpack.c.h.b16 %v3478
    %v3816 = vunpack.c.l.b16 %v3479
    %v3817 = vunpack.c.l.b16 %v3480
    %v3818 = vunpack.c.h.b16 %v3480
    %v3819 = vunpack.c.l.b16 %v3481
    %v3820 = vunpack.c.h.b16 %v3481
    %v3821 = vunpack.c.l.b16 %v3482
    %v3822 = vunpack.c.h.b16 %v3482
    %v3823 = vunpack.c.l.b16 %v3483
    %v3824 = vunpack.c.l.b16 %v3484
    %v3825 = vunpack.c.h.b16 %v3484
    %v3826 = vunpack.c.l.b16 %v3485
    %v3827 = vunpack.c.h.b16 %v3485
    %v3828 = vunpack.c.l.b16 %v3486
    %v3829 = vunpack.c.h.b16 %v3486
    %v3830 = vunpack.c.l.b16 %v3487
    %v3831 = vunpack.c.l.b16 %v3488
    %v3832 = vunpack.c.h.b16 %v3488
    %v3833 = vunpack.c.l.b16 %v3489
    %v3834 = vunpack.c.h.b16 %v3489
    %v3835 = vunpack.c.l.b16 %v3490
    %v3836 = vunpack.c.h.b16 %v3490
    %v3837 = vunpack.c.l.b16 %v3491
    %v3838 = vunpack.c.l.b16 %v3492
    %v3839 = vunpack.c.h.b16 %v3492
    %v3840 = vunpack.c.l.b16 %v3493
    %v3841 = vunpack.c.h.b16 %v3493
    %v3842 = vunpack.c.l.b16 %v3494
    %v3843 = vunpack.c.h.b16 %v3494
    %v3844 = vunpack.c.l.b16 %v3495
    %v3845 = vunpack.c.l.b16 %v3496
    %v3846 = vunpack.c.h.b16 %v3496
    %v3847 = vunpack.c.l.b16 %v3497
    %v3848 = vunpack.c.h.b16 %v3497
    %v3849 = vunpack.c.l.b16 %v3498
    %v3850 = vunpack.c.h.b16 %v3498
    %v3851 = vunpack.c.l.b16 %v3499
    %v3852 = vpack.c.b16 %v3635, %v3628
    %v3853 = vpack.c.b16 %v3636, %v3629
    %v3854 = vpack.c.b16 %v3637, %v3630
    %v3855 = vpack.c.b16 %v3638, %v3631
    %v3856 = vpack.c.b16 %v3639, %v3632
    %v3857 = vpack.c.b16 %v3640, %v3633
    %v3858 = vpack.c.b16 %v3641, %v3634
    %v3859 = vpack.c.b16 %v3649, %v3642
    %v3860 = vpack.c.b16 %v3650, %v3643
    %v3861 = vpack.c.b16 %v3651, %v3644
    %v3862 = vpack.c.b16 %v3652, %v3645
    %v3863 = vpack.c.b16 %v3653, %v3646
    %v3864 = vpack.c.b16 %v3654, %v3647
    %v3865 = vpack.c.b16 %v3655, %v3648
    %v3866 = vpack.c.b16 %v3663, %v3656
    %v3867 = vpack.c.b16 %v3664, %v3657
    %v3868 = vpack.c.b16 %v3665, %v3658
    %v3869 = vpack.c.b16 %v3666, %v3659
    %v3870 = vpack.c.b16 %v3667, %v3660
    %v3871 = vpack.c.b16 %v3668, %v3661
    %v3872 = vpack.c.b16 %v3669, %v3662
    %v3873 = vpack.c.b16 %v3677, %v3670
    %v3874 = vpack.c.b16 %v3678, %v3671
    %v3875 = vpack.c.b16 %v3679, %v3672
    %v3876 = vpack.c.b16 %v3680, %v3673
    %v3877 = vpack.c.b16 %v3681, %v3674
    %v3878 = vpack.c.b16 %v3682, %v3675
    %v3879 = vpack.c.b16 %v3683, %v3676
    %v3880 = vpack.c.b16 %v3691, %v3684
    %v3881 = vpack.c.b16 %v3692, %v3685
    %v3882 = vpack.c.b16 %v3693, %v3686
    %v3883 = vpack.c.b16 %v3694, %v3687
    %v3884 = vpack.c.b16 %v3695, %v3688
    %v3885 = vpack.c.b16 %v3696, %v3689
    %v3886 = vpack.c.b16 %v3697, %v3690
    %v3887 = vpack.c.b16 %v3705, %v3698
    %v3888 = vpack.c.b16 %v3706, %v3699
    %v3889 = vpack.c.b16 %v3707, %v3700
    %v3890 = vpack.c.b16 %v3708, %v3701
    %v3891 = vpack.c.b16 %v3709, %v3702
    %v3892 = vpack.c.b16 %v3710, %v3703
    %v3893 = vpack.c.b16 %v3711, %v3704
    %v3894 = vpack.c.b16 %v3719, %v3712
    %v3895 = vpack.c.b16 %v3720, %v3713
    %v3896 = vpack.c.b16 %v3721, %v3714
    %v3897 = vpack.c.b16 %v3722, %v3715
    %v3898 = vpack.c.b16 %v3723, %v3716
    %v3899 = vpack.c.b16 %v3724, %v3717
    %v3900 = vpack.c.b16 %v3725, %v3718
    %v3901 = vpack.c.b16 %v3733, %v3726
    %v3902 = vpack.c.b16 %v3734, %v3727
    %v3903 = vpack.c.b16 %v3735, %v3728
    %v3904 = vpack.c.b16 %v3736, %v3729
    %v3905 = vpack.c.b16 %v3737, %v3730
    %v3906 = vpack.c.b16 %v3738, %v3731
    %v3907 = vpack.c.b16 %v3739, %v3732
    %v3908 = vpack.c.b16 %v3747, %v3740
    %v3909 = vpack.c.b16 %v3748, %v3741
    %v3910 = vpack.c.b16 %v3749, %v3742
    %v3911 = vpack.c.b16 %v3750, %v3743
    %v3912 = vpack.c.b16 %v3751, %v3744
    %v3913 = vpack.c.b16 %v3752, %v3745
    %v3914 = vpack.c.b16 %v3753, %v3746
    %v3915 = vpack.c.b16 %v3761, %v3754
    %v3916 = vpack.c.b16 %v3762, %v3755
    %v3917 = vpack.c.b16 %v3763, %v3756
    %v3918 = vpack.c.b16 %v3764, %v3757
    %v3919 = vpack.c.b16 %v3765, %v3758
    %v3920 = vpack.c.b16 %v3766, %v3759
    %v3921 = vpack.c.b16 %v3767, %v3760
    %v3922 = vpack.c.b16 %v3775, %v3768
    %v3923 = vpack.c.b16 %v3776, %v3769
    %v3924 = vpack.c.b16 %v3777, %v3770
    %v3925 = vpack.c.b16 %v3778, %v3771
    %v3926 = vpack.c.b16 %v3779, %v3772
    %v3927 = vpack.c.b16 %v3780, %v3773
    %v3928 = vpack.c.b16 %v3781, %v3774
    %v3929 = vpack.c.b16 %v3789, %v3782
    %v3930 = vpack.c.b16 %v3790, %v3783
    %v3931 = vpack.c.b16 %v3791, %v3784
    %v3932 = vpack.c.b16 %v3792, %v3785
    %v3933 = vpack.c.b16 %v3793, %v3786
    %v3934 = vpack.c.b16 %v3794, %v3787
    %v3935 = vpack.c.b16 %v3795, %v3788
    %v3936 = vpack.c.b16 %v3803, %v3796
    %v3937 = vpack.c.b16 %v3804, %v3797
    %v3938 = vpack.c.b16 %v3805, %v3798
    %v3939 = vpack.c.b16 %v3806, %v3799
    %v3940 = vpack.c.b16 %v3807, %v3800
    %v3941 = vpack.c.b16 %v3808, %v3801
    %v3942 = vpack.c.b16 %v3809, %v3802
    %v3943 = vpack.c.b16 %v3817, %v3810
    %v3944 = vpack.c.b16 %v3818, %v3811
    %v3945 = vpack.c.b16 %v3819, %v3812
    %v3946 = vpack.c.b16 %v3820, %v3813
    %v3947 = vpack.c.b16 %v3821, %v3814
    %v3948 = vpack.c.b16 %v3822, %v3815
    %v3949 = vpack.c.b16 %v3823, %v3816
    %v3950 = vpack.c.b16 %v3831, %v3824
    %v3951 = vpack.c.b16 %v3832, %v3825
    %v3952 = vpack.c.b16 %v3833, %v3826
    %v3953 = vpack.c.b16 %v3834, %v3827
    %v3954 = vpack.c.b16 %v3835, %v3828
    %v3955 = vpack.c.b16 %v3836, %v3829
    %v3956 = vpack.c.b16 %v3837, %v3830
    %v3957 = vpack.c.b16 %v3845, %v3838
    %v3958 = vpack.c.b16 %v3846, %v3839
    %v3959 = vpack.c.b16 %v3847, %v3840
    %v3960 = vpack.c.b16 %v3848, %v3841
    %v3961 = vpack.c.b16 %v3849, %v3842
    %v3962 = vpack.c.b16 %v3850, %v3843
    %v3963 = vpack.c.b16 %v3851, %v3844
    %4076 = vmatprep.subr.bf16.mxu0 %v3853
    %4077 = vmatpush1.bf16.msra.mxu0 %v3852
    %4078 = vmatprep.subr.bf16.mxu0 %v3860
    %4079 = vmatpush1.bf16.msra.mxu0 %v3859
    %4080 = vmatprep.subr.bf16.mxu0 %v3867
    %4081 = vmatpush1.bf16.msra.mxu0 %v3866
    %4082 = vmatprep.subr.bf16.mxu0 %v3874
    %4083 = vmatpush1.bf16.msra.mxu0 %v3873
    %4084 = vmatprep.subr.bf16.mxu0 %v3881
    %4085 = vmatpush1.bf16.msra.mxu0 %v3880
    %4086 = vmatprep.subr.bf16.mxu0 %v3888
    %4087 = vmatpush1.bf16.msra.mxu0 %v3887
    %4088 = vmatprep.subr.bf16.mxu0 %v3895
    %4089 = vmatpush1.bf16.msra.mxu0 %v3894
    %4090 = vmatprep.subr.bf16.mxu0 %v3902
    %4091 = vmatpush1.bf16.msra.mxu0 %v3901
    %4092 = vmatprep.subr.bf16.mxu0 %v3909
    %4093 = vmatpush1.bf16.msra.mxu0 %v3908
    %4094 = vmatprep.subr.bf16.mxu0 %v3916
    %4095 = vmatpush1.bf16.msra.mxu0 %v3915
    %4096 = vmatprep.subr.bf16.mxu0 %v3923
    %4097 = vmatpush1.bf16.msra.mxu0 %v3922
    %4098 = vmatprep.subr.bf16.mxu0 %v3930
    %4099 = vmatpush1.bf16.msra.mxu0 %v3929
    %4100 = vmatprep.subr.bf16.mxu0 %v3937
    %4101 = vmatpush1.bf16.msra.mxu0 %v3936
    %4102 = vmatprep.subr.bf16.mxu0 %v3944
    %4103 = vmatpush1.bf16.msra.mxu0 %v3943
    %4104 = vmatprep.subr.bf16.mxu0 %v3951
    %4105 = vmatpush1.bf16.msra.mxu0 %v3950
    %4106 = vmatprep.subr.bf16.mxu0 %v3958
    %4107 = vmatpush1.bf16.msra.mxu0 %v3957
    %4108 = vmatprep.mubr.bf16.mxu0 %v2664
    %4109 = vmatmul.mubr.bf16.gmra.mrb[0].mxu0 %v2663
    %v4110 = vpop.f32.mrb[0].mxu0
    %v4111 = vadd.f32 0.0, %v4110
    %v4112 = vpop.f32.mrb[0].mxu0
    %v4113 = vadd.f32 0.0, %v4112
    %v4114 = vpop.f32.mrb[0].mxu0
    %v4115 = vpop.f32.mrb[0].mxu0
    %4116 = vdwg.mxu0
    %4117 = vmatprep.subr.bf16.mxu0 %v3855
    %4118 = vmatpush1.bf16.msra.mxu0 %v3854
    %4119 = vmatprep.subr.bf16.mxu0 %v3862
    %4120 = vmatpush1.bf16.msra.mxu0 %v3861
    %4121 = vmatprep.subr.bf16.mxu0 %v3869
    %4122 = vmatpush1.bf16.msra.mxu0 %v3868
    %4123 = vmatprep.subr.bf16.mxu0 %v3876
    %4124 = vmatpush1.bf16.msra.mxu0 %v3875
    %4125 = vmatprep.subr.bf16.mxu0 %v3883
    %4126 = vmatpush1.bf16.msra.mxu0 %v3882
    %4127 = vmatprep.subr.bf16.mxu0 %v3890
    %4128 = vmatpush1.bf16.msra.mxu0 %v3889
    %4129 = vmatprep.subr.bf16.mxu0 %v3897
    %4130 = vmatpush1.bf16.msra.mxu0 %v3896
    %4131 = vmatprep.subr.bf16.mxu0 %v3904
    %4132 = vmatpush1.bf16.msra.mxu0 %v3903
    %4133 = vmatprep.subr.bf16.mxu0 %v3911
    %4134 = vmatpush1.bf16.msra.mxu0 %v3910
    %4135 = vmatprep.subr.bf16.mxu0 %v3918
    %4136 = vmatpush1.bf16.msra.mxu0 %v3917
    %4137 = vmatprep.subr.bf16.mxu0 %v3925
    %4138 = vmatpush1.bf16.msra.mxu0 %v3924
    %4139 = vmatprep.subr.bf16.mxu0 %v3932
    %4140 = vmatpush1.bf16.msra.mxu0 %v3931
    %4141 = vmatprep.subr.bf16.mxu0 %v3939
    %4142 = vmatpush1.bf16.msra.mxu0 %v3938
    %4143 = vmatprep.subr.bf16.mxu0 %v3946
    %4144 = vmatpush1.bf16.msra.mxu0 %v3945
    %4145 = vmatprep.subr.bf16.mxu0 %v3953
    %4146 = vmatpush1.bf16.msra.mxu0 %v3952
    %4147 = vmatprep.subr.bf16.mxu0 %v3960
    %4148 = vmatpush1.bf16.msra.mxu0 %v3959
    %4149 = vmatprep.mubr.bf16.mxu0 %v2664
    %4150 = vmatmul.mubr.bf16.gmra.mrb[0].mxu0 %v2663
    %v4151 = vpop.f32.mrb[0].mxu0
    %v4152 = vadd.f32 0.0, %v4151
    %v4153 = vpop.f32.mrb[0].mxu0
    %v4154 = vadd.f32 0.0, %v4153
    %v4155 = vpop.f32.mrb[0].mxu0
    %v4156 = vpop.f32.mrb[0].mxu0
    %4157 = vdwg.mxu0
    %4158 = vmatprep.subr.bf16.mxu0 %v3857
    %4159 = vmatpush1.bf16.msra.mxu0 %v3856
    %4160 = vmatprep.subr.bf16.mxu0 %v3864
    %4161 = vmatpush1.bf16.msra.mxu0 %v3863
    %4162 = vmatprep.subr.bf16.mxu0 %v3871
    %4163 = vmatpush1.bf16.msra.mxu0 %v3870
    %4164 = vmatprep.subr.bf16.mxu0 %v3878
    %4165 = vmatpush1.bf16.msra.mxu0 %v3877
    %4166 = vmatprep.subr.bf16.mxu0 %v3885
    %4167 = vmatpush1.bf16.msra.mxu0 %v3884
    %4168 = vmatprep.subr.bf16.mxu0 %v3892
    %4169 = vmatpush1.bf16.msra.mxu0 %v3891
    %4170 = vmatprep.subr.bf16.mxu0 %v3899
    %4171 = vmatpush1.bf16.msra.mxu0 %v3898
    %4172 = vmatprep.subr.bf16.mxu0 %v3906
    %4173 = vmatpush1.bf16.msra.mxu0 %v3905
    %4174 = vmatprep.subr.bf16.mxu0 %v3913
    %4175 = vmatpush1.bf16.msra.mxu0 %v3912
    %4176 = vmatprep.subr.bf16.mxu0 %v3920
    %4177 = vmatpush1.bf16.msra.mxu0 %v3919
    %4178 = vmatprep.subr.bf16.mxu0 %v3927
    %4179 = vmatpush1.bf16.msra.mxu0 %v3926
    %4180 = vmatprep.subr.bf16.mxu0 %v3934
    %4181 = vmatpush1.bf16.msra.mxu0 %v3933
    %4182 = vmatprep.subr.bf16.mxu0 %v3941
    %4183 = vmatpush1.bf16.msra.mxu0 %v3940
    %4184 = vmatprep.subr.bf16.mxu0 %v3948
    %4185 = vmatpush1.bf16.msra.mxu0 %v3947
    %4186 = vmatprep.subr.bf16.mxu0 %v3955
    %4187 = vmatpush1.bf16.msra.mxu0 %v3954
    %4188 = vmatprep.subr.bf16.mxu0 %v3962
    %4189 = vmatpush1.bf16.msra.mxu0 %v3961
    %4190 = vmatprep.mubr.bf16.mxu0 %v2664
    %4191 = vmatmul.mubr.bf16.gmra.mrb[0].mxu0 %v2663
    %v4192 = vpop.f32.mrb[0].mxu0
    %v4193 = vadd.f32 0.0, %v4192
    %v4194 = vpop.f32.mrb[0].mxu0
    %v4195 = vadd.f32 0.0, %v4194
    %v4196 = vpop.f32.mrb[0].mxu0
    %v4197 = vpop.f32.mrb[0].mxu0
    %4198 = vdwg.mxu0
    %4199 = vmatprep.subr.bf16.mxu0 0
    %4200 = vmatpush1.bf16.msra.mxu0 %v3858
    %4201 = vmatprep.subr.bf16.mxu0 0
    %4202 = vmatpush1.bf16.msra.mxu0 %v3865
    %4203 = vmatprep.subr.bf16.mxu0 0
    %4204 = vmatpush1.bf16.msra.mxu0 %v3872
    %4205 = vmatprep.subr.bf16.mxu0 0
    %4206 = vmatpush1.bf16.msra.mxu0 %v3879
    %4207 = vmatprep.subr.bf16.mxu0 0
    %4208 = vmatpush1.bf16.msra.mxu0 %v3886
    %4209 = vmatprep.subr.bf16.mxu0 0
    %4210 = vmatpush1.bf16.msra.mxu0 %v3893
    %4211 = vmatprep.subr.bf16.mxu0 0
    %4212 = vmatpush1.bf16.msra.mxu0 %v3900
    %4213 = vmatprep.subr.bf16.mxu0 0
    %4214 = vmatpush1.bf16.msra.mxu0 %v3907
    %4215 = vmatprep.subr.bf16.mxu0 0
    %4216 = vmatpush1.bf16.msra.mxu0 %v3914
    %4217 = vmatprep.subr.bf16.mxu0 0
    %4218 = vmatpush1.bf16.msra.mxu0 %v3921
    %4219 = vmatprep.subr.bf16.mxu0 0
    %4220 = vmatpush1.bf16.msra.mxu0 %v3928
    %4221 = vmatprep.subr.bf16.mxu0 0
    %4222 = vmatpush1.bf16.msra.mxu0 %v3935
    %4223 = vmatprep.subr.bf16.mxu0 0
    %4224 = vmatpush1.bf16.msra.mxu0 %v3942
    %4225 = vmatprep.subr.bf16.mxu0 0
    %4226 = vmatpush1.bf16.msra.mxu0 %v3949
    %4227 = vmatprep.subr.bf16.mxu0 0
    %4228 = vmatpush1.bf16.msra.mxu0 %v3956
    %4229 = vmatprep.subr.bf16.mxu0 0
    %4230 = vmatpush1.bf16.msra.mxu0 %v3963
    %4231 = vmatprep.mubr.bf16.mxu0 %v2664
    %4232 = vmatmul.mubr.bf16.gmra.mrb[0].mxu0 %v2663
    %v4233 = vpop.f32.mrb[0].mxu0
    %v4234 = vadd.f32 0.0, %v4233
    %v4235 = vpop.f32.mrb[0].mxu0
    %v4236 = vpop.f32.mrb[0].mxu0
    %v4237 = vpop.f32.mrb[0].mxu0
    %4238 = vdwg.mxu0
    %v4239 = vadd.f32 %v3326, %v4111
    %v4240 = vadd.f32 %v4239, %v138
    %v4241 = vsel %vm1450, %v4240, -inf
    %4242 = vmax.xlane.f32.xlu0 %v4241
    %v4243 = vpop.xlane.xlu0 %4242
    %v4244 = vsub.f32 %v4240, %v4243
    %v4245 = vmul.f32 %v4244, 1.442695
    %v4246 = vpow.pop %v4245
    %v4247 = vsel %vm1450, %v4246, 0.0
    %4248 = vadd.xlane.f32.xlu0 %v4247
    %v4249 = vpop.xlane.xlu0 %4248
    %v4250 = vrcp.pop %v4249
    %v4251 = vmul.f32 %v4246, %v4250
    %s4252 = scalar_lea.vmem [#allocation19], 1
    %4253 = vst [vmem:[%s4252] sm:$0x1] %v4251
    %v4254 = vpack.c.bf16 %v4251, %v4251
    %v4255 = vld [vmem:[#allocation7] sm:$0xff]
    %v4256 = vld [vmem:[#allocation7 + $0x8] sm:$0xff]
    %v4257 = vld [vmem:[#allocation7 + $0x10] sm:$0xff]
    %v4258 = vld [vmem:[#allocation7 + $0x18] sm:$0xff]
    %v4259 = vld [vmem:[#allocation7 + $0x20] sm:$0xff]
    %v4260 = vld [vmem:[#allocation7 + $0x28] sm:$0xff]
    %v4261 = vld [vmem:[#allocation7 + $0x30] sm:$0xff]
    %v4262 = vld [vmem:[#allocation7 + $0x38] sm:$0xff]
    %v4263 = vld [vmem:[#allocation7 + $0x40] sm:$0xff]
    %v4264 = vld [vmem:[#allocation7 + $0x48] sm:$0xff]
    %v4265 = vld [vmem:[#allocation7 + $0x50] sm:$0xff]
    %v4266 = vld [vmem:[#allocation7 + $0x58] sm:$0xff]
    %v4267 = vld [vmem:[#allocation7 + $0x60] sm:$0xff]
    %v4268 = vld [vmem:[#allocation7 + $0x68] sm:$0xff]
    %v4269 = vld [vmem:[#allocation7 + $0x70] sm:$0xff]
    %v4270 = vld [vmem:[#allocation7 + $0x78] sm:$0xff]
    %v4287 = vunpack.c.l.b16 %v4255
    %v4288 = vunpack.c.h.b16 %v4255
    %v4289 = vunpack.c.l.b16 %v4256
    %v4290 = vunpack.c.h.b16 %v4256
    %v4291 = vunpack.c.l.b16 %v4257
    %v4292 = vunpack.c.h.b16 %v4257
    %v4293 = vunpack.c.l.b16 %v4258
    %v4294 = vunpack.c.h.b16 %v4258
    %v4295 = vunpack.c.l.b16 %v4259
    %v4296 = vunpack.c.h.b16 %v4259
    %v4297 = vunpack.c.l.b16 %v4260
    %v4298 = vunpack.c.h.b16 %v4260
    %v4299 = vunpack.c.l.b16 %v4261
    %v4300 = vunpack.c.h.b16 %v4261
    %v4301 = vunpack.c.l.b16 %v4262
    %v4302 = vunpack.c.h.b16 %v4262
    %v4303 = vunpack.c.l.b16 %v4263
    %v4304 = vunpack.c.h.b16 %v4263
    %v4305 = vunpack.c.l.b16 %v4264
    %v4306 = vunpack.c.h.b16 %v4264
    %v4307 = vunpack.c.l.b16 %v4265
    %v4308 = vunpack.c.h.b16 %v4265
    %v4309 = vunpack.c.l.b16 %v4266
    %v4310 = vunpack.c.h.b16 %v4266
    %v4311 = vunpack.c.l.b16 %v4267
    %v4312 = vunpack.c.h.b16 %v4267
    %v4313 = vunpack.c.l.b16 %v4268
    %v4314 = vunpack.c.h.b16 %v4268
    %v4315 = vunpack.c.l.b16 %v4269
    %v4316 = vunpack.c.h.b16 %v4269
    %v4317 = vunpack.c.l.b16 %v4270
    %v4318 = vunpack.c.h.b16 %v4270
    %v4319 = vpack.c.b16 %v4289, %v4287
    %v4320 = vpack.c.b16 %v4290, %v4288
    %v4321 = vpack.c.b16 %v4293, %v4291
    %v4322 = vpack.c.b16 %v4294, %v4292
    %v4323 = vpack.c.b16 %v4297, %v4295
    %v4324 = vpack.c.b16 %v4298, %v4296
    %v4325 = vpack.c.b16 %v4301, %v4299
    %v4326 = vpack.c.b16 %v4302, %v4300
    %v4327 = vpack.c.b16 %v4305, %v4303
    %v4328 = vpack.c.b16 %v4306, %v4304
    %v4329 = vpack.c.b16 %v4309, %v4307
    %v4330 = vpack.c.b16 %v4310, %v4308
    %v4331 = vpack.c.b16 %v4313, %v4311
    %v4332 = vpack.c.b16 %v4314, %v4312
    %v4333 = vpack.c.b16 %v4317, %v4315
    %v4334 = vpack.c.b16 %v4318, %v4316
    %4351 = vmatprep.subr.bf16.mxu0 %v4320
    %4352 = vmatpush1.bf16.msra.mxu0 %v4319
    %4353 = vmatprep.subr.bf16.mxu0 %v4322
    %4354 = vmatpush1.bf16.msra.mxu0 %v4321
    %4355 = vmatprep.subr.bf16.mxu0 %v4324
    %4356 = vmatpush1.bf16.msra.mxu0 %v4323
    %4357 = vmatprep.subr.bf16.mxu0 %v4326
    %4358 = vmatpush1.bf16.msra.mxu0 %v4325
    %4359 = vmatprep.subr.bf16.mxu0 %v4328
    %4360 = vmatpush1.bf16.msra.mxu0 %v4327
    %4361 = vmatprep.subr.bf16.mxu0 %v4330
    %4362 = vmatpush1.bf16.msra.mxu0 %v4329
    %4363 = vmatprep.subr.bf16.mxu0 %v4332
    %4364 = vmatpush1.bf16.msra.mxu0 %v4331
    %4365 = vmatprep.subr.bf16.mxu0 %v4334
    %4366 = vmatpush1.bf16.msra.mxu0 %v4333
    %4367 = vmatprep.subr.bf16.mxu0 0
    %4368 = vmatpush1.bf16.msra.mxu0 0
    %4369 = vmatprep.subr.bf16.mxu0 0
    %4370 = vmatpush1.bf16.msra.mxu0 0
    %4371 = vmatprep.subr.bf16.mxu0 0
    %4372 = vmatpush1.bf16.msra.mxu0 0
    %4373 = vmatprep.subr.bf16.mxu0 0
    %4374 = vmatpush1.bf16.msra.mxu0 0
    %4375 = vmatprep.subr.bf16.mxu0 0
    %4376 = vmatpush1.bf16.msra.mxu0 0
    %4377 = vmatprep.subr.bf16.mxu0 0
    %4378 = vmatpush1.bf16.msra.mxu0 0
    %4379 = vmatprep.subr.bf16.mxu0 0
    %4380 = vmatpush1.bf16.msra.mxu0 0
    %4381 = vmatprep.subr.bf16.mxu0 0
    %4382 = vmatpush1.bf16.msra.mxu0 0
    %4383 = vmatprep.mubr.bf16.mxu0 0
    %4384 = vmatmul.mubr.bf16.gmra.mrb[0].mxu0 %v4254
    %v4385 = vpop.f32.mrb[0].mxu0
    %v4386 = vadd.f32 0.0, %v4385
    %v4387 = vpop.f32.mrb[0].mxu0
    %v4388 = vadd.f32 0.0, %v4387
    %v4389 = vpop.f32.mrb[0].mxu0
    %v4390 = vpop.f32.mrb[0].mxu0
    %4391 = vdwg.mxu0
    %v4392 = vpack.c.bf16 %v4386, %v4386
    %v4393 = vpack.c.bf16 %v4388, %v4388
    %v4394 = vld [vmem:[#allocation12] sm:$0xff]
    %v4395 = vld [vmem:[#allocation12 + $0x8] sm:$0xff]
    %v4396 = vld [vmem:[#allocation12 + $0x10] sm:$0xff]
    %v4397 = vld [vmem:[#allocation12 + $0x18] sm:$0xff]
    %v4398 = vld [vmem:[#allocation12 + $0x20] sm:$0xff]
    %v4399 = vld [vmem:[#allocation12 + $0x28] sm:$0xff]
    %v4400 = vld [vmem:[#allocation12 + $0x30] sm:$0xff]
    %v4401 = vld [vmem:[#allocation12 + $0x38] sm:$0xff]
    %v4402 = vld [vmem:[#allocation12 + $0x40] sm:$0xff]
    %v4403 = vld [vmem:[#allocation12 + $0x48] sm:$0xff]
    %v4404 = vld [vmem:[#allocation12 + $0x50] sm:$0xff]
    %v4405 = vld [vmem:[#allocation12 + $0x58] sm:$0xff]
    %v4406 = vld [vmem:[#allocation12 + $0x60] sm:$0xff]
    %v4407 = vld [vmem:[#allocation12 + $0x68] sm:$0xff]
    %v4408 = vld [vmem:[#allocation12 + $0x70] sm:$0xff]
    %v4409 = vld [vmem:[#allocation12 + $0x78] sm:$0xff]
    %v4410 = vld [vmem:[#allocation12 + $0x80] sm:$0xff]
    %v4411 = vld [vmem:[#allocation12 + $0x88] sm:$0xff]
    %v4412 = vld [vmem:[#allocation12 + $0x90] sm:$0xff]
    %v4413 = vld [vmem:[#allocation12 + $0x98] sm:$0xff]
    %v4414 = vld [vmem:[#allocation12 + $0xa0] sm:$0xff]
    %v4415 = vld [vmem:[#allocation12 + $0xa8] sm:$0xff]
    %v4416 = vld [vmem:[#allocation12 + $0xb0] sm:$0xff]
    %v4417 = vld [vmem:[#allocation12 + $0xb8] sm:$0xff]
    %v4418 = vld [vmem:[#allocation12 + $0xc0] sm:$0xff]
    %v4419 = vld [vmem:[#allocation12 + $0xc8] sm:$0xff]
    %v4420 = vld [vmem:[#allocation12 + $0xd0] sm:$0xff]
    %v4421 = vld [vmem:[#allocation12 + $0xd8] sm:$0xff]
    %v4422 = vld [vmem:[#allocation12 + $0xe0] sm:$0xff]
    %v4423 = vld [vmem:[#allocation12 + $0xe8] sm:$0xff]
    %v4424 = vld [vmem:[#allocation12 + $0xf0] sm:$0xff]
    %v4425 = vld [vmem:[#allocation12 + $0xf8] sm:$0xff]
    %v4458 = vunpack.c.l.b16 %v4394
    %v4459 = vunpack.c.h.b16 %v4394
    %v4460 = vunpack.c.l.b16 %v4395
    %v4461 = vunpack.c.h.b16 %v4395
    %v4462 = vunpack.c.l.b16 %v4396
    %v4463 = vunpack.c.h.b16 %v4396
    %v4464 = vunpack.c.l.b16 %v4397
    %v4465 = vunpack.c.h.b16 %v4397
    %v4466 = vunpack.c.l.b16 %v4398
    %v4467 = vunpack.c.h.b16 %v4398
    %v4468 = vunpack.c.l.b16 %v4399
    %v4469 = vunpack.c.h.b16 %v4399
    %v4470 = vunpack.c.l.b16 %v4400
    %v4471 = vunpack.c.h.b16 %v4400
    %v4472 = vunpack.c.l.b16 %v4401
    %v4473 = vunpack.c.h.b16 %v4401
    %v4474 = vunpack.c.l.b16 %v4402
    %v4475 = vunpack.c.h.b16 %v4402
    %v4476 = vunpack.c.l.b16 %v4403
    %v4477 = vunpack.c.h.b16 %v4403
    %v4478 = vunpack.c.l.b16 %v4404
    %v4479 = vunpack.c.h.b16 %v4404
    %v4480 = vunpack.c.l.b16 %v4405
    %v4481 = vunpack.c.h.b16 %v4405
    %v4482 = vunpack.c.l.b16 %v4406
    %v4483 = vunpack.c.h.b16 %v4406
    %v4484 = vunpack.c.l.b16 %v4407
    %v4485 = vunpack.c.h.b16 %v4407
    %v4486 = vunpack.c.l.b16 %v4408
    %v4487 = vunpack.c.h.b16 %v4408
    %v4488 = vunpack.c.l.b16 %v4409
    %v4489 = vunpack.c.h.b16 %v4409
    %v4490 = vunpack.c.l.b16 %v4410
    %v4491 = vunpack.c.h.b16 %v4410
    %v4492 = vunpack.c.l.b16 %v4411
    %v4493 = vunpack.c.h.b16 %v4411
    %v4494 = vunpack.c.l.b16 %v4412
    %v4495 = vunpack.c.h.b16 %v4412
    %v4496 = vunpack.c.l.b16 %v4413
    %v4497 = vunpack.c.h.b16 %v4413
    %v4498 = vunpack.c.l.b16 %v4414
    %v4499 = vunpack.c.h.b16 %v4414
    %v4500 = vunpack.c.l.b16 %v4415
    %v4501 = vunpack.c.h.b16 %v4415
    %v4502 = vunpack.c.l.b16 %v4416
    %v4503 = vunpack.c.h.b16 %v4416
    %v4504 = vunpack.c.l.b16 %v4417
    %v4505 = vunpack.c.h.b16 %v4417
    %v4506 = vunpack.c.l.b16 %v4418
    %v4507 = vunpack.c.h.b16 %v4418
    %v4508 = vunpack.c.l.b16 %v4419
    %v4509 = vunpack.c.h.b16 %v4419
    %v4510 = vunpack.c.l.b16 %v4420
    %v4511 = vunpack.c.h.b16 %v4420
    %v4512 = vunpack.c.l.b16 %v4421
    %v4513 = vunpack.c.h.b16 %v4421
    %v4514 = vunpack.c.l.b16 %v4422
    %v4515 = vunpack.c.h.b16 %v4422
    %v4516 = vunpack.c.l.b16 %v4423
    %v4517 = vunpack.c.h.b16 %v4423
    %v4518 = vunpack.c.l.b16 %v4424
    %v4519 = vunpack.c.h.b16 %v4424
    %v4520 = vunpack.c.l.b16 %v4425
    %v4521 = vunpack.c.h.b16 %v4425
    %v4522 = vpack.c.b16 %v4460, %v4458
    %v4523 = vpack.c.b16 %v4461, %v4459
    %v4524 = vpack.c.b16 %v4464, %v4462
    %v4525 = vpack.c.b16 %v4465, %v4463
    %v4526 = vpack.c.b16 %v4468, %v4466
    %v4527 = vpack.c.b16 %v4469, %v4467
    %v4528 = vpack.c.b16 %v4472, %v4470
    %v4529 = vpack.c.b16 %v4473, %v4471
    %v4530 = vpack.c.b16 %v4476, %v4474
    %v4531 = vpack.c.b16 %v4477, %v4475
    %v4532 = vpack.c.b16 %v4480, %v4478
    %v4533 = vpack.c.b16 %v4481, %v4479
    %v4534 = vpack.c.b16 %v4484, %v4482
    %v4535 = vpack.c.b16 %v4485, %v4483
    %v4536 = vpack.c.b16 %v4488, %v4486
    %v4537 = vpack.c.b16 %v4489, %v4487
    %v4538 = vpack.c.b16 %v4492, %v4490
    %v4539 = vpack.c.b16 %v4493, %v4491
    %v4540 = vpack.c.b16 %v4496, %v4494
    %v4541 = vpack.c.b16 %v4497, %v4495
    %v4542 = vpack.c.b16 %v4500, %v4498
    %v4543 = vpack.c.b16 %v4501, %v4499
    %v4544 = vpack.c.b16 %v4504, %v4502
    %v4545 = vpack.c.b16 %v4505, %v4503
    %v4546 = vpack.c.b16 %v4508, %v4506
    %v4547 = vpack.c.b16 %v4509, %v4507
    %v4548 = vpack.c.b16 %v4512, %v4510
    %v4549 = vpack.c.b16 %v4513, %v4511
    %v4550 = vpack.c.b16 %v4516, %v4514
    %v4551 = vpack.c.b16 %v4517, %v4515
    %v4552 = vpack.c.b16 %v4520, %v4518
    %v4553 = vpack.c.b16 %v4521, %v4519
    %4586 = vmatprep.subr.bf16.mxu0 %v4523
    %4587 = vmatpush1.bf16.msra.mxu0 %v4522
    %4588 = vmatprep.subr.bf16.mxu0 %v4525
    %4589 = vmatpush1.bf16.msra.mxu0 %v4524
    %4590 = vmatprep.subr.bf16.mxu0 %v4527
    %4591 = vmatpush1.bf16.msra.mxu0 %v4526
    %4592 = vmatprep.subr.bf16.mxu0 %v4529
    %4593 = vmatpush1.bf16.msra.mxu0 %v4528
    %4594 = vmatprep.subr.bf16.mxu0 %v4531
    %4595 = vmatpush1.bf16.msra.mxu0 %v4530
    %4596 = vmatprep.subr.bf16.mxu0 %v4533
    %4597 = vmatpush1.bf16.msra.mxu0 %v4532
    %4598 = vmatprep.subr.bf16.mxu0 %v4535
    %4599 = vmatpush1.bf16.msra.mxu0 %v4534
    %4600 = vmatprep.subr.bf16.mxu0 %v4537
    %4601 = vmatpush1.bf16.msra.mxu0 %v4536
    %4602 = vmatprep.subr.bf16.mxu0 %v4539
    %4603 = vmatpush1.bf16.msra.mxu0 %v4538
    %4604 = vmatprep.subr.bf16.mxu0 %v4541
    %4605 = vmatpush1.bf16.msra.mxu0 %v4540
    %4606 = vmatprep.subr.bf16.mxu0 %v4543
    %4607 = vmatpush1.bf16.msra.mxu0 %v4542
    %4608 = vmatprep.subr.bf16.mxu0 %v4545
    %4609 = vmatpush1.bf16.msra.mxu0 %v4544
    %4610 = vmatprep.subr.bf16.mxu0 %v4547
    %4611 = vmatpush1.bf16.msra.mxu0 %v4546
    %4612 = vmatprep.subr.bf16.mxu0 %v4549
    %4613 = vmatpush1.bf16.msra.mxu0 %v4548
    %4614 = vmatprep.subr.bf16.mxu0 %v4551
    %4615 = vmatpush1.bf16.msra.mxu0 %v4550
    %4616 = vmatprep.subr.bf16.mxu0 %v4553
    %4617 = vmatpush1.bf16.msra.mxu0 %v4552
    %4618 = vmatprep.mubr.bf16.mxu0 %v4393
    %4619 = vmatmul.mubr.bf16.gmra.mrb[0].mxu0 %v4392
    %v4620 = vpop.f32.mrb[0].mxu0
    %v4621 = vadd.f32 0.0, %v4620
    %v4622 = vpop.f32.mrb[0].mxu0
    %v4623 = vadd.f32 0.0, %v4622
    %v4624 = vpop.f32.mrb[0].mxu0
    %v4625 = vpop.f32.mrb[0].mxu0
    %4626 = vdwg.mxu0
    %v4627 = vadd.f32 %v3328, %v4621
    %v4628 = vadd.f32 %v3367, %v4623
    %v4629 = vadd.f32 %v4627, %v1842
    %v4630 = vadd.f32 %v4628, %v1846
    %v4631 = vmax.f32 %v4629, 0.0
    %v4632 = vmax.f32 %v4630, 0.0
    %v4633 = vpack.c.bf16 %v4631, %v4631
    %v4634 = vpack.c.bf16 %v4632, %v4632
    %v4635 = vld [vmem:[#allocation13] sm:$0xff]
    %v4636 = vld [vmem:[#allocation13 + $0x8] sm:$0xff]
    %v4637 = vld [vmem:[#allocation13 + $0x10] sm:$0xff]
    %v4638 = vld [vmem:[#allocation13 + $0x18] sm:$0xff]
    %v4639 = vld [vmem:[#allocation13 + $0x20] sm:$0xff]
    %v4640 = vld [vmem:[#allocation13 + $0x28] sm:$0xff]
    %v4641 = vld [vmem:[#allocation13 + $0x30] sm:$0xff]
    %v4642 = vld [vmem:[#allocation13 + $0x38] sm:$0xff]
    %v4643 = vld [vmem:[#allocation13 + $0x40] sm:$0xff]
    %v4644 = vld [vmem:[#allocation13 + $0x48] sm:$0xff]
    %v4645 = vld [vmem:[#allocation13 + $0x50] sm:$0xff]
    %v4646 = vld [vmem:[#allocation13 + $0x58] sm:$0xff]
    %v4647 = vld [vmem:[#allocation13 + $0x60] sm:$0xff]
    %v4648 = vld [vmem:[#allocation13 + $0x68] sm:$0xff]
    %v4649 = vld [vmem:[#allocation13 + $0x70] sm:$0xff]
    %v4650 = vld [vmem:[#allocation13 + $0x78] sm:$0xff]
    %v4651 = vld [vmem:[#allocation13 + $0x80] sm:$0xff]
    %v4652 = vld [vmem:[#allocation13 + $0x88] sm:$0xff]
    %v4653 = vld [vmem:[#allocation13 + $0x90] sm:$0xff]
    %v4654 = vld [vmem:[#allocation13 + $0x98] sm:$0xff]
    %v4655 = vld [vmem:[#allocation13 + $0xa0] sm:$0xff]
    %v4656 = vld [vmem:[#allocation13 + $0xa8] sm:$0xff]
    %v4657 = vld [vmem:[#allocation13 + $0xb0] sm:$0xff]
    %v4658 = vld [vmem:[#allocation13 + $0xb8] sm:$0xff]
    %v4659 = vld [vmem:[#allocation13 + $0xc0] sm:$0xff]
    %v4660 = vld [vmem:[#allocation13 + $0xc8] sm:$0xff]
    %v4661 = vld [vmem:[#allocation13 + $0xd0] sm:$0xff]
    %v4662 = vld [vmem:[#allocation13 + $0xd8] sm:$0xff]
    %v4663 = vld [vmem:[#allocation13 + $0xe0] sm:$0xff]
    %v4664 = vld [vmem:[#allocation13 + $0xe8] sm:$0xff]
    %v4665 = vld [vmem:[#allocation13 + $0xf0] sm:$0xff]
    %v4666 = vld [vmem:[#allocation13 + $0xf8] sm:$0xff]
    %v4667 = vld [vmem:[#allocation13 + $0x100] sm:$0xff]
    %v4668 = vld [vmem:[#allocation13 + $0x108] sm:$0xff]
    %v4669 = vld [vmem:[#allocation13 + $0x110] sm:$0xff]
    %v4670 = vld [vmem:[#allocation13 + $0x118] sm:$0xff]
    %v4671 = vld [vmem:[#allocation13 + $0x120] sm:$0xff]
    %v4672 = vld [vmem:[#allocation13 + $0x128] sm:$0xff]
    %v4673 = vld [vmem:[#allocation13 + $0x130] sm:$0xff]
    %v4674 = vld [vmem:[#allocation13 + $0x138] sm:$0xff]
    %v4675 = vld [vmem:[#allocation13 + $0x140] sm:$0xff]
    %v4676 = vld [vmem:[#allocation13 + $0x148] sm:$0xff]
    %v4677 = vld [vmem:[#allocation13 + $0x150] sm:$0xff]
    %v4678 = vld [vmem:[#allocation13 + $0x158] sm:$0xff]
    %v4679 = vld [vmem:[#allocation13 + $0x160] sm:$0xff]
    %v4680 = vld [vmem:[#allocation13 + $0x168] sm:$0xff]
    %v4681 = vld [vmem:[#allocation13 + $0x170] sm:$0xff]
    %v4682 = vld [vmem:[#allocation13 + $0x178] sm:$0xff]
    %v4683 = vld [vmem:[#allocation13 + $0x180] sm:$0xff]
    %v4684 = vld [vmem:[#allocation13 + $0x188] sm:$0xff]
    %v4685 = vld [vmem:[#allocation13 + $0x190] sm:$0xff]
    %v4686 = vld [vmem:[#allocation13 + $0x198] sm:$0xff]
    %v4687 = vld [vmem:[#allocation13 + $0x1a0] sm:$0xff]
    %v4688 = vld [vmem:[#allocation13 + $0x1a8] sm:$0xff]
    %v4689 = vld [vmem:[#allocation13 + $0x1b0] sm:$0xff]
    %v4690 = vld [vmem:[#allocation13 + $0x1b8] sm:$0xff]
    %v4691 = vld [vmem:[#allocation13 + $0x1c0] sm:$0xff]
    %v4692 = vld [vmem:[#allocation13 + $0x1c8] sm:$0xff]
    %v4693 = vld [vmem:[#allocation13 + $0x1d0] sm:$0xff]
    %v4694 = vld [vmem:[#allocation13 + $0x1d8] sm:$0xff]
    %v4695 = vld [vmem:[#allocation13 + $0x1e0] sm:$0xff]
    %v4696 = vld [vmem:[#allocation13 + $0x1e8] sm:$0xff]
    %v4697 = vld [vmem:[#allocation13 + $0x1f0] sm:$0xff]
    %v4698 = vld [vmem:[#allocation13 + $0x1f8] sm:$0xff]
    %v4699 = vld [vmem:[#allocation13 + $0x200] sm:$0xff]
    %v4700 = vld [vmem:[#allocation13 + $0x208] sm:$0xff]
    %v4701 = vld [vmem:[#allocation13 + $0x210] sm:$0xff]
    %v4702 = vld [vmem:[#allocation13 + $0x218] sm:$0xff]
    %v4703 = vld [vmem:[#allocation13 + $0x220] sm:$0xff]
    %v4704 = vld [vmem:[#allocation13 + $0x228] sm:$0xff]
    %v4705 = vld [vmem:[#allocation13 + $0x230] sm:$0xff]
    %v4706 = vld [vmem:[#allocation13 + $0x238] sm:$0xff]
    %v4707 = vld [vmem:[#allocation13 + $0x240] sm:$0xff]
    %v4708 = vld [vmem:[#allocation13 + $0x248] sm:$0xff]
    %v4709 = vld [vmem:[#allocation13 + $0x250] sm:$0xff]
    %v4710 = vld [vmem:[#allocation13 + $0x258] sm:$0xff]
    %v4711 = vld [vmem:[#allocation13 + $0x260] sm:$0xff]
    %v4712 = vld [vmem:[#allocation13 + $0x268] sm:$0xff]
    %v4713 = vld [vmem:[#allocation13 + $0x270] sm:$0xff]
    %v4714 = vld [vmem:[#allocation13 + $0x278] sm:$0xff]
    %v4715 = vld [vmem:[#allocation13 + $0x280] sm:$0xff]
    %v4716 = vld [vmem:[#allocation13 + $0x288] sm:$0xff]
    %v4717 = vld [vmem:[#allocation13 + $0x290] sm:$0xff]
    %v4718 = vld [vmem:[#allocation13 + $0x298] sm:$0xff]
    %v4719 = vld [vmem:[#allocation13 + $0x2a0] sm:$0xff]
    %v4720 = vld [vmem:[#allocation13 + $0x2a8] sm:$0xff]
    %v4721 = vld [vmem:[#allocation13 + $0x2b0] sm:$0xff]
    %v4722 = vld [vmem:[#allocation13 + $0x2b8] sm:$0xff]
    %v4723 = vld [vmem:[#allocation13 + $0x2c0] sm:$0xff]
    %v4724 = vld [vmem:[#allocation13 + $0x2c8] sm:$0xff]
    %v4725 = vld [vmem:[#allocation13 + $0x2d0] sm:$0xff]
    %v4726 = vld [vmem:[#allocation13 + $0x2d8] sm:$0xff]
    %v4727 = vld [vmem:[#allocation13 + $0x2e0] sm:$0xff]
    %v4728 = vld [vmem:[#allocation13 + $0x2e8] sm:$0xff]
    %v4729 = vld [vmem:[#allocation13 + $0x2f0] sm:$0xff]
    %v4730 = vld [vmem:[#allocation13 + $0x2f8] sm:$0xff]
    %v4827 = vunpack.c.l.b16 %v4635
    %v4828 = vunpack.c.h.b16 %v4635
    %v4829 = vunpack.c.l.b16 %v4636
    %v4830 = vunpack.c.h.b16 %v4636
    %v4831 = vunpack.c.l.b16 %v4637
    %v4832 = vunpack.c.h.b16 %v4637
    %v4833 = vunpack.c.l.b16 %v4638
    %v4834 = vunpack.c.h.b16 %v4638
    %v4835 = vunpack.c.l.b16 %v4639
    %v4836 = vunpack.c.h.b16 %v4639
    %v4837 = vunpack.c.l.b16 %v4640
    %v4838 = vunpack.c.h.b16 %v4640
    %v4839 = vunpack.c.l.b16 %v4641
    %v4840 = vunpack.c.h.b16 %v4641
    %v4841 = vunpack.c.l.b16 %v4642
    %v4842 = vunpack.c.h.b16 %v4642
    %v4843 = vunpack.c.l.b16 %v4643
    %v4844 = vunpack.c.h.b16 %v4643
    %v4845 = vunpack.c.l.b16 %v4644
    %v4846 = vunpack.c.h.b16 %v4644
    %v4847 = vunpack.c.l.b16 %v4645
    %v4848 = vunpack.c.h.b16 %v4645
    %v4849 = vunpack.c.l.b16 %v4646
    %v4850 = vunpack.c.h.b16 %v4646
    %v4851 = vunpack.c.l.b16 %v4647
    %v4852 = vunpack.c.h.b16 %v4647
    %v4853 = vunpack.c.l.b16 %v4648
    %v4854 = vunpack.c.h.b16 %v4648
    %v4855 = vunpack.c.l.b16 %v4649
    %v4856 = vunpack.c.h.b16 %v4649
    %v4857 = vunpack.c.l.b16 %v4650
    %v4858 = vunpack.c.h.b16 %v4650
    %v4859 = vunpack.c.l.b16 %v4651
    %v4860 = vunpack.c.h.b16 %v4651
    %v4861 = vunpack.c.l.b16 %v4652
    %v4862 = vunpack.c.h.b16 %v4652
    %v4863 = vunpack.c.l.b16 %v4653
    %v4864 = vunpack.c.h.b16 %v4653
    %v4865 = vunpack.c.l.b16 %v4654
    %v4866 = vunpack.c.h.b16 %v4654
    %v4867 = vunpack.c.l.b16 %v4655
    %v4868 = vunpack.c.h.b16 %v4655
    %v4869 = vunpack.c.l.b16 %v4656
    %v4870 = vunpack.c.h.b16 %v4656
    %v4871 = vunpack.c.l.b16 %v4657
    %v4872 = vunpack.c.h.b16 %v4657
    %v4873 = vunpack.c.l.b16 %v4658
    %v4874 = vunpack.c.h.b16 %v4658
    %v4875 = vunpack.c.l.b16 %v4659
    %v4876 = vunpack.c.h.b16 %v4659
    %v4877 = vunpack.c.l.b16 %v4660
    %v4878 = vunpack.c.h.b16 %v4660
    %v4879 = vunpack.c.l.b16 %v4661
    %v4880 = vunpack.c.h.b16 %v4661
    %v4881 = vunpack.c.l.b16 %v4662
    %v4882 = vunpack.c.h.b16 %v4662
    %v4883 = vunpack.c.l.b16 %v4663
    %v4884 = vunpack.c.h.b16 %v4663
    %v4885 = vunpack.c.l.b16 %v4664
    %v4886 = vunpack.c.h.b16 %v4664
    %v4887 = vunpack.c.l.b16 %v4665
    %v4888 = vunpack.c.h.b16 %v4665
    %v4889 = vunpack.c.l.b16 %v4666
    %v4890 = vunpack.c.h.b16 %v4666
    %v4891 = vunpack.c.l.b16 %v4667
    %v4892 = vunpack.c.h.b16 %v4667
    %v4893 = vunpack.c.l.b16 %v4668
    %v4894 = vunpack.c.h.b16 %v4668
    %v4895 = vunpack.c.l.b16 %v4669
    %v4896 = vunpack.c.h.b16 %v4669
    %v4897 = vunpack.c.l.b16 %v4670
    %v4898 = vunpack.c.h.b16 %v4670
    %v4899 = vunpack.c.l.b16 %v4671
    %v4900 = vunpack.c.h.b16 %v4671
    %v4901 = vunpack.c.l.b16 %v4672
    %v4902 = vunpack.c.h.b16 %v4672
    %v4903 = vunpack.c.l.b16 %v4673
    %v4904 = vunpack.c.h.b16 %v4673
    %v4905 = vunpack.c.l.b16 %v4674
    %v4906 = vunpack.c.h.b16 %v4674
    %v4907 = vunpack.c.l.b16 %v4675
    %v4908 = vunpack.c.h.b16 %v4675
    %v4909 = vunpack.c.l.b16 %v4676
    %v4910 = vunpack.c.h.b16 %v4676
    %v4911 = vunpack.c.l.b16 %v4677
    %v4912 = vunpack.c.h.b16 %v4677
    %v4913 = vunpack.c.l.b16 %v4678
    %v4914 = vunpack.c.h.b16 %v4678
    %v4915 = vunpack.c.l.b16 %v4679
    %v4916 = vunpack.c.h.b16 %v4679
    %v4917 = vunpack.c.l.b16 %v4680
    %v4918 = vunpack.c.h.b16 %v4680
    %v4919 = vunpack.c.l.b16 %v4681
    %v4920 = vunpack.c.h.b16 %v4681
    %v4921 = vunpack.c.l.b16 %v4682
    %v4922 = vunpack.c.h.b16 %v4682
    %v4923 = vunpack.c.l.b16 %v4683
    %v4924 = vunpack.c.h.b16 %v4683
    %v4925 = vunpack.c.l.b16 %v4684
    %v4926 = vunpack.c.h.b16 %v4684
    %v4927 = vunpack.c.l.b16 %v4685
    %v4928 = vunpack.c.h.b16 %v4685
    %v4929 = vunpack.c.l.b16 %v4686
    %v4930 = vunpack.c.h.b16 %v4686
    %v4931 = vunpack.c.l.b16 %v4687
    %v4932 = vunpack.c.h.b16 %v4687
    %v4933 = vunpack.c.l.b16 %v4688
    %v4934 = vunpack.c.h.b16 %v4688
    %v4935 = vunpack.c.l.b16 %v4689
    %v4936 = vunpack.c.h.b16 %v4689
    %v4937 = vunpack.c.l.b16 %v4690
    %v4938 = vunpack.c.h.b16 %v4690
    %v4939 = vunpack.c.l.b16 %v4691
    %v4940 = vunpack.c.h.b16 %v4691
    %v4941 = vunpack.c.l.b16 %v4692
    %v4942 = vunpack.c.h.b16 %v4692
    %v4943 = vunpack.c.l.b16 %v4693
    %v4944 = vunpack.c.h.b16 %v4693
    %v4945 = vunpack.c.l.b16 %v4694
    %v4946 = vunpack.c.h.b16 %v4694
    %v4947 = vunpack.c.l.b16 %v4695
    %v4948 = vunpack.c.h.b16 %v4695
    %v4949 = vunpack.c.l.b16 %v4696
    %v4950 = vunpack.c.h.b16 %v4696
    %v4951 = vunpack.c.l.b16 %v4697
    %v4952 = vunpack.c.h.b16 %v4697
    %v4953 = vunpack.c.l.b16 %v4698
    %v4954 = vunpack.c.h.b16 %v4698
    %v4955 = vunpack.c.l.b16 %v4699
    %v4956 = vunpack.c.h.b16 %v4699
    %v4957 = vunpack.c.l.b16 %v4700
    %v4958 = vunpack.c.h.b16 %v4700
    %v4959 = vunpack.c.l.b16 %v4701
    %v4960 = vunpack.c.h.b16 %v4701
    %v4961 = vunpack.c.l.b16 %v4702
    %v4962 = vunpack.c.h.b16 %v4702
    %v4963 = vunpack.c.l.b16 %v4703
    %v4964 = vunpack.c.h.b16 %v4703
    %v4965 = vunpack.c.l.b16 %v4704
    %v4966 = vunpack.c.h.b16 %v4704
    %v4967 = vunpack.c.l.b16 %v4705
    %v4968 = vunpack.c.h.b16 %v4705
    %v4969 = vunpack.c.l.b16 %v4706
    %v4970 = vunpack.c.h.b16 %v4706
    %v4971 = vunpack.c.l.b16 %v4707
    %v4972 = vunpack.c.h.b16 %v4707
    %v4973 = vunpack.c.l.b16 %v4708
    %v4974 = vunpack.c.h.b16 %v4708
    %v4975 = vunpack.c.l.b16 %v4709
    %v4976 = vunpack.c.h.b16 %v4709
    %v4977 = vunpack.c.l.b16 %v4710
    %v4978 = vunpack.c.h.b16 %v4710
    %v4979 = vunpack.c.l.b16 %v4711
    %v4980 = vunpack.c.h.b16 %v4711
    %v4981 = vunpack.c.l.b16 %v4712
    %v4982 = vunpack.c.h.b16 %v4712
    %v4983 = vunpack.c.l.b16 %v4713
    %v4984 = vunpack.c.h.b16 %v4713
    %v4985 = vunpack.c.l.b16 %v4714
    %v4986 = vunpack.c.h.b16 %v4714
    %v4987 = vunpack.c.l.b16 %v4715
    %v4988 = vunpack.c.h.b16 %v4715
    %v4989 = vunpack.c.l.b16 %v4716
    %v4990 = vunpack.c.h.b16 %v4716
    %v4991 = vunpack.c.l.b16 %v4717
    %v4992 = vunpack.c.h.b16 %v4717
    %v4993 = vunpack.c.l.b16 %v4718
    %v4994 = vunpack.c.h.b16 %v4718
    %v4995 = vunpack.c.l.b16 %v4719
    %v4996 = vunpack.c.h.b16 %v4719
    %v4997 = vunpack.c.l.b16 %v4720
    %v4998 = vunpack.c.h.b16 %v4720
    %v4999 = vunpack.c.l.b16 %v4721
    %v5000 = vunpack.c.h.b16 %v4721
    %v5001 = vunpack.c.l.b16 %v4722
    %v5002 = vunpack.c.h.b16 %v4722
    %v5003 = vunpack.c.l.b16 %v4723
    %v5004 = vunpack.c.h.b16 %v4723
    %v5005 = vunpack.c.l.b16 %v4724
    %v5006 = vunpack.c.h.b16 %v4724
    %v5007 = vunpack.c.l.b16 %v4725
    %v5008 = vunpack.c.h.b16 %v4725
    %v5009 = vunpack.c.l.b16 %v4726
    %v5010 = vunpack.c.h.b16 %v4726
    %v5011 = vunpack.c.l.b16 %v4727
    %v5012 = vunpack.c.h.b16 %v4727
    %v5013 = vunpack.c.l.b16 %v4728
    %v5014 = vunpack.c.h.b16 %v4728
    %v5015 = vunpack.c.l.b16 %v4729
    %v5016 = vunpack.c.h.b16 %v4729
    %v5017 = vunpack.c.l.b16 %v4730
    %v5018 = vunpack.c.h.b16 %v4730
    %v5019 = vpack.c.b16 %v4833, %v4827
    %v5020 = vpack.c.b16 %v4834, %v4828
    %v5021 = vpack.c.b16 %v4835, %v4829
    %v5022 = vpack.c.b16 %v4836, %v4830
    %v5023 = vpack.c.b16 %v4837, %v4831
    %v5024 = vpack.c.b16 %v4838, %v4832
    %v5025 = vpack.c.b16 %v4845, %v4839
    %v5026 = vpack.c.b16 %v4846, %v4840
    %v5027 = vpack.c.b16 %v4847, %v4841
    %v5028 = vpack.c.b16 %v4848, %v4842
    %v5029 = vpack.c.b16 %v4849, %v4843
    %v5030 = vpack.c.b16 %v4850, %v4844
    %v5031 = vpack.c.b16 %v4857, %v4851
    %v5032 = vpack.c.b16 %v4858, %v4852
    %v5033 = vpack.c.b16 %v4859, %v4853
    %v5034 = vpack.c.b16 %v4860, %v4854
    %v5035 = vpack.c.b16 %v4861, %v4855
    %v5036 = vpack.c.b16 %v4862, %v4856
    %v5037 = vpack.c.b16 %v4869, %v4863
    %v5038 = vpack.c.b16 %v4870, %v4864
    %v5039 = vpack.c.b16 %v4871, %v4865
    %v5040 = vpack.c.b16 %v4872, %v4866
    %v5041 = vpack.c.b16 %v4873, %v4867
    %v5042 = vpack.c.b16 %v4874, %v4868
    %v5043 = vpack.c.b16 %v4881, %v4875
    %v5044 = vpack.c.b16 %v4882, %v4876
    %v5045 = vpack.c.b16 %v4883, %v4877
    %v5046 = vpack.c.b16 %v4884, %v4878
    %v5047 = vpack.c.b16 %v4885, %v4879
    %v5048 = vpack.c.b16 %v4886, %v4880
    %v5049 = vpack.c.b16 %v4893, %v4887
    %v5050 = vpack.c.b16 %v4894, %v4888
    %v5051 = vpack.c.b16 %v4895, %v4889
    %v5052 = vpack.c.b16 %v4896, %v4890
    %v5053 = vpack.c.b16 %v4897, %v4891
    %v5054 = vpack.c.b16 %v4898, %v4892
    %v5055 = vpack.c.b16 %v4905, %v4899
    %v5056 = vpack.c.b16 %v4906, %v4900
    %v5057 = vpack.c.b16 %v4907, %v4901
    %v5058 = vpack.c.b16 %v4908, %v4902
    %v5059 = vpack.c.b16 %v4909, %v4903
    %v5060 = vpack.c.b16 %v4910, %v4904
    %v5061 = vpack.c.b16 %v4917, %v4911
    %v5062 = vpack.c.b16 %v4918, %v4912
    %v5063 = vpack.c.b16 %v4919, %v4913
    %v5064 = vpack.c.b16 %v4920, %v4914
    %v5065 = vpack.c.b16 %v4921, %v4915
    %v5066 = vpack.c.b16 %v4922, %v4916
    %v5067 = vpack.c.b16 %v4929, %v4923
    %v5068 = vpack.c.b16 %v4930, %v4924
    %v5069 = vpack.c.b16 %v4931, %v4925
    %v5070 = vpack.c.b16 %v4932, %v4926
    %v5071 = vpack.c.b16 %v4933, %v4927
    %v5072 = vpack.c.b16 %v4934, %v4928
    %v5073 = vpack.c.b16 %v4941, %v4935
    %v5074 = vpack.c.b16 %v4942, %v4936
    %v5075 = vpack.c.b16 %v4943, %v4937
    %v5076 = vpack.c.b16 %v4944, %v4938
    %v5077 = vpack.c.b16 %v4945, %v4939
    %v5078 = vpack.c.b16 %v4946, %v4940
    %v5079 = vpack.c.b16 %v4953, %v4947
    %v5080 = vpack.c.b16 %v4954, %v4948
    %v5081 = vpack.c.b16 %v4955, %v4949
    %v5082 = vpack.c.b16 %v4956, %v4950
    %v5083 = vpack.c.b16 %v4957, %v4951
    %v5084 = vpack.c.b16 %v4958, %v4952
    %v5085 = vpack.c.b16 %v4965, %v4959
    %v5086 = vpack.c.b16 %v4966, %v4960
    %v5087 = vpack.c.b16 %v4967, %v4961
    %v5088 = vpack.c.b16 %v4968, %v4962
    %v5089 = vpack.c.b16 %v4969, %v4963
    %v5090 = vpack.c.b16 %v4970, %v4964
    %v5091 = vpack.c.b16 %v4977, %v4971
    %v5092 = vpack.c.b16 %v4978, %v4972
    %v5093 = vpack.c.b16 %v4979, %v4973
    %v5094 = vpack.c.b16 %v4980, %v4974
    %v5095 = vpack.c.b16 %v4981, %v4975
    %v5096 = vpack.c.b16 %v4982, %v4976
    %v5097 = vpack.c.b16 %v4989, %v4983
    %v5098 = vpack.c.b16 %v4990, %v4984
    %v5099 = vpack.c.b16 %v4991, %v4985
    %v5100 = vpack.c.b16 %v4992, %v4986
    %v5101 = vpack.c.b16 %v4993, %v4987
    %v5102 = vpack.c.b16 %v4994, %v4988
    %v5103 = vpack.c.b16 %v5001, %v4995
    %v5104 = vpack.c.b16 %v5002, %v4996
    %v5105 = vpack.c.b16 %v5003, %v4997
    %v5106 = vpack.c.b16 %v5004, %v4998
    %v5107 = vpack.c.b16 %v5005, %v4999
    %v5108 = vpack.c.b16 %v5006, %v5000
    %v5109 = vpack.c.b16 %v5013, %v5007
    %v5110 = vpack.c.b16 %v5014, %v5008
    %v5111 = vpack.c.b16 %v5015, %v5009
    %v5112 = vpack.c.b16 %v5016, %v5010
    %v5113 = vpack.c.b16 %v5017, %v5011
    %v5114 = vpack.c.b16 %v5018, %v5012
    %5211 = vmatprep.subr.bf16.mxu0 %v5020
    %5212 = vmatpush1.bf16.msra.mxu0 %v5019
    %5213 = vmatprep.subr.bf16.mxu0 %v5026
    %5214 = vmatpush1.bf16.msra.mxu0 %v5025
    %5215 = vmatprep.subr.bf16.mxu0 %v5032
    %5216 = vmatpush1.bf16.msra.mxu0 %v5031
    %5217 = vmatprep.subr.bf16.mxu0 %v5038
    %5218 = vmatpush1.bf16.msra.mxu0 %v5037
    %5219 = vmatprep.subr.bf16.mxu0 %v5044
    %5220 = vmatpush1.bf16.msra.mxu0 %v5043
    %5221 = vmatprep.subr.bf16.mxu0 %v5050
    %5222 = vmatpush1.bf16.msra.mxu0 %v5049
    %5223 = vmatprep.subr.bf16.mxu0 %v5056
    %5224 = vmatpush1.bf16.msra.mxu0 %v5055
    %5225 = vmatprep.subr.bf16.mxu0 %v5062
    %5226 = vmatpush1.bf16.msra.mxu0 %v5061
    %5227 = vmatprep.subr.bf16.mxu0 %v5068
    %5228 = vmatpush1.bf16.msra.mxu0 %v5067
    %5229 = vmatprep.subr.bf16.mxu0 %v5074
    %5230 = vmatpush1.bf16.msra.mxu0 %v5073
    %5231 = vmatprep.subr.bf16.mxu0 %v5080
    %5232 = vmatpush1.bf16.msra.mxu0 %v5079
    %5233 = vmatprep.subr.bf16.mxu0 %v5086
    %5234 = vmatpush1.bf16.msra.mxu0 %v5085
    %5235 = vmatprep.subr.bf16.mxu0 %v5092
    %5236 = vmatpush1.bf16.msra.mxu0 %v5091
    %5237 = vmatprep.subr.bf16.mxu0 %v5098
    %5238 = vmatpush1.bf16.msra.mxu0 %v5097
    %5239 = vmatprep.subr.bf16.mxu0 %v5104
    %5240 = vmatpush1.bf16.msra.mxu0 %v5103
    %5241 = vmatprep.subr.bf16.mxu0 %v5110
    %5242 = vmatpush1.bf16.msra.mxu0 %v5109
    %5243 = vmatprep.mubr.bf16.mxu0 %v4634
    %5244 = vmatmul.mubr.bf16.gmra.mrb[0].mxu0 %v4633
    %v5245 = vpop.f32.mrb[0].mxu0
    %v5246 = vadd.f32 %v2435, %v5245
    %v5247 = vpop.f32.mrb[0].mxu0
    %v5248 = vadd.f32 %v2439, %v5247
    %v5249 = vpop.f32.mrb[0].mxu0
    %v5250 = vpop.f32.mrb[0].mxu0
    %5251 = vdwg.mxu0
    %5252 = vmatprep.subr.bf16.mxu0 %v5022
    %5253 = vmatpush1.bf16.msra.mxu0 %v5021
    %5254 = vmatprep.subr.bf16.mxu0 %v5028
    %5255 = vmatpush1.bf16.msra.mxu0 %v5027
    %5256 = vmatprep.subr.bf16.mxu0 %v5034
    %5257 = vmatpush1.bf16.msra.mxu0 %v5033
    %5258 = vmatprep.subr.bf16.mxu0 %v5040
    %5259 = vmatpush1.bf16.msra.mxu0 %v5039
    %5260 = vmatprep.subr.bf16.mxu0 %v5046
    %5261 = vmatpush1.bf16.msra.mxu0 %v5045
    %5262 = vmatprep.subr.bf16.mxu0 %v5052
    %5263 = vmatpush1.bf16.msra.mxu0 %v5051
    %5264 = vmatprep.subr.bf16.mxu0 %v5058
    %5265 = vmatpush1.bf16.msra.mxu0 %v5057
    %5266 = vmatprep.subr.bf16.mxu0 %v5064
    %5267 = vmatpush1.bf16.msra.mxu0 %v5063
    %5268 = vmatprep.subr.bf16.mxu0 %v5070
    %5269 = vmatpush1.bf16.msra.mxu0 %v5069
    %5270 = vmatprep.subr.bf16.mxu0 %v5076
    %5271 = vmatpush1.bf16.msra.mxu0 %v5075
    %5272 = vmatprep.subr.bf16.mxu0 %v5082
    %5273 = vmatpush1.bf16.msra.mxu0 %v5081
    %5274 = vmatprep.subr.bf16.mxu0 %v5088
    %5275 = vmatpush1.bf16.msra.mxu0 %v5087
    %5276 = vmatprep.subr.bf16.mxu0 %v5094
    %5277 = vmatpush1.bf16.msra.mxu0 %v5093
    %5278 = vmatprep.subr.bf16.mxu0 %v5100
    %5279 = vmatpush1.bf16.msra.mxu0 %v5099
    %5280 = vmatprep.subr.bf16.mxu0 %v5106
    %5281 = vmatpush1.bf16.msra.mxu0 %v5105
    %5282 = vmatprep.subr.bf16.mxu0 %v5112
    %5283 = vmatpush1.bf16.msra.mxu0 %v5111
    %5284 = vmatprep.mubr.bf16.mxu0 %v4634
    %5285 = vmatmul.mubr.bf16.gmra.mrb[0].mxu0 %v4633
    %v5286 = vpop.f32.mrb[0].mxu0
    %v5287 = vadd.f32 %v2443, %v5286
    %v5288 = vpop.f32.mrb[0].mxu0
    %v5289 = vadd.f32 %v2447, %v5288
    %v5290 = vpop.f32.mrb[0].mxu0
    %v5291 = vpop.f32.mrb[0].mxu0
    %5292 = vdwg.mxu0
    %5293 = vmatprep.subr.bf16.mxu0 %v5024
    %5294 = vmatpush1.bf16.msra.mxu0 %v5023
    %5295 = vmatprep.subr.bf16.mxu0 %v5030
    %5296 = vmatpush1.bf16.msra.mxu0 %v5029
    %5297 = vmatprep.subr.bf16.mxu0 %v5036
    %5298 = vmatpush1.bf16.msra.mxu0 %v5035
    %5299 = vmatprep.subr.bf16.mxu0 %v5042
    %5300 = vmatpush1.bf16.msra.mxu0 %v5041
    %5301 = vmatprep.subr.bf16.mxu0 %v5048
    %5302 = vmatpush1.bf16.msra.mxu0 %v5047
    %5303 = vmatprep.subr.bf16.mxu0 %v5054
    %5304 = vmatpush1.bf16.msra.mxu0 %v5053
    %5305 = vmatprep.subr.bf16.mxu0 %v5060
    %5306 = vmatpush1.bf16.msra.mxu0 %v5059
    %5307 = vmatprep.subr.bf16.mxu0 %v5066
    %5308 = vmatpush1.bf16.msra.mxu0 %v5065
    %5309 = vmatprep.subr.bf16.mxu0 %v5072
    %5310 = vmatpush1.bf16.msra.mxu0 %v5071
    %5311 = vmatprep.subr.bf16.mxu0 %v5078
    %5312 = vmatpush1.bf16.msra.mxu0 %v5077
    %5313 = vmatprep.subr.bf16.mxu0 %v5084
    %5314 = vmatpush1.bf16.msra.mxu0 %v5083
    %5315 = vmatprep.subr.bf16.mxu0 %v5090
    %5316 = vmatpush1.bf16.msra.mxu0 %v5089
    %5317 = vmatprep.subr.bf16.mxu0 %v5096
    %5318 = vmatpush1.bf16.msra.mxu0 %v5095
    %5319 = vmatprep.subr.bf16.mxu0 %v5102
    %5320 = vmatpush1.bf16.msra.mxu0 %v5101
    %5321 = vmatprep.subr.bf16.mxu0 %v5108
    %5322 = vmatpush1.bf16.msra.mxu0 %v5107
    %5323 = vmatprep.subr.bf16.mxu0 %v5114
    %5324 = vmatpush1.bf16.msra.mxu0 %v5113
    %5325 = vmatprep.mubr.bf16.mxu0 %v4634
    %5326 = vmatmul.mubr.bf16.gmra.mrb[0].mxu0 %v4633
    %v5327 = vpop.f32.mrb[0].mxu0
    %v5328 = vadd.f32 %v2451, %v5327
    %v5329 = vpop.f32.mrb[0].mxu0
    %v5330 = vadd.f32 %v2455, %v5329
    %v5331 = vpop.f32.mrb[0].mxu0
    %v5332 = vpop.f32.mrb[0].mxu0
    %5333 = vdwg.mxu0
    %v5334 = vadd.f32 %v5246, %v4113
    %v5335 = vadd.f32 %v5248, %v4152
    %v5336 = vxor.u32 %v5334, 2147483648
    %v5337 = vxor.u32 %v5335, 2147483648
    %v5338 = vmul.f32 %v5336, 1.442695
    %v5339 = vpow.pop %v5338
    %v5340 = vmul.f32 %v5337, 1.442695
    %v5341 = vpow.pop %v5340
    %v5342 = vadd.f32 %v5339, 1.0
    %v5343 = vadd.f32 %v5341, 1.0
    %v5344 = vrcp.pop %v5342
    %v5345 = vmul.f32 1.0, %v5344
    %v5346 = vrcp.pop %v5343
    %v5347 = vmul.f32 1.0, %v5346
    %v5348 = vadd.f32 %v5287, %v4154
    %v5349 = vadd.f32 %v5289, %v4193
    %v5350 = vxor.u32 %v5348, 2147483648
    %v5351 = vxor.u32 %v5349, 2147483648
    %v5352 = vmul.f32 %v5350, 1.442695
    %v5353 = vpow.pop %v5352
    %v5354 = vmul.f32 %v5351, 1.442695
    %v5355 = vpow.pop %v5354
    %v5356 = vadd.f32 %v5353, 1.0
    %v5357 = vadd.f32 %v5355, 1.0
    %v5358 = vrcp.pop %v5356
    %v5359 = vmul.f32 1.0, %v5358
    %v5360 = vrcp.pop %v5357
    %v5361 = vmul.f32 1.0, %v5360
    %v5362 = vadd.f32 %v4195, %v2617
    %v5363 = vadd.f32 %v4234, %v2621
    %v5364 = vmul.f32 %v5345, %v5362
    %v5365 = vmul.f32 %v5347, %v5363
    %v5366 = vadd.f32 %v5328, %v5364
    %v5367 = vadd.f32 %v5330, %v5365
    %v5368 = vtanh.pop %v5366
    %v5369 = vtanh.pop %v5367
    %v5370 = vsub.f32 1.0, %v5359
    %v5371 = vsub.f32 1.0, %v5361
    %v5372 = vmul.f32 %v5370, %v5368
    %v5373 = vmul.f32 %v5371, %v5369
    %v5374 = vmul.f32 %v5359, %v2638
    %v5375 = vmul.f32 %v5361, %v2639
    %v5376 = vadd.f32 %v5372, %v5374
    %v5377 = vadd.f32 %v5373, %v5375
    %v5380 = vcombine.low %v5376, %v5377
    %v5382 = vunpack.c.l.s4 1966171168
    %v5383 = vunpack.c.0.s8 %v5382
    %v5384 = vlaneseq
    %v5385 = vshrl.u32 %v5384, 7
    %v5386 = vsub.s32 %v5383, %v5385
    %v5387 = vrot.slane %v5380, %v5386
    %v5389 = vunpack.c.l.s4 1966171168
    %v5390 = vunpack.c.0.s8 %v5389
    %v5391 = vlaneseq
    %v5392 = vshrl.u32 %v5391, 7
    %v5393 = vsub.s32 %v5390, %v5392
    %v5394 = vrot.slane %v5387, %v5393
    %s5396 = scalar_lea.vmem [#allocation17], 2
    %5397 = vst.msk [vmem:[%s5396] sm:$0x3] %vm2661, %v5394
    %v5398 = vpack.c.bf16 %v5376, %v5376
    %v5399 = vpack.c.bf16 %v5377, %v5377
    %v5400 = vld [vmem:[#allocation15] sm:$0xff]
    %v5401 = vld [vmem:[#allocation15 + $0x8] sm:$0xff]
    %v5402 = vld [vmem:[#allocation15 + $0x10] sm:$0xff]
    %v5403 = vld [vmem:[#allocation15 + $0x18] sm:$0xff]
    %v5404 = vld [vmem:[#allocation15 + $0x20] sm:$0xff]
    %v5405 = vld [vmem:[#allocation15 + $0x28] sm:$0xff]
    %v5406 = vld [vmem:[#allocation15 + $0x30] sm:$0xff]
    %v5407 = vld [vmem:[#allocation15 + $0x38] sm:$0xff]
    %v5408 = vld [vmem:[#allocation15 + $0x40] sm:$0xff]
    %v5409 = vld [vmem:[#allocation15 + $0x48] sm:$0xff]
    %v5410 = vld [vmem:[#allocation15 + $0x50] sm:$0xff]
    %v5411 = vld [vmem:[#allocation15 + $0x58] sm:$0xff]
    %v5412 = vld [vmem:[#allocation15 + $0x60] sm:$0xff]
    %v5413 = vld [vmem:[#allocation15 + $0x68] sm:$0xff]
    %v5414 = vld [vmem:[#allocation15 + $0x70] sm:$0xff]
    %v5415 = vld [vmem:[#allocation15 + $0x78] sm:$0xff]
    %v5416 = vld [vmem:[#allocation15 + $0x80] sm:$0xff]
    %v5417 = vld [vmem:[#allocation15 + $0x88] sm:$0xff]
    %v5418 = vld [vmem:[#allocation15 + $0x90] sm:$0xff]
    %v5419 = vld [vmem:[#allocation15 + $0x98] sm:$0xff]
    %v5420 = vld [vmem:[#allocation15 + $0xa0] sm:$0xff]
    %v5421 = vld [vmem:[#allocation15 + $0xa8] sm:$0xff]
    %v5422 = vld [vmem:[#allocation15 + $0xb0] sm:$0xff]
    %v5423 = vld [vmem:[#allocation15 + $0xb8] sm:$0xff]
    %v5424 = vld [vmem:[#allocation15 + $0xc0] sm:$0xff]
    %v5425 = vld [vmem:[#allocation15 + $0xc8] sm:$0xff]
    %v5426 = vld [vmem:[#allocation15 + $0xd0] sm:$0xff]
    %v5427 = vld [vmem:[#allocation15 + $0xd8] sm:$0xff]
    %v5428 = vld [vmem:[#allocation15 + $0xe0] sm:$0xff]
    %v5429 = vld [vmem:[#allocation15 + $0xe8] sm:$0xff]
    %v5430 = vld [vmem:[#allocation15 + $0xf0] sm:$0xff]
    %v5431 = vld [vmem:[#allocation15 + $0xf8] sm:$0xff]
    %v5464 = vunpack.c.l.b16 %v5400
    %v5465 = vunpack.c.h.b16 %v5400
    %v5466 = vunpack.c.l.b16 %v5401
    %v5467 = vunpack.c.h.b16 %v5401
    %v5468 = vunpack.c.l.b16 %v5402
    %v5469 = vunpack.c.h.b16 %v5402
    %v5470 = vunpack.c.l.b16 %v5403
    %v5471 = vunpack.c.h.b16 %v5403
    %v5472 = vunpack.c.l.b16 %v5404
    %v5473 = vunpack.c.h.b16 %v5404
    %v5474 = vunpack.c.l.b16 %v5405
    %v5475 = vunpack.c.h.b16 %v5405
    %v5476 = vunpack.c.l.b16 %v5406
    %v5477 = vunpack.c.h.b16 %v5406
    %v5478 = vunpack.c.l.b16 %v5407
    %v5479 = vunpack.c.h.b16 %v5407
    %v5480 = vunpack.c.l.b16 %v5408
    %v5481 = vunpack.c.h.b16 %v5408
    %v5482 = vunpack.c.l.b16 %v5409
    %v5483 = vunpack.c.h.b16 %v5409
    %v5484 = vunpack.c.l.b16 %v5410
    %v5485 = vunpack.c.h.b16 %v5410
    %v5486 = vunpack.c.l.b16 %v5411
    %v5487 = vunpack.c.h.b16 %v5411
    %v5488 = vunpack.c.l.b16 %v5412
    %v5489 = vunpack.c.h.b16 %v5412
    %v5490 = vunpack.c.l.b16 %v5413
    %v5491 = vunpack.c.h.b16 %v5413
    %v5492 = vunpack.c.l.b16 %v5414
    %v5493 = vunpack.c.h.b16 %v5414
    %v5494 = vunpack.c.l.b16 %v5415
    %v5495 = vunpack.c.h.b16 %v5415
    %v5496 = vunpack.c.l.b16 %v5416
    %v5497 = vunpack.c.h.b16 %v5416
    %v5498 = vunpack.c.l.b16 %v5417
    %v5499 = vunpack.c.h.b16 %v5417
    %v5500 = vunpack.c.l.b16 %v5418
    %v5501 = vunpack.c.h.b16 %v5418
    %v5502 = vunpack.c.l.b16 %v5419
    %v5503 = vunpack.c.h.b16 %v5419
    %v5504 = vunpack.c.l.b16 %v5420
    %v5505 = vunpack.c.h.b16 %v5420
    %v5506 = vunpack.c.l.b16 %v5421
    %v5507 = vunpack.c.h.b16 %v5421
    %v5508 = vunpack.c.l.b16 %v5422
    %v5509 = vunpack.c.h.b16 %v5422
    %v5510 = vunpack.c.l.b16 %v5423
    %v5511 = vunpack.c.h.b16 %v5423
    %v5512 = vunpack.c.l.b16 %v5424
    %v5513 = vunpack.c.h.b16 %v5424
    %v5514 = vunpack.c.l.b16 %v5425
    %v5515 = vunpack.c.h.b16 %v5425
    %v5516 = vunpack.c.l.b16 %v5426
    %v5517 = vunpack.c.h.b16 %v5426
    %v5518 = vunpack.c.l.b16 %v5427
    %v5519 = vunpack.c.h.b16 %v5427
    %v5520 = vunpack.c.l.b16 %v5428
    %v5521 = vunpack.c.h.b16 %v5428
    %v5522 = vunpack.c.l.b16 %v5429
    %v5523 = vunpack.c.h.b16 %v5429
    %v5524 = vunpack.c.l.b16 %v5430
    %v5525 = vunpack.c.h.b16 %v5430
    %v5526 = vunpack.c.l.b16 %v5431
    %v5527 = vunpack.c.h.b16 %v5431
    %v5528 = vpack.c.b16 %v5466, %v5464
    %v5529 = vpack.c.b16 %v5467, %v5465
    %v5530 = vpack.c.b16 %v5470, %v5468
    %v5531 = vpack.c.b16 %v5471, %v5469
    %v5532 = vpack.c.b16 %v5474, %v5472
    %v5533 = vpack.c.b16 %v5475, %v5473
    %v5534 = vpack.c.b16 %v5478, %v5476
    %v5535 = vpack.c.b16 %v5479, %v5477
    %v5536 = vpack.c.b16 %v5482, %v5480
    %v5537 = vpack.c.b16 %v5483, %v5481
    %v5538 = vpack.c.b16 %v5486, %v5484
    %v5539 = vpack.c.b16 %v5487, %v5485
    %v5540 = vpack.c.b16 %v5490, %v5488
    %v5541 = vpack.c.b16 %v5491, %v5489
    %v5542 = vpack.c.b16 %v5494, %v5492
    %v5543 = vpack.c.b16 %v5495, %v5493
    %v5544 = vpack.c.b16 %v5498, %v5496
    %v5545 = vpack.c.b16 %v5499, %v5497
    %v5546 = vpack.c.b16 %v5502, %v5500
    %v5547 = vpack.c.b16 %v5503, %v5501
    %v5548 = vpack.c.b16 %v5506, %v5504
    %v5549 = vpack.c.b16 %v5507, %v5505
    %v5550 = vpack.c.b16 %v5510, %v5508
    %v5551 = vpack.c.b16 %v5511, %v5509
    %v5552 = vpack.c.b16 %v5514, %v5512
    %v5553 = vpack.c.b16 %v5515, %v5513
    %v5554 = vpack.c.b16 %v5518, %v5516
    %v5555 = vpack.c.b16 %v5519, %v5517
    %v5556 = vpack.c.b16 %v5522, %v5520
    %v5557 = vpack.c.b16 %v5523, %v5521
    %v5558 = vpack.c.b16 %v5526, %v5524
    %v5559 = vpack.c.b16 %v5527, %v5525
    %5592 = vmatprep.subr.bf16.mxu0 %v5529
    %5593 = vmatpush1.bf16.msra.mxu0 %v5528
    %5594 = vmatprep.subr.bf16.mxu0 %v5531
    %5595 = vmatpush1.bf16.msra.mxu0 %v5530
    %5596 = vmatprep.subr.bf16.mxu0 %v5533
    %5597 = vmatpush1.bf16.msra.mxu0 %v5532
    %5598 = vmatprep.subr.bf16.mxu0 %v5535
    %5599 = vmatpush1.bf16.msra.mxu0 %v5534
    %5600 = vmatprep.subr.bf16.mxu0 %v5537
    %5601 = vmatpush1.bf16.msra.mxu0 %v5536
    %5602 = vmatprep.subr.bf16.mxu0 %v5539
    %5603 = vmatpush1.bf16.msra.mxu0 %v5538
    %5604 = vmatprep.subr.bf16.mxu0 %v5541
    %5605 = vmatpush1.bf16.msra.mxu0 %v5540
    %5606 = vmatprep.subr.bf16.mxu0 %v5543
    %5607 = vmatpush1.bf16.msra.mxu0 %v5542
    %5608 = vmatprep.subr.bf16.mxu0 %v5545
    %5609 = vmatpush1.bf16.msra.mxu0 %v5544
    %5610 = vmatprep.subr.bf16.mxu0 %v5547
    %5611 = vmatpush1.bf16.msra.mxu0 %v5546
    %5612 = vmatprep.subr.bf16.mxu0 %v5549
    %5613 = vmatpush1.bf16.msra.mxu0 %v5548
    %5614 = vmatprep.subr.bf16.mxu0 %v5551
    %5615 = vmatpush1.bf16.msra.mxu0 %v5550
    %5616 = vmatprep.subr.bf16.mxu0 %v5553
    %5617 = vmatpush1.bf16.msra.mxu0 %v5552
    %5618 = vmatprep.subr.bf16.mxu0 %v5555
    %5619 = vmatpush1.bf16.msra.mxu0 %v5554
    %5620 = vmatprep.subr.bf16.mxu0 %v5557
    %5621 = vmatpush1.bf16.msra.mxu0 %v5556
    %5622 = vmatprep.subr.bf16.mxu0 %v5559
    %5623 = vmatpush1.bf16.msra.mxu0 %v5558
    %5624 = vmatprep.mubr.bf16.mxu0 %v5399
    %5625 = vmatmul.mubr.bf16.gmra.mrb[0].mxu0 %v5398
    %v5626 = vpop.f32.mrb[0].mxu0
    %v5627 = vadd.f32 %v2861, %v5626
    %v5628 = vpop.f32.mrb[0].mxu0
    %v5629 = vadd.f32 %v2865, %v5628
    %v5630 = vpop.f32.mrb[0].mxu0
    %v5631 = vpop.f32.mrb[0].mxu0
    %5632 = vdwg.mxu0
    %v5633 = vsel %vm1450, %v5627, -inf
    %v5634 = vsel %vm1450, %v5629, -inf
    %v5635 = vmax.f32 %v5633, %v5634
    %5636 = vmax.xlane.f32.xlu0 %v5635
    %v5637 = vpop.xlane.xlu0 %5636
    %v5638 = vsub.f32 %v5627, %v5637
    %v5639 = vsub.f32 %v5629, %v5637
    %v5640 = vmul.f32 %v5638, 1.442695
    %v5641 = vpow.pop %v5640
    %v5642 = vmul.f32 %v5639, 1.442695
    %v5643 = vpow.pop %v5642
    %v5644 = vsel %vm1450, %v5641, 0.0
    %v5645 = vsel %vm1450, %v5643, 0.0
    %v5646 = vadd.f32 %v5644, %v5645
    %5647 = vadd.xlane.f32.xlu0 %v5646
    %v5648 = vpop.xlane.xlu0 %5647
    %v5649 = vlog2.pop %v5648
    %v5650 = vmul.f32 %v5649, 0.6931472
    %v5651 = vsub.f32 %v5638, %v5650
    %v5652 = vsub.f32 %v5639, %v5650
    %v5655 = vcombine.low %v5651, %v5652
    %v5657 = vunpack.c.l.s4 1966171168
    %v5658 = vunpack.c.0.s8 %v5657
    %v5659 = vlaneseq
    %v5660 = vshrl.u32 %v5659, 7
    %v5661 = vsub.s32 %v5658, %v5660
    %v5662 = vrot.slane %v5655, %v5661
    %v5664 = vunpack.c.l.s4 1966171168
    %v5665 = vunpack.c.0.s8 %v5664
    %v5666 = vlaneseq
    %v5667 = vshrl.u32 %v5666, 7
    %v5668 = vsub.s32 %v5665, %v5667
    %v5669 = vrot.slane %v5662, %v5668
    %s5671 = scalar_lea.vmem [#allocation16], 2
    %5672 = vst.msk [vmem:[%s5671] sm:$0x3] %vm2661, %v5669
    %s5673 = sld [smem:[#allocation3 + $0x2]]
    %s5674 = sshra.s32 %s5673, 3
    %s5675 = sand.u32 %s5673, 7
    %s5676 = sshra.s32 %s5673, 3
    %s5677 = sand.u32 %s5673, 7
    %s5678 = smul.u32 %s5674, 2
    %s5679 = smul.u32 %s5678, 8
    %s5680 = sadd.s32 %s5679, %s5677
    %s5681 = scalar_lea.vmem [#allocation4], %s5680
    %v5682 = vld [vmem:[%s5681] ss:$8 sm:$0x3]
    %v5684 = vlaneseq
    %v5685 = vshrl.u32 %v5684, 7
    %v5686 = vsub.s32 0, %v5685
    %v5687 = vrot.slane %v5682, %v5686
    %v5688 = vlaneseq
    %v5689 = vshrl.u32 %v5688, 7
    %v5690 = vsub.s32 1, %v5689
    %v5691 = vrot.slane %v5682, %v5690
    %v5694 = vpack.c.bf16 %v5687, %v5687
    %v5695 = vpack.c.bf16 %v5691, %v5691
    %v5696 = vld [vmem:[#allocation9] sm:$0xff]
    %v5697 = vld [vmem:[#allocation9 + $0x8] sm:$0xf]
    %v5698 = vld [vmem:[#allocation9 + $0xc] sm:$0xff]
    %v5699 = vld [vmem:[#allocation9 + $0x14] sm:$0xf]
    %v5700 = vld [vmem:[#allocation9 + $0x18] sm:$0xff]
    %v5701 = vld [vmem:[#allocation9 + $0x20] sm:$0xf]
    %v5702 = vld [vmem:[#allocation9 + $0x24] sm:$0xff]
    %v5703 = vld [vmem:[#allocation9 + $0x2c] sm:$0xf]
    %v5704 = vld [vmem:[#allocation9 + $0x30] sm:$0xff]
    %v5705 = vld [vmem:[#allocation9 + $0x38] sm:$0xf]
    %v5706 = vld [vmem:[#allocation9 + $0x3c] sm:$0xff]
    %v5707 = vld [vmem:[#allocation9 + $0x44] sm:$0xf]
    %v5708 = vld [vmem:[#allocation9 + $0x48] sm:$0xff]
    %v5709 = vld [vmem:[#allocation9 + $0x50] sm:$0xf]
    %v5710 = vld [vmem:[#allocation9 + $0x54] sm:$0xff]
    %v5711 = vld [vmem:[#allocation9 + $0x5c] sm:$0xf]
    %v5712 = vld [vmem:[#allocation9 + $0x60] sm:$0xff]
    %v5713 = vld [vmem:[#allocation9 + $0x68] sm:$0xf]
    %v5714 = vld [vmem:[#allocation9 + $0x6c] sm:$0xff]
    %v5715 = vld [vmem:[#allocation9 + $0x74] sm:$0xf]
    %v5716 = vld [vmem:[#allocation9 + $0x78] sm:$0xff]
    %v5717 = vld [vmem:[#allocation9 + $0x80] sm:$0xf]
    %v5718 = vld [vmem:[#allocation9 + $0x84] sm:$0xff]
    %v5719 = vld [vmem:[#allocation9 + $0x8c] sm:$0xf]
    %v5720 = vld [vmem:[#allocation9 + $0x90] sm:$0xff]
    %v5721 = vld [vmem:[#allocation9 + $0x98] sm:$0xf]
    %v5722 = vld [vmem:[#allocation9 + $0x9c] sm:$0xff]
    %v5723 = vld [vmem:[#allocation9 + $0xa4] sm:$0xf]
    %v5724 = vld [vmem:[#allocation9 + $0xa8] sm:$0xff]
    %v5725 = vld [vmem:[#allocation9 + $0xb0] sm:$0xf]
    %v5726 = vld [vmem:[#allocation9 + $0xb4] sm:$0xff]
    %v5727 = vld [vmem:[#allocation9 + $0xbc] sm:$0xf]
    %v5728 = vld [vmem:[#allocation9 + $0xc0] sm:$0xff]
    %v5729 = vld [vmem:[#allocation9 + $0xc8] sm:$0xf]
    %v5730 = vld [vmem:[#allocation9 + $0xcc] sm:$0xff]
    %v5731 = vld [vmem:[#allocation9 + $0xd4] sm:$0xf]
    %v5732 = vld [vmem:[#allocation9 + $0xd8] sm:$0xff]
    %v5733 = vld [vmem:[#allocation9 + $0xe0] sm:$0xf]
    %v5734 = vld [vmem:[#allocation9 + $0xe4] sm:$0xff]
    %v5735 = vld [vmem:[#allocation9 + $0xec] sm:$0xf]
    %v5736 = vld [vmem:[#allocation9 + $0xf0] sm:$0xff]
    %v5737 = vld [vmem:[#allocation9 + $0xf8] sm:$0xf]
    %v5738 = vld [vmem:[#allocation9 + $0xfc] sm:$0xff]
    %v5739 = vld [vmem:[#allocation9 + $0x104] sm:$0xf]
    %v5740 = vld [vmem:[#allocation9 + $0x108] sm:$0xff]
    %v5741 = vld [vmem:[#allocation9 + $0x110] sm:$0xf]
    %v5742 = vld [vmem:[#allocation9 + $0x114] sm:$0xff]
    %v5743 = vld [vmem:[#allocation9 + $0x11c] sm:$0xf]
    %v5744 = vld [vmem:[#allocation9 + $0x120] sm:$0xff]
    %v5745 = vld [vmem:[#allocation9 + $0x128] sm:$0xf]
    %v5746 = vld [vmem:[#allocation9 + $0x12c] sm:$0xff]
    %v5747 = vld [vmem:[#allocation9 + $0x134] sm:$0xf]
    %v5748 = vld [vmem:[#allocation9 + $0x138] sm:$0xff]
    %v5749 = vld [vmem:[#allocation9 + $0x140] sm:$0xf]
    %v5750 = vld [vmem:[#allocation9 + $0x144] sm:$0xff]
    %v5751 = vld [vmem:[#allocation9 + $0x14c] sm:$0xf]
    %v5752 = vld [vmem:[#allocation9 + $0x150] sm:$0xff]
    %v5753 = vld [vmem:[#allocation9 + $0x158] sm:$0xf]
    %v5754 = vld [vmem:[#allocation9 + $0x15c] sm:$0xff]
    %v5755 = vld [vmem:[#allocation9 + $0x164] sm:$0xf]
    %v5756 = vld [vmem:[#allocation9 + $0x168] sm:$0xff]
    %v5757 = vld [vmem:[#allocation9 + $0x170] sm:$0xf]
    %v5758 = vld [vmem:[#allocation9 + $0x174] sm:$0xff]
    %v5759 = vld [vmem:[#allocation9 + $0x17c] sm:$0xf]
    %v5824 = vunpack.c.l.b16 %v5696
    %v5825 = vunpack.c.h.b16 %v5696
    %v5826 = vunpack.c.l.b16 %v5697
    %v5827 = vunpack.c.l.b16 %v5698
    %v5828 = vunpack.c.h.b16 %v5698
    %v5829 = vunpack.c.l.b16 %v5699
    %v5830 = vunpack.c.l.b16 %v5700
    %v5831 = vunpack.c.h.b16 %v5700
    %v5832 = vunpack.c.l.b16 %v5701
    %v5833 = vunpack.c.l.b16 %v5702
    %v5834 = vunpack.c.h.b16 %v5702
    %v5835 = vunpack.c.l.b16 %v5703
    %v5836 = vunpack.c.l.b16 %v5704
    %v5837 = vunpack.c.h.b16 %v5704
    %v5838 = vunpack.c.l.b16 %v5705
    %v5839 = vunpack.c.l.b16 %v5706
    %v5840 = vunpack.c.h.b16 %v5706
    %v5841 = vunpack.c.l.b16 %v5707
    %v5842 = vunpack.c.l.b16 %v5708
    %v5843 = vunpack.c.h.b16 %v5708
    %v5844 = vunpack.c.l.b16 %v5709
    %v5845 = vunpack.c.l.b16 %v5710
    %v5846 = vunpack.c.h.b16 %v5710
    %v5847 = vunpack.c.l.b16 %v5711
    %v5848 = vunpack.c.l.b16 %v5712
    %v5849 = vunpack.c.h.b16 %v5712
    %v5850 = vunpack.c.l.b16 %v5713
    %v5851 = vunpack.c.l.b16 %v5714
    %v5852 = vunpack.c.h.b16 %v5714
    %v5853 = vunpack.c.l.b16 %v5715
    %v5854 = vunpack.c.l.b16 %v5716
    %v5855 = vunpack.c.h.b16 %v5716
    %v5856 = vunpack.c.l.b16 %v5717
    %v5857 = vunpack.c.l.b16 %v5718
    %v5858 = vunpack.c.h.b16 %v5718
    %v5859 = vunpack.c.l.b16 %v5719
    %v5860 = vunpack.c.l.b16 %v5720
    %v5861 = vunpack.c.h.b16 %v5720
    %v5862 = vunpack.c.l.b16 %v5721
    %v5863 = vunpack.c.l.b16 %v5722
    %v5864 = vunpack.c.h.b16 %v5722
    %v5865 = vunpack.c.l.b16 %v5723
    %v5866 = vunpack.c.l.b16 %v5724
    %v5867 = vunpack.c.h.b16 %v5724
    %v5868 = vunpack.c.l.b16 %v5725
    %v5869 = vunpack.c.l.b16 %v5726
    %v5870 = vunpack.c.h.b16 %v5726
    %v5871 = vunpack.c.l.b16 %v5727
    %v5872 = vunpack.c.l.b16 %v5728
    %v5873 = vunpack.c.h.b16 %v5728
    %v5874 = vunpack.c.l.b16 %v5729
    %v5875 = vunpack.c.l.b16 %v5730
    %v5876 = vunpack.c.h.b16 %v5730
    %v5877 = vunpack.c.l.b16 %v5731
    %v5878 = vunpack.c.l.b16 %v5732
    %v5879 = vunpack.c.h.b16 %v5732
    %v5880 = vunpack.c.l.b16 %v5733
    %v5881 = vunpack.c.l.b16 %v5734
    %v5882 = vunpack.c.h.b16 %v5734
    %v5883 = vunpack.c.l.b16 %v5735
    %v5884 = vunpack.c.l.b16 %v5736
    %v5885 = vunpack.c.h.b16 %v5736
    %v5886 = vunpack.c.l.b16 %v5737
    %v5887 = vunpack.c.l.b16 %v5738
    %v5888 = vunpack.c.h.b16 %v5738
    %v5889 = vunpack.c.l.b16 %v5739
    %v5890 = vunpack.c.l.b16 %v5740
    %v5891 = vunpack.c.h.b16 %v5740
    %v5892 = vunpack.c.l.b16 %v5741
    %v5893 = vunpack.c.l.b16 %v5742
    %v5894 = vunpack.c.h.b16 %v5742
    %v5895 = vunpack.c.l.b16 %v5743
    %v5896 = vunpack.c.l.b16 %v5744
    %v5897 = vunpack.c.h.b16 %v5744
    %v5898 = vunpack.c.l.b16 %v5745
    %v5899 = vunpack.c.l.b16 %v5746
    %v5900 = vunpack.c.h.b16 %v5746
    %v5901 = vunpack.c.l.b16 %v5747
    %v5902 = vunpack.c.l.b16 %v5748
    %v5903 = vunpack.c.h.b16 %v5748
    %v5904 = vunpack.c.l.b16 %v5749
    %v5905 = vunpack.c.l.b16 %v5750
    %v5906 = vunpack.c.h.b16 %v5750
    %v5907 = vunpack.c.l.b16 %v5751
    %v5908 = vunpack.c.l.b16 %v5752
    %v5909 = vunpack.c.h.b16 %v5752
    %v5910 = vunpack.c.l.b16 %v5753
    %v5911 = vunpack.c.l.b16 %v5754
    %v5912 = vunpack.c.h.b16 %v5754
    %v5913 = vunpack.c.l.b16 %v5755
    %v5914 = vunpack.c.l.b16 %v5756
    %v5915 = vunpack.c.h.b16 %v5756
    %v5916 = vunpack.c.l.b16 %v5757
    %v5917 = vunpack.c.l.b16 %v5758
    %v5918 = vunpack.c.h.b16 %v5758
    %v5919 = vunpack.c.l.b16 %v5759
    %v5920 = vpack.c.b16 %v5827, %v5824
    %v5921 = vpack.c.b16 %v5828, %v5825
    %v5922 = vpack.c.b16 %v5829, %v5826
    %v5923 = vpack.c.b16 %v5833, %v5830
    %v5924 = vpack.c.b16 %v5834, %v5831
    %v5925 = vpack.c.b16 %v5835, %v5832
    %v5926 = vpack.c.b16 %v5839, %v5836
    %v5927 = vpack.c.b16 %v5840, %v5837
    %v5928 = vpack.c.b16 %v5841, %v5838
    %v5929 = vpack.c.b16 %v5845, %v5842
    %v5930 = vpack.c.b16 %v5846, %v5843
    %v5931 = vpack.c.b16 %v5847, %v5844
    %v5932 = vpack.c.b16 %v5851, %v5848
    %v5933 = vpack.c.b16 %v5852, %v5849
    %v5934 = vpack.c.b16 %v5853, %v5850
    %v5935 = vpack.c.b16 %v5857, %v5854
    %v5936 = vpack.c.b16 %v5858, %v5855
    %v5937 = vpack.c.b16 %v5859, %v5856
    %v5938 = vpack.c.b16 %v5863, %v5860
    %v5939 = vpack.c.b16 %v5864, %v5861
    %v5940 = vpack.c.b16 %v5865, %v5862
    %v5941 = vpack.c.b16 %v5869, %v5866
    %v5942 = vpack.c.b16 %v5870, %v5867
    %v5943 = vpack.c.b16 %v5871, %v5868
    %v5944 = vpack.c.b16 %v5875, %v5872
    %v5945 = vpack.c.b16 %v5876, %v5873
    %v5946 = vpack.c.b16 %v5877, %v5874
    %v5947 = vpack.c.b16 %v5881, %v5878
    %v5948 = vpack.c.b16 %v5882, %v5879
    %v5949 = vpack.c.b16 %v5883, %v5880
    %v5950 = vpack.c.b16 %v5887, %v5884
    %v5951 = vpack.c.b16 %v5888, %v5885
    %v5952 = vpack.c.b16 %v5889, %v5886
    %v5953 = vpack.c.b16 %v5893, %v5890
    %v5954 = vpack.c.b16 %v5894, %v5891
    %v5955 = vpack.c.b16 %v5895, %v5892
    %v5956 = vpack.c.b16 %v5899, %v5896
    %v5957 = vpack.c.b16 %v5900, %v5897
    %v5958 = vpack.c.b16 %v5901, %v5898
    %v5959 = vpack.c.b16 %v5905, %v5902
    %v5960 = vpack.c.b16 %v5906, %v5903
    %v5961 = vpack.c.b16 %v5907, %v5904
    %v5962 = vpack.c.b16 %v5911, %v5908
    %v5963 = vpack.c.b16 %v5912, %v5909
    %v5964 = vpack.c.b16 %v5913, %v5910
    %v5965 = vpack.c.b16 %v5917, %v5914
    %v5966 = vpack.c.b16 %v5918, %v5915
    %v5967 = vpack.c.b16 %v5919, %v5916
    %6016 = vmatprep.subr.bf16.mxu0 %v5921
    %6017 = vmatpush1.bf16.msra.mxu0 %v5920
    %6018 = vmatprep.subr.bf16.mxu0 %v5924
    %6019 = vmatpush1.bf16.msra.mxu0 %v5923
    %6020 = vmatprep.subr.bf16.mxu0 %v5927
    %6021 = vmatpush1.bf16.msra.mxu0 %v5926
    %6022 = vmatprep.subr.bf16.mxu0 %v5930
    %6023 = vmatpush1.bf16.msra.mxu0 %v5929
    %6024 = vmatprep.subr.bf16.mxu0 %v5933
    %6025 = vmatpush1.bf16.msra.mxu0 %v5932
    %6026 = vmatprep.subr.bf16.mxu0 %v5936
    %6027 = vmatpush1.bf16.msra.mxu0 %v5935
    %6028 = vmatprep.subr.bf16.mxu0 %v5939
    %6029 = vmatpush1.bf16.msra.mxu0 %v5938
    %6030 = vmatprep.subr.bf16.mxu0 %v5942
    %6031 = vmatpush1.bf16.msra.mxu0 %v5941
    %6032 = vmatprep.subr.bf16.mxu0 %v5945
    %6033 = vmatpush1.bf16.msra.mxu0 %v5944
    %6034 = vmatprep.subr.bf16.mxu0 %v5948
    %6035 = vmatpush1.bf16.msra.mxu0 %v5947
    %6036 = vmatprep.subr.bf16.mxu0 %v5951
    %6037 = vmatpush1.bf16.msra.mxu0 %v5950
    %6038 = vmatprep.subr.bf16.mxu0 %v5954
    %6039 = vmatpush1.bf16.msra.mxu0 %v5953
    %6040 = vmatprep.subr.bf16.mxu0 %v5957
    %6041 = vmatpush1.bf16.msra.mxu0 %v5956
    %6042 = vmatprep.subr.bf16.mxu0 %v5960
    %6043 = vmatpush1.bf16.msra.mxu0 %v5959
    %6044 = vmatprep.subr.bf16.mxu0 %v5963
    %6045 = vmatpush1.bf16.msra.mxu0 %v5962
    %6046 = vmatprep.subr.bf16.mxu0 %v5966
    %6047 = vmatpush1.bf16.msra.mxu0 %v5965
    %6048 = vmatprep.mubr.bf16.mxu0 %v5695
    %6049 = vmatmul.mubr.bf16.gmra.mrb[0].mxu0 %v5694
    %v6050 = vpop.f32.mrb[0].mxu0
    %v6051 = vadd.f32 0.0, %v6050
    %v6052 = vpop.f32.mrb[0].mxu0
    %v6053 = vadd.f32 0.0, %v6052
    %v6054 = vpop.f32.mrb[0].mxu0
    %v6055 = vpop.f32.mrb[0].mxu0
    %6056 = vdwg.mxu0
    %6057 = vmatprep.subr.bf16.mxu0 0
    %6058 = vmatpush1.bf16.msra.mxu0 %v5922
    %6059 = vmatprep.subr.bf16.mxu0 0
    %6060 = vmatpush1.bf16.msra.mxu0 %v5925
    %6061 = vmatprep.subr.bf16.mxu0 0
    %6062 = vmatpush1.bf16.msra.mxu0 %v5928
    %6063 = vmatprep.subr.bf16.mxu0 0
    %6064 = vmatpush1.bf16.msra.mxu0 %v5931
    %6065 = vmatprep.subr.bf16.mxu0 0
    %6066 = vmatpush1.bf16.msra.mxu0 %v5934
    %6067 = vmatprep.subr.bf16.mxu0 0
    %6068 = vmatpush1.bf16.msra.mxu0 %v5937
    %6069 = vmatprep.subr.bf16.mxu0 0
    %6070 = vmatpush1.bf16.msra.mxu0 %v5940
    %6071 = vmatprep.subr.bf16.mxu0 0
    %6072 = vmatpush1.bf16.msra.mxu0 %v5943
    %6073 = vmatprep.subr.bf16.mxu0 0
    %6074 = vmatpush1.bf16.msra.mxu0 %v5946
    %6075 = vmatprep.subr.bf16.mxu0 0
    %6076 = vmatpush1.bf16.msra.mxu0 %v5949
    %6077 = vmatprep.subr.bf16.mxu0 0
    %6078 = vmatpush1.bf16.msra.mxu0 %v5952
    %6079 = vmatprep.subr.bf16.mxu0 0
    %6080 = vmatpush1.bf16.msra.mxu0 %v5955
    %6081 = vmatprep.subr.bf16.mxu0 0
    %6082 = vmatpush1.bf16.msra.mxu0 %v5958
    %6083 = vmatprep.subr.bf16.mxu0 0
    %6084 = vmatpush1.bf16.msra.mxu0 %v5961
    %6085 = vmatprep.subr.bf16.mxu0 0
    %6086 = vmatpush1.bf16.msra.mxu0 %v5964
    %6087 = vmatprep.subr.bf16.mxu0 0
    %6088 = vmatpush1.bf16.msra.mxu0 %v5967
    %6089 = vmatprep.mubr.bf16.mxu0 %v5695
    %6090 = vmatmul.mubr.bf16.gmra.mrb[0].mxu0 %v5694
    %v6091 = vpop.f32.mrb[0].mxu0
    %v6092 = vadd.f32 0.0, %v6091
    %v6093 = vpop.f32.mrb[0].mxu0
    %v6094 = vpop.f32.mrb[0].mxu0
    %v6095 = vpop.f32.mrb[0].mxu0
    %6096 = vdwg.mxu0
    %v6097 = vld [vmem:[#allocation10] sm:$0xff]
    %v6098 = vld [vmem:[#allocation10 + $0x8] sm:$0xff]
    %v6099 = vld [vmem:[#allocation10 + $0x10] sm:$0xff]
    %v6100 = vld [vmem:[#allocation10 + $0x18] sm:$0xf]
    %v6101 = vld [vmem:[#allocation10 + $0x1c] sm:$0xff]
    %v6102 = vld [vmem:[#allocation10 + $0x24] sm:$0xff]
    %v6103 = vld [vmem:[#allocation10 + $0x2c] sm:$0xff]
    %v6104 = vld [vmem:[#allocation10 + $0x34] sm:$0xf]
    %v6105 = vld [vmem:[#allocation10 + $0x38] sm:$0xff]
    %v6106 = vld [vmem:[#allocation10 + $0x40] sm:$0xff]
    %v6107 = vld [vmem:[#allocation10 + $0x48] sm:$0xff]
    %v6108 = vld [vmem:[#allocation10 + $0x50] sm:$0xf]
    %v6109 = vld [vmem:[#allocation10 + $0x54] sm:$0xff]
    %v6110 = vld [vmem:[#allocation10 + $0x5c] sm:$0xff]
    %v6111 = vld [vmem:[#allocation10 + $0x64] sm:$0xff]
    %v6112 = vld [vmem:[#allocation10 + $0x6c] sm:$0xf]
    %v6113 = vld [vmem:[#allocation10 + $0x70] sm:$0xff]
    %v6114 = vld [vmem:[#allocation10 + $0x78] sm:$0xff]
    %v6115 = vld [vmem:[#allocation10 + $0x80] sm:$0xff]
    %v6116 = vld [vmem:[#allocation10 + $0x88] sm:$0xf]
    %v6117 = vld [vmem:[#allocation10 + $0x8c] sm:$0xff]
    %v6118 = vld [vmem:[#allocation10 + $0x94] sm:$0xff]
    %v6119 = vld [vmem:[#allocation10 + $0x9c] sm:$0xff]
    %v6120 = vld [vmem:[#allocation10 + $0xa4] sm:$0xf]
    %v6121 = vld [vmem:[#allocation10 + $0xa8] sm:$0xff]
    %v6122 = vld [vmem:[#allocation10 + $0xb0] sm:$0xff]
    %v6123 = vld [vmem:[#allocation10 + $0xb8] sm:$0xff]
    %v6124 = vld [vmem:[#allocation10 + $0xc0] sm:$0xf]
    %v6125 = vld [vmem:[#allocation10 + $0xc4] sm:$0xff]
    %v6126 = vld [vmem:[#allocation10 + $0xcc] sm:$0xff]
    %v6127 = vld [vmem:[#allocation10 + $0xd4] sm:$0xff]
    %v6128 = vld [vmem:[#allocation10 + $0xdc] sm:$0xf]
    %v6129 = vld [vmem:[#allocation10 + $0xe0] sm:$0xff]
    %v6130 = vld [vmem:[#allocation10 + $0xe8] sm:$0xff]
    %v6131 = vld [vmem:[#allocation10 + $0xf0] sm:$0xff]
    %v6132 = vld [vmem:[#allocation10 + $0xf8] sm:$0xf]
    %v6133 = vld [vmem:[#allocation10 + $0xfc] sm:$0xff]
    %v6134 = vld [vmem:[#allocation10 + $0x104] sm:$0xff]
    %v6135 = vld [vmem:[#allocation10 + $0x10c] sm:$0xff]
    %v6136 = vld [vmem:[#allocation10 + $0x114] sm:$0xf]
    %v6137 = vld [vmem:[#allocation10 + $0x118] sm:$0xff]
    %v6138 = vld [vmem:[#allocation10 + $0x120] sm:$0xff]
    %v6139 = vld [vmem:[#allocation10 + $0x128] sm:$0xff]
    %v6140 = vld [vmem:[#allocation10 + $0x130] sm:$0xf]
    %v6141 = vld [vmem:[#allocation10 + $0x134] sm:$0xff]
    %v6142 = vld [vmem:[#allocation10 + $0x13c] sm:$0xff]
    %v6143 = vld [vmem:[#allocation10 + $0x144] sm:$0xff]
    %v6144 = vld [vmem:[#allocation10 + $0x14c] sm:$0xf]
    %v6145 = vld [vmem:[#allocation10 + $0x150] sm:$0xff]
    %v6146 = vld [vmem:[#allocation10 + $0x158] sm:$0xff]
    %v6147 = vld [vmem:[#allocation10 + $0x160] sm:$0xff]
    %v6148 = vld [vmem:[#allocation10 + $0x168] sm:$0xf]
    %v6149 = vld [vmem:[#allocation10 + $0x16c] sm:$0xff]
    %v6150 = vld [vmem:[#allocation10 + $0x174] sm:$0xff]
    %v6151 = vld [vmem:[#allocation10 + $0x17c] sm:$0xff]
    %v6152 = vld [vmem:[#allocation10 + $0x184] sm:$0xf]
    %v6153 = vld [vmem:[#allocation10 + $0x188] sm:$0xff]
    %v6154 = vld [vmem:[#allocation10 + $0x190] sm:$0xff]
    %v6155 = vld [vmem:[#allocation10 + $0x198] sm:$0xff]
    %v6156 = vld [vmem:[#allocation10 + $0x1a0] sm:$0xf]
    %v6157 = vld [vmem:[#allocation10 + $0x1a4] sm:$0xff]
    %v6158 = vld [vmem:[#allocation10 + $0x1ac] sm:$0xff]
    %v6159 = vld [vmem:[#allocation10 + $0x1b4] sm:$0xff]
    %v6160 = vld [vmem:[#allocation10 + $0x1bc] sm:$0xf]
    %v6161 = vld [vmem:[#allocation10 + $0x1c0] sm:$0xff]
    %v6162 = vld [vmem:[#allocation10 + $0x1c8] sm:$0xff]
    %v6163 = vld [vmem:[#allocation10 + $0x1d0] sm:$0xff]
    %v6164 = vld [vmem:[#allocation10 + $0x1d8] sm:$0xf]
    %v6165 = vld [vmem:[#allocation10 + $0x1dc] sm:$0xff]
    %v6166 = vld [vmem:[#allocation10 + $0x1e4] sm:$0xff]
    %v6167 = vld [vmem:[#allocation10 + $0x1ec] sm:$0xff]
    %v6168 = vld [vmem:[#allocation10 + $0x1f4] sm:$0xf]
    %v6169 = vld [vmem:[#allocation10 + $0x1f8] sm:$0xff]
    %v6170 = vld [vmem:[#allocation10 + $0x200] sm:$0xff]
    %v6171 = vld [vmem:[#allocation10 + $0x208] sm:$0xff]
    %v6172 = vld [vmem:[#allocation10 + $0x210] sm:$0xf]
    %v6173 = vld [vmem:[#allocation10 + $0x214] sm:$0xff]
    %v6174 = vld [vmem:[#allocation10 + $0x21c] sm:$0xff]
    %v6175 = vld [vmem:[#allocation10 + $0x224] sm:$0xff]
    %v6176 = vld [vmem:[#allocation10 + $0x22c] sm:$0xf]
    %v6177 = vld [vmem:[#allocation10 + $0x230] sm:$0xff]
    %v6178 = vld [vmem:[#allocation10 + $0x238] sm:$0xff]
    %v6179 = vld [vmem:[#allocation10 + $0x240] sm:$0xff]
    %v6180 = vld [vmem:[#allocation10 + $0x248] sm:$0xf]
    %v6181 = vld [vmem:[#allocation10 + $0x24c] sm:$0xff]
    %v6182 = vld [vmem:[#allocation10 + $0x254] sm:$0xff]
    %v6183 = vld [vmem:[#allocation10 + $0x25c] sm:$0xff]
    %v6184 = vld [vmem:[#allocation10 + $0x264] sm:$0xf]
    %v6185 = vld [vmem:[#allocation10 + $0x268] sm:$0xff]
    %v6186 = vld [vmem:[#allocation10 + $0x270] sm:$0xff]
    %v6187 = vld [vmem:[#allocation10 + $0x278] sm:$0xff]
    %v6188 = vld [vmem:[#allocation10 + $0x280] sm:$0xf]
    %v6189 = vld [vmem:[#allocation10 + $0x284] sm:$0xff]
    %v6190 = vld [vmem:[#allocation10 + $0x28c] sm:$0xff]
    %v6191 = vld [vmem:[#allocation10 + $0x294] sm:$0xff]
    %v6192 = vld [vmem:[#allocation10 + $0x29c] sm:$0xf]
    %v6193 = vld [vmem:[#allocation10 + $0x2a0] sm:$0xff]
    %v6194 = vld [vmem:[#allocation10 + $0x2a8] sm:$0xff]
    %v6195 = vld [vmem:[#allocation10 + $0x2b0] sm:$0xff]
    %v6196 = vld [vmem:[#allocation10 + $0x2b8] sm:$0xf]
    %v6197 = vld [vmem:[#allocation10 + $0x2bc] sm:$0xff]
    %v6198 = vld [vmem:[#allocation10 + $0x2c4] sm:$0xff]
    %v6199 = vld [vmem:[#allocation10 + $0x2cc] sm:$0xff]
    %v6200 = vld [vmem:[#allocation10 + $0x2d4] sm:$0xf]
    %v6201 = vld [vmem:[#allocation10 + $0x2d8] sm:$0xff]
    %v6202 = vld [vmem:[#allocation10 + $0x2e0] sm:$0xff]
    %v6203 = vld [vmem:[#allocation10 + $0x2e8] sm:$0xff]
    %v6204 = vld [vmem:[#allocation10 + $0x2f0] sm:$0xf]
    %v6205 = vld [vmem:[#allocation10 + $0x2f4] sm:$0xff]
    %v6206 = vld [vmem:[#allocation10 + $0x2fc] sm:$0xff]
    %v6207 = vld [vmem:[#allocation10 + $0x304] sm:$0xff]
    %v6208 = vld [vmem:[#allocation10 + $0x30c] sm:$0xf]
    %v6209 = vld [vmem:[#allocation10 + $0x310] sm:$0xff]
    %v6210 = vld [vmem:[#allocation10 + $0x318] sm:$0xff]
    %v6211 = vld [vmem:[#allocation10 + $0x320] sm:$0xff]
    %v6212 = vld [vmem:[#allocation10 + $0x328] sm:$0xf]
    %v6213 = vld [vmem:[#allocation10 + $0x32c] sm:$0xff]
    %v6214 = vld [vmem:[#allocation10 + $0x334] sm:$0xff]
    %v6215 = vld [vmem:[#allocation10 + $0x33c] sm:$0xff]
    %v6216 = vld [vmem:[#allocation10 + $0x344] sm:$0xf]
    %v6217 = vld [vmem:[#allocation10 + $0x348] sm:$0xff]
    %v6218 = vld [vmem:[#allocation10 + $0x350] sm:$0xff]
    %v6219 = vld [vmem:[#allocation10 + $0x358] sm:$0xff]
    %v6220 = vld [vmem:[#allocation10 + $0x360] sm:$0xf]
    %v6221 = vld [vmem:[#allocation10 + $0x364] sm:$0xff]
    %v6222 = vld [vmem:[#allocation10 + $0x36c] sm:$0xff]
    %v6223 = vld [vmem:[#allocation10 + $0x374] sm:$0xff]
    %v6224 = vld [vmem:[#allocation10 + $0x37c] sm:$0xf]
    %v6353 = vunpack.c.l.b16 %v6097
    %v6354 = vunpack.c.h.b16 %v6097
    %v6355 = vunpack.c.l.b16 %v6098
    %v6356 = vunpack.c.h.b16 %v6098
    %v6357 = vunpack.c.l.b16 %v6099
    %v6358 = vunpack.c.h.b16 %v6099
    %v6359 = vunpack.c.l.b16 %v6100
    %v6360 = vunpack.c.l.b16 %v6101
    %v6361 = vunpack.c.h.b16 %v6101
    %v6362 = vunpack.c.l.b16 %v6102
    %v6363 = vunpack.c.h.b16 %v6102
    %v6364 = vunpack.c.l.b16 %v6103
    %v6365 = vunpack.c.h.b16 %v6103
    %v6366 = vunpack.c.l.b16 %v6104
    %v6367 = vunpack.c.l.b16 %v6105
    %v6368 = vunpack.c.h.b16 %v6105
    %v6369 = vunpack.c.l.b16 %v6106
    %v6370 = vunpack.c.h.b16 %v6106
    %v6371 = vunpack.c.l.b16 %v6107
    %v6372 = vunpack.c.h.b16 %v6107
    %v6373 = vunpack.c.l.b16 %v6108
    %v6374 = vunpack.c.l.b16 %v6109
    %v6375 = vunpack.c.h.b16 %v6109
    %v6376 = vunpack.c.l.b16 %v6110
    %v6377 = vunpack.c.h.b16 %v6110
    %v6378 = vunpack.c.l.b16 %v6111
    %v6379 = vunpack.c.h.b16 %v6111
    %v6380 = vunpack.c.l.b16 %v6112
    %v6381 = vunpack.c.l.b16 %v6113
    %v6382 = vunpack.c.h.b16 %v6113
    %v6383 = vunpack.c.l.b16 %v6114
    %v6384 = vunpack.c.h.b16 %v6114
    %v6385 = vunpack.c.l.b16 %v6115
    %v6386 = vunpack.c.h.b16 %v6115
    %v6387 = vunpack.c.l.b16 %v6116
    %v6388 = vunpack.c.l.b16 %v6117
    %v6389 = vunpack.c.h.b16 %v6117
    %v6390 = vunpack.c.l.b16 %v6118
    %v6391 = vunpack.c.h.b16 %v6118
    %v6392 = vunpack.c.l.b16 %v6119
    %v6393 = vunpack.c.h.b16 %v6119
    %v6394 = vunpack.c.l.b16 %v6120
    %v6395 = vunpack.c.l.b16 %v6121
    %v6396 = vunpack.c.h.b16 %v6121
    %v6397 = vunpack.c.l.b16 %v6122
    %v6398 = vunpack.c.h.b16 %v6122
    %v6399 = vunpack.c.l.b16 %v6123
    %v6400 = vunpack.c.h.b16 %v6123
    %v6401 = vunpack.c.l.b16 %v6124
    %v6402 = vunpack.c.l.b16 %v6125
    %v6403 = vunpack.c.h.b16 %v6125
    %v6404 = vunpack.c.l.b16 %v6126
    %v6405 = vunpack.c.h.b16 %v6126
    %v6406 = vunpack.c.l.b16 %v6127
    %v6407 = vunpack.c.h.b16 %v6127
    %v6408 = vunpack.c.l.b16 %v6128
    %v6409 = vunpack.c.l.b16 %v6129
    %v6410 = vunpack.c.h.b16 %v6129
    %v6411 = vunpack.c.l.b16 %v6130
    %v6412 = vunpack.c.h.b16 %v6130
    %v6413 = vunpack.c.l.b16 %v6131
    %v6414 = vunpack.c.h.b16 %v6131
    %v6415 = vunpack.c.l.b16 %v6132
    %v6416 = vunpack.c.l.b16 %v6133
    %v6417 = vunpack.c.h.b16 %v6133
    %v6418 = vunpack.c.l.b16 %v6134
    %v6419 = vunpack.c.h.b16 %v6134
    %v6420 = vunpack.c.l.b16 %v6135
    %v6421 = vunpack.c.h.b16 %v6135
    %v6422 = vunpack.c.l.b16 %v6136
    %v6423 = vunpack.c.l.b16 %v6137
    %v6424 = vunpack.c.h.b16 %v6137
    %v6425 = vunpack.c.l.b16 %v6138
    %v6426 = vunpack.c.h.b16 %v6138
    %v6427 = vunpack.c.l.b16 %v6139
    %v6428 = vunpack.c.h.b16 %v6139
    %v6429 = vunpack.c.l.b16 %v6140
    %v6430 = vunpack.c.l.b16 %v6141
    %v6431 = vunpack.c.h.b16 %v6141
    %v6432 = vunpack.c.l.b16 %v6142
    %v6433 = vunpack.c.h.b16 %v6142
    %v6434 = vunpack.c.l.b16 %v6143
    %v6435 = vunpack.c.h.b16 %v6143
    %v6436 = vunpack.c.l.b16 %v6144
    %v6437 = vunpack.c.l.b16 %v6145
    %v6438 = vunpack.c.h.b16 %v6145
    %v6439 = vunpack.c.l.b16 %v6146
    %v6440 = vunpack.c.h.b16 %v6146
    %v6441 = vunpack.c.l.b16 %v6147
    %v6442 = vunpack.c.h.b16 %v6147
    %v6443 = vunpack.c.l.b16 %v6148
    %v6444 = vunpack.c.l.b16 %v6149
    %v6445 = vunpack.c.h.b16 %v6149
    %v6446 = vunpack.c.l.b16 %v6150
    %v6447 = vunpack.c.h.b16 %v6150
    %v6448 = vunpack.c.l.b16 %v6151
    %v6449 = vunpack.c.h.b16 %v6151
    %v6450 = vunpack.c.l.b16 %v6152
    %v6451 = vunpack.c.l.b16 %v6153
    %v6452 = vunpack.c.h.b16 %v6153
    %v6453 = vunpack.c.l.b16 %v6154
    %v6454 = vunpack.c.h.b16 %v6154
    %v6455 = vunpack.c.l.b16 %v6155
    %v6456 = vunpack.c.h.b16 %v6155
    %v6457 = vunpack.c.l.b16 %v6156
    %v6458 = vunpack.c.l.b16 %v6157
    %v6459 = vunpack.c.h.b16 %v6157
    %v6460 = vunpack.c.l.b16 %v6158
    %v6461 = vunpack.c.h.b16 %v6158
    %v6462 = vunpack.c.l.b16 %v6159
    %v6463 = vunpack.c.h.b16 %v6159
    %v6464 = vunpack.c.l.b16 %v6160
    %v6465 = vunpack.c.l.b16 %v6161
    %v6466 = vunpack.c.h.b16 %v6161
    %v6467 = vunpack.c.l.b16 %v6162
    %v6468 = vunpack.c.h.b16 %v6162
    %v6469 = vunpack.c.l.b16 %v6163
    %v6470 = vunpack.c.h.b16 %v6163
    %v6471 = vunpack.c.l.b16 %v6164
    %v6472 = vunpack.c.l.b16 %v6165
    %v6473 = vunpack.c.h.b16 %v6165
    %v6474 = vunpack.c.l.b16 %v6166
    %v6475 = vunpack.c.h.b16 %v6166
    %v6476 = vunpack.c.l.b16 %v6167
    %v6477 = vunpack.c.h.b16 %v6167
    %v6478 = vunpack.c.l.b16 %v6168
    %v6479 = vunpack.c.l.b16 %v6169
    %v6480 = vunpack.c.h.b16 %v6169
    %v6481 = vunpack.c.l.b16 %v6170
    %v6482 = vunpack.c.h.b16 %v6170
    %v6483 = vunpack.c.l.b16 %v6171
    %v6484 = vunpack.c.h.b16 %v6171
    %v6485 = vunpack.c.l.b16 %v6172
    %v6486 = vunpack.c.l.b16 %v6173
    %v6487 = vunpack.c.h.b16 %v6173
    %v6488 = vunpack.c.l.b16 %v6174
    %v6489 = vunpack.c.h.b16 %v6174
    %v6490 = vunpack.c.l.b16 %v6175
    %v6491 = vunpack.c.h.b16 %v6175
    %v6492 = vunpack.c.l.b16 %v6176
    %v6493 = vunpack.c.l.b16 %v6177
    %v6494 = vunpack.c.h.b16 %v6177
    %v6495 = vunpack.c.l.b16 %v6178
    %v6496 = vunpack.c.h.b16 %v6178
    %v6497 = vunpack.c.l.b16 %v6179
    %v6498 = vunpack.c.h.b16 %v6179
    %v6499 = vunpack.c.l.b16 %v6180
    %v6500 = vunpack.c.l.b16 %v6181
    %v6501 = vunpack.c.h.b16 %v6181
    %v6502 = vunpack.c.l.b16 %v6182
    %v6503 = vunpack.c.h.b16 %v6182
    %v6504 = vunpack.c.l.b16 %v6183
    %v6505 = vunpack.c.h.b16 %v6183
    %v6506 = vunpack.c.l.b16 %v6184
    %v6507 = vunpack.c.l.b16 %v6185
    %v6508 = vunpack.c.h.b16 %v6185
    %v6509 = vunpack.c.l.b16 %v6186
    %v6510 = vunpack.c.h.b16 %v6186
    %v6511 = vunpack.c.l.b16 %v6187
    %v6512 = vunpack.c.h.b16 %v6187
    %v6513 = vunpack.c.l.b16 %v6188
    %v6514 = vunpack.c.l.b16 %v6189
    %v6515 = vunpack.c.h.b16 %v6189
    %v6516 = vunpack.c.l.b16 %v6190
    %v6517 = vunpack.c.h.b16 %v6190
    %v6518 = vunpack.c.l.b16 %v6191
    %v6519 = vunpack.c.h.b16 %v6191
    %v6520 = vunpack.c.l.b16 %v6192
    %v6521 = vunpack.c.l.b16 %v6193
    %v6522 = vunpack.c.h.b16 %v6193
    %v6523 = vunpack.c.l.b16 %v6194
    %v6524 = vunpack.c.h.b16 %v6194
    %v6525 = vunpack.c.l.b16 %v6195
    %v6526 = vunpack.c.h.b16 %v6195
    %v6527 = vunpack.c.l.b16 %v6196
    %v6528 = vunpack.c.l.b16 %v6197
    %v6529 = vunpack.c.h.b16 %v6197
    %v6530 = vunpack.c.l.b16 %v6198
    %v6531 = vunpack.c.h.b16 %v6198
    %v6532 = vunpack.c.l.b16 %v6199
    %v6533 = vunpack.c.h.b16 %v6199
    %v6534 = vunpack.c.l.b16 %v6200
    %v6535 = vunpack.c.l.b16 %v6201
    %v6536 = vunpack.c.h.b16 %v6201
    %v6537 = vunpack.c.l.b16 %v6202
    %v6538 = vunpack.c.h.b16 %v6202
    %v6539 = vunpack.c.l.b16 %v6203
    %v6540 = vunpack.c.h.b16 %v6203
    %v6541 = vunpack.c.l.b16 %v6204
    %v6542 = vunpack.c.l.b16 %v6205
    %v6543 = vunpack.c.h.b16 %v6205
    %v6544 = vunpack.c.l.b16 %v6206
    %v6545 = vunpack.c.h.b16 %v6206
    %v6546 = vunpack.c.l.b16 %v6207
    %v6547 = vunpack.c.h.b16 %v6207
    %v6548 = vunpack.c.l.b16 %v6208
    %v6549 = vunpack.c.l.b16 %v6209
    %v6550 = vunpack.c.h.b16 %v6209
    %v6551 = vunpack.c.l.b16 %v6210
    %v6552 = vunpack.c.h.b16 %v6210
    %v6553 = vunpack.c.l.b16 %v6211
    %v6554 = vunpack.c.h.b16 %v6211
    %v6555 = vunpack.c.l.b16 %v6212
    %v6556 = vunpack.c.l.b16 %v6213
    %v6557 = vunpack.c.h.b16 %v6213
    %v6558 = vunpack.c.l.b16 %v6214
    %v6559 = vunpack.c.h.b16 %v6214
    %v6560 = vunpack.c.l.b16 %v6215
    %v6561 = vunpack.c.h.b16 %v6215
    %v6562 = vunpack.c.l.b16 %v6216
    %v6563 = vunpack.c.l.b16 %v6217
    %v6564 = vunpack.c.h.b16 %v6217
    %v6565 = vunpack.c.l.b16 %v6218
    %v6566 = vunpack.c.h.b16 %v6218
    %v6567 = vunpack.c.l.b16 %v6219
    %v6568 = vunpack.c.h.b16 %v6219
    %v6569 = vunpack.c.l.b16 %v6220
    %v6570 = vunpack.c.l.b16 %v6221
    %v6571 = vunpack.c.h.b16 %v6221
    %v6572 = vunpack.c.l.b16 %v6222
    %v6573 = vunpack.c.h.b16 %v6222
    %v6574 = vunpack.c.l.b16 %v6223
    %v6575 = vunpack.c.h.b16 %v6223
    %v6576 = vunpack.c.l.b16 %v6224
    %v6577 = vpack.c.b16 %v6360, %v6353
    %v6578 = vpack.c.b16 %v6361, %v6354
    %v6579 = vpack.c.b16 %v6362, %v6355
    %v6580 = vpack.c.b16 %v6363, %v6356
    %v6581 = vpack.c.b16 %v6364, %v6357
    %v6582 = vpack.c.b16 %v6365, %v6358
    %v6583 = vpack.c.b16 %v6366, %v6359
    %v6584 = vpack.c.b16 %v6374, %v6367
    %v6585 = vpack.c.b16 %v6375, %v6368
    %v6586 = vpack.c.b16 %v6376, %v6369
    %v6587 = vpack.c.b16 %v6377, %v6370
    %v6588 = vpack.c.b16 %v6378, %v6371
    %v6589 = vpack.c.b16 %v6379, %v6372
    %v6590 = vpack.c.b16 %v6380, %v6373
    %v6591 = vpack.c.b16 %v6388, %v6381
    %v6592 = vpack.c.b16 %v6389, %v6382
    %v6593 = vpack.c.b16 %v6390, %v6383
    %v6594 = vpack.c.b16 %v6391, %v6384
    %v6595 = vpack.c.b16 %v6392, %v6385
    %v6596 = vpack.c.b16 %v6393, %v6386
    %v6597 = vpack.c.b16 %v6394, %v6387
    %v6598 = vpack.c.b16 %v6402, %v6395
    %v6599 = vpack.c.b16 %v6403, %v6396
    %v6600 = vpack.c.b16 %v6404, %v6397
    %v6601 = vpack.c.b16 %v6405, %v6398
    %v6602 = vpack.c.b16 %v6406, %v6399
    %v6603 = vpack.c.b16 %v6407, %v6400
    %v6604 = vpack.c.b16 %v6408, %v6401
    %v6605 = vpack.c.b16 %v6416, %v6409
    %v6606 = vpack.c.b16 %v6417, %v6410
    %v6607 = vpack.c.b16 %v6418, %v6411
    %v6608 = vpack.c.b16 %v6419, %v6412
    %v6609 = vpack.c.b16 %v6420, %v6413
    %v6610 = vpack.c.b16 %v6421, %v6414
    %v6611 = vpack.c.b16 %v6422, %v6415
    %v6612 = vpack.c.b16 %v6430, %v6423
    %v6613 = vpack.c.b16 %v6431, %v6424
    %v6614 = vpack.c.b16 %v6432, %v6425
    %v6615 = vpack.c.b16 %v6433, %v6426
    %v6616 = vpack.c.b16 %v6434, %v6427
    %v6617 = vpack.c.b16 %v6435, %v6428
    %v6618 = vpack.c.b16 %v6436, %v6429
    %v6619 = vpack.c.b16 %v6444, %v6437
    %v6620 = vpack.c.b16 %v6445, %v6438
    %v6621 = vpack.c.b16 %v6446, %v6439
    %v6622 = vpack.c.b16 %v6447, %v6440
    %v6623 = vpack.c.b16 %v6448, %v6441
    %v6624 = vpack.c.b16 %v6449, %v6442
    %v6625 = vpack.c.b16 %v6450, %v6443
    %v6626 = vpack.c.b16 %v6458, %v6451
    %v6627 = vpack.c.b16 %v6459, %v6452
    %v6628 = vpack.c.b16 %v6460, %v6453
    %v6629 = vpack.c.b16 %v6461, %v6454
    %v6630 = vpack.c.b16 %v6462, %v6455
    %v6631 = vpack.c.b16 %v6463, %v6456
    %v6632 = vpack.c.b16 %v6464, %v6457
    %v6633 = vpack.c.b16 %v6472, %v6465
    %v6634 = vpack.c.b16 %v6473, %v6466
    %v6635 = vpack.c.b16 %v6474, %v6467
    %v6636 = vpack.c.b16 %v6475, %v6468
    %v6637 = vpack.c.b16 %v6476, %v6469
    %v6638 = vpack.c.b16 %v6477, %v6470
    %v6639 = vpack.c.b16 %v6478, %v6471
    %v6640 = vpack.c.b16 %v6486, %v6479
    %v6641 = vpack.c.b16 %v6487, %v6480
    %v6642 = vpack.c.b16 %v6488, %v6481
    %v6643 = vpack.c.b16 %v6489, %v6482
    %v6644 = vpack.c.b16 %v6490, %v6483
    %v6645 = vpack.c.b16 %v6491, %v6484
    %v6646 = vpack.c.b16 %v6492, %v6485
    %v6647 = vpack.c.b16 %v6500, %v6493
    %v6648 = vpack.c.b16 %v6501, %v6494
    %v6649 = vpack.c.b16 %v6502, %v6495
    %v6650 = vpack.c.b16 %v6503, %v6496
    %v6651 = vpack.c.b16 %v6504, %v6497
    %v6652 = vpack.c.b16 %v6505, %v6498
    %v6653 = vpack.c.b16 %v6506, %v6499
    %v6654 = vpack.c.b16 %v6514, %v6507
    %v6655 = vpack.c.b16 %v6515, %v6508
    %v6656 = vpack.c.b16 %v6516, %v6509
    %v6657 = vpack.c.b16 %v6517, %v6510
    %v6658 = vpack.c.b16 %v6518, %v6511
    %v6659 = vpack.c.b16 %v6519, %v6512
    %v6660 = vpack.c.b16 %v6520, %v6513
    %v6661 = vpack.c.b16 %v6528, %v6521
    %v6662 = vpack.c.b16 %v6529, %v6522
    %v6663 = vpack.c.b16 %v6530, %v6523
    %v6664 = vpack.c.b16 %v6531, %v6524
    %v6665 = vpack.c.b16 %v6532, %v6525
    %v6666 = vpack.c.b16 %v6533, %v6526
    %v6667 = vpack.c.b16 %v6534, %v6527
    %v6668 = vpack.c.b16 %v6542, %v6535
    %v6669 = vpack.c.b16 %v6543, %v6536
    %v6670 = vpack.c.b16 %v6544, %v6537
    %v6671 = vpack.c.b16 %v6545, %v6538
    %v6672 = vpack.c.b16 %v6546, %v6539
    %v6673 = vpack.c.b16 %v6547, %v6540
    %v6674 = vpack.c.b16 %v6548, %v6541
    %v6675 = vpack.c.b16 %v6556, %v6549
    %v6676 = vpack.c.b16 %v6557, %v6550
    %v6677 = vpack.c.b16 %v6558, %v6551
    %v6678 = vpack.c.b16 %v6559, %v6552
    %v6679 = vpack.c.b16 %v6560, %v6553
    %v6680 = vpack.c.b16 %v6561, %v6554
    %v6681 = vpack.c.b16 %v6562, %v6555
    %v6682 = vpack.c.b16 %v6570, %v6563
    %v6683 = vpack.c.b16 %v6571, %v6564
    %v6684 = vpack.c.b16 %v6572, %v6565
    %v6685 = vpack.c.b16 %v6573, %v6566
    %v6686 = vpack.c.b16 %v6574, %v6567
    %v6687 = vpack.c.b16 %v6575, %v6568
    %v6688 = vpack.c.b16 %v6576, %v6569
    %6801 = vmatprep.subr.bf16.mxu0 %v6578
    %6802 = vmatpush1.bf16.msra.mxu0 %v6577
    %6803 = vmatprep.subr.bf16.mxu0 %v6585
    %6804 = vmatpush1.bf16.msra.mxu0 %v6584
    %6805 = vmatprep.subr.bf16.mxu0 %v6592
    %6806 = vmatpush1.bf16.msra.mxu0 %v6591
    %6807 = vmatprep.subr.bf16.mxu0 %v6599
    %6808 = vmatpush1.bf16.msra.mxu0 %v6598
    %6809 = vmatprep.subr.bf16.mxu0 %v6606
    %6810 = vmatpush1.bf16.msra.mxu0 %v6605
    %6811 = vmatprep.subr.bf16.mxu0 %v6613
    %6812 = vmatpush1.bf16.msra.mxu0 %v6612
    %6813 = vmatprep.subr.bf16.mxu0 %v6620
    %6814 = vmatpush1.bf16.msra.mxu0 %v6619
    %6815 = vmatprep.subr.bf16.mxu0 %v6627
    %6816 = vmatpush1.bf16.msra.mxu0 %v6626
    %6817 = vmatprep.subr.bf16.mxu0 %v6634
    %6818 = vmatpush1.bf16.msra.mxu0 %v6633
    %6819 = vmatprep.subr.bf16.mxu0 %v6641
    %6820 = vmatpush1.bf16.msra.mxu0 %v6640
    %6821 = vmatprep.subr.bf16.mxu0 %v6648
    %6822 = vmatpush1.bf16.msra.mxu0 %v6647
    %6823 = vmatprep.subr.bf16.mxu0 %v6655
    %6824 = vmatpush1.bf16.msra.mxu0 %v6654
    %6825 = vmatprep.subr.bf16.mxu0 %v6662
    %6826 = vmatpush1.bf16.msra.mxu0 %v6661
    %6827 = vmatprep.subr.bf16.mxu0 %v6669
    %6828 = vmatpush1.bf16.msra.mxu0 %v6668
    %6829 = vmatprep.subr.bf16.mxu0 %v6676
    %6830 = vmatpush1.bf16.msra.mxu0 %v6675
    %6831 = vmatprep.subr.bf16.mxu0 %v6683
    %6832 = vmatpush1.bf16.msra.mxu0 %v6682
    %6833 = vmatprep.mubr.bf16.mxu0 %v5399
    %6834 = vmatmul.mubr.bf16.gmra.mrb[0].mxu0 %v5398
    %v6835 = vpop.f32.mrb[0].mxu0
    %v6836 = vadd.f32 0.0, %v6835
    %v6837 = vpop.f32.mrb[0].mxu0
    %v6838 = vadd.f32 0.0, %v6837
    %v6839 = vpop.f32.mrb[0].mxu0
    %v6840 = vpop.f32.mrb[0].mxu0
    %6841 = vdwg.mxu0
    %6842 = vmatprep.subr.bf16.mxu0 %v6580
    %6843 = vmatpush1.bf16.msra.mxu0 %v6579
    %6844 = vmatprep.subr.bf16.mxu0 %v6587
    %6845 = vmatpush1.bf16.msra.mxu0 %v6586
    %6846 = vmatprep.subr.bf16.mxu0 %v6594
    %6847 = vmatpush1.bf16.msra.mxu0 %v6593
    %6848 = vmatprep.subr.bf16.mxu0 %v6601
    %6849 = vmatpush1.bf16.msra.mxu0 %v6600
    %6850 = vmatprep.subr.bf16.mxu0 %v6608
    %6851 = vmatpush1.bf16.msra.mxu0 %v6607
    %6852 = vmatprep.subr.bf16.mxu0 %v6615
    %6853 = vmatpush1.bf16.msra.mxu0 %v6614
    %6854 = vmatprep.subr.bf16.mxu0 %v6622
    %6855 = vmatpush1.bf16.msra.mxu0 %v6621
    %6856 = vmatprep.subr.bf16.mxu0 %v6629
    %6857 = vmatpush1.bf16.msra.mxu0 %v6628
    %6858 = vmatprep.subr.bf16.mxu0 %v6636
    %6859 = vmatpush1.bf16.msra.mxu0 %v6635
    %6860 = vmatprep.subr.bf16.mxu0 %v6643
    %6861 = vmatpush1.bf16.msra.mxu0 %v6642
    %6862 = vmatprep.subr.bf16.mxu0 %v6650
    %6863 = vmatpush1.bf16.msra.mxu0 %v6649
    %6864 = vmatprep.subr.bf16.mxu0 %v6657
    %6865 = vmatpush1.bf16.msra.mxu0 %v6656
    %6866 = vmatprep.subr.bf16.mxu0 %v6664
    %6867 = vmatpush1.bf16.msra.mxu0 %v6663
    %6868 = vmatprep.subr.bf16.mxu0 %v6671
    %6869 = vmatpush1.bf16.msra.mxu0 %v6670
    %6870 = vmatprep.subr.bf16.mxu0 %v6678
    %6871 = vmatpush1.bf16.msra.mxu0 %v6677
    %6872 = vmatprep.subr.bf16.mxu0 %v6685
    %6873 = vmatpush1.bf16.msra.mxu0 %v6684
    %6874 = vmatprep.mubr.bf16.mxu0 %v5399
    %6875 = vmatmul.mubr.bf16.gmra.mrb[0].mxu0 %v5398
    %v6876 = vpop.f32.mrb[0].mxu0
    %v6877 = vadd.f32 0.0, %v6876
    %v6878 = vpop.f32.mrb[0].mxu0
    %v6879 = vadd.f32 0.0, %v6878
    %v6880 = vpop.f32.mrb[0].mxu0
    %v6881 = vpop.f32.mrb[0].mxu0
    %6882 = vdwg.mxu0
    %6883 = vmatprep.subr.bf16.mxu0 %v6582
    %6884 = vmatpush1.bf16.msra.mxu0 %v6581
    %6885 = vmatprep.subr.bf16.mxu0 %v6589
    %6886 = vmatpush1.bf16.msra.mxu0 %v6588
    %6887 = vmatprep.subr.bf16.mxu0 %v6596
    %6888 = vmatpush1.bf16.msra.mxu0 %v6595
    %6889 = vmatprep.subr.bf16.mxu0 %v6603
    %6890 = vmatpush1.bf16.msra.mxu0 %v6602
    %6891 = vmatprep.subr.bf16.mxu0 %v6610
    %6892 = vmatpush1.bf16.msra.mxu0 %v6609
    %6893 = vmatprep.subr.bf16.mxu0 %v6617
    %6894 = vmatpush1.bf16.msra.mxu0 %v6616
    %6895 = vmatprep.subr.bf16.mxu0 %v6624
    %6896 = vmatpush1.bf16.msra.mxu0 %v6623
    %6897 = vmatprep.subr.bf16.mxu0 %v6631
    %6898 = vmatpush1.bf16.msra.mxu0 %v6630
    %6899 = vmatprep.subr.bf16.mxu0 %v6638
    %6900 = vmatpush1.bf16.msra.mxu0 %v6637
    %6901 = vmatprep.subr.bf16.mxu0 %v6645
    %6902 = vmatpush1.bf16.msra.mxu0 %v6644
    %6903 = vmatprep.subr.bf16.mxu0 %v6652
    %6904 = vmatpush1.bf16.msra.mxu0 %v6651
    %6905 = vmatprep.subr.bf16.mxu0 %v6659
    %6906 = vmatpush1.bf16.msra.mxu0 %v6658
    %6907 = vmatprep.subr.bf16.mxu0 %v6666
    %6908 = vmatpush1.bf16.msra.mxu0 %v6665
    %6909 = vmatprep.subr.bf16.mxu0 %v6673
    %6910 = vmatpush1.bf16.msra.mxu0 %v6672
    %6911 = vmatprep.subr.bf16.mxu0 %v6680
    %6912 = vmatpush1.bf16.msra.mxu0 %v6679
    %6913 = vmatprep.subr.bf16.mxu0 %v6687
    %6914 = vmatpush1.bf16.msra.mxu0 %v6686
    %6915 = vmatprep.mubr.bf16.mxu0 %v5399
    %6916 = vmatmul.mubr.bf16.gmra.mrb[0].mxu0 %v5398
    %v6917 = vpop.f32.mrb[0].mxu0
    %v6918 = vadd.f32 0.0, %v6917
    %v6919 = vpop.f32.mrb[0].mxu0
    %v6920 = vadd.f32 0.0, %v6919
    %v6921 = vpop.f32.mrb[0].mxu0
    %v6922 = vpop.f32.mrb[0].mxu0
    %6923 = vdwg.mxu0
    %6924 = vmatprep.subr.bf16.mxu0 0
    %6925 = vmatpush1.bf16.msra.mxu0 %v6583
    %6926 = vmatprep.subr.bf16.mxu0 0
    %6927 = vmatpush1.bf16.msra.mxu0 %v6590
    %6928 = vmatprep.subr.bf16.mxu0 0
    %6929 = vmatpush1.bf16.msra.mxu0 %v6597
    %6930 = vmatprep.subr.bf16.mxu0 0
    %6931 = vmatpush1.bf16.msra.mxu0 %v6604
    %6932 = vmatprep.subr.bf16.mxu0 0
    %6933 = vmatpush1.bf16.msra.mxu0 %v6611
    %6934 = vmatprep.subr.bf16.mxu0 0
    %6935 = vmatpush1.bf16.msra.mxu0 %v6618
    %6936 = vmatprep.subr.bf16.mxu0 0
    %6937 = vmatpush1.bf16.msra.mxu0 %v6625
    %6938 = vmatprep.subr.bf16.mxu0 0
    %6939 = vmatpush1.bf16.msra.mxu0 %v6632
    %6940 = vmatprep.subr.bf16.mxu0 0
    %6941 = vmatpush1.bf16.msra.mxu0 %v6639
    %6942 = vmatprep.subr.bf16.mxu0 0
    %6943 = vmatpush1.bf16.msra.mxu0 %v6646
    %6944 = vmatprep.subr.bf16.mxu0 0
    %6945 = vmatpush1.bf16.msra.mxu0 %v6653
    %6946 = vmatprep.subr.bf16.mxu0 0
    %6947 = vmatpush1.bf16.msra.mxu0 %v6660
    %6948 = vmatprep.subr.bf16.mxu0 0
    %6949 = vmatpush1.bf16.msra.mxu0 %v6667
    %6950 = vmatprep.subr.bf16.mxu0 0
    %6951 = vmatpush1.bf16.msra.mxu0 %v6674
    %6952 = vmatprep.subr.bf16.mxu0 0
    %6953 = vmatpush1.bf16.msra.mxu0 %v6681
    %6954 = vmatprep.subr.bf16.mxu0 0
    %6955 = vmatpush1.bf16.msra.mxu0 %v6688
    %6956 = vmatprep.mubr.bf16.mxu0 %v5399
    %6957 = vmatmul.mubr.bf16.gmra.mrb[0].mxu0 %v5398
    %v6958 = vpop.f32.mrb[0].mxu0
    %v6959 = vadd.f32 0.0, %v6958
    %v6960 = vpop.f32.mrb[0].mxu0
    %v6961 = vpop.f32.mrb[0].mxu0
    %v6962 = vpop.f32.mrb[0].mxu0
    %6963 = vdwg.mxu0
    %v6964 = vadd.f32 %v6051, %v6836
    %v6965 = vadd.f32 %v6964, %v138
    %v6966 = vsel %vm1450, %v6965, -inf
    %6967 = vmax.xlane.f32.xlu0 %v6966
    %v6968 = vpop.xlane.xlu0 %6967
    %v6969 = vsub.f32 %v6965, %v6968
    %v6970 = vmul.f32 %v6969, 1.442695
    %v6971 = vpow.pop %v6970
    %v6972 = vsel %vm1450, %v6971, 0.0
    %6973 = vadd.xlane.f32.xlu0 %v6972
    %v6974 = vpop.xlane.xlu0 %6973
    %v6975 = vrcp.pop %v6974
    %v6976 = vmul.f32 %v6971, %v6975
    %s6977 = scalar_lea.vmem [#allocation19], 2
    %6978 = vst [vmem:[%s6977] sm:$0x1] %v6976
    %v6979 = vpack.c.bf16 %v6976, %v6976
    %v6980 = vld [vmem:[#allocation7] sm:$0xff]
    %v6981 = vld [vmem:[#allocation7 + $0x8] sm:$0xff]
    %v6982 = vld [vmem:[#allocation7 + $0x10] sm:$0xff]
    %v6983 = vld [vmem:[#allocation7 + $0x18] sm:$0xff]
    %v6984 = vld [vmem:[#allocation7 + $0x20] sm:$0xff]
    %v6985 = vld [vmem:[#allocation7 + $0x28] sm:$0xff]
    %v6986 = vld [vmem:[#allocation7 + $0x30] sm:$0xff]
    %v6987 = vld [vmem:[#allocation7 + $0x38] sm:$0xff]
    %v6988 = vld [vmem:[#allocation7 + $0x40] sm:$0xff]
    %v6989 = vld [vmem:[#allocation7 + $0x48] sm:$0xff]
    %v6990 = vld [vmem:[#allocation7 + $0x50] sm:$0xff]
    %v6991 = vld [vmem:[#allocation7 + $0x58] sm:$0xff]
    %v6992 = vld [vmem:[#allocation7 + $0x60] sm:$0xff]
    %v6993 = vld [vmem:[#allocation7 + $0x68] sm:$0xff]
    %v6994 = vld [vmem:[#allocation7 + $0x70] sm:$0xff]
    %v6995 = vld [vmem:[#allocation7 + $0x78] sm:$0xff]
    %v7012 = vunpack.c.l.b16 %v6980
    %v7013 = vunpack.c.h.b16 %v6980
    %v7014 = vunpack.c.l.b16 %v6981
    %v7015 = vunpack.c.h.b16 %v6981
    %v7016 = vunpack.c.l.b16 %v6982
    %v7017 = vunpack.c.h.b16 %v6982
    %v7018 = vunpack.c.l.b16 %v6983
    %v7019 = vunpack.c.h.b16 %v6983
    %v7020 = vunpack.c.l.b16 %v6984
    %v7021 = vunpack.c.h.b16 %v6984
    %v7022 = vunpack.c.l.b16 %v6985
    %v7023 = vunpack.c.h.b16 %v6985
    %v7024 = vunpack.c.l.b16 %v6986
    %v7025 = vunpack.c.h.b16 %v6986
    %v7026 = vunpack.c.l.b16 %v6987
    %v7027 = vunpack.c.h.b16 %v6987
    %v7028 = vunpack.c.l.b16 %v6988
    %v7029 = vunpack.c.h.b16 %v6988
    %v7030 = vunpack.c.l.b16 %v6989
    %v7031 = vunpack.c.h.b16 %v6989
    %v7032 = vunpack.c.l.b16 %v6990
    %v7033 = vunpack.c.h.b16 %v6990
    %v7034 = vunpack.c.l.b16 %v6991
    %v7035 = vunpack.c.h.b16 %v6991
    %v7036 = vunpack.c.l.b16 %v6992
    %v7037 = vunpack.c.h.b16 %v6992
    %v7038 = vunpack.c.l.b16 %v6993
    %v7039 = vunpack.c.h.b16 %v6993
    %v7040 = vunpack.c.l.b16 %v6994
    %v7041 = vunpack.c.h.b16 %v6994
    %v7042 = vunpack.c.l.b16 %v6995
    %v7043 = vunpack.c.h.b16 %v6995
    %v7044 = vpack.c.b16 %v7014, %v7012
    %v7045 = vpack.c.b16 %v7015, %v7013
    %v7046 = vpack.c.b16 %v7018, %v7016
    %v7047 = vpack.c.b16 %v7019, %v7017
    %v7048 = vpack.c.b16 %v7022, %v7020
    %v7049 = vpack.c.b16 %v7023, %v7021
    %v7050 = vpack.c.b16 %v7026, %v7024
    %v7051 = vpack.c.b16 %v7027, %v7025
    %v7052 = vpack.c.b16 %v7030, %v7028
    %v7053 = vpack.c.b16 %v7031, %v7029
    %v7054 = vpack.c.b16 %v7034, %v7032
    %v7055 = vpack.c.b16 %v7035, %v7033
    %v7056 = vpack.c.b16 %v7038, %v7036
    %v7057 = vpack.c.b16 %v7039, %v7037
    %v7058 = vpack.c.b16 %v7042, %v7040
    %v7059 = vpack.c.b16 %v7043, %v7041
    %7076 = vmatprep.subr.bf16.mxu0 %v7045
    %7077 = vmatpush1.bf16.msra.mxu0 %v7044
    %7078 = vmatprep.subr.bf16.mxu0 %v7047
    %7079 = vmatpush1.bf16.msra.mxu0 %v7046
    %7080 = vmatprep.subr.bf16.mxu0 %v7049
    %7081 = vmatpush1.bf16.msra.mxu0 %v7048
    %7082 = vmatprep.subr.bf16.mxu0 %v7051
    %7083 = vmatpush1.bf16.msra.mxu0 %v7050
    %7084 = vmatprep.subr.bf16.mxu0 %v7053
    %7085 = vmatpush1.bf16.msra.mxu0 %v7052
    %7086 = vmatprep.subr.bf16.mxu0 %v7055
    %7087 = vmatpush1.bf16.msra.mxu0 %v7054
    %7088 = vmatprep.subr.bf16.mxu0 %v7057
    %7089 = vmatpush1.bf16.msra.mxu0 %v7056
    %7090 = vmatprep.subr.bf16.mxu0 %v7059
    %7091 = vmatpush1.bf16.msra.mxu0 %v7058
    %7092 = vmatprep.subr.bf16.mxu0 0
    %7093 = vmatpush1.bf16.msra.mxu0 0
    %7094 = vmatprep.subr.bf16.mxu0 0
    %7095 = vmatpush1.bf16.msra.mxu0 0
    %7096 = vmatprep.subr.bf16.mxu0 0
    %7097 = vmatpush1.bf16.msra.mxu0 0
    %7098 = vmatprep.subr.bf16.mxu0 0
    %7099 = vmatpush1.bf16.msra.mxu0 0
    %7100 = vmatprep.subr.bf16.mxu0 0
    %7101 = vmatpush1.bf16.msra.mxu0 0
    %7102 = vmatprep.subr.bf16.mxu0 0
    %7103 = vmatpush1.bf16.msra.mxu0 0
    %7104 = vmatprep.subr.bf16.mxu0 0
    %7105 = vmatpush1.bf16.msra.mxu0 0
    %7106 = vmatprep.subr.bf16.mxu0 0
    %7107 = vmatpush1.bf16.msra.mxu0 0
    %7108 = vmatprep.mubr.bf16.mxu0 0
    %7109 = vmatmul.mubr.bf16.gmra.mrb[0].mxu0 %v6979
    %v7110 = vpop.f32.mrb[0].mxu0
    %v7111 = vadd.f32 0.0, %v7110
    %v7112 = vpop.f32.mrb[0].mxu0
    %v7113 = vadd.f32 0.0, %v7112
    %v7114 = vpop.f32.mrb[0].mxu0
    %v7115 = vpop.f32.mrb[0].mxu0
    %7116 = vdwg.mxu0
    %v7117 = vpack.c.bf16 %v7111, %v7111
    %v7118 = vpack.c.bf16 %v7113, %v7113
    %v7119 = vld [vmem:[#allocation12] sm:$0xff]
    %v7120 = vld [vmem:[#allocation12 + $0x8] sm:$0xff]
    %v7121 = vld [vmem:[#allocation12 + $0x10] sm:$0xff]
    %v7122 = vld [vmem:[#allocation12 + $0x18] sm:$0xff]
    %v7123 = vld [vmem:[#allocation12 + $0x20] sm:$0xff]
    %v7124 = vld [vmem:[#allocation12 + $0x28] sm:$0xff]
    %v7125 = vld [vmem:[#allocation12 + $0x30] sm:$0xff]
    %v7126 = vld [vmem:[#allocation12 + $0x38] sm:$0xff]
    %v7127 = vld [vmem:[#allocation12 + $0x40] sm:$0xff]
    %v7128 = vld [vmem:[#allocation12 + $0x48] sm:$0xff]
    %v7129 = vld [vmem:[#allocation12 + $0x50] sm:$0xff]
    %v7130 = vld [vmem:[#allocation12 + $0x58] sm:$0xff]
    %v7131 = vld [vmem:[#allocation12 + $0x60] sm:$0xff]
    %v7132 = vld [vmem:[#allocation12 + $0x68] sm:$0xff]
    %v7133 = vld [vmem:[#allocation12 + $0x70] sm:$0xff]
    %v7134 = vld [vmem:[#allocation12 + $0x78] sm:$0xff]
    %v7135 = vld [vmem:[#allocation12 + $0x80] sm:$0xff]
    %v7136 = vld [vmem:[#allocation12 + $0x88] sm:$0xff]
    %v7137 = vld [vmem:[#allocation12 + $0x90] sm:$0xff]
    %v7138 = vld [vmem:[#allocation12 + $0x98] sm:$0xff]
    %v7139 = vld [vmem:[#allocation12 + $0xa0] sm:$0xff]
    %v7140 = vld [vmem:[#allocation12 + $0xa8] sm:$0xff]
    %v7141 = vld [vmem:[#allocation12 + $0xb0] sm:$0xff]
    %v7142 = vld [vmem:[#allocation12 + $0xb8] sm:$0xff]
    %v7143 = vld [vmem:[#allocation12 + $0xc0] sm:$0xff]
    %v7144 = vld [vmem:[#allocation12 + $0xc8] sm:$0xff]
    %v7145 = vld [vmem:[#allocation12 + $0xd0] sm:$0xff]
    %v7146 = vld [vmem:[#allocation12 + $0xd8] sm:$0xff]
    %v7147 = vld [vmem:[#allocation12 + $0xe0] sm:$0xff]
    %v7148 = vld [vmem:[#allocation12 + $0xe8] sm:$0xff]
    %v7149 = vld [vmem:[#allocation12 + $0xf0] sm:$0xff]
    %v7150 = vld [vmem:[#allocation12 + $0xf8] sm:$0xff]
    %v7183 = vunpack.c.l.b16 %v7119
    %v7184 = vunpack.c.h.b16 %v7119
    %v7185 = vunpack.c.l.b16 %v7120
    %v7186 = vunpack.c.h.b16 %v7120
    %v7187 = vunpack.c.l.b16 %v7121
    %v7188 = vunpack.c.h.b16 %v7121
    %v7189 = vunpack.c.l.b16 %v7122
    %v7190 = vunpack.c.h.b16 %v7122
    %v7191 = vunpack.c.l.b16 %v7123
    %v7192 = vunpack.c.h.b16 %v7123
    %v7193 = vunpack.c.l.b16 %v7124
    %v7194 = vunpack.c.h.b16 %v7124
    %v7195 = vunpack.c.l.b16 %v7125
    %v7196 = vunpack.c.h.b16 %v7125
    %v7197 = vunpack.c.l.b16 %v7126
    %v7198 = vunpack.c.h.b16 %v7126
    %v7199 = vunpack.c.l.b16 %v7127
    %v7200 = vunpack.c.h.b16 %v7127
    %v7201 = vunpack.c.l.b16 %v7128
    %v7202 = vunpack.c.h.b16 %v7128
    %v7203 = vunpack.c.l.b16 %v7129
    %v7204 = vunpack.c.h.b16 %v7129
    %v7205 = vunpack.c.l.b16 %v7130
    %v7206 = vunpack.c.h.b16 %v7130
    %v7207 = vunpack.c.l.b16 %v7131
    %v7208 = vunpack.c.h.b16 %v7131
    %v7209 = vunpack.c.l.b16 %v7132
    %v7210 = vunpack.c.h.b16 %v7132
    %v7211 = vunpack.c.l.b16 %v7133
    %v7212 = vunpack.c.h.b16 %v7133
    %v7213 = vunpack.c.l.b16 %v7134
    %v7214 = vunpack.c.h.b16 %v7134
    %v7215 = vunpack.c.l.b16 %v7135
    %v7216 = vunpack.c.h.b16 %v7135
    %v7217 = vunpack.c.l.b16 %v7136
    %v7218 = vunpack.c.h.b16 %v7136
    %v7219 = vunpack.c.l.b16 %v7137
    %v7220 = vunpack.c.h.b16 %v7137
    %v7221 = vunpack.c.l.b16 %v7138
    %v7222 = vunpack.c.h.b16 %v7138
    %v7223 = vunpack.c.l.b16 %v7139
    %v7224 = vunpack.c.h.b16 %v7139
    %v7225 = vunpack.c.l.b16 %v7140
    %v7226 = vunpack.c.h.b16 %v7140
    %v7227 = vunpack.c.l.b16 %v7141
    %v7228 = vunpack.c.h.b16 %v7141
    %v7229 = vunpack.c.l.b16 %v7142
    %v7230 = vunpack.c.h.b16 %v7142
    %v7231 = vunpack.c.l.b16 %v7143
    %v7232 = vunpack.c.h.b16 %v7143
    %v7233 = vunpack.c.l.b16 %v7144
    %v7234 = vunpack.c.h.b16 %v7144
    %v7235 = vunpack.c.l.b16 %v7145
    %v7236 = vunpack.c.h.b16 %v7145
    %v7237 = vunpack.c.l.b16 %v7146
    %v7238 = vunpack.c.h.b16 %v7146
    %v7239 = vunpack.c.l.b16 %v7147
    %v7240 = vunpack.c.h.b16 %v7147
    %v7241 = vunpack.c.l.b16 %v7148
    %v7242 = vunpack.c.h.b16 %v7148
    %v7243 = vunpack.c.l.b16 %v7149
    %v7244 = vunpack.c.h.b16 %v7149
    %v7245 = vunpack.c.l.b16 %v7150
    %v7246 = vunpack.c.h.b16 %v7150
    %v7247 = vpack.c.b16 %v7185, %v7183
    %v7248 = vpack.c.b16 %v7186, %v7184
    %v7249 = vpack.c.b16 %v7189, %v7187
    %v7250 = vpack.c.b16 %v7190, %v7188
    %v7251 = vpack.c.b16 %v7193, %v7191
    %v7252 = vpack.c.b16 %v7194, %v7192
    %v7253 = vpack.c.b16 %v7197, %v7195
    %v7254 = vpack.c.b16 %v7198, %v7196
    %v7255 = vpack.c.b16 %v7201, %v7199
    %v7256 = vpack.c.b16 %v7202, %v7200
    %v7257 = vpack.c.b16 %v7205, %v7203
    %v7258 = vpack.c.b16 %v7206, %v7204
    %v7259 = vpack.c.b16 %v7209, %v7207
    %v7260 = vpack.c.b16 %v7210, %v7208
    %v7261 = vpack.c.b16 %v7213, %v7211
    %v7262 = vpack.c.b16 %v7214, %v7212
    %v7263 = vpack.c.b16 %v7217, %v7215
    %v7264 = vpack.c.b16 %v7218, %v7216
    %v7265 = vpack.c.b16 %v7221, %v7219
    %v7266 = vpack.c.b16 %v7222, %v7220
    %v7267 = vpack.c.b16 %v7225, %v7223
    %v7268 = vpack.c.b16 %v7226, %v7224
    %v7269 = vpack.c.b16 %v7229, %v7227
    %v7270 = vpack.c.b16 %v7230, %v7228
    %v7271 = vpack.c.b16 %v7233, %v7231
    %v7272 = vpack.c.b16 %v7234, %v7232
    %v7273 = vpack.c.b16 %v7237, %v7235
    %v7274 = vpack.c.b16 %v7238, %v7236
    %v7275 = vpack.c.b16 %v7241, %v7239
    %v7276 = vpack.c.b16 %v7242, %v7240
    %v7277 = vpack.c.b16 %v7245, %v7243
    %v7278 = vpack.c.b16 %v7246, %v7244
    %7311 = vmatprep.subr.bf16.mxu0 %v7248
    %7312 = vmatpush1.bf16.msra.mxu0 %v7247
    %7313 = vmatprep.subr.bf16.mxu0 %v7250
    %7314 = vmatpush1.bf16.msra.mxu0 %v7249
    %7315 = vmatprep.subr.bf16.mxu0 %v7252
    %7316 = vmatpush1.bf16.msra.mxu0 %v7251
    %7317 = vmatprep.subr.bf16.mxu0 %v7254
    %7318 = vmatpush1.bf16.msra.mxu0 %v7253
    %7319 = vmatprep.subr.bf16.mxu0 %v7256
    %7320 = vmatpush1.bf16.msra.mxu0 %v7255
    %7321 = vmatprep.subr.bf16.mxu0 %v7258
    %7322 = vmatpush1.bf16.msra.mxu0 %v7257
    %7323 = vmatprep.subr.bf16.mxu0 %v7260
    %7324 = vmatpush1.bf16.msra.mxu0 %v7259
    %7325 = vmatprep.subr.bf16.mxu0 %v7262
    %7326 = vmatpush1.bf16.msra.mxu0 %v7261
    %7327 = vmatprep.subr.bf16.mxu0 %v7264
    %7328 = vmatpush1.bf16.msra.mxu0 %v7263
    %7329 = vmatprep.subr.bf16.mxu0 %v7266
    %7330 = vmatpush1.bf16.msra.mxu0 %v7265
    %7331 = vmatprep.subr.bf16.mxu0 %v7268
    %7332 = vmatpush1.bf16.msra.mxu0 %v7267
    %7333 = vmatprep.subr.bf16.mxu0 %v7270
    %7334 = vmatpush1.bf16.msra.mxu0 %v7269
    %7335 = vmatprep.subr.bf16.mxu0 %v7272
    %7336 = vmatpush1.bf16.msra.mxu0 %v7271
    %7337 = vmatprep.subr.bf16.mxu0 %v7274
    %7338 = vmatpush1.bf16.msra.mxu0 %v7273
    %7339 = vmatprep.subr.bf16.mxu0 %v7276
    %7340 = vmatpush1.bf16.msra.mxu0 %v7275
    %7341 = vmatprep.subr.bf16.mxu0 %v7278
    %7342 = vmatpush1.bf16.msra.mxu0 %v7277
    %7343 = vmatprep.mubr.bf16.mxu0 %v7118
    %7344 = vmatmul.mubr.bf16.gmra.mrb[0].mxu0 %v7117
    %v7345 = vpop.f32.mrb[0].mxu0
    %v7346 = vadd.f32 0.0, %v7345
    %v7347 = vpop.f32.mrb[0].mxu0
    %v7348 = vadd.f32 0.0, %v7347
    %v7349 = vpop.f32.mrb[0].mxu0
    %v7350 = vpop.f32.mrb[0].mxu0
    %7351 = vdwg.mxu0
    %v7352 = vadd.f32 %v6053, %v7346
    %v7353 = vadd.f32 %v6092, %v7348
    %v7354 = vadd.f32 %v7352, %v1842
    %v7355 = vadd.f32 %v7353, %v1846
    %v7356 = vmax.f32 %v7354, 0.0
    %v7357 = vmax.f32 %v7355, 0.0
    %v7358 = vpack.c.bf16 %v7356, %v7356
    %v7359 = vpack.c.bf16 %v7357, %v7357
    %v7360 = vld [vmem:[#allocation13] sm:$0xff]
    %v7361 = vld [vmem:[#allocation13 + $0x8] sm:$0xff]
    %v7362 = vld [vmem:[#allocation13 + $0x10] sm:$0xff]
    %v7363 = vld [vmem:[#allocation13 + $0x18] sm:$0xff]
    %v7364 = vld [vmem:[#allocation13 + $0x20] sm:$0xff]
    %v7365 = vld [vmem:[#allocation13 + $0x28] sm:$0xff]
    %v7366 = vld [vmem:[#allocation13 + $0x30] sm:$0xff]
    %v7367 = vld [vmem:[#allocation13 + $0x38] sm:$0xff]
    %v7368 = vld [vmem:[#allocation13 + $0x40] sm:$0xff]
    %v7369 = vld [vmem:[#allocation13 + $0x48] sm:$0xff]
    %v7370 = vld [vmem:[#allocation13 + $0x50] sm:$0xff]
    %v7371 = vld [vmem:[#allocation13 + $0x58] sm:$0xff]
    %v7372 = vld [vmem:[#allocation13 + $0x60] sm:$0xff]
    %v7373 = vld [vmem:[#allocation13 + $0x68] sm:$0xff]
    %v7374 = vld [vmem:[#allocation13 + $0x70] sm:$0xff]
    %v7375 = vld [vmem:[#allocation13 + $0x78] sm:$0xff]
    %v7376 = vld [vmem:[#allocation13 + $0x80] sm:$0xff]
    %v7377 = vld [vmem:[#allocation13 + $0x88] sm:$0xff]
    %v7378 = vld [vmem:[#allocation13 + $0x90] sm:$0xff]
    %v7379 = vld [vmem:[#allocation13 + $0x98] sm:$0xff]
    %v7380 = vld [vmem:[#allocation13 + $0xa0] sm:$0xff]
    %v7381 = vld [vmem:[#allocation13 + $0xa8] sm:$0xff]
    %v7382 = vld [vmem:[#allocation13 + $0xb0] sm:$0xff]
    %v7383 = vld [vmem:[#allocation13 + $0xb8] sm:$0xff]
    %v7384 = vld [vmem:[#allocation13 + $0xc0] sm:$0xff]
    %v7385 = vld [vmem:[#allocation13 + $0xc8] sm:$0xff]
    %v7386 = vld [vmem:[#allocation13 + $0xd0] sm:$0xff]
    %v7387 = vld [vmem:[#allocation13 + $0xd8] sm:$0xff]
    %v7388 = vld [vmem:[#allocation13 + $0xe0] sm:$0xff]
    %v7389 = vld [vmem:[#allocation13 + $0xe8] sm:$0xff]
    %v7390 = vld [vmem:[#allocation13 + $0xf0] sm:$0xff]
    %v7391 = vld [vmem:[#allocation13 + $0xf8] sm:$0xff]
    %v7392 = vld [vmem:[#allocation13 + $0x100] sm:$0xff]
    %v7393 = vld [vmem:[#allocation13 + $0x108] sm:$0xff]
    %v7394 = vld [vmem:[#allocation13 + $0x110] sm:$0xff]
    %v7395 = vld [vmem:[#allocation13 + $0x118] sm:$0xff]
    %v7396 = vld [vmem:[#allocation13 + $0x120] sm:$0xff]
    %v7397 = vld [vmem:[#allocation13 + $0x128] sm:$0xff]
    %v7398 = vld [vmem:[#allocation13 + $0x130] sm:$0xff]
    %v7399 = vld [vmem:[#allocation13 + $0x138] sm:$0xff]
    %v7400 = vld [vmem:[#allocation13 + $0x140] sm:$0xff]
    %v7401 = vld [vmem:[#allocation13 + $0x148] sm:$0xff]
    %v7402 = vld [vmem:[#allocation13 + $0x150] sm:$0xff]
    %v7403 = vld [vmem:[#allocation13 + $0x158] sm:$0xff]
    %v7404 = vld [vmem:[#allocation13 + $0x160] sm:$0xff]
    %v7405 = vld [vmem:[#allocation13 + $0x168] sm:$0xff]
    %v7406 = vld [vmem:[#allocation13 + $0x170] sm:$0xff]
    %v7407 = vld [vmem:[#allocation13 + $0x178] sm:$0xff]
    %v7408 = vld [vmem:[#allocation13 + $0x180] sm:$0xff]
    %v7409 = vld [vmem:[#allocation13 + $0x188] sm:$0xff]
    %v7410 = vld [vmem:[#allocation13 + $0x190] sm:$0xff]
    %v7411 = vld [vmem:[#allocation13 + $0x198] sm:$0xff]
    %v7412 = vld [vmem:[#allocation13 + $0x1a0] sm:$0xff]
    %v7413 = vld [vmem:[#allocation13 + $0x1a8] sm:$0xff]
    %v7414 = vld [vmem:[#allocation13 + $0x1b0] sm:$0xff]
    %v7415 = vld [vmem:[#allocation13 + $0x1b8] sm:$0xff]
    %v7416 = vld [vmem:[#allocation13 + $0x1c0] sm:$0xff]
    %v7417 = vld [vmem:[#allocation13 + $0x1c8] sm:$0xff]
    %v7418 = vld [vmem:[#allocation13 + $0x1d0] sm:$0xff]
    %v7419 = vld [vmem:[#allocation13 + $0x1d8] sm:$0xff]
    %v7420 = vld [vmem:[#allocation13 + $0x1e0] sm:$0xff]
    %v7421 = vld [vmem:[#allocation13 + $0x1e8] sm:$0xff]
    %v7422 = vld [vmem:[#allocation13 + $0x1f0] sm:$0xff]
    %v7423 = vld [vmem:[#allocation13 + $0x1f8] sm:$0xff]
    %v7424 = vld [vmem:[#allocation13 + $0x200] sm:$0xff]
    %v7425 = vld [vmem:[#allocation13 + $0x208] sm:$0xff]
    %v7426 = vld [vmem:[#allocation13 + $0x210] sm:$0xff]
    %v7427 = vld [vmem:[#allocation13 + $0x218] sm:$0xff]
    %v7428 = vld [vmem:[#allocation13 + $0x220] sm:$0xff]
    %v7429 = vld [vmem:[#allocation13 + $0x228] sm:$0xff]
    %v7430 = vld [vmem:[#allocation13 + $0x230] sm:$0xff]
    %v7431 = vld [vmem:[#allocation13 + $0x238] sm:$0xff]
    %v7432 = vld [vmem:[#allocation13 + $0x240] sm:$0xff]
    %v7433 = vld [vmem:[#allocation13 + $0x248] sm:$0xff]
    %v7434 = vld [vmem:[#allocation13 + $0x250] sm:$0xff]
    %v7435 = vld [vmem:[#allocation13 + $0x258] sm:$0xff]
    %v7436 = vld [vmem:[#allocation13 + $0x260] sm:$0xff]
    %v7437 = vld [vmem:[#allocation13 + $0x268] sm:$0xff]
    %v7438 = vld [vmem:[#allocation13 + $0x270] sm:$0xff]
    %v7439 = vld [vmem:[#allocation13 + $0x278] sm:$0xff]
    %v7440 = vld [vmem:[#allocation13 + $0x280] sm:$0xff]
    %v7441 = vld [vmem:[#allocation13 + $0x288] sm:$0xff]
    %v7442 = vld [vmem:[#allocation13 + $0x290] sm:$0xff]
    %v7443 = vld [vmem:[#allocation13 + $0x298] sm:$0xff]
    %v7444 = vld [vmem:[#allocation13 + $0x2a0] sm:$0xff]
    %v7445 = vld [vmem:[#allocation13 + $0x2a8] sm:$0xff]
    %v7446 = vld [vmem:[#allocation13 + $0x2b0] sm:$0xff]
    %v7447 = vld [vmem:[#allocation13 + $0x2b8] sm:$0xff]
    %v7448 = vld [vmem:[#allocation13 + $0x2c0] sm:$0xff]
    %v7449 = vld [vmem:[#allocation13 + $0x2c8] sm:$0xff]
    %v7450 = vld [vmem:[#allocation13 + $0x2d0] sm:$0xff]
    %v7451 = vld [vmem:[#allocation13 + $0x2d8] sm:$0xff]
    %v7452 = vld [vmem:[#allocation13 + $0x2e0] sm:$0xff]
    %v7453 = vld [vmem:[#allocation13 + $0x2e8] sm:$0xff]
    %v7454 = vld [vmem:[#allocation13 + $0x2f0] sm:$0xff]
    %v7455 = vld [vmem:[#allocation13 + $0x2f8] sm:$0xff]
    %v7552 = vunpack.c.l.b16 %v7360
    %v7553 = vunpack.c.h.b16 %v7360
    %v7554 = vunpack.c.l.b16 %v7361
    %v7555 = vunpack.c.h.b16 %v7361
    %v7556 = vunpack.c.l.b16 %v7362
    %v7557 = vunpack.c.h.b16 %v7362
    %v7558 = vunpack.c.l.b16 %v7363
    %v7559 = vunpack.c.h.b16 %v7363
    %v7560 = vunpack.c.l.b16 %v7364
    %v7561 = vunpack.c.h.b16 %v7364
    %v7562 = vunpack.c.l.b16 %v7365
    %v7563 = vunpack.c.h.b16 %v7365
    %v7564 = vunpack.c.l.b16 %v7366
    %v7565 = vunpack.c.h.b16 %v7366
    %v7566 = vunpack.c.l.b16 %v7367
    %v7567 = vunpack.c.h.b16 %v7367
    %v7568 = vunpack.c.l.b16 %v7368
    %v7569 = vunpack.c.h.b16 %v7368
    %v7570 = vunpack.c.l.b16 %v7369
    %v7571 = vunpack.c.h.b16 %v7369
    %v7572 = vunpack.c.l.b16 %v7370
    %v7573 = vunpack.c.h.b16 %v7370
    %v7574 = vunpack.c.l.b16 %v7371
    %v7575 = vunpack.c.h.b16 %v7371
    %v7576 = vunpack.c.l.b16 %v7372
    %v7577 = vunpack.c.h.b16 %v7372
    %v7578 = vunpack.c.l.b16 %v7373
    %v7579 = vunpack.c.h.b16 %v7373
    %v7580 = vunpack.c.l.b16 %v7374
    %v7581 = vunpack.c.h.b16 %v7374
    %v7582 = vunpack.c.l.b16 %v7375
    %v7583 = vunpack.c.h.b16 %v7375
    %v7584 = vunpack.c.l.b16 %v7376
    %v7585 = vunpack.c.h.b16 %v7376
    %v7586 = vunpack.c.l.b16 %v7377
    %v7587 = vunpack.c.h.b16 %v7377
    %v7588 = vunpack.c.l.b16 %v7378
    %v7589 = vunpack.c.h.b16 %v7378
    %v7590 = vunpack.c.l.b16 %v7379
    %v7591 = vunpack.c.h.b16 %v7379
    %v7592 = vunpack.c.l.b16 %v7380
    %v7593 = vunpack.c.h.b16 %v7380
    %v7594 = vunpack.c.l.b16 %v7381
    %v7595 = vunpack.c.h.b16 %v7381
    %v7596 = vunpack.c.l.b16 %v7382
    %v7597 = vunpack.c.h.b16 %v7382
    %v7598 = vunpack.c.l.b16 %v7383
    %v7599 = vunpack.c.h.b16 %v7383
    %v7600 = vunpack.c.l.b16 %v7384
    %v7601 = vunpack.c.h.b16 %v7384
    %v7602 = vunpack.c.l.b16 %v7385
    %v7603 = vunpack.c.h.b16 %v7385
    %v7604 = vunpack.c.l.b16 %v7386
    %v7605 = vunpack.c.h.b16 %v7386
    %v7606 = vunpack.c.l.b16 %v7387
    %v7607 = vunpack.c.h.b16 %v7387
    %v7608 = vunpack.c.l.b16 %v7388
    %v7609 = vunpack.c.h.b16 %v7388
    %v7610 = vunpack.c.l.b16 %v7389
    %v7611 = vunpack.c.h.b16 %v7389
    %v7612 = vunpack.c.l.b16 %v7390
    %v7613 = vunpack.c.h.b16 %v7390
    %v7614 = vunpack.c.l.b16 %v7391
    %v7615 = vunpack.c.h.b16 %v7391
    %v7616 = vunpack.c.l.b16 %v7392
    %v7617 = vunpack.c.h.b16 %v7392
    %v7618 = vunpack.c.l.b16 %v7393
    %v7619 = vunpack.c.h.b16 %v7393
    %v7620 = vunpack.c.l.b16 %v7394
    %v7621 = vunpack.c.h.b16 %v7394
    %v7622 = vunpack.c.l.b16 %v7395
    %v7623 = vunpack.c.h.b16 %v7395
    %v7624 = vunpack.c.l.b16 %v7396
    %v7625 = vunpack.c.h.b16 %v7396
    %v7626 = vunpack.c.l.b16 %v7397
    %v7627 = vunpack.c.h.b16 %v7397
    %v7628 = vunpack.c.l.b16 %v7398
    %v7629 = vunpack.c.h.b16 %v7398
    %v7630 = vunpack.c.l.b16 %v7399
    %v7631 = vunpack.c.h.b16 %v7399
    %v7632 = vunpack.c.l.b16 %v7400
    %v7633 = vunpack.c.h.b16 %v7400
    %v7634 = vunpack.c.l.b16 %v7401
    %v7635 = vunpack.c.h.b16 %v7401
    %v7636 = vunpack.c.l.b16 %v7402
    %v7637 = vunpack.c.h.b16 %v7402
    %v7638 = vunpack.c.l.b16 %v7403
    %v7639 = vunpack.c.h.b16 %v7403
    %v7640 = vunpack.c.l.b16 %v7404
    %v7641 = vunpack.c.h.b16 %v7404
    %v7642 = vunpack.c.l.b16 %v7405
    %v7643 = vunpack.c.h.b16 %v7405
    %v7644 = vunpack.c.l.b16 %v7406
    %v7645 = vunpack.c.h.b16 %v7406
    %v7646 = vunpack.c.l.b16 %v7407
    %v7647 = vunpack.c.h.b16 %v7407
    %v7648 = vunpack.c.l.b16 %v7408
    %v7649 = vunpack.c.h.b16 %v7408
    %v7650 = vunpack.c.l.b16 %v7409
    %v7651 = vunpack.c.h.b16 %v7409
    %v7652 = vunpack.c.l.b16 %v7410
    %v7653 = vunpack.c.h.b16 %v7410
    %v7654 = vunpack.c.l.b16 %v7411
    %v7655 = vunpack.c.h.b16 %v7411
    %v7656 = vunpack.c.l.b16 %v7412
    %v7657 = vunpack.c.h.b16 %v7412
    %v7658 = vunpack.c.l.b16 %v7413
    %v7659 = vunpack.c.h.b16 %v7413
    %v7660 = vunpack.c.l.b16 %v7414
    %v7661 = vunpack.c.h.b16 %v7414
    %v7662 = vunpack.c.l.b16 %v7415
    %v7663 = vunpack.c.h.b16 %v7415
    %v7664 = vunpack.c.l.b16 %v7416
    %v7665 = vunpack.c.h.b16 %v7416
    %v7666 = vunpack.c.l.b16 %v7417
    %v7667 = vunpack.c.h.b16 %v7417
    %v7668 = vunpack.c.l.b16 %v7418
    %v7669 = vunpack.c.h.b16 %v7418
    %v7670 = vunpack.c.l.b16 %v7419
    %v7671 = vunpack.c.h.b16 %v7419
    %v7672 = vunpack.c.l.b16 %v7420
    %v7673 = vunpack.c.h.b16 %v7420
    %v7674 = vunpack.c.l.b16 %v7421
    %v7675 = vunpack.c.h.b16 %v7421
    %v7676 = vunpack.c.l.b16 %v7422
    %v7677 = vunpack.c.h.b16 %v7422
    %v7678 = vunpack.c.l.b16 %v7423
    %v7679 = vunpack.c.h.b16 %v7423
    %v7680 = vunpack.c.l.b16 %v7424
    %v7681 = vunpack.c.h.b16 %v7424
    %v7682 = vunpack.c.l.b16 %v7425
    %v7683 = vunpack.c.h.b16 %v7425
    %v7684 = vunpack.c.l.b16 %v7426
    %v7685 = vunpack.c.h.b16 %v7426
    %v7686 = vunpack.c.l.b16 %v7427
    %v7687 = vunpack.c.h.b16 %v7427
    %v7688 = vunpack.c.l.b16 %v7428
    %v7689 = vunpack.c.h.b16 %v7428
    %v7690 = vunpack.c.l.b16 %v7429
    %v7691 = vunpack.c.h.b16 %v7429
    %v7692 = vunpack.c.l.b16 %v7430
    %v7693 = vunpack.c.h.b16 %v7430
    %v7694 = vunpack.c.l.b16 %v7431
    %v7695 = vunpack.c.h.b16 %v7431
    %v7696 = vunpack.c.l.b16 %v7432
    %v7697 = vunpack.c.h.b16 %v7432
    %v7698 = vunpack.c.l.b16 %v7433
    %v7699 = vunpack.c.h.b16 %v7433
    %v7700 = vunpack.c.l.b16 %v7434
    %v7701 = vunpack.c.h.b16 %v7434
    %v7702 = vunpack.c.l.b16 %v7435
    %v7703 = vunpack.c.h.b16 %v7435
    %v7704 = vunpack.c.l.b16 %v7436
    %v7705 = vunpack.c.h.b16 %v7436
    %v7706 = vunpack.c.l.b16 %v7437
    %v7707 = vunpack.c.h.b16 %v7437
    %v7708 = vunpack.c.l.b16 %v7438
    %v7709 = vunpack.c.h.b16 %v7438
    %v7710 = vunpack.c.l.b16 %v7439
    %v7711 = vunpack.c.h.b16 %v7439
    %v7712 = vunpack.c.l.b16 %v7440
    %v7713 = vunpack.c.h.b16 %v7440
    %v7714 = vunpack.c.l.b16 %v7441
    %v7715 = vunpack.c.h.b16 %v7441
    %v7716 = vunpack.c.l.b16 %v7442
    %v7717 = vunpack.c.h.b16 %v7442
    %v7718 = vunpack.c.l.b16 %v7443
    %v7719 = vunpack.c.h.b16 %v7443
    %v7720 = vunpack.c.l.b16 %v7444
    %v7721 = vunpack.c.h.b16 %v7444
    %v7722 = vunpack.c.l.b16 %v7445
    %v7723 = vunpack.c.h.b16 %v7445
    %v7724 = vunpack.c.l.b16 %v7446
    %v7725 = vunpack.c.h.b16 %v7446
    %v7726 = vunpack.c.l.b16 %v7447
    %v7727 = vunpack.c.h.b16 %v7447
    %v7728 = vunpack.c.l.b16 %v7448
    %v7729 = vunpack.c.h.b16 %v7448
    %v7730 = vunpack.c.l.b16 %v7449
    %v7731 = vunpack.c.h.b16 %v7449
    %v7732 = vunpack.c.l.b16 %v7450
    %v7733 = vunpack.c.h.b16 %v7450
    %v7734 = vunpack.c.l.b16 %v7451
    %v7735 = vunpack.c.h.b16 %v7451
    %v7736 = vunpack.c.l.b16 %v7452
    %v7737 = vunpack.c.h.b16 %v7452
    %v7738 = vunpack.c.l.b16 %v7453
    %v7739 = vunpack.c.h.b16 %v7453
    %v7740 = vunpack.c.l.b16 %v7454
    %v7741 = vunpack.c.h.b16 %v7454
    %v7742 = vunpack.c.l.b16 %v7455
    %v7743 = vunpack.c.h.b16 %v7455
    %v7744 = vpack.c.b16 %v7558, %v7552
    %v7745 = vpack.c.b16 %v7559, %v7553
    %v7746 = vpack.c.b16 %v7560, %v7554
    %v7747 = vpack.c.b16 %v7561, %v7555
    %v7748 = vpack.c.b16 %v7562, %v7556
    %v7749 = vpack.c.b16 %v7563, %v7557
    %v7750 = vpack.c.b16 %v7570, %v7564
    %v7751 = vpack.c.b16 %v7571, %v7565
    %v7752 = vpack.c.b16 %v7572, %v7566
    %v7753 = vpack.c.b16 %v7573, %v7567
    %v7754 = vpack.c.b16 %v7574, %v7568
    %v7755 = vpack.c.b16 %v7575, %v7569
    %v7756 = vpack.c.b16 %v7582, %v7576
    %v7757 = vpack.c.b16 %v7583, %v7577
    %v7758 = vpack.c.b16 %v7584, %v7578
    %v7759 = vpack.c.b16 %v7585, %v7579
    %v7760 = vpack.c.b16 %v7586, %v7580
    %v7761 = vpack.c.b16 %v7587, %v7581
    %v7762 = vpack.c.b16 %v7594, %v7588
    %v7763 = vpack.c.b16 %v7595, %v7589
    %v7764 = vpack.c.b16 %v7596, %v7590
    %v7765 = vpack.c.b16 %v7597, %v7591
    %v7766 = vpack.c.b16 %v7598, %v7592
    %v7767 = vpack.c.b16 %v7599, %v7593
    %v7768 = vpack.c.b16 %v7606, %v7600
    %v7769 = vpack.c.b16 %v7607, %v7601
    %v7770 = vpack.c.b16 %v7608, %v7602
    %v7771 = vpack.c.b16 %v7609, %v7603
    %v7772 = vpack.c.b16 %v7610, %v7604
    %v7773 = vpack.c.b16 %v7611, %v7605
    %v7774 = vpack.c.b16 %v7618, %v7612
    %v7775 = vpack.c.b16 %v7619, %v7613
    %v7776 = vpack.c.b16 %v7620, %v7614
    %v7777 = vpack.c.b16 %v7621, %v7615
    %v7778 = vpack.c.b16 %v7622, %v7616
    %v7779 = vpack.c.b16 %v7623, %v7617
    %v7780 = vpack.c.b16 %v7630, %v7624
    %v7781 = vpack.c.b16 %v7631, %v7625
    %v7782 = vpack.c.b16 %v7632, %v7626
    %v7783 = vpack.c.b16 %v7633, %v7627
    %v7784 = vpack.c.b16 %v7634, %v7628
    %v7785 = vpack.c.b16 %v7635, %v7629
    %v7786 = vpack.c.b16 %v7642, %v7636
    %v7787 = vpack.c.b16 %v7643, %v7637
    %v7788 = vpack.c.b16 %v7644, %v7638
    %v7789 = vpack.c.b16 %v7645, %v7639
    %v7790 = vpack.c.b16 %v7646, %v7640
    %v7791 = vpack.c.b16 %v7647, %v7641
    %v7792 = vpack.c.b16 %v7654, %v7648
    %v7793 = vpack.c.b16 %v7655, %v7649
    %v7794 = vpack.c.b16 %v7656, %v7650
    %v7795 = vpack.c.b16 %v7657, %v7651
    %v7796 = vpack.c.b16 %v7658, %v7652
    %v7797 = vpack.c.b16 %v7659, %v7653
    %v7798 = vpack.c.b16 %v7666, %v7660
    %v7799 = vpack.c.b16 %v7667, %v7661
    %v7800 = vpack.c.b16 %v7668, %v7662
    %v7801 = vpack.c.b16 %v7669, %v7663
    %v7802 = vpack.c.b16 %v7670, %v7664
    %v7803 = vpack.c.b16 %v7671, %v7665
    %v7804 = vpack.c.b16 %v7678, %v7672
    %v7805 = vpack.c.b16 %v7679, %v7673
    %v7806 = vpack.c.b16 %v7680, %v7674
    %v7807 = vpack.c.b16 %v7681, %v7675
    %v7808 = vpack.c.b16 %v7682, %v7676
    %v7809 = vpack.c.b16 %v7683, %v7677
    %v7810 = vpack.c.b16 %v7690, %v7684
    %v7811 = vpack.c.b16 %v7691, %v7685
    %v7812 = vpack.c.b16 %v7692, %v7686
    %v7813 = vpack.c.b16 %v7693, %v7687
    %v7814 = vpack.c.b16 %v7694, %v7688
    %v7815 = vpack.c.b16 %v7695, %v7689
    %v7816 = vpack.c.b16 %v7702, %v7696
    %v7817 = vpack.c.b16 %v7703, %v7697
    %v7818 = vpack.c.b16 %v7704, %v7698
    %v7819 = vpack.c.b16 %v7705, %v7699
    %v7820 = vpack.c.b16 %v7706, %v7700
    %v7821 = vpack.c.b16 %v7707, %v7701
    %v7822 = vpack.c.b16 %v7714, %v7708
    %v7823 = vpack.c.b16 %v7715, %v7709
    %v7824 = vpack.c.b16 %v7716, %v7710
    %v7825 = vpack.c.b16 %v7717, %v7711
    %v7826 = vpack.c.b16 %v7718, %v7712
    %v7827 = vpack.c.b16 %v7719, %v7713
    %v7828 = vpack.c.b16 %v7726, %v7720
    %v7829 = vpack.c.b16 %v7727, %v7721
    %v7830 = vpack.c.b16 %v7728, %v7722
    %v7831 = vpack.c.b16 %v7729, %v7723
    %v7832 = vpack.c.b16 %v7730, %v7724
    %v7833 = vpack.c.b16 %v7731, %v7725
    %v7834 = vpack.c.b16 %v7738, %v7732
    %v7835 = vpack.c.b16 %v7739, %v7733
    %v7836 = vpack.c.b16 %v7740, %v7734
    %v7837 = vpack.c.b16 %v7741, %v7735
    %v7838 = vpack.c.b16 %v7742, %v7736
    %v7839 = vpack.c.b16 %v7743, %v7737
    %7936 = vmatprep.subr.bf16.mxu0 %v7745
    %7937 = vmatpush1.bf16.msra.mxu0 %v7744
    %7938 = vmatprep.subr.bf16.mxu0 %v7751
    %7939 = vmatpush1.bf16.msra.mxu0 %v7750
    %7940 = vmatprep.subr.bf16.mxu0 %v7757
    %7941 = vmatpush1.bf16.msra.mxu0 %v7756
    %7942 = vmatprep.subr.bf16.mxu0 %v7763
    %7943 = vmatpush1.bf16.msra.mxu0 %v7762
    %7944 = vmatprep.subr.bf16.mxu0 %v7769
    %7945 = vmatpush1.bf16.msra.mxu0 %v7768
    %7946 = vmatprep.subr.bf16.mxu0 %v7775
    %7947 = vmatpush1.bf16.msra.mxu0 %v7774
    %7948 = vmatprep.subr.bf16.mxu0 %v7781
    %7949 = vmatpush1.bf16.msra.mxu0 %v7780
    %7950 = vmatprep.subr.bf16.mxu0 %v7787
    %7951 = vmatpush1.bf16.msra.mxu0 %v7786
    %7952 = vmatprep.subr.bf16.mxu0 %v7793
    %7953 = vmatpush1.bf16.msra.mxu0 %v7792
    %7954 = vmatprep.subr.bf16.mxu0 %v7799
    %7955 = vmatpush1.bf16.msra.mxu0 %v7798
    %7956 = vmatprep.subr.bf16.mxu0 %v7805
    %7957 = vmatpush1.bf16.msra.mxu0 %v7804
    %7958 = vmatprep.subr.bf16.mxu0 %v7811
    %7959 = vmatpush1.bf16.msra.mxu0 %v7810
    %7960 = vmatprep.subr.bf16.mxu0 %v7817
    %7961 = vmatpush1.bf16.msra.mxu0 %v7816
    %7962 = vmatprep.subr.bf16.mxu0 %v7823
    %7963 = vmatpush1.bf16.msra.mxu0 %v7822
    %7964 = vmatprep.subr.bf16.mxu0 %v7829
    %7965 = vmatpush1.bf16.msra.mxu0 %v7828
    %7966 = vmatprep.subr.bf16.mxu0 %v7835
    %7967 = vmatpush1.bf16.msra.mxu0 %v7834
    %7968 = vmatprep.mubr.bf16.mxu0 %v7359
    %7969 = vmatmul.mubr.bf16.gmra.mrb[0].mxu0 %v7358
    %v7970 = vpop.f32.mrb[0].mxu0
    %v7971 = vadd.f32 %v2435, %v7970
    %v7972 = vpop.f32.mrb[0].mxu0
    %v7973 = vadd.f32 %v2439, %v7972
    %v7974 = vpop.f32.mrb[0].mxu0
    %v7975 = vpop.f32.mrb[0].mxu0
    %7976 = vdwg.mxu0
    %7977 = vmatprep.subr.bf16.mxu0 %v7747
    %7978 = vmatpush1.bf16.msra.mxu0 %v7746
    %7979 = vmatprep.subr.bf16.mxu0 %v7753
    %7980 = vmatpush1.bf16.msra.mxu0 %v7752
    %7981 = vmatprep.subr.bf16.mxu0 %v7759
    %7982 = vmatpush1.bf16.msra.mxu0 %v7758
    %7983 = vmatprep.subr.bf16.mxu0 %v7765
    %7984 = vmatpush1.bf16.msra.mxu0 %v7764
    %7985 = vmatprep.subr.bf16.mxu0 %v7771
    %7986 = vmatpush1.bf16.msra.mxu0 %v7770
    %7987 = vmatprep.subr.bf16.mxu0 %v7777
    %7988 = vmatpush1.bf16.msra.mxu0 %v7776
    %7989 = vmatprep.subr.bf16.mxu0 %v7783
    %7990 = vmatpush1.bf16.msra.mxu0 %v7782
    %7991 = vmatprep.subr.bf16.mxu0 %v7789
    %7992 = vmatpush1.bf16.msra.mxu0 %v7788
    %7993 = vmatprep.subr.bf16.mxu0 %v7795
    %7994 = vmatpush1.bf16.msra.mxu0 %v7794
    %7995 = vmatprep.subr.bf16.mxu0 %v7801
    %7996 = vmatpush1.bf16.msra.mxu0 %v7800
    %7997 = vmatprep.subr.bf16.mxu0 %v7807
    %7998 = vmatpush1.bf16.msra.mxu0 %v7806
    %7999 = vmatprep.subr.bf16.mxu0 %v7813
    %8000 = vmatpush1.bf16.msra.mxu0 %v7812
    %8001 = vmatprep.subr.bf16.mxu0 %v7819
    %8002 = vmatpush1.bf16.msra.mxu0 %v7818
    %8003 = vmatprep.subr.bf16.mxu0 %v7825
    %8004 = vmatpush1.bf16.msra.mxu0 %v7824
    %8005 = vmatprep.subr.bf16.mxu0 %v7831
    %8006 = vmatpush1.bf16.msra.mxu0 %v7830
    %8007 = vmatprep.subr.bf16.mxu0 %v7837
    %8008 = vmatpush1.bf16.msra.mxu0 %v7836
    %8009 = vmatprep.mubr.bf16.mxu0 %v7359
    %8010 = vmatmul.mubr.bf16.gmra.mrb[0].mxu0 %v7358
    %v8011 = vpop.f32.mrb[0].mxu0
    %v8012 = vadd.f32 %v2443, %v8011
    %v8013 = vpop.f32.mrb[0].mxu0
    %v8014 = vadd.f32 %v2447, %v8013
    %v8015 = vpop.f32.mrb[0].mxu0
    %v8016 = vpop.f32.mrb[0].mxu0
    %8017 = vdwg.mxu0
    %8018 = vmatprep.subr.bf16.mxu0 %v7749
    %8019 = vmatpush1.bf16.msra.mxu0 %v7748
    %8020 = vmatprep.subr.bf16.mxu0 %v7755
    %8021 = vmatpush1.bf16.msra.mxu0 %v7754
    %8022 = vmatprep.subr.bf16.mxu0 %v7761
    %8023 = vmatpush1.bf16.msra.mxu0 %v7760
    %8024 = vmatprep.subr.bf16.mxu0 %v7767
    %8025 = vmatpush1.bf16.msra.mxu0 %v7766
    %8026 = vmatprep.subr.bf16.mxu0 %v7773
    %8027 = vmatpush1.bf16.msra.mxu0 %v7772
    %8028 = vmatprep.subr.bf16.mxu0 %v7779
    %8029 = vmatpush1.bf16.msra.mxu0 %v7778
    %8030 = vmatprep.subr.bf16.mxu0 %v7785
    %8031 = vmatpush1.bf16.msra.mxu0 %v7784
    %8032 = vmatprep.subr.bf16.mxu0 %v7791
    %8033 = vmatpush1.bf16.msra.mxu0 %v7790
    %8034 = vmatprep.subr.bf16.mxu0 %v7797
    %8035 = vmatpush1.bf16.msra.mxu0 %v7796
    %8036 = vmatprep.subr.bf16.mxu0 %v7803
    %8037 = vmatpush1.bf16.msra.mxu0 %v7802
    %8038 = vmatprep.subr.bf16.mxu0 %v7809
    %8039 = vmatpush1.bf16.msra.mxu0 %v7808
    %8040 = vmatprep.subr.bf16.mxu0 %v7815
    %8041 = vmatpush1.bf16.msra.mxu0 %v7814
    %8042 = vmatprep.subr.bf16.mxu0 %v7821
    %8043 = vmatpush1.bf16.msra.mxu0 %v7820
    %8044 = vmatprep.subr.bf16.mxu0 %v7827
    %8045 = vmatpush1.bf16.msra.mxu0 %v7826
    %8046 = vmatprep.subr.bf16.mxu0 %v7833
    %8047 = vmatpush1.bf16.msra.mxu0 %v7832
    %8048 = vmatprep.subr.bf16.mxu0 %v7839
    %8049 = vmatpush1.bf16.msra.mxu0 %v7838
    %8050 = vmatprep.mubr.bf16.mxu0 %v7359
    %8051 = vmatmul.mubr.bf16.gmra.mrb[0].mxu0 %v7358
    %v8052 = vpop.f32.mrb[0].mxu0
    %v8053 = vadd.f32 %v2451, %v8052
    %v8054 = vpop.f32.mrb[0].mxu0
    %v8055 = vadd.f32 %v2455, %v8054
    %v8056 = vpop.f32.mrb[0].mxu0
    %v8057 = vpop.f32.mrb[0].mxu0
    %8058 = vdwg.mxu0
    %v8059 = vadd.f32 %v7971, %v6838
    %v8060 = vadd.f32 %v7973, %v6877
    %v8061 = vxor.u32 %v8059, 2147483648
    %v8062 = vxor.u32 %v8060, 2147483648
    %v8063 = vmul.f32 %v8061, 1.442695
    %v8064 = vpow.pop %v8063
    %v8065 = vmul.f32 %v8062, 1.442695
    %v8066 = vpow.pop %v8065
    %v8067 = vadd.f32 %v8064, 1.0
    %v8068 = vadd.f32 %v8066, 1.0
    %v8069 = vrcp.pop %v8067
    %v8070 = vmul.f32 1.0, %v8069
    %v8071 = vrcp.pop %v8068
    %v8072 = vmul.f32 1.0, %v8071
    %v8073 = vadd.f32 %v8012, %v6879
    %v8074 = vadd.f32 %v8014, %v6918
    %v8075 = vxor.u32 %v8073, 2147483648
    %v8076 = vxor.u32 %v8074, 2147483648
    %v8077 = vmul.f32 %v8075, 1.442695
    %v8078 = vpow.pop %v8077
    %v8079 = vmul.f32 %v8076, 1.442695
    %v8080 = vpow.pop %v8079
    %v8081 = vadd.f32 %v8078, 1.0
    %v8082 = vadd.f32 %v8080, 1.0
    %v8083 = vrcp.pop %v8081
    %v8084 = vmul.f32 1.0, %v8083
    %v8085 = vrcp.pop %v8082
    %v8086 = vmul.f32 1.0, %v8085
    %v8087 = vadd.f32 %v6920, %v2617
    %v8088 = vadd.f32 %v6959, %v2621
    %v8089 = vmul.f32 %v8070, %v8087
    %v8090 = vmul.f32 %v8072, %v8088
    %v8091 = vadd.f32 %v8053, %v8089
    %v8092 = vadd.f32 %v8055, %v8090
    %v8093 = vtanh.pop %v8091
    %v8094 = vtanh.pop %v8092
    %v8095 = vsub.f32 1.0, %v8084
    %v8096 = vsub.f32 1.0, %v8086
    %v8097 = vmul.f32 %v8095, %v8093
    %v8098 = vmul.f32 %v8096, %v8094
    %v8099 = vmul.f32 %v8084, %v5376
    %v8100 = vmul.f32 %v8086, %v5377
    %v8101 = vadd.f32 %v8097, %v8099
    %v8102 = vadd.f32 %v8098, %v8100
    %v8105 = vcombine.low %v8101, %v8102
    %v8107 = vunpack.c.l.s4 1966171168
    %v8108 = vunpack.c.0.s8 %v8107
    %v8109 = vlaneseq
    %v8110 = vshrl.u32 %v8109, 7
    %v8111 = vsub.s32 %v8108, %v8110
    %v8112 = vrot.slane %v8105, %v8111
    %v8114 = vunpack.c.l.s4 1966171168
    %v8115 = vunpack.c.0.s8 %v8114
    %v8116 = vlaneseq
    %v8117 = vshrl.u32 %v8116, 7
    %v8118 = vsub.s32 %v8115, %v8117
    %v8119 = vrot.slane %v8112, %v8118
    %s8121 = scalar_lea.vmem [#allocation17], 4
    %8122 = vst.msk [vmem:[%s8121] sm:$0x3] %vm2661, %v8119
    %v8123 = vpack.c.bf16 %v8101, %v8101
    %v8124 = vpack.c.bf16 %v8102, %v8102
    %v8125 = vld [vmem:[#allocation15] sm:$0xff]
    %v8126 = vld [vmem:[#allocation15 + $0x8] sm:$0xff]
    %v8127 = vld [vmem:[#allocation15 + $0x10] sm:$0xff]
    %v8128 = vld [vmem:[#allocation15 + $0x18] sm:$0xff]
    %v8129 = vld [vmem:[#allocation15 + $0x20] sm:$0xff]
    %v8130 = vld [vmem:[#allocation15 + $0x28] sm:$0xff]
    %v8131 = vld [vmem:[#allocation15 + $0x30] sm:$0xff]
    %v8132 = vld [vmem:[#allocation15 + $0x38] sm:$0xff]
    %v8133 = vld [vmem:[#allocation15 + $0x40] sm:$0xff]
    %v8134 = vld [vmem:[#allocation15 + $0x48] sm:$0xff]
    %v8135 = vld [vmem:[#allocation15 + $0x50] sm:$0xff]
    %v8136 = vld [vmem:[#allocation15 + $0x58] sm:$0xff]
    %v8137 = vld [vmem:[#allocation15 + $0x60] sm:$0xff]
    %v8138 = vld [vmem:[#allocation15 + $0x68] sm:$0xff]
    %v8139 = vld [vmem:[#allocation15 + $0x70] sm:$0xff]
    %v8140 = vld [vmem:[#allocation15 + $0x78] sm:$0xff]
    %v8141 = vld [vmem:[#allocation15 + $0x80] sm:$0xff]
    %v8142 = vld [vmem:[#allocation15 + $0x88] sm:$0xff]
    %v8143 = vld [vmem:[#allocation15 + $0x90] sm:$0xff]
    %v8144 = vld [vmem:[#allocation15 + $0x98] sm:$0xff]
    %v8145 = vld [vmem:[#allocation15 + $0xa0] sm:$0xff]
    %v8146 = vld [vmem:[#allocation15 + $0xa8] sm:$0xff]
    %v8147 = vld [vmem:[#allocation15 + $0xb0] sm:$0xff]
    %v8148 = vld [vmem:[#allocation15 + $0xb8] sm:$0xff]
    %v8149 = vld [vmem:[#allocation15 + $0xc0] sm:$0xff]
    %v8150 = vld [vmem:[#allocation15 + $0xc8] sm:$0xff]
    %v8151 = vld [vmem:[#allocation15 + $0xd0] sm:$0xff]
    %v8152 = vld [vmem:[#allocation15 + $0xd8] sm:$0xff]
    %v8153 = vld [vmem:[#allocation15 + $0xe0] sm:$0xff]
    %v8154 = vld [vmem:[#allocation15 + $0xe8] sm:$0xff]
    %v8155 = vld [vmem:[#allocation15 + $0xf0] sm:$0xff]
    %v8156 = vld [vmem:[#allocation15 + $0xf8] sm:$0xff]
    %v8189 = vunpack.c.l.b16 %v8125
    %v8190 = vunpack.c.h.b16 %v8125
    %v8191 = vunpack.c.l.b16 %v8126
    %v8192 = vunpack.c.h.b16 %v8126
    %v8193 = vunpack.c.l.b16 %v8127
    %v8194 = vunpack.c.h.b16 %v8127
    %v8195 = vunpack.c.l.b16 %v8128
    %v8196 = vunpack.c.h.b16 %v8128
    %v8197 = vunpack.c.l.b16 %v8129
    %v8198 = vunpack.c.h.b16 %v8129
    %v8199 = vunpack.c.l.b16 %v8130
    %v8200 = vunpack.c.h.b16 %v8130
    %v8201 = vunpack.c.l.b16 %v8131
    %v8202 = vunpack.c.h.b16 %v8131
    %v8203 = vunpack.c.l.b16 %v8132
    %v8204 = vunpack.c.h.b16 %v8132
    %v8205 = vunpack.c.l.b16 %v8133
    %v8206 = vunpack.c.h.b16 %v8133
    %v8207 = vunpack.c.l.b16 %v8134
    %v8208 = vunpack.c.h.b16 %v8134
    %v8209 = vunpack.c.l.b16 %v8135
    %v8210 = vunpack.c.h.b16 %v8135
    %v8211 = vunpack.c.l.b16 %v8136
    %v8212 = vunpack.c.h.b16 %v8136
    %v8213 = vunpack.c.l.b16 %v8137
    %v8214 = vunpack.c.h.b16 %v8137
    %v8215 = vunpack.c.l.b16 %v8138
    %v8216 = vunpack.c.h.b16 %v8138
    %v8217 = vunpack.c.l.b16 %v8139
    %v8218 = vunpack.c.h.b16 %v8139
    %v8219 = vunpack.c.l.b16 %v8140
    %v8220 = vunpack.c.h.b16 %v8140
    %v8221 = vunpack.c.l.b16 %v8141
    %v8222 = vunpack.c.h.b16 %v8141
    %v8223 = vunpack.c.l.b16 %v8142
    %v8224 = vunpack.c.h.b16 %v8142
    %v8225 = vunpack.c.l.b16 %v8143
    %v8226 = vunpack.c.h.b16 %v8143
    %v8227 = vunpack.c.l.b16 %v8144
    %v8228 = vunpack.c.h.b16 %v8144
    %v8229 = vunpack.c.l.b16 %v8145
    %v8230 = vunpack.c.h.b16 %v8145
    %v8231 = vunpack.c.l.b16 %v8146
    %v8232 = vunpack.c.h.b16 %v8146
    %v8233 = vunpack.c.l.b16 %v8147
    %v8234 = vunpack.c.h.b16 %v8147
    %v8235 = vunpack.c.l.b16 %v8148
    %v8236 = vunpack.c.h.b16 %v8148
    %v8237 = vunpack.c.l.b16 %v8149
    %v8238 = vunpack.c.h.b16 %v8149
    %v8239 = vunpack.c.l.b16 %v8150
    %v8240 = vunpack.c.h.b16 %v8150
    %v8241 = vunpack.c.l.b16 %v8151
    %v8242 = vunpack.c.h.b16 %v8151
    %v8243 = vunpack.c.l.b16 %v8152
    %v8244 = vunpack.c.h.b16 %v8152
    %v8245 = vunpack.c.l.b16 %v8153
    %v8246 = vunpack.c.h.b16 %v8153
    %v8247 = vunpack.c.l.b16 %v8154
    %v8248 = vunpack.c.h.b16 %v8154
    %v8249 = vunpack.c.l.b16 %v8155
    %v8250 = vunpack.c.h.b16 %v8155
    %v8251 = vunpack.c.l.b16 %v8156
    %v8252 = vunpack.c.h.b16 %v8156
    %v8253 = vpack.c.b16 %v8191, %v8189
    %v8254 = vpack.c.b16 %v8192, %v8190
    %v8255 = vpack.c.b16 %v8195, %v8193
    %v8256 = vpack.c.b16 %v8196, %v8194
    %v8257 = vpack.c.b16 %v8199, %v8197
    %v8258 = vpack.c.b16 %v8200, %v8198
    %v8259 = vpack.c.b16 %v8203, %v8201
    %v8260 = vpack.c.b16 %v8204, %v8202
    %v8261 = vpack.c.b16 %v8207, %v8205
    %v8262 = vpack.c.b16 %v8208, %v8206
    %v8263 = vpack.c.b16 %v8211, %v8209
    %v8264 = vpack.c.b16 %v8212, %v8210
    %v8265 = vpack.c.b16 %v8215, %v8213
    %v8266 = vpack.c.b16 %v8216, %v8214
    %v8267 = vpack.c.b16 %v8219, %v8217
    %v8268 = vpack.c.b16 %v8220, %v8218
    %v8269 = vpack.c.b16 %v8223, %v8221
    %v8270 = vpack.c.b16 %v8224, %v8222
    %v8271 = vpack.c.b16 %v8227, %v8225
    %v8272 = vpack.c.b16 %v8228, %v8226
    %v8273 = vpack.c.b16 %v8231, %v8229
    %v8274 = vpack.c.b16 %v8232, %v8230
    %v8275 = vpack.c.b16 %v8235, %v8233
    %v8276 = vpack.c.b16 %v8236, %v8234
    %v8277 = vpack.c.b16 %v8239, %v8237
    %v8278 = vpack.c.b16 %v8240, %v8238
    %v8279 = vpack.c.b16 %v8243, %v8241
    %v8280 = vpack.c.b16 %v8244, %v8242
    %v8281 = vpack.c.b16 %v8247, %v8245
    %v8282 = vpack.c.b16 %v8248, %v8246
    %v8283 = vpack.c.b16 %v8251, %v8249
    %v8284 = vpack.c.b16 %v8252, %v8250
    %8317 = vmatprep.subr.bf16.mxu0 %v8254
    %8318 = vmatpush1.bf16.msra.mxu0 %v8253
    %8319 = vmatprep.subr.bf16.mxu0 %v8256
    %8320 = vmatpush1.bf16.msra.mxu0 %v8255
    %8321 = vmatprep.subr.bf16.mxu0 %v8258
    %8322 = vmatpush1.bf16.msra.mxu0 %v8257
    %8323 = vmatprep.subr.bf16.mxu0 %v8260
    %8324 = vmatpush1.bf16.msra.mxu0 %v8259
    %8325 = vmatprep.subr.bf16.mxu0 %v8262
    %8326 = vmatpush1.bf16.msra.mxu0 %v8261
    %8327 = vmatprep.subr.bf16.mxu0 %v8264
    %8328 = vmatpush1.bf16.msra.mxu0 %v8263
    %8329 = vmatprep.subr.bf16.mxu0 %v8266
    %8330 = vmatpush1.bf16.msra.mxu0 %v8265
    %8331 = vmatprep.subr.bf16.mxu0 %v8268
    %8332 = vmatpush1.bf16.msra.mxu0 %v8267
    %8333 = vmatprep.subr.bf16.mxu0 %v8270
    %8334 = vmatpush1.bf16.msra.mxu0 %v8269
    %8335 = vmatprep.subr.bf16.mxu0 %v8272
    %8336 = vmatpush1.bf16.msra.mxu0 %v8271
    %8337 = vmatprep.subr.bf16.mxu0 %v8274
    %8338 = vmatpush1.bf16.msra.mxu0 %v8273
    %8339 = vmatprep.subr.bf16.mxu0 %v8276
    %8340 = vmatpush1.bf16.msra.mxu0 %v8275
    %8341 = vmatprep.subr.bf16.mxu0 %v8278
    %8342 = vmatpush1.bf16.msra.mxu0 %v8277
    %8343 = vmatprep.subr.bf16.mxu0 %v8280
    %8344 = vmatpush1.bf16.msra.mxu0 %v8279
    %8345 = vmatprep.subr.bf16.mxu0 %v8282
    %8346 = vmatpush1.bf16.msra.mxu0 %v8281
    %8347 = vmatprep.subr.bf16.mxu0 %v8284
    %8348 = vmatpush1.bf16.msra.mxu0 %v8283
    %8349 = vmatprep.mubr.bf16.mxu0 %v8124
    %8350 = vmatmul.mubr.bf16.gmra.mrb[0].mxu0 %v8123
    %v8351 = vpop.f32.mrb[0].mxu0
    %v8352 = vadd.f32 %v2861, %v8351
    %v8353 = vpop.f32.mrb[0].mxu0
    %v8354 = vadd.f32 %v2865, %v8353
    %v8355 = vpop.f32.mrb[0].mxu0
    %v8356 = vpop.f32.mrb[0].mxu0
    %8357 = vdwg.mxu0
    %v8358 = vsel %vm1450, %v8352, -inf
    %v8359 = vsel %vm1450, %v8354, -inf
    %v8360 = vmax.f32 %v8358, %v8359
    %8361 = vmax.xlane.f32.xlu0 %v8360
    %v8362 = vpop.xlane.xlu0 %8361
    %v8363 = vsub.f32 %v8352, %v8362
    %v8364 = vsub.f32 %v8354, %v8362
    %v8365 = vmul.f32 %v8363, 1.442695
    %v8366 = vpow.pop %v8365
    %v8367 = vmul.f32 %v8364, 1.442695
    %v8368 = vpow.pop %v8367
    %v8369 = vsel %vm1450, %v8366, 0.0
    %v8370 = vsel %vm1450, %v8368, 0.0
    %v8371 = vadd.f32 %v8369, %v8370
    %8372 = vadd.xlane.f32.xlu0 %v8371
    %v8373 = vpop.xlane.xlu0 %8372
    %v8374 = vlog2.pop %v8373
    %v8375 = vmul.f32 %v8374, 0.6931472
    %v8376 = vsub.f32 %v8363, %v8375
    %v8377 = vsub.f32 %v8364, %v8375
    %v8380 = vcombine.low %v8376, %v8377
    %v8382 = vunpack.c.l.s4 1966171168
    %v8383 = vunpack.c.0.s8 %v8382
    %v8384 = vlaneseq
    %v8385 = vshrl.u32 %v8384, 7
    %v8386 = vsub.s32 %v8383, %v8385
    %v8387 = vrot.slane %v8380, %v8386
    %v8389 = vunpack.c.l.s4 1966171168
    %v8390 = vunpack.c.0.s8 %v8389
    %v8391 = vlaneseq
    %v8392 = vshrl.u32 %v8391, 7
    %v8393 = vsub.s32 %v8390, %v8392
    %v8394 = vrot.slane %v8387, %v8393
    %s8396 = scalar_lea.vmem [#allocation16], 4
    %8397 = vst.msk [vmem:[%s8396] sm:$0x3] %vm2661, %v8394
    %s8398 = sld [smem:[#allocation3 + $0x3]]
    %s8399 = sshra.s32 %s8398, 3
    %s8400 = sand.u32 %s8398, 7
    %s8401 = sshra.s32 %s8398, 3
    %s8402 = sand.u32 %s8398, 7
    %s8403 = smul.u32 %s8399, 2
    %s8404 = smul.u32 %s8403, 8
    %s8405 = sadd.s32 %s8404, %s8402
    %s8406 = scalar_lea.vmem [#allocation4], %s8405
    %v8407 = vld [vmem:[%s8406] ss:$8 sm:$0x3]
    %v8409 = vlaneseq
    %v8410 = vshrl.u32 %v8409, 7
    %v8411 = vsub.s32 0, %v8410
    %v8412 = vrot.slane %v8407, %v8411
    %v8413 = vlaneseq
    %v8414 = vshrl.u32 %v8413, 7
    %v8415 = vsub.s32 1, %v8414
    %v8416 = vrot.slane %v8407, %v8415
    %v8419 = vpack.c.bf16 %v8412, %v8412
    %v8420 = vpack.c.bf16 %v8416, %v8416
    %v8421 = vld [vmem:[#allocation9] sm:$0xff]
    %v8422 = vld [vmem:[#allocation9 + $0x8] sm:$0xf]
    %v8423 = vld [vmem:[#allocation9 + $0xc] sm:$0xff]
    %v8424 = vld [vmem:[#allocation9 + $0x14] sm:$0xf]
    %v8425 = vld [vmem:[#allocation9 + $0x18] sm:$0xff]
    %v8426 = vld [vmem:[#allocation9 + $0x20] sm:$0xf]
    %v8427 = vld [vmem:[#allocation9 + $0x24] sm:$0xff]
    %v8428 = vld [vmem:[#allocation9 + $0x2c] sm:$0xf]
    %v8429 = vld [vmem:[#allocation9 + $0x30] sm:$0xff]
    %v8430 = vld [vmem:[#allocation9 + $0x38] sm:$0xf]
    %v8431 = vld [vmem:[#allocation9 + $0x3c] sm:$0xff]
    %v8432 = vld [vmem:[#allocation9 + $0x44] sm:$0xf]
    %v8433 = vld [vmem:[#allocation9 + $0x48] sm:$0xff]
    %v8434 = vld [vmem:[#allocation9 + $0x50] sm:$0xf]
    %v8435 = vld [vmem:[#allocation9 + $0x54] sm:$0xff]
    %v8436 = vld [vmem:[#allocation9 + $0x5c] sm:$0xf]
    %v8437 = vld [vmem:[#allocation9 + $0x60] sm:$0xff]
    %v8438 = vld [vmem:[#allocation9 + $0x68] sm:$0xf]
    %v8439 = vld [vmem:[#allocation9 + $0x6c] sm:$0xff]
    %v8440 = vld [vmem:[#allocation9 + $0x74] sm:$0xf]
    %v8441 = vld [vmem:[#allocation9 + $0x78] sm:$0xff]
    %v8442 = vld [vmem:[#allocation9 + $0x80] sm:$0xf]
    %v8443 = vld [vmem:[#allocation9 + $0x84] sm:$0xff]
    %v8444 = vld [vmem:[#allocation9 + $0x8c] sm:$0xf]
    %v8445 = vld [vmem:[#allocation9 + $0x90] sm:$0xff]
    %v8446 = vld [vmem:[#allocation9 + $0x98] sm:$0xf]
    %v8447 = vld [vmem:[#allocation9 + $0x9c] sm:$0xff]
    %v8448 = vld [vmem:[#allocation9 + $0xa4] sm:$0xf]
    %v8449 = vld [vmem:[#allocation9 + $0xa8] sm:$0xff]
    %v8450 = vld [vmem:[#allocation9 + $0xb0] sm:$0xf]
    %v8451 = vld [vmem:[#allocation9 + $0xb4] sm:$0xff]
    %v8452 = vld [vmem:[#allocation9 + $0xbc] sm:$0xf]
    %v8453 = vld [vmem:[#allocation9 + $0xc0] sm:$0xff]
    %v8454 = vld [vmem:[#allocation9 + $0xc8] sm:$0xf]
    %v8455 = vld [vmem:[#allocation9 + $0xcc] sm:$0xff]
    %v8456 = vld [vmem:[#allocation9 + $0xd4] sm:$0xf]
    %v8457 = vld [vmem:[#allocation9 + $0xd8] sm:$0xff]
    %v8458 = vld [vmem:[#allocation9 + $0xe0] sm:$0xf]
    %v8459 = vld [vmem:[#allocation9 + $0xe4] sm:$0xff]
    %v8460 = vld [vmem:[#allocation9 + $0xec] sm:$0xf]
    %v8461 = vld [vmem:[#allocation9 + $0xf0] sm:$0xff]
    %v8462 = vld [vmem:[#allocation9 + $0xf8] sm:$0xf]
    %v8463 = vld [vmem:[#allocation9 + $0xfc] sm:$0xff]
    %v8464 = vld [vmem:[#allocation9 + $0x104] sm:$0xf]
    %v8465 = vld [vmem:[#allocation9 + $0x108] sm:$0xff]
    %v8466 = vld [vmem:[#allocation9 + $0x110] sm:$0xf]
    %v8467 = vld [vmem:[#allocation9 + $0x114] sm:$0xff]
    %v8468 = vld [vmem:[#allocation9 + $0x11c] sm:$0xf]
    %v8469 = vld [vmem:[#allocation9 + $0x120] sm:$0xff]
    %v8470 = vld [vmem:[#allocation9 + $0x128] sm:$0xf]
    %v8471 = vld [vmem:[#allocation9 + $0x12c] sm:$0xff]
    %v8472 = vld [vmem:[#allocation9 + $0x134] sm:$0xf]
    %v8473 = vld [vmem:[#allocation9 + $0x138] sm:$0xff]
    %v8474 = vld [vmem:[#allocation9 + $0x140] sm:$0xf]
    %v8475 = vld [vmem:[#allocation9 + $0x144] sm:$0xff]
    %v8476 = vld [vmem:[#allocation9 + $0x14c] sm:$0xf]
    %v8477 = vld [vmem:[#allocation9 + $0x150] sm:$0xff]
    %v8478 = vld [vmem:[#allocation9 + $0x158] sm:$0xf]
    %v8479 = vld [vmem:[#allocation9 + $0x15c] sm:$0xff]
    %v8480 = vld [vmem:[#allocation9 + $0x164] sm:$0xf]
    %v8481 = vld [vmem:[#allocation9 + $0x168] sm:$0xff]
    %v8482 = vld [vmem:[#allocation9 + $0x170] sm:$0xf]
    %v8483 = vld [vmem:[#allocation9 + $0x174] sm:$0xff]
    %v8484 = vld [vmem:[#allocation9 + $0x17c] sm:$0xf]
    %v8549 = vunpack.c.l.b16 %v8421
    %v8550 = vunpack.c.h.b16 %v8421
    %v8551 = vunpack.c.l.b16 %v8422
    %v8552 = vunpack.c.l.b16 %v8423
    %v8553 = vunpack.c.h.b16 %v8423
    %v8554 = vunpack.c.l.b16 %v8424
    %v8555 = vunpack.c.l.b16 %v8425
    %v8556 = vunpack.c.h.b16 %v8425
    %v8557 = vunpack.c.l.b16 %v8426
    %v8558 = vunpack.c.l.b16 %v8427
    %v8559 = vunpack.c.h.b16 %v8427
    %v8560 = vunpack.c.l.b16 %v8428
    %v8561 = vunpack.c.l.b16 %v8429
    %v8562 = vunpack.c.h.b16 %v8429
    %v8563 = vunpack.c.l.b16 %v8430
    %v8564 = vunpack.c.l.b16 %v8431
    %v8565 = vunpack.c.h.b16 %v8431
    %v8566 = vunpack.c.l.b16 %v8432
    %v8567 = vunpack.c.l.b16 %v8433
    %v8568 = vunpack.c.h.b16 %v8433
    %v8569 = vunpack.c.l.b16 %v8434
    %v8570 = vunpack.c.l.b16 %v8435
    %v8571 = vunpack.c.h.b16 %v8435
    %v8572 = vunpack.c.l.b16 %v8436
    %v8573 = vunpack.c.l.b16 %v8437
    %v8574 = vunpack.c.h.b16 %v8437
    %v8575 = vunpack.c.l.b16 %v8438
    %v8576 = vunpack.c.l.b16 %v8439
    %v8577 = vunpack.c.h.b16 %v8439
    %v8578 = vunpack.c.l.b16 %v8440
    %v8579 = vunpack.c.l.b16 %v8441
    %v8580 = vunpack.c.h.b16 %v8441
    %v8581 = vunpack.c.l.b16 %v8442
    %v8582 = vunpack.c.l.b16 %v8443
    %v8583 = vunpack.c.h.b16 %v8443
    %v8584 = vunpack.c.l.b16 %v8444
    %v8585 = vunpack.c.l.b16 %v8445
    %v8586 = vunpack.c.h.b16 %v8445
    %v8587 = vunpack.c.l.b16 %v8446
    %v8588 = vunpack.c.l.b16 %v8447
    %v8589 = vunpack.c.h.b16 %v8447
    %v8590 = vunpack.c.l.b16 %v8448
    %v8591 = vunpack.c.l.b16 %v8449
    %v8592 = vunpack.c.h.b16 %v8449
    %v8593 = vunpack.c.l.b16 %v8450
    %v8594 = vunpack.c.l.b16 %v8451
    %v8595 = vunpack.c.h.b16 %v8451
    %v8596 = vunpack.c.l.b16 %v8452
    %v8597 = vunpack.c.l.b16 %v8453
    %v8598 = vunpack.c.h.b16 %v8453
    %v8599 = vunpack.c.l.b16 %v8454
    %v8600 = vunpack.c.l.b16 %v8455
    %v8601 = vunpack.c.h.b16 %v8455
    %v8602 = vunpack.c.l.b16 %v8456
    %v8603 = vunpack.c.l.b16 %v8457
    %v8604 = vunpack.c.h.b16 %v8457
    %v8605 = vunpack.c.l.b16 %v8458
    %v8606 = vunpack.c.l.b16 %v8459
    %v8607 = vunpack.c.h.b16 %v8459
    %v8608 = vunpack.c.l.b16 %v8460
    %v8609 = vunpack.c.l.b16 %v8461
    %v8610 = vunpack.c.h.b16 %v8461
    %v8611 = vunpack.c.l.b16 %v8462
    %v8612 = vunpack.c.l.b16 %v8463
    %v8613 = vunpack.c.h.b16 %v8463
    %v8614 = vunpack.c.l.b16 %v8464
    %v8615 = vunpack.c.l.b16 %v8465
    %v8616 = vunpack.c.h.b16 %v8465
    %v8617 = vunpack.c.l.b16 %v8466
    %v8618 = vunpack.c.l.b16 %v8467
    %v8619 = vunpack.c.h.b16 %v8467
    %v8620 = vunpack.c.l.b16 %v8468
    %v8621 = vunpack.c.l.b16 %v8469
    %v8622 = vunpack.c.h.b16 %v8469
    %v8623 = vunpack.c.l.b16 %v8470
    %v8624 = vunpack.c.l.b16 %v8471
    %v8625 = vunpack.c.h.b16 %v8471
    %v8626 = vunpack.c.l.b16 %v8472
    %v8627 = vunpack.c.l.b16 %v8473
    %v8628 = vunpack.c.h.b16 %v8473
    %v8629 = vunpack.c.l.b16 %v8474
    %v8630 = vunpack.c.l.b16 %v8475
    %v8631 = vunpack.c.h.b16 %v8475
    %v8632 = vunpack.c.l.b16 %v8476
    %v8633 = vunpack.c.l.b16 %v8477
    %v8634 = vunpack.c.h.b16 %v8477
    %v8635 = vunpack.c.l.b16 %v8478
    %v8636 = vunpack.c.l.b16 %v8479
    %v8637 = vunpack.c.h.b16 %v8479
    %v8638 = vunpack.c.l.b16 %v8480
    %v8639 = vunpack.c.l.b16 %v8481
    %v8640 = vunpack.c.h.b16 %v8481
    %v8641 = vunpack.c.l.b16 %v8482
    %v8642 = vunpack.c.l.b16 %v8483
    %v8643 = vunpack.c.h.b16 %v8483
    %v8644 = vunpack.c.l.b16 %v8484
    %v8645 = vpack.c.b16 %v8552, %v8549
    %v8646 = vpack.c.b16 %v8553, %v8550
    %v8647 = vpack.c.b16 %v8554, %v8551
    %v8648 = vpack.c.b16 %v8558, %v8555
    %v8649 = vpack.c.b16 %v8559, %v8556
    %v8650 = vpack.c.b16 %v8560, %v8557
    %v8651 = vpack.c.b16 %v8564, %v8561
    %v8652 = vpack.c.b16 %v8565, %v8562
    %v8653 = vpack.c.b16 %v8566, %v8563
    %v8654 = vpack.c.b16 %v8570, %v8567
    %v8655 = vpack.c.b16 %v8571, %v8568
    %v8656 = vpack.c.b16 %v8572, %v8569
    %v8657 = vpack.c.b16 %v8576, %v8573
    %v8658 = vpack.c.b16 %v8577, %v8574
    %v8659 = vpack.c.b16 %v8578, %v8575
    %v8660 = vpack.c.b16 %v8582, %v8579
    %v8661 = vpack.c.b16 %v8583, %v8580
    %v8662 = vpack.c.b16 %v8584, %v8581
    %v8663 = vpack.c.b16 %v8588, %v8585
    %v8664 = vpack.c.b16 %v8589, %v8586
    %v8665 = vpack.c.b16 %v8590, %v8587
    %v8666 = vpack.c.b16 %v8594, %v8591
    %v8667 = vpack.c.b16 %v8595, %v8592
    %v8668 = vpack.c.b16 %v8596, %v8593
    %v8669 = vpack.c.b16 %v8600, %v8597
    %v8670 = vpack.c.b16 %v8601, %v8598
    %v8671 = vpack.c.b16 %v8602, %v8599
    %v8672 = vpack.c.b16 %v8606, %v8603
    %v8673 = vpack.c.b16 %v8607, %v8604
    %v8674 = vpack.c.b16 %v8608, %v8605
    %v8675 = vpack.c.b16 %v8612, %v8609
    %v8676 = vpack.c.b16 %v8613, %v8610
    %v8677 = vpack.c.b16 %v8614, %v8611
    %v8678 = vpack.c.b16 %v8618, %v8615
    %v8679 = vpack.c.b16 %v8619, %v8616
    %v8680 = vpack.c.b16 %v8620, %v8617
    %v8681 = vpack.c.b16 %v8624, %v8621
    %v8682 = vpack.c.b16 %v8625, %v8622
    %v8683 = vpack.c.b16 %v8626, %v8623
    %v8684 = vpack.c.b16 %v8630, %v8627
    %v8685 = vpack.c.b16 %v8631, %v8628
    %v8686 = vpack.c.b16 %v8632, %v8629
    %v8687 = vpack.c.b16 %v8636, %v8633
    %v8688 = vpack.c.b16 %v8637, %v8634
    %v8689 = vpack.c.b16 %v8638, %v8635
    %v8690 = vpack.c.b16 %v8642, %v8639
    %v8691 = vpack.c.b16 %v8643, %v8640
    %v8692 = vpack.c.b16 %v8644, %v8641
    %8741 = vmatprep.subr.bf16.mxu0 %v8646
    %8742 = vmatpush1.bf16.msra.mxu0 %v8645
    %8743 = vmatprep.subr.bf16.mxu0 %v8649
    %8744 = vmatpush1.bf16.msra.mxu0 %v8648
    %8745 = vmatprep.subr.bf16.mxu0 %v8652
    %8746 = vmatpush1.bf16.msra.mxu0 %v8651
    %8747 = vmatprep.subr.bf16.mxu0 %v8655
    %8748 = vmatpush1.bf16.msra.mxu0 %v8654
    %8749 = vmatprep.subr.bf16.mxu0 %v8658
    %8750 = vmatpush1.bf16.msra.mxu0 %v8657
    %8751 = vmatprep.subr.bf16.mxu0 %v8661
    %8752 = vmatpush1.bf16.msra.mxu0 %v8660
    %8753 = vmatprep.subr.bf16.mxu0 %v8664
    %8754 = vmatpush1.bf16.msra.mxu0 %v8663
    %8755 = vmatprep.subr.bf16.mxu0 %v8667
    %8756 = vmatpush1.bf16.msra.mxu0 %v8666
    %8757 = vmatprep.subr.bf16.mxu0 %v8670
    %8758 = vmatpush1.bf16.msra.mxu0 %v8669
    %8759 = vmatprep.subr.bf16.mxu0 %v8673
    %8760 = vmatpush1.bf16.msra.mxu0 %v8672
    %8761 = vmatprep.subr.bf16.mxu0 %v8676
    %8762 = vmatpush1.bf16.msra.mxu0 %v8675
    %8763 = vmatprep.subr.bf16.mxu0 %v8679
    %8764 = vmatpush1.bf16.msra.mxu0 %v8678
    %8765 = vmatprep.subr.bf16.mxu0 %v8682
    %8766 = vmatpush1.bf16.msra.mxu0 %v8681
    %8767 = vmatprep.subr.bf16.mxu0 %v8685
    %8768 = vmatpush1.bf16.msra.mxu0 %v8684
    %8769 = vmatprep.subr.bf16.mxu0 %v8688
    %8770 = vmatpush1.bf16.msra.mxu0 %v8687
    %8771 = vmatprep.subr.bf16.mxu0 %v8691
    %8772 = vmatpush1.bf16.msra.mxu0 %v8690
    %8773 = vmatprep.mubr.bf16.mxu0 %v8420
    %8774 = vmatmul.mubr.bf16.gmra.mrb[0].mxu0 %v8419
    %v8775 = vpop.f32.mrb[0].mxu0
    %v8776 = vadd.f32 0.0, %v8775
    %v8777 = vpop.f32.mrb[0].mxu0
    %v8778 = vadd.f32 0.0, %v8777
    %v8779 = vpop.f32.mrb[0].mxu0
    %v8780 = vpop.f32.mrb[0].mxu0
    %8781 = vdwg.mxu0
    %8782 = vmatprep.subr.bf16.mxu0 0
    %8783 = vmatpush1.bf16.msra.mxu0 %v8647
    %8784 = vmatprep.subr.bf16.mxu0 0
    %8785 = vmatpush1.bf16.msra.mxu0 %v8650
    %8786 = vmatprep.subr.bf16.mxu0 0
    %8787 = vmatpush1.bf16.msra.mxu0 %v8653
    %8788 = vmatprep.subr.bf16.mxu0 0
    %8789 = vmatpush1.bf16.msra.mxu0 %v8656
    %8790 = vmatprep.subr.bf16.mxu0 0
    %8791 = vmatpush1.bf16.msra.mxu0 %v8659
    %8792 = vmatprep.subr.bf16.mxu0 0
    %8793 = vmatpush1.bf16.msra.mxu0 %v8662
    %8794 = vmatprep.subr.bf16.mxu0 0
    %8795 = vmatpush1.bf16.msra.mxu0 %v8665
    %8796 = vmatprep.subr.bf16.mxu0 0
    %8797 = vmatpush1.bf16.msra.mxu0 %v8668
    %8798 = vmatprep.subr.bf16.mxu0 0
    %8799 = vmatpush1.bf16.msra.mxu0 %v8671
    %8800 = vmatprep.subr.bf16.mxu0 0
    %8801 = vmatpush1.bf16.msra.mxu0 %v8674
    %8802 = vmatprep.subr.bf16.mxu0 0
    %8803 = vmatpush1.bf16.msra.mxu0 %v8677
    %8804 = vmatprep.subr.bf16.mxu0 0
    %8805 = vmatpush1.bf16.msra.mxu0 %v8680
    %8806 = vmatprep.subr.bf16.mxu0 0
    %8807 = vmatpush1.bf16.msra.mxu0 %v8683
    %8808 = vmatprep.subr.bf16.mxu0 0
    %8809 = vmatpush1.bf16.msra.mxu0 %v8686
    %8810 = vmatprep.subr.bf16.mxu0 0
    %8811 = vmatpush1.bf16.msra.mxu0 %v8689
    %8812 = vmatprep.subr.bf16.mxu0 0
    %8813 = vmatpush1.bf16.msra.mxu0 %v8692
    %8814 = vmatprep.mubr.bf16.mxu0 %v8420
    %8815 = vmatmul.mubr.bf16.gmra.mrb[0].mxu0 %v8419
    %v8816 = vpop.f32.mrb[0].mxu0
    %v8817 = vadd.f32 0.0, %v8816
    %v8818 = vpop.f32.mrb[0].mxu0
    %v8819 = vpop.f32.mrb[0].mxu0
    %v8820 = vpop.f32.mrb[0].mxu0
    %8821 = vdwg.mxu0
    %v8822 = vld [vmem:[#allocation10] sm:$0xff]
    %v8823 = vld [vmem:[#allocation10 + $0x8] sm:$0xff]
    %v8824 = vld [vmem:[#allocation10 + $0x10] sm:$0xff]
    %v8825 = vld [vmem:[#allocation10 + $0x18] sm:$0xf]
    %v8826 = vld [vmem:[#allocation10 + $0x1c] sm:$0xff]
    %v8827 = vld [vmem:[#allocation10 + $0x24] sm:$0xff]
    %v8828 = vld [vmem:[#allocation10 + $0x2c] sm:$0xff]
    %v8829 = vld [vmem:[#allocation10 + $0x34] sm:$0xf]
    %v8830 = vld [vmem:[#allocation10 + $0x38] sm:$0xff]
    %v8831 = vld [vmem:[#allocation10 + $0x40] sm:$0xff]
    %v8832 = vld [vmem:[#allocation10 + $0x48] sm:$0xff]
    %v8833 = vld [vmem:[#allocation10 + $0x50] sm:$0xf]
    %v8834 = vld [vmem:[#allocation10 + $0x54] sm:$0xff]
    %v8835 = vld [vmem:[#allocation10 + $0x5c] sm:$0xff]
    %v8836 = vld [vmem:[#allocation10 + $0x64] sm:$0xff]
    %v8837 = vld [vmem:[#allocation10 + $0x6c] sm:$0xf]
    %v8838 = vld [vmem:[#allocation10 + $0x70] sm:$0xff]
    %v8839 = vld [vmem:[#allocation10 + $0x78] sm:$0xff]
    %v8840 = vld [vmem:[#allocation10 + $0x80] sm:$0xff]
    %v8841 = vld [vmem:[#allocation10 + $0x88] sm:$0xf]
    %v8842 = vld [vmem:[#allocation10 + $0x8c] sm:$0xff]
    %v8843 = vld [vmem:[#allocation10 + $0x94] sm:$0xff]
    %v8844 = vld [vmem:[#allocation10 + $0x9c] sm:$0xff]
    %v8845 = vld [vmem:[#allocation10 + $0xa4] sm:$0xf]
    %v8846 = vld [vmem:[#allocation10 + $0xa8] sm:$0xff]
    %v8847 = vld [vmem:[#allocation10 + $0xb0] sm:$0xff]
    %v8848 = vld [vmem:[#allocation10 + $0xb8] sm:$0xff]
    %v8849 = vld [vmem:[#allocation10 + $0xc0] sm:$0xf]
    %v8850 = vld [vmem:[#allocation10 + $0xc4] sm:$0xff]
    %v8851 = vld [vmem:[#allocation10 + $0xcc] sm:$0xff]
    %v8852 = vld [vmem:[#allocation10 + $0xd4] sm:$0xff]
    %v8853 = vld [vmem:[#allocation10 + $0xdc] sm:$0xf]
    %v8854 = vld [vmem:[#allocation10 + $0xe0] sm:$0xff]
    %v8855 = vld [vmem:[#allocation10 + $0xe8] sm:$0xff]
    %v8856 = vld [vmem:[#allocation10 + $0xf0] sm:$0xff]
    %v8857 = vld [vmem:[#allocation10 + $0xf8] sm:$0xf]
    %v8858 = vld [vmem:[#allocation10 + $0xfc] sm:$0xff]
    %v8859 = vld [vmem:[#allocation10 + $0x104] sm:$0xff]
    %v8860 = vld [vmem:[#allocation10 + $0x10c] sm:$0xff]
    %v8861 = vld [vmem:[#allocation10 + $0x114] sm:$0xf]
    %v8862 = vld [vmem:[#allocation10 + $0x118] sm:$0xff]
    %v8863 = vld [vmem:[#allocation10 + $0x120] sm:$0xff]
    %v8864 = vld [vmem:[#allocation10 + $0x128] sm:$0xff]
    %v8865 = vld [vmem:[#allocation10 + $0x130] sm:$0xf]
    %v8866 = vld [vmem:[#allocation10 + $0x134] sm:$0xff]
    %v8867 = vld [vmem:[#allocation10 + $0x13c] sm:$0xff]
    %v8868 = vld [vmem:[#allocation10 + $0x144] sm:$0xff]
    %v8869 = vld [vmem:[#allocation10 + $0x14c] sm:$0xf]
    %v8870 = vld [vmem:[#allocation10 + $0x150] sm:$0xff]
    %v8871 = vld [vmem:[#allocation10 + $0x158] sm:$0xff]
    %v8872 = vld [vmem:[#allocation10 + $0x160] sm:$0xff]
    %v8873 = vld [vmem:[#allocation10 + $0x168] sm:$0xf]
    %v8874 = vld [vmem:[#allocation10 + $0x16c] sm:$0xff]
    %v8875 = vld [vmem:[#allocation10 + $0x174] sm:$0xff]
    %v8876 = vld [vmem:[#allocation10 + $0x17c] sm:$0xff]
    %v8877 = vld [vmem:[#allocation10 + $0x184] sm:$0xf]
    %v8878 = vld [vmem:[#allocation10 + $0x188] sm:$0xff]
    %v8879 = vld [vmem:[#allocation10 + $0x190] sm:$0xff]
    %v8880 = vld [vmem:[#allocation10 + $0x198] sm:$0xff]
    %v8881 = vld [vmem:[#allocation10 + $0x1a0] sm:$0xf]
    %v8882 = vld [vmem:[#allocation10 + $0x1a4] sm:$0xff]
    %v8883 = vld [vmem:[#allocation10 + $0x1ac] sm:$0xff]
    %v8884 = vld [vmem:[#allocation10 + $0x1b4] sm:$0xff]
    %v8885 = vld [vmem:[#allocation10 + $0x1bc] sm:$0xf]
    %v8886 = vld [vmem:[#allocation10 + $0x1c0] sm:$0xff]
    %v8887 = vld [vmem:[#allocation10 + $0x1c8] sm:$0xff]
    %v8888 = vld [vmem:[#allocation10 + $0x1d0] sm:$0xff]
    %v8889 = vld [vmem:[#allocation10 + $0x1d8] sm:$0xf]
    %v8890 = vld [vmem:[#allocation10 + $0x1dc] sm:$0xff]
    %v8891 = vld [vmem:[#allocation10 + $0x1e4] sm:$0xff]
    %v8892 = vld [vmem:[#allocation10 + $0x1ec] sm:$0xff]
    %v8893 = vld [vmem:[#allocation10 + $0x1f4] sm:$0xf]
    %v8894 = vld [vmem:[#allocation10 + $0x1f8] sm:$0xff]
    %v8895 = vld [vmem:[#allocation10 + $0x200] sm:$0xff]
    %v8896 = vld [vmem:[#allocation10 + $0x208] sm:$0xff]
    %v8897 = vld [vmem:[#allocation10 + $0x210] sm:$0xf]
    %v8898 = vld [vmem:[#allocation10 + $0x214] sm:$0xff]
    %v8899 = vld [vmem:[#allocation10 + $0x21c] sm:$0xff]
    %v8900 = vld [vmem:[#allocation10 + $0x224] sm:$0xff]
    %v8901 = vld [vmem:[#allocation10 + $0x22c] sm:$0xf]
    %v8902 = vld [vmem:[#allocation10 + $0x230] sm:$0xff]
    %v8903 = vld [vmem:[#allocation10 + $0x238] sm:$0xff]
    %v8904 = vld [vmem:[#allocation10 + $0x240] sm:$0xff]
    %v8905 = vld [vmem:[#allocation10 + $0x248] sm:$0xf]
    %v8906 = vld [vmem:[#allocation10 + $0x24c] sm:$0xff]
    %v8907 = vld [vmem:[#allocation10 + $0x254] sm:$0xff]
    %v8908 = vld [vmem:[#allocation10 + $0x25c] sm:$0xff]
    %v8909 = vld [vmem:[#allocation10 + $0x264] sm:$0xf]
    %v8910 = vld [vmem:[#allocation10 + $0x268] sm:$0xff]
    %v8911 = vld [vmem:[#allocation10 + $0x270] sm:$0xff]
    %v8912 = vld [vmem:[#allocation10 + $0x278] sm:$0xff]
    %v8913 = vld [vmem:[#allocation10 + $0x280] sm:$0xf]
    %v8914 = vld [vmem:[#allocation10 + $0x284] sm:$0xff]
    %v8915 = vld [vmem:[#allocation10 + $0x28c] sm:$0xff]
    %v8916 = vld [vmem:[#allocation10 + $0x294] sm:$0xff]
    %v8917 = vld [vmem:[#allocation10 + $0x29c] sm:$0xf]
    %v8918 = vld [vmem:[#allocation10 + $0x2a0] sm:$0xff]
    %v8919 = vld [vmem:[#allocation10 + $0x2a8] sm:$0xff]
    %v8920 = vld [vmem:[#allocation10 + $0x2b0] sm:$0xff]
    %v8921 = vld [vmem:[#allocation10 + $0x2b8] sm:$0xf]
    %v8922 = vld [vmem:[#allocation10 + $0x2bc] sm:$0xff]
    %v8923 = vld [vmem:[#allocation10 + $0x2c4] sm:$0xff]
    %v8924 = vld [vmem:[#allocation10 + $0x2cc] sm:$0xff]
    %v8925 = vld [vmem:[#allocation10 + $0x2d4] sm:$0xf]
    %v8926 = vld [vmem:[#allocation10 + $0x2d8] sm:$0xff]
    %v8927 = vld [vmem:[#allocation10 + $0x2e0] sm:$0xff]
    %v8928 = vld [vmem:[#allocation10 + $0x2e8] sm:$0xff]
    %v8929 = vld [vmem:[#allocation10 + $0x2f0] sm:$0xf]
    %v8930 = vld [vmem:[#allocation10 + $0x2f4] sm:$0xff]
    %v8931 = vld [vmem:[#allocation10 + $0x2fc] sm:$0xff]
    %v8932 = vld [vmem:[#allocation10 + $0x304] sm:$0xff]
    %v8933 = vld [vmem:[#allocation10 + $0x30c] sm:$0xf]
    %v8934 = vld [vmem:[#allocation10 + $0x310] sm:$0xff]
    %v8935 = vld [vmem:[#allocation10 + $0x318] sm:$0xff]
    %v8936 = vld [vmem:[#allocation10 + $0x320] sm:$0xff]
    %v8937 = vld [vmem:[#allocation10 + $0x328] sm:$0xf]
    %v8938 = vld [vmem:[#allocation10 + $0x32c] sm:$0xff]
    %v8939 = vld [vmem:[#allocation10 + $0x334] sm:$0xff]
    %v8940 = vld [vmem:[#allocation10 + $0x33c] sm:$0xff]
    %v8941 = vld [vmem:[#allocation10 + $0x344] sm:$0xf]
    %v8942 = vld [vmem:[#allocation10 + $0x348] sm:$0xff]
    %v8943 = vld [vmem:[#allocation10 + $0x350] sm:$0xff]
    %v8944 = vld [vmem:[#allocation10 + $0x358] sm:$0xff]
    %v8945 = vld [vmem:[#allocation10 + $0x360] sm:$0xf]
    %v8946 = vld [vmem:[#allocation10 + $0x364] sm:$0xff]
    %v8947 = vld [vmem:[#allocation10 + $0x36c] sm:$0xff]
    %v8948 = vld [vmem:[#allocation10 + $0x374] sm:$0xff]
    %v8949 = vld [vmem:[#allocation10 + $0x37c] sm:$0xf]
    %v9078 = vunpack.c.l.b16 %v8822
    %v9079 = vunpack.c.h.b16 %v8822
    %v9080 = vunpack.c.l.b16 %v8823
    %v9081 = vunpack.c.h.b16 %v8823
    %v9082 = vunpack.c.l.b16 %v8824
    %v9083 = vunpack.c.h.b16 %v8824
    %v9084 = vunpack.c.l.b16 %v8825
    %v9085 = vunpack.c.l.b16 %v8826
    %v9086 = vunpack.c.h.b16 %v8826
    %v9087 = vunpack.c.l.b16 %v8827
    %v9088 = vunpack.c.h.b16 %v8827
    %v9089 = vunpack.c.l.b16 %v8828
    %v9090 = vunpack.c.h.b16 %v8828
    %v9091 = vunpack.c.l.b16 %v8829
    %v9092 = vunpack.c.l.b16 %v8830
    %v9093 = vunpack.c.h.b16 %v8830
    %v9094 = vunpack.c.l.b16 %v8831
    %v9095 = vunpack.c.h.b16 %v8831
    %v9096 = vunpack.c.l.b16 %v8832
    %v9097 = vunpack.c.h.b16 %v8832
    %v9098 = vunpack.c.l.b16 %v8833
    %v9099 = vunpack.c.l.b16 %v8834
    %v9100 = vunpack.c.h.b16 %v8834
    %v9101 = vunpack.c.l.b16 %v8835
    %v9102 = vunpack.c.h.b16 %v8835
    %v9103 = vunpack.c.l.b16 %v8836
    %v9104 = vunpack.c.h.b16 %v8836
    %v9105 = vunpack.c.l.b16 %v8837
    %v9106 = vunpack.c.l.b16 %v8838
    %v9107 = vunpack.c.h.b16 %v8838
    %v9108 = vunpack.c.l.b16 %v8839
    %v9109 = vunpack.c.h.b16 %v8839
    %v9110 = vunpack.c.l.b16 %v8840
    %v9111 = vunpack.c.h.b16 %v8840
    %v9112 = vunpack.c.l.b16 %v8841
    %v9113 = vunpack.c.l.b16 %v8842
    %v9114 = vunpack.c.h.b16 %v8842
    %v9115 = vunpack.c.l.b16 %v8843
    %v9116 = vunpack.c.h.b16 %v8843
    %v9117 = vunpack.c.l.b16 %v8844
    %v9118 = vunpack.c.h.b16 %v8844
    %v9119 = vunpack.c.l.b16 %v8845
    %v9120 = vunpack.c.l.b16 %v8846
    %v9121 = vunpack.c.h.b16 %v8846
    %v9122 = vunpack.c.l.b16 %v8847
    %v9123 = vunpack.c.h.b16 %v8847
    %v9124 = vunpack.c.l.b16 %v8848
    %v9125 = vunpack.c.h.b16 %v8848
    %v9126 = vunpack.c.l.b16 %v8849
    %v9127 = vunpack.c.l.b16 %v8850
    %v9128 = vunpack.c.h.b16 %v8850
    %v9129 = vunpack.c.l.b16 %v8851
    %v9130 = vunpack.c.h.b16 %v8851
    %v9131 = vunpack.c.l.b16 %v8852
    %v9132 = vunpack.c.h.b16 %v8852
    %v9133 = vunpack.c.l.b16 %v8853
    %v9134 = vunpack.c.l.b16 %v8854
    %v9135 = vunpack.c.h.b16 %v8854
    %v9136 = vunpack.c.l.b16 %v8855
    %v9137 = vunpack.c.h.b16 %v8855
    %v9138 = vunpack.c.l.b16 %v8856
    %v9139 = vunpack.c.h.b16 %v8856
    %v9140 = vunpack.c.l.b16 %v8857
    %v9141 = vunpack.c.l.b16 %v8858
    %v9142 = vunpack.c.h.b16 %v8858
    %v9143 = vunpack.c.l.b16 %v8859
    %v9144 = vunpack.c.h.b16 %v8859
    %v9145 = vunpack.c.l.b16 %v8860
    %v9146 = vunpack.c.h.b16 %v8860
    %v9147 = vunpack.c.l.b16 %v8861
    %v9148 = vunpack.c.l.b16 %v8862
    %v9149 = vunpack.c.h.b16 %v8862
    %v9150 = vunpack.c.l.b16 %v8863
    %v9151 = vunpack.c.h.b16 %v8863
    %v9152 = vunpack.c.l.b16 %v8864
    %v9153 = vunpack.c.h.b16 %v8864
    %v9154 = vunpack.c.l.b16 %v8865
    %v9155 = vunpack.c.l.b16 %v8866
    %v9156 = vunpack.c.h.b16 %v8866
    %v9157 = vunpack.c.l.b16 %v8867
    %v9158 = vunpack.c.h.b16 %v8867
    %v9159 = vunpack.c.l.b16 %v8868
    %v9160 = vunpack.c.h.b16 %v8868
    %v9161 = vunpack.c.l.b16 %v8869
    %v9162 = vunpack.c.l.b16 %v8870
    %v9163 = vunpack.c.h.b16 %v8870
    %v9164 = vunpack.c.l.b16 %v8871
    %v9165 = vunpack.c.h.b16 %v8871
    %v9166 = vunpack.c.l.b16 %v8872
    %v9167 = vunpack.c.h.b16 %v8872
    %v9168 = vunpack.c.l.b16 %v8873
    %v9169 = vunpack.c.l.b16 %v8874
    %v9170 = vunpack.c.h.b16 %v8874
    %v9171 = vunpack.c.l.b16 %v8875
    %v9172 = vunpack.c.h.b16 %v8875
    %v9173 = vunpack.c.l.b16 %v8876
    %v9174 = vunpack.c.h.b16 %v8876
    %v9175 = vunpack.c.l.b16 %v8877
    %v9176 = vunpack.c.l.b16 %v8878
    %v9177 = vunpack.c.h.b16 %v8878
    %v9178 = vunpack.c.l.b16 %v8879
    %v9179 = vunpack.c.h.b16 %v8879
    %v9180 = vunpack.c.l.b16 %v8880
    %v9181 = vunpack.c.h.b16 %v8880
    %v9182 = vunpack.c.l.b16 %v8881
    %v9183 = vunpack.c.l.b16 %v8882
    %v9184 = vunpack.c.h.b16 %v8882
    %v9185 = vunpack.c.l.b16 %v8883
    %v9186 = vunpack.c.h.b16 %v8883
    %v9187 = vunpack.c.l.b16 %v8884
    %v9188 = vunpack.c.h.b16 %v8884
    %v9189 = vunpack.c.l.b16 %v8885
    %v9190 = vunpack.c.l.b16 %v8886
    %v9191 = vunpack.c.h.b16 %v8886
    %v9192 = vunpack.c.l.b16 %v8887
    %v9193 = vunpack.c.h.b16 %v8887
    %v9194 = vunpack.c.l.b16 %v8888
    %v9195 = vunpack.c.h.b16 %v8888
    %v9196 = vunpack.c.l.b16 %v8889
    %v9197 = vunpack.c.l.b16 %v8890
    %v9198 = vunpack.c.h.b16 %v8890
    %v9199 = vunpack.c.l.b16 %v8891
    %v9200 = vunpack.c.h.b16 %v8891
    %v9201 = vunpack.c.l.b16 %v8892
    %v9202 = vunpack.c.h.b16 %v8892
    %v9203 = vunpack.c.l.b16 %v8893
    %v9204 = vunpack.c.l.b16 %v8894
    %v9205 = vunpack.c.h.b16 %v8894
    %v9206 = vunpack.c.l.b16 %v8895
    %v9207 = vunpack.c.h.b16 %v8895
    %v9208 = vunpack.c.l.b16 %v8896
    %v9209 = vunpack.c.h.b16 %v8896
    %v9210 = vunpack.c.l.b16 %v8897
    %v9211 = vunpack.c.l.b16 %v8898
    %v9212 = vunpack.c.h.b16 %v8898
    %v9213 = vunpack.c.l.b16 %v8899
    %v9214 = vunpack.c.h.b16 %v8899
    %v9215 = vunpack.c.l.b16 %v8900
    %v9216 = vunpack.c.h.b16 %v8900
    %v9217 = vunpack.c.l.b16 %v8901
    %v9218 = vunpack.c.l.b16 %v8902
    %v9219 = vunpack.c.h.b16 %v8902
    %v9220 = vunpack.c.l.b16 %v8903
    %v9221 = vunpack.c.h.b16 %v8903
    %v9222 = vunpack.c.l.b16 %v8904
    %v9223 = vunpack.c.h.b16 %v8904
    %v9224 = vunpack.c.l.b16 %v8905
    %v9225 = vunpack.c.l.b16 %v8906
    %v9226 = vunpack.c.h.b16 %v8906
    %v9227 = vunpack.c.l.b16 %v8907
    %v9228 = vunpack.c.h.b16 %v8907
    %v9229 = vunpack.c.l.b16 %v8908
    %v9230 = vunpack.c.h.b16 %v8908
    %v9231 = vunpack.c.l.b16 %v8909
    %v9232 = vunpack.c.l.b16 %v8910
    %v9233 = vunpack.c.h.b16 %v8910
    %v9234 = vunpack.c.l.b16 %v8911
    %v9235 = vunpack.c.h.b16 %v8911
    %v9236 = vunpack.c.l.b16 %v8912
    %v9237 = vunpack.c.h.b16 %v8912
    %v9238 = vunpack.c.l.b16 %v8913
    %v9239 = vunpack.c.l.b16 %v8914
    %v9240 = vunpack.c.h.b16 %v8914
    %v9241 = vunpack.c.l.b16 %v8915
    %v9242 = vunpack.c.h.b16 %v8915
    %v9243 = vunpack.c.l.b16 %v8916
    %v9244 = vunpack.c.h.b16 %v8916
    %v9245 = vunpack.c.l.b16 %v8917
    %v9246 = vunpack.c.l.b16 %v8918
    %v9247 = vunpack.c.h.b16 %v8918
    %v9248 = vunpack.c.l.b16 %v8919
    %v9249 = vunpack.c.h.b16 %v8919
    %v9250 = vunpack.c.l.b16 %v8920
    %v9251 = vunpack.c.h.b16 %v8920
    %v9252 = vunpack.c.l.b16 %v8921
    %v9253 = vunpack.c.l.b16 %v8922
    %v9254 = vunpack.c.h.b16 %v8922
    %v9255 = vunpack.c.l.b16 %v8923
    %v9256 = vunpack.c.h.b16 %v8923
    %v9257 = vunpack.c.l.b16 %v8924
    %v9258 = vunpack.c.h.b16 %v8924
    %v9259 = vunpack.c.l.b16 %v8925
    %v9260 = vunpack.c.l.b16 %v8926
    %v9261 = vunpack.c.h.b16 %v8926
    %v9262 = vunpack.c.l.b16 %v8927
    %v9263 = vunpack.c.h.b16 %v8927
    %v9264 = vunpack.c.l.b16 %v8928
    %v9265 = vunpack.c.h.b16 %v8928
    %v9266 = vunpack.c.l.b16 %v8929
    %v9267 = vunpack.c.l.b16 %v8930
    %v9268 = vunpack.c.h.b16 %v8930
    %v9269 = vunpack.c.l.b16 %v8931
    %v9270 = vunpack.c.h.b16 %v8931
    %v9271 = vunpack.c.l.b16 %v8932
    %v9272 = vunpack.c.h.b16 %v8932
    %v9273 = vunpack.c.l.b16 %v8933
    %v9274 = vunpack.c.l.b16 %v8934
    %v9275 = vunpack.c.h.b16 %v8934
    %v9276 = vunpack.c.l.b16 %v8935
    %v9277 = vunpack.c.h.b16 %v8935
    %v9278 = vunpack.c.l.b16 %v8936
    %v9279 = vunpack.c.h.b16 %v8936
    %v9280 = vunpack.c.l.b16 %v8937
    %v9281 = vunpack.c.l.b16 %v8938
    %v9282 = vunpack.c.h.b16 %v8938
    %v9283 = vunpack.c.l.b16 %v8939
    %v9284 = vunpack.c.h.b16 %v8939
    %v9285 = vunpack.c.l.b16 %v8940
    %v9286 = vunpack.c.h.b16 %v8940
    %v9287 = vunpack.c.l.b16 %v8941
    %v9288 = vunpack.c.l.b16 %v8942
    %v9289 = vunpack.c.h.b16 %v8942
    %v9290 = vunpack.c.l.b16 %v8943
    %v9291 = vunpack.c.h.b16 %v8943
    %v9292 = vunpack.c.l.b16 %v8944
    %v9293 = vunpack.c.h.b16 %v8944
    %v9294 = vunpack.c.l.b16 %v8945
    %v9295 = vunpack.c.l.b16 %v8946
    %v9296 = vunpack.c.h.b16 %v8946
    %v9297 = vunpack.c.l.b16 %v8947
    %v9298 = vunpack.c.h.b16 %v8947
    %v9299 = vunpack.c.l.b16 %v8948
    %v9300 = vunpack.c.h.b16 %v8948
    %v9301 = vunpack.c.l.b16 %v8949
    %v9302 = vpack.c.b16 %v9085, %v9078
    %v9303 = vpack.c.b16 %v9086, %v9079
    %v9304 = vpack.c.b16 %v9087, %v9080
    %v9305 = vpack.c.b16 %v9088, %v9081
    %v9306 = vpack.c.b16 %v9089, %v9082
    %v9307 = vpack.c.b16 %v9090, %v9083
    %v9308 = vpack.c.b16 %v9091, %v9084
    %v9309 = vpack.c.b16 %v9099, %v9092
    %v9310 = vpack.c.b16 %v9100, %v9093
    %v9311 = vpack.c.b16 %v9101, %v9094
    %v9312 = vpack.c.b16 %v9102, %v9095
    %v9313 = vpack.c.b16 %v9103, %v9096
    %v9314 = vpack.c.b16 %v9104, %v9097
    %v9315 = vpack.c.b16 %v9105, %v9098
    %v9316 = vpack.c.b16 %v9113, %v9106
    %v9317 = vpack.c.b16 %v9114, %v9107
    %v9318 = vpack.c.b16 %v9115, %v9108
    %v9319 = vpack.c.b16 %v9116, %v9109
    %v9320 = vpack.c.b16 %v9117, %v9110
    %v9321 = vpack.c.b16 %v9118, %v9111
    %v9322 = vpack.c.b16 %v9119, %v9112
    %v9323 = vpack.c.b16 %v9127, %v9120
    %v9324 = vpack.c.b16 %v9128, %v9121
    %v9325 = vpack.c.b16 %v9129, %v9122
    %v9326 = vpack.c.b16 %v9130, %v9123
    %v9327 = vpack.c.b16 %v9131, %v9124
    %v9328 = vpack.c.b16 %v9132, %v9125
    %v9329 = vpack.c.b16 %v9133, %v9126
    %v9330 = vpack.c.b16 %v9141, %v9134
    %v9331 = vpack.c.b16 %v9142, %v9135
    %v9332 = vpack.c.b16 %v9143, %v9136
    %v9333 = vpack.c.b16 %v9144, %v9137
    %v9334 = vpack.c.b16 %v9145, %v9138
    %v9335 = vpack.c.b16 %v9146, %v9139
    %v9336 = vpack.c.b16 %v9147, %v9140
    %v9337 = vpack.c.b16 %v9155, %v9148
    %v9338 = vpack.c.b16 %v9156, %v9149
    %v9339 = vpack.c.b16 %v9157, %v9150
    %v9340 = vpack.c.b16 %v9158, %v9151
    %v9341 = vpack.c.b16 %v9159, %v9152
    %v9342 = vpack.c.b16 %v9160, %v9153
    %v9343 = vpack.c.b16 %v9161, %v9154
    %v9344 = vpack.c.b16 %v9169, %v9162
    %v9345 = vpack.c.b16 %v9170, %v9163
    %v9346 = vpack.c.b16 %v9171, %v9164
    %v9347 = vpack.c.b16 %v9172, %v9165
    %v9348 = vpack.c.b16 %v9173, %v9166
    %v9349 = vpack.c.b16 %v9174, %v9167
    %v9350 = vpack.c.b16 %v9175, %v9168
    %v9351 = vpack.c.b16 %v9183, %v9176
    %v9352 = vpack.c.b16 %v9184, %v9177
    %v9353 = vpack.c.b16 %v9185, %v9178
    %v9354 = vpack.c.b16 %v9186, %v9179
    %v9355 = vpack.c.b16 %v9187, %v9180
    %v9356 = vpack.c.b16 %v9188, %v9181
    %v9357 = vpack.c.b16 %v9189, %v9182
    %v9358 = vpack.c.b16 %v9197, %v9190
    %v9359 = vpack.c.b16 %v9198, %v9191
    %v9360 = vpack.c.b16 %v9199, %v9192
    %v9361 = vpack.c.b16 %v9200, %v9193
    %v9362 = vpack.c.b16 %v9201, %v9194
    %v9363 = vpack.c.b16 %v9202, %v9195
    %v9364 = vpack.c.b16 %v9203, %v9196
    %v9365 = vpack.c.b16 %v9211, %v9204
    %v9366 = vpack.c.b16 %v9212, %v9205
    %v9367 = vpack.c.b16 %v9213, %v9206
    %v9368 = vpack.c.b16 %v9214, %v9207
    %v9369 = vpack.c.b16 %v9215, %v9208
    %v9370 = vpack.c.b16 %v9216, %v9209
    %v9371 = vpack.c.b16 %v9217, %v9210
    %v9372 = vpack.c.b16 %v9225, %v9218
    %v9373 = vpack.c.b16 %v9226, %v9219
    %v9374 = vpack.c.b16 %v9227, %v9220
    %v9375 = vpack.c.b16 %v9228, %v9221
    %v9376 = vpack.c.b16 %v9229, %v9222
    %v9377 = vpack.c.b16 %v9230, %v9223
    %v9378 = vpack.c.b16 %v9231, %v9224
    %v9379 = vpack.c.b16 %v9239, %v9232
    %v9380 = vpack.c.b16 %v9240, %v9233
    %v9381 = vpack.c.b16 %v9241, %v9234
    %v9382 = vpack.c.b16 %v9242, %v9235
    %v9383 = vpack.c.b16 %v9243, %v9236
    %v9384 = vpack.c.b16 %v9244, %v9237
    %v9385 = vpack.c.b16 %v9245, %v9238
    %v9386 = vpack.c.b16 %v9253, %v9246
    %v9387 = vpack.c.b16 %v9254, %v9247
    %v9388 = vpack.c.b16 %v9255, %v9248
    %v9389 = vpack.c.b16 %v9256, %v9249
    %v9390 = vpack.c.b16 %v9257, %v9250
    %v9391 = vpack.c.b16 %v9258, %v9251
    %v9392 = vpack.c.b16 %v9259, %v9252
    %v9393 = vpack.c.b16 %v9267, %v9260
    %v9394 = vpack.c.b16 %v9268, %v9261
    %v9395 = vpack.c.b16 %v9269, %v9262
    %v9396 = vpack.c.b16 %v9270, %v9263
    %v9397 = vpack.c.b16 %v9271, %v9264
    %v9398 = vpack.c.b16 %v9272, %v9265
    %v9399 = vpack.c.b16 %v9273, %v9266
    %v9400 = vpack.c.b16 %v9281, %v9274
    %v9401 = vpack.c.b16 %v9282, %v9275
    %v9402 = vpack.c.b16 %v9283, %v9276
    %v9403 = vpack.c.b16 %v9284, %v9277
    %v9404 = vpack.c.b16 %v9285, %v9278
    %v9405 = vpack.c.b16 %v9286, %v9279
    %v9406 = vpack.c.b16 %v9287, %v9280
    %v9407 = vpack.c.b16 %v9295, %v9288
    %v9408 = vpack.c.b16 %v9296, %v9289
    %v9409 = vpack.c.b16 %v9297, %v9290
    %v9410 = vpack.c.b16 %v9298, %v9291
    %v9411 = vpack.c.b16 %v9299, %v9292
    %v9412 = vpack.c.b16 %v9300, %v9293
    %v9413 = vpack.c.b16 %v9301, %v9294
    %9526 = vmatprep.subr.bf16.mxu0 %v9303
    %9527 = vmatpush1.bf16.msra.mxu0 %v9302
    %9528 = vmatprep.subr.bf16.mxu0 %v9310
    %9529 = vmatpush1.bf16.msra.mxu0 %v9309
    %9530 = vmatprep.subr.bf16.mxu0 %v9317
    %9531 = vmatpush1.bf16.msra.mxu0 %v9316
    %9532 = vmatprep.subr.bf16.mxu0 %v9324
    %9533 = vmatpush1.bf16.msra.mxu0 %v9323
    %9534 = vmatprep.subr.bf16.mxu0 %v9331
    %9535 = vmatpush1.bf16.msra.mxu0 %v9330
    %9536 = vmatprep.subr.bf16.mxu0 %v9338
    %9537 = vmatpush1.bf16.msra.mxu0 %v9337
    %9538 = vmatprep.subr.bf16.mxu0 %v9345
    %9539 = vmatpush1.bf16.msra.mxu0 %v9344
    %9540 = vmatprep.subr.bf16.mxu0 %v9352
    %9541 = vmatpush1.bf16.msra.mxu0 %v9351
    %9542 = vmatprep.subr.bf16.mxu0 %v9359
    %9543 = vmatpush1.bf16.msra.mxu0 %v9358
    %9544 = vmatprep.subr.bf16.mxu0 %v9366
    %9545 = vmatpush1.bf16.msra.mxu0 %v9365
    %9546 = vmatprep.subr.bf16.mxu0 %v9373
    %9547 = vmatpush1.bf16.msra.mxu0 %v9372
    %9548 = vmatprep.subr.bf16.mxu0 %v9380
    %9549 = vmatpush1.bf16.msra.mxu0 %v9379
    %9550 = vmatprep.subr.bf16.mxu0 %v9387
    %9551 = vmatpush1.bf16.msra.mxu0 %v9386
    %9552 = vmatprep.subr.bf16.mxu0 %v9394
    %9553 = vmatpush1.bf16.msra.mxu0 %v9393
    %9554 = vmatprep.subr.bf16.mxu0 %v9401
    %9555 = vmatpush1.bf16.msra.mxu0 %v9400
    %9556 = vmatprep.subr.bf16.mxu0 %v9408
    %9557 = vmatpush1.bf16.msra.mxu0 %v9407
    %9558 = vmatprep.mubr.bf16.mxu0 %v8124
    %9559 = vmatmul.mubr.bf16.gmra.mrb[0].mxu0 %v8123
    %v9560 = vpop.f32.mrb[0].mxu0
    %v9561 = vadd.f32 0.0, %v9560
    %v9562 = vpop.f32.mrb[0].mxu0
    %v9563 = vadd.f32 0.0, %v9562
    %v9564 = vpop.f32.mrb[0].mxu0
    %v9565 = vpop.f32.mrb[0].mxu0
    %9566 = vdwg.mxu0
    %9567 = vmatprep.subr.bf16.mxu0 %v9305
    %9568 = vmatpush1.bf16.msra.mxu0 %v9304
    %9569 = vmatprep.subr.bf16.mxu0 %v9312
    %9570 = vmatpush1.bf16.msra.mxu0 %v9311
    %9571 = vmatprep.subr.bf16.mxu0 %v9319
    %9572 = vmatpush1.bf16.msra.mxu0 %v9318
    %9573 = vmatprep.subr.bf16.mxu0 %v9326
    %9574 = vmatpush1.bf16.msra.mxu0 %v9325
    %9575 = vmatprep.subr.bf16.mxu0 %v9333
    %9576 = vmatpush1.bf16.msra.mxu0 %v9332
    %9577 = vmatprep.subr.bf16.mxu0 %v9340
    %9578 = vmatpush1.bf16.msra.mxu0 %v9339
    %9579 = vmatprep.subr.bf16.mxu0 %v9347
    %9580 = vmatpush1.bf16.msra.mxu0 %v9346
    %9581 = vmatprep.subr.bf16.mxu0 %v9354
    %9582 = vmatpush1.bf16.msra.mxu0 %v9353
    %9583 = vmatprep.subr.bf16.mxu0 %v9361
    %9584 = vmatpush1.bf16.msra.mxu0 %v9360
    %9585 = vmatprep.subr.bf16.mxu0 %v9368
    %9586 = vmatpush1.bf16.msra.mxu0 %v9367
    %9587 = vmatprep.subr.bf16.mxu0 %v9375
    %9588 = vmatpush1.bf16.msra.mxu0 %v9374
    %9589 = vmatprep.subr.bf16.mxu0 %v9382
    %9590 = vmatpush1.bf16.msra.mxu0 %v9381
    %9591 = vmatprep.subr.bf16.mxu0 %v9389
    %9592 = vmatpush1.bf16.msra.mxu0 %v9388
    %9593 = vmatprep.subr.bf16.mxu0 %v9396
    %9594 = vmatpush1.bf16.msra.mxu0 %v9395
    %9595 = vmatprep.subr.bf16.mxu0 %v9403
    %9596 = vmatpush1.bf16.msra.mxu0 %v9402
    %9597 = vmatprep.subr.bf16.mxu0 %v9410
    %9598 = vmatpush1.bf16.msra.mxu0 %v9409
    %9599 = vmatprep.mubr.bf16.mxu0 %v8124
    %9600 = vmatmul.mubr.bf16.gmra.mrb[0].mxu0 %v8123
    %v9601 = vpop.f32.mrb[0].mxu0
    %v9602 = vadd.f32 0.0, %v9601
    %v9603 = vpop.f32.mrb[0].mxu0
    %v9604 = vadd.f32 0.0, %v9603
    %v9605 = vpop.f32.mrb[0].mxu0
    %v9606 = vpop.f32.mrb[0].mxu0
    %9607 = vdwg.mxu0
    %9608 = vmatprep.subr.bf16.mxu0 %v9307
    %9609 = vmatpush1.bf16.msra.mxu0 %v9306
    %9610 = vmatprep.subr.bf16.mxu0 %v9314
    %9611 = vmatpush1.bf16.msra.mxu0 %v9313
    %9612 = vmatprep.subr.bf16.mxu0 %v9321
    %9613 = vmatpush1.bf16.msra.mxu0 %v9320
    %9614 = vmatprep.subr.bf16.mxu0 %v9328
    %9615 = vmatpush1.bf16.msra.mxu0 %v9327
    %9616 = vmatprep.subr.bf16.mxu0 %v9335
    %9617 = vmatpush1.bf16.msra.mxu0 %v9334
    %9618 = vmatprep.subr.bf16.mxu0 %v9342
    %9619 = vmatpush1.bf16.msra.mxu0 %v9341
    %9620 = vmatprep.subr.bf16.mxu0 %v9349
    %9621 = vmatpush1.bf16.msra.mxu0 %v9348
    %9622 = vmatprep.subr.bf16.mxu0 %v9356
    %9623 = vmatpush1.bf16.msra.mxu0 %v9355
    %9624 = vmatprep.subr.bf16.mxu0 %v9363
    %9625 = vmatpush1.bf16.msra.mxu0 %v9362
    %9626 = vmatprep.subr.bf16.mxu0 %v9370
    %9627 = vmatpush1.bf16.msra.mxu0 %v9369
    %9628 = vmatprep.subr.bf16.mxu0 %v9377
    %9629 = vmatpush1.bf16.msra.mxu0 %v9376
    %9630 = vmatprep.subr.bf16.mxu0 %v9384
    %9631 = vmatpush1.bf16.msra.mxu0 %v9383
    %9632 = vmatprep.subr.bf16.mxu0 %v9391
    %9633 = vmatpush1.bf16.msra.mxu0 %v9390
    %9634 = vmatprep.subr.bf16.mxu0 %v9398
    %9635 = vmatpush1.bf16.msra.mxu0 %v9397
    %9636 = vmatprep.subr.bf16.mxu0 %v9405
    %9637 = vmatpush1.bf16.msra.mxu0 %v9404
    %9638 = vmatprep.subr.bf16.mxu0 %v9412
    %9639 = vmatpush1.bf16.msra.mxu0 %v9411
    %9640 = vmatprep.mubr.bf16.mxu0 %v8124
    %9641 = vmatmul.mubr.bf16.gmra.mrb[0].mxu0 %v8123
    %v9642 = vpop.f32.mrb[0].mxu0
    %v9643 = vadd.f32 0.0, %v9642
    %v9644 = vpop.f32.mrb[0].mxu0
    %v9645 = vadd.f32 0.0, %v9644
    %v9646 = vpop.f32.mrb[0].mxu0
    %v9647 = vpop.f32.mrb[0].mxu0
    %9648 = vdwg.mxu0
    %9649 = vmatprep.subr.bf16.mxu0 0
    %9650 = vmatpush1.bf16.msra.mxu0 %v9308
    %9651 = vmatprep.subr.bf16.mxu0 0
    %9652 = vmatpush1.bf16.msra.mxu0 %v9315
    %9653 = vmatprep.subr.bf16.mxu0 0
    %9654 = vmatpush1.bf16.msra.mxu0 %v9322
    %9655 = vmatprep.subr.bf16.mxu0 0
    %9656 = vmatpush1.bf16.msra.mxu0 %v9329
    %9657 = vmatprep.subr.bf16.mxu0 0
    %9658 = vmatpush1.bf16.msra.mxu0 %v9336
    %9659 = vmatprep.subr.bf16.mxu0 0
    %9660 = vmatpush1.bf16.msra.mxu0 %v9343
    %9661 = vmatprep.subr.bf16.mxu0 0
    %9662 = vmatpush1.bf16.msra.mxu0 %v9350
    %9663 = vmatprep.subr.bf16.mxu0 0
    %9664 = vmatpush1.bf16.msra.mxu0 %v9357
    %9665 = vmatprep.subr.bf16.mxu0 0
    %9666 = vmatpush1.bf16.msra.mxu0 %v9364
    %9667 = vmatprep.subr.bf16.mxu0 0
    %9668 = vmatpush1.bf16.msra.mxu0 %v9371
    %9669 = vmatprep.subr.bf16.mxu0 0
    %9670 = vmatpush1.bf16.msra.mxu0 %v9378
    %9671 = vmatprep.subr.bf16.mxu0 0
    %9672 = vmatpush1.bf16.msra.mxu0 %v9385
    %9673 = vmatprep.subr.bf16.mxu0 0
    %9674 = vmatpush1.bf16.msra.mxu0 %v9392
    %9675 = vmatprep.subr.bf16.mxu0 0
    %9676 = vmatpush1.bf16.msra.mxu0 %v9399
    %9677 = vmatprep.subr.bf16.mxu0 0
    %9678 = vmatpush1.bf16.msra.mxu0 %v9406
    %9679 = vmatprep.subr.bf16.mxu0 0
    %9680 = vmatpush1.bf16.msra.mxu0 %v9413
    %9681 = vmatprep.mubr.bf16.mxu0 %v8124
    %9682 = vmatmul.mubr.bf16.gmra.mrb[0].mxu0 %v8123
    %v9683 = vpop.f32.mrb[0].mxu0
    %v9684 = vadd.f32 0.0, %v9683
    %v9685 = vpop.f32.mrb[0].mxu0
    %v9686 = vpop.f32.mrb[0].mxu0
    %v9687 = vpop.f32.mrb[0].mxu0
    %9688 = vdwg.mxu0
    %v9689 = vadd.f32 %v8776, %v9561
    %v9690 = vadd.f32 %v9689, %v138
    %v9691 = vsel %vm1450, %v9690, -inf
    %9692 = vmax.xlane.f32.xlu0 %v9691
    %v9693 = vpop.xlane.xlu0 %9692
    %v9694 = vsub.f32 %v9690, %v9693
    %v9695 = vmul.f32 %v9694, 1.442695
    %v9696 = vpow.pop %v9695
    %v9697 = vsel %vm1450, %v9696, 0.0
    %9698 = vadd.xlane.f32.xlu0 %v9697
    %v9699 = vpop.xlane.xlu0 %9698
    %v9700 = vrcp.pop %v9699
    %v9701 = vmul.f32 %v9696, %v9700
    %s9702 = scalar_lea.vmem [#allocation19], 3
    %9703 = vst [vmem:[%s9702] sm:$0x1] %v9701
    %v9704 = vpack.c.bf16 %v9701, %v9701
    %v9705 = vld [vmem:[#allocation7] sm:$0xff]
    %v9706 = vld [vmem:[#allocation7 + $0x8] sm:$0xff]
    %v9707 = vld [vmem:[#allocation7 + $0x10] sm:$0xff]
    %v9708 = vld [vmem:[#allocation7 + $0x18] sm:$0xff]
    %v9709 = vld [vmem:[#allocation7 + $0x20] sm:$0xff]
    %v9710 = vld [vmem:[#allocation7 + $0x28] sm:$0xff]
    %v9711 = vld [vmem:[#allocation7 + $0x30] sm:$0xff]
    %v9712 = vld [vmem:[#allocation7 + $0x38] sm:$0xff]
    %v9713 = vld [vmem:[#allocation7 + $0x40] sm:$0xff]
    %v9714 = vld [vmem:[#allocation7 + $0x48] sm:$0xff]
    %v9715 = vld [vmem:[#allocation7 + $0x50] sm:$0xff]
    %v9716 = vld [vmem:[#allocation7 + $0x58] sm:$0xff]
    %v9717 = vld [vmem:[#allocation7 + $0x60] sm:$0xff]
    %v9718 = vld [vmem:[#allocation7 + $0x68] sm:$0xff]
    %v9719 = vld [vmem:[#allocation7 + $0x70] sm:$0xff]
    %v9720 = vld [vmem:[#allocation7 + $0x78] sm:$0xff]
    %v9737 = vunpack.c.l.b16 %v9705
    %v9738 = vunpack.c.h.b16 %v9705
    %v9739 = vunpack.c.l.b16 %v9706
    %v9740 = vunpack.c.h.b16 %v9706
    %v9741 = vunpack.c.l.b16 %v9707
    %v9742 = vunpack.c.h.b16 %v9707
    %v9743 = vunpack.c.l.b16 %v9708
    %v9744 = vunpack.c.h.b16 %v9708
    %v9745 = vunpack.c.l.b16 %v9709
    %v9746 = vunpack.c.h.b16 %v9709
    %v9747 = vunpack.c.l.b16 %v9710
    %v9748 = vunpack.c.h.b16 %v9710
    %v9749 = vunpack.c.l.b16 %v9711
    %v9750 = vunpack.c.h.b16 %v9711
    %v9751 = vunpack.c.l.b16 %v9712
    %v9752 = vunpack.c.h.b16 %v9712
    %v9753 = vunpack.c.l.b16 %v9713
    %v9754 = vunpack.c.h.b16 %v9713
    %v9755 = vunpack.c.l.b16 %v9714
    %v9756 = vunpack.c.h.b16 %v9714
    %v9757 = vunpack.c.l.b16 %v9715
    %v9758 = vunpack.c.h.b16 %v9715
    %v9759 = vunpack.c.l.b16 %v9716
    %v9760 = vunpack.c.h.b16 %v9716
    %v9761 = vunpack.c.l.b16 %v9717
    %v9762 = vunpack.c.h.b16 %v9717
    %v9763 = vunpack.c.l.b16 %v9718
    %v9764 = vunpack.c.h.b16 %v9718
    %v9765 = vunpack.c.l.b16 %v9719
    %v9766 = vunpack.c.h.b16 %v9719
    %v9767 = vunpack.c.l.b16 %v9720
    %v9768 = vunpack.c.h.b16 %v9720
    %v9769 = vpack.c.b16 %v9739, %v9737
    %v9770 = vpack.c.b16 %v9740, %v9738
    %v9771 = vpack.c.b16 %v9743, %v9741
    %v9772 = vpack.c.b16 %v9744, %v9742
    %v9773 = vpack.c.b16 %v9747, %v9745
    %v9774 = vpack.c.b16 %v9748, %v9746
    %v9775 = vpack.c.b16 %v9751, %v9749
    %v9776 = vpack.c.b16 %v9752, %v9750
    %v9777 = vpack.c.b16 %v9755, %v9753
    %v9778 = vpack.c.b16 %v9756, %v9754
    %v9779 = vpack.c.b16 %v9759, %v9757
    %v9780 = vpack.c.b16 %v9760, %v9758
    %v9781 = vpack.c.b16 %v9763, %v9761
    %v9782 = vpack.c.b16 %v9764, %v9762
    %v9783 = vpack.c.b16 %v9767, %v9765
    %v9784 = vpack.c.b16 %v9768, %v9766
    %9801 = vmatprep.subr.bf16.mxu0 %v9770
    %9802 = vmatpush1.bf16.msra.mxu0 %v9769
    %9803 = vmatprep.subr.bf16.mxu0 %v9772
    %9804 = vmatpush1.bf16.msra.mxu0 %v9771
    %9805 = vmatprep.subr.bf16.mxu0 %v9774
    %9806 = vmatpush1.bf16.msra.mxu0 %v9773
    %9807 = vmatprep.subr.bf16.mxu0 %v9776
    %9808 = vmatpush1.bf16.msra.mxu0 %v9775
    %9809 = vmatprep.subr.bf16.mxu0 %v9778
    %9810 = vmatpush1.bf16.msra.mxu0 %v9777
    %9811 = vmatprep.subr.bf16.mxu0 %v9780
    %9812 = vmatpush1.bf16.msra.mxu0 %v9779
    %9813 = vmatprep.subr.bf16.mxu0 %v9782
    %9814 = vmatpush1.bf16.msra.mxu0 %v9781
    %9815 = vmatprep.subr.bf16.mxu0 %v9784
    %9816 = vmatpush1.bf16.msra.mxu0 %v9783
    %9817 = vmatprep.subr.bf16.mxu0 0
    %9818 = vmatpush1.bf16.msra.mxu0 0
    %9819 = vmatprep.subr.bf16.mxu0 0
    %9820 = vmatpush1.bf16.msra.mxu0 0
    %9821 = vmatprep.subr.bf16.mxu0 0
    %9822 = vmatpush1.bf16.msra.mxu0 0
    %9823 = vmatprep.subr.bf16.mxu0 0
    %9824 = vmatpush1.bf16.msra.mxu0 0
    %9825 = vmatprep.subr.bf16.mxu0 0
    %9826 = vmatpush1.bf16.msra.mxu0 0
    %9827 = vmatprep.subr.bf16.mxu0 0
    %9828 = vmatpush1.bf16.msra.mxu0 0
    %9829 = vmatprep.subr.bf16.mxu0 0
    %9830 = vmatpush1.bf16.msra.mxu0 0
    %9831 = vmatprep.subr.bf16.mxu0 0
    %9832 = vmatpush1.bf16.msra.mxu0 0
    %9833 = vmatprep.mubr.bf16.mxu0 0
    %9834 = vmatmul.mubr.bf16.gmra.mrb[0].mxu0 %v9704
    %v9835 = vpop.f32.mrb[0].mxu0
    %v9836 = vadd.f32 0.0, %v9835
    %v9837 = vpop.f32.mrb[0].mxu0
    %v9838 = vadd.f32 0.0, %v9837
    %v9839 = vpop.f32.mrb[0].mxu0
    %v9840 = vpop.f32.mrb[0].mxu0
    %9841 = vdwg.mxu0
    %v9842 = vpack.c.bf16 %v9836, %v9836
    %v9843 = vpack.c.bf16 %v9838, %v9838
    %v9844 = vld [vmem:[#allocation12] sm:$0xff]
    %v9845 = vld [vmem:[#allocation12 + $0x8] sm:$0xff]
    %v9846 = vld [vmem:[#allocation12 + $0x10] sm:$0xff]
    %v9847 = vld [vmem:[#allocation12 + $0x18] sm:$0xff]
    %v9848 = vld [vmem:[#allocation12 + $0x20] sm:$0xff]
    %v9849 = vld [vmem:[#allocation12 + $0x28] sm:$0xff]
    %v9850 = vld [vmem:[#allocation12 + $0x30] sm:$0xff]
    %v9851 = vld [vmem:[#allocation12 + $0x38] sm:$0xff]
    %v9852 = vld [vmem:[#allocation12 + $0x40] sm:$0xff]
    %v9853 = vld [vmem:[#allocation12 + $0x48] sm:$0xff]
    %v9854 = vld [vmem:[#allocation12 + $0x50] sm:$0xff]
    %v9855 = vld [vmem:[#allocation12 + $0x58] sm:$0xff]
    %v9856 = vld [vmem:[#allocation12 + $0x60] sm:$0xff]
    %v9857 = vld [vmem:[#allocation12 + $0x68] sm:$0xff]
    %v9858 = vld [vmem:[#allocation12 + $0x70] sm:$0xff]
    %v9859 = vld [vmem:[#allocation12 + $0x78] sm:$0xff]
    %v9860 = vld [vmem:[#allocation12 + $0x80] sm:$0xff]
    %v9861 = vld [vmem:[#allocation12 + $0x88] sm:$0xff]
    %v9862 = vld [vmem:[#allocation12 + $0x90] sm:$0xff]
    %v9863 = vld [vmem:[#allocation12 + $0x98] sm:$0xff]
    %v9864 = vld [vmem:[#allocation12 + $0xa0] sm:$0xff]
    %v9865 = vld [vmem:[#allocation12 + $0xa8] sm:$0xff]
    %v9866 = vld [vmem:[#allocation12 + $0xb0] sm:$0xff]
    %v9867 = vld [vmem:[#allocation12 + $0xb8] sm:$0xff]
    %v9868 = vld [vmem:[#allocation12 + $0xc0] sm:$0xff]
    %v9869 = vld [vmem:[#allocation12 + $0xc8] sm:$0xff]
    %v9870 = vld [vmem:[#allocation12 + $0xd0] sm:$0xff]
    %v9871 = vld [vmem:[#allocation12 + $0xd8] sm:$0xff]
    %v9872 = vld [vmem:[#allocation12 + $0xe0] sm:$0xff]
    %v9873 = vld [vmem:[#allocation12 + $0xe8] sm:$0xff]
    %v9874 = vld [vmem:[#allocation12 + $0xf0] sm:$0xff]
    %v9875 = vld [vmem:[#allocation12 + $0xf8] sm:$0xff]
    %v9908 = vunpack.c.l.b16 %v9844
    %v9909 = vunpack.c.h.b16 %v9844
    %v9910 = vunpack.c.l.b16 %v9845
    %v9911 = vunpack.c.h.b16 %v9845
    %v9912 = vunpack.c.l.b16 %v9846
    %v9913 = vunpack.c.h.b16 %v9846
    %v9914 = vunpack.c.l.b16 %v9847
    %v9915 = vunpack.c.h.b16 %v9847
    %v9916 = vunpack.c.l.b16 %v9848
    %v9917 = vunpack.c.h.b16 %v9848
    %v9918 = vunpack.c.l.b16 %v9849
    %v9919 = vunpack.c.h.b16 %v9849
    %v9920 = vunpack.c.l.b16 %v9850
    %v9921 = vunpack.c.h.b16 %v9850
    %v9922 = vunpack.c.l.b16 %v9851
    %v9923 = vunpack.c.h.b16 %v9851
    %v9924 = vunpack.c.l.b16 %v9852
    %v9925 = vunpack.c.h.b16 %v9852
    %v9926 = vunpack.c.l.b16 %v9853
    %v9927 = vunpack.c.h.b16 %v9853
    %v9928 = vunpack.c.l.b16 %v9854
    %v9929 = vunpack.c.h.b16 %v9854
    %v9930 = vunpack.c.l.b16 %v9855
    %v9931 = vunpack.c.h.b16 %v9855
    %v9932 = vunpack.c.l.b16 %v9856
    %v9933 = vunpack.c.h.b16 %v9856
    %v9934 = vunpack.c.l.b16 %v9857
    %v9935 = vunpack.c.h.b16 %v9857
    %v9936 = vunpack.c.l.b16 %v9858
    %v9937 = vunpack.c.h.b16 %v9858
    %v9938 = vunpack.c.l.b16 %v9859
    %v9939 = vunpack.c.h.b16 %v9859
    %v9940 = vunpack.c.l.b16 %v9860
    %v9941 = vunpack.c.h.b16 %v9860
    %v9942 = vunpack.c.l.b16 %v9861
    %v9943 = vunpack.c.h.b16 %v9861
    %v9944 = vunpack.c.l.b16 %v9862
    %v9945 = vunpack.c.h.b16 %v9862
    %v9946 = vunpack.c.l.b16 %v9863
    %v9947 = vunpack.c.h.b16 %v9863
    %v9948 = vunpack.c.l.b16 %v9864
    %v9949 = vunpack.c.h.b16 %v9864
    %v9950 = vunpack.c.l.b16 %v9865
    %v9951 = vunpack.c.h.b16 %v9865
    %v9952 = vunpack.c.l.b16 %v9866
    %v9953 = vunpack.c.h.b16 %v9866
    %v9954 = vunpack.c.l.b16 %v9867
    %v9955 = vunpack.c.h.b16 %v9867
    %v9956 = vunpack.c.l.b16 %v9868
    %v9957 = vunpack.c.h.b16 %v9868
    %v9958 = vunpack.c.l.b16 %v9869
    %v9959 = vunpack.c.h.b16 %v9869
    %v9960 = vunpack.c.l.b16 %v9870
    %v9961 = vunpack.c.h.b16 %v9870
    %v9962 = vunpack.c.l.b16 %v9871
    %v9963 = vunpack.c.h.b16 %v9871
    %v9964 = vunpack.c.l.b16 %v9872
    %v9965 = vunpack.c.h.b16 %v9872
    %v9966 = vunpack.c.l.b16 %v9873
    %v9967 = vunpack.c.h.b16 %v9873
    %v9968 = vunpack.c.l.b16 %v9874
    %v9969 = vunpack.c.h.b16 %v9874
    %v9970 = vunpack.c.l.b16 %v9875
    %v9971 = vunpack.c.h.b16 %v9875
    %v9972 = vpack.c.b16 %v9910, %v9908
    %v9973 = vpack.c.b16 %v9911, %v9909
    %v9974 = vpack.c.b16 %v9914, %v9912
    %v9975 = vpack.c.b16 %v9915, %v9913
    %v9976 = vpack.c.b16 %v9918, %v9916
    %v9977 = vpack.c.b16 %v9919, %v9917
    %v9978 = vpack.c.b16 %v9922, %v9920
    %v9979 = vpack.c.b16 %v9923, %v9921
    %v9980 = vpack.c.b16 %v9926, %v9924
    %v9981 = vpack.c.b16 %v9927, %v9925
    %v9982 = vpack.c.b16 %v9930, %v9928
    %v9983 = vpack.c.b16 %v9931, %v9929
    %v9984 = vpack.c.b16 %v9934, %v9932
    %v9985 = vpack.c.b16 %v9935, %v9933
    %v9986 = vpack.c.b16 %v9938, %v9936
    %v9987 = vpack.c.b16 %v9939, %v9937
    %v9988 = vpack.c.b16 %v9942, %v9940
    %v9989 = vpack.c.b16 %v9943, %v9941
    %v9990 = vpack.c.b16 %v9946, %v9944
    %v9991 = vpack.c.b16 %v9947, %v9945
    %v9992 = vpack.c.b16 %v9950, %v9948
    %v9993 = vpack.c.b16 %v9951, %v9949
    %v9994 = vpack.c.b16 %v9954, %v9952
    %v9995 = vpack.c.b16 %v9955, %v9953
    %v9996 = vpack.c.b16 %v9958, %v9956
    %v9997 = vpack.c.b16 %v9959, %v9957
    %v9998 = vpack.c.b16 %v9962, %v9960
    %v9999 = vpack.c.b16 %v9963, %v9961
    %v10000 = vpack.c.b16 %v9966, %v9964
    %v10001 = vpack.c.b16 %v9967, %v9965
    %v10002 = vpack.c.b16 %v9970, %v9968
    %v10003 = vpack.c.b16 %v9971, %v9969
    %10036 = vmatprep.subr.bf16.mxu0 %v9973
    %10037 = vmatpush1.bf16.msra.mxu0 %v9972
    %10038 = vmatprep.subr.bf16.mxu0 %v9975
    %10039 = vmatpush1.bf16.msra.mxu0 %v9974
    %10040 = vmatprep.subr.bf16.mxu0 %v9977
    %10041 = vmatpush1.bf16.msra.mxu0 %v9976
    %10042 = vmatprep.subr.bf16.mxu0 %v9979
    %10043 = vmatpush1.bf16.msra.mxu0 %v9978
    %10044 = vmatprep.subr.bf16.mxu0 %v9981
    %10045 = vmatpush1.bf16.msra.mxu0 %v9980
    %10046 = vmatprep.subr.bf16.mxu0 %v9983
    %10047 = vmatpush1.bf16.msra.mxu0 %v9982
    %10048 = vmatprep.subr.bf16.mxu0 %v9985
    %10049 = vmatpush1.bf16.msra.mxu0 %v9984
    %10050 = vmatprep.subr.bf16.mxu0 %v9987
    %10051 = vmatpush1.bf16.msra.mxu0 %v9986
    %10052 = vmatprep.subr.bf16.mxu0 %v9989
    %10053 = vmatpush1.bf16.msra.mxu0 %v9988
    %10054 = vmatprep.subr.bf16.mxu0 %v9991
    %10055 = vmatpush1.bf16.msra.mxu0 %v9990
    %10056 = vmatprep.subr.bf16.mxu0 %v9993
    %10057 = vmatpush1.bf16.msra.mxu0 %v9992
    %10058 = vmatprep.subr.bf16.mxu0 %v9995
    %10059 = vmatpush1.bf16.msra.mxu0 %v9994
    %10060 = vmatprep.subr.bf16.mxu0 %v9997
    %10061 = vmatpush1.bf16.msra.mxu0 %v9996
    %10062 = vmatprep.subr.bf16.mxu0 %v9999
    %10063 = vmatpush1.bf16.msra.mxu0 %v9998
    %10064 = vmatprep.subr.bf16.mxu0 %v10001
    %10065 = vmatpush1.bf16.msra.mxu0 %v10000
    %10066 = vmatprep.subr.bf16.mxu0 %v10003
    %10067 = vmatpush1.bf16.msra.mxu0 %v10002
    %10068 = vmatprep.mubr.bf16.mxu0 %v9843
    %10069 = vmatmul.mubr.bf16.gmra.mrb[0].mxu0 %v9842
    %v10070 = vpop.f32.mrb[0].mxu0
    %v10071 = vadd.f32 0.0, %v10070
    %v10072 = vpop.f32.mrb[0].mxu0
    %v10073 = vadd.f32 0.0, %v10072
    %v10074 = vpop.f32.mrb[0].mxu0
    %v10075 = vpop.f32.mrb[0].mxu0
    %10076 = vdwg.mxu0
    %v10077 = vadd.f32 %v8778, %v10071
    %v10078 = vadd.f32 %v8817, %v10073
    %v10079 = vadd.f32 %v10077, %v1842
    %v10080 = vadd.f32 %v10078, %v1846
    %v10081 = vmax.f32 %v10079, 0.0
    %v10082 = vmax.f32 %v10080, 0.0
    %v10083 = vpack.c.bf16 %v10081, %v10081
    %v10084 = vpack.c.bf16 %v10082, %v10082
    %v10085 = vld [vmem:[#allocation13] sm:$0xff]
    %v10086 = vld [vmem:[#allocation13 + $0x8] sm:$0xff]
    %v10087 = vld [vmem:[#allocation13 + $0x10] sm:$0xff]
    %v10088 = vld [vmem:[#allocation13 + $0x18] sm:$0xff]
    %v10089 = vld [vmem:[#allocation13 + $0x20] sm:$0xff]
    %v10090 = vld [vmem:[#allocation13 + $0x28] sm:$0xff]
    %v10091 = vld [vmem:[#allocation13 + $0x30] sm:$0xff]
    %v10092 = vld [vmem:[#allocation13 + $0x38] sm:$0xff]
    %v10093 = vld [vmem:[#allocation13 + $0x40] sm:$0xff]
    %v10094 = vld [vmem:[#allocation13 + $0x48] sm:$0xff]
    %v10095 = vld [vmem:[#allocation13 + $0x50] sm:$0xff]
    %v10096 = vld [vmem:[#allocation13 + $0x58] sm:$0xff]
    %v10097 = vld [vmem:[#allocation13 + $0x60] sm:$0xff]
    %v10098 = vld [vmem:[#allocation13 + $0x68] sm:$0xff]
    %v10099 = vld [vmem:[#allocation13 + $0x70] sm:$0xff]
    %v10100 = vld [vmem:[#allocation13 + $0x78] sm:$0xff]
    %v10101 = vld [vmem:[#allocation13 + $0x80] sm:$0xff]
    %v10102 = vld [vmem:[#allocation13 + $0x88] sm:$0xff]
    %v10103 = vld [vmem:[#allocation13 + $0x90] sm:$0xff]
    %v10104 = vld [vmem:[#allocation13 + $0x98] sm:$0xff]
    %v10105 = vld [vmem:[#allocation13 + $0xa0] sm:$0xff]
    %v10106 = vld [vmem:[#allocation13 + $0xa8] sm:$0xff]
    %v10107 = vld [vmem:[#allocation13 + $0xb0] sm:$0xff]
    %v10108 = vld [vmem:[#allocation13 + $0xb8] sm:$0xff]
    %v10109 = vld [vmem:[#allocation13 + $0xc0] sm:$0xff]
    %v10110 = vld [vmem:[#allocation13 + $0xc8] sm:$0xff]
    %v10111 = vld [vmem:[#allocation13 + $0xd0] sm:$0xff]
    %v10112 = vld [vmem:[#allocation13 + $0xd8] sm:$0xff]
    %v10113 = vld [vmem:[#allocation13 + $0xe0] sm:$0xff]
    %v10114 = vld [vmem:[#allocation13 + $0xe8] sm:$0xff]
    %v10115 = vld [vmem:[#allocation13 + $0xf0] sm:$0xff]
    %v10116 = vld [vmem:[#allocation13 + $0xf8] sm:$0xff]
    %v10117 = vld [vmem:[#allocation13 + $0x100] sm:$0xff]
    %v10118 = vld [vmem:[#allocation13 + $0x108] sm:$0xff]
    %v10119 = vld [vmem:[#allocation13 + $0x110] sm:$0xff]
    %v10120 = vld [vmem:[#allocation13 + $0x118] sm:$0xff]
    %v10121 = vld [vmem:[#allocation13 + $0x120] sm:$0xff]
    %v10122 = vld [vmem:[#allocation13 + $0x128] sm:$0xff]
    %v10123 = vld [vmem:[#allocation13 + $0x130] sm:$0xff]
    %v10124 = vld [vmem:[#allocation13 + $0x138] sm:$0xff]
    %v10125 = vld [vmem:[#allocation13 + $0x140] sm:$0xff]
    %v10126 = vld [vmem:[#allocation13 + $0x148] sm:$0xff]
    %v10127 = vld [vmem:[#allocation13 + $0x150] sm:$0xff]
    %v10128 = vld [vmem:[#allocation13 + $0x158] sm:$0xff]
    %v10129 = vld [vmem:[#allocation13 + $0x160] sm:$0xff]
    %v10130 = vld [vmem:[#allocation13 + $0x168] sm:$0xff]
    %v10131 = vld [vmem:[#allocation13 + $0x170] sm:$0xff]
    %v10132 = vld [vmem:[#allocation13 + $0x178] sm:$0xff]
    %v10133 = vld [vmem:[#allocation13 + $0x180] sm:$0xff]
    %v10134 = vld [vmem:[#allocation13 + $0x188] sm:$0xff]
    %v10135 = vld [vmem:[#allocation13 + $0x190] sm:$0xff]
    %v10136 = vld [vmem:[#allocation13 + $0x198] sm:$0xff]
    %v10137 = vld [vmem:[#allocation13 + $0x1a0] sm:$0xff]
    %v10138 = vld [vmem:[#allocation13 + $0x1a8] sm:$0xff]
    %v10139 = vld [vmem:[#allocation13 + $0x1b0] sm:$0xff]
    %v10140 = vld [vmem:[#allocation13 + $0x1b8] sm:$0xff]
    %v10141 = vld [vmem:[#allocation13 + $0x1c0] sm:$0xff]
    %v10142 = vld [vmem:[#allocation13 + $0x1c8] sm:$0xff]
    %v10143 = vld [vmem:[#allocation13 + $0x1d0] sm:$0xff]
    %v10144 = vld [vmem:[#allocation13 + $0x1d8] sm:$0xff]
    %v10145 = vld [vmem:[#allocation13 + $0x1e0] sm:$0xff]
    %v10146 = vld [vmem:[#allocation13 + $0x1e8] sm:$0xff]
    %v10147 = vld [vmem:[#allocation13 + $0x1f0] sm:$0xff]
    %v10148 = vld [vmem:[#allocation13 + $0x1f8] sm:$0xff]
    %v10149 = vld [vmem:[#allocation13 + $0x200] sm:$0xff]
    %v10150 = vld [vmem:[#allocation13 + $0x208] sm:$0xff]
    %v10151 = vld [vmem:[#allocation13 + $0x210] sm:$0xff]
    %v10152 = vld [vmem:[#allocation13 + $0x218] sm:$0xff]
    %v10153 = vld [vmem:[#allocation13 + $0x220] sm:$0xff]
    %v10154 = vld [vmem:[#allocation13 + $0x228] sm:$0xff]
    %v10155 = vld [vmem:[#allocation13 + $0x230] sm:$0xff]
    %v10156 = vld [vmem:[#allocation13 + $0x238] sm:$0xff]
    %v10157 = vld [vmem:[#allocation13 + $0x240] sm:$0xff]
    %v10158 = vld [vmem:[#allocation13 + $0x248] sm:$0xff]
    %v10159 = vld [vmem:[#allocation13 + $0x250] sm:$0xff]
    %v10160 = vld [vmem:[#allocation13 + $0x258] sm:$0xff]
    %v10161 = vld [vmem:[#allocation13 + $0x260] sm:$0xff]
    %v10162 = vld [vmem:[#allocation13 + $0x268] sm:$0xff]
    %v10163 = vld [vmem:[#allocation13 + $0x270] sm:$0xff]
    %v10164 = vld [vmem:[#allocation13 + $0x278] sm:$0xff]
    %v10165 = vld [vmem:[#allocation13 + $0x280] sm:$0xff]
    %v10166 = vld [vmem:[#allocation13 + $0x288] sm:$0xff]
    %v10167 = vld [vmem:[#allocation13 + $0x290] sm:$0xff]
    %v10168 = vld [vmem:[#allocation13 + $0x298] sm:$0xff]
    %v10169 = vld [vmem:[#allocation13 + $0x2a0] sm:$0xff]
    %v10170 = vld [vmem:[#allocation13 + $0x2a8] sm:$0xff]
    %v10171 = vld [vmem:[#allocation13 + $0x2b0] sm:$0xff]
    %v10172 = vld [vmem:[#allocation13 + $0x2b8] sm:$0xff]
    %v10173 = vld [vmem:[#allocation13 + $0x2c0] sm:$0xff]
    %v10174 = vld [vmem:[#allocation13 + $0x2c8] sm:$0xff]
    %v10175 = vld [vmem:[#allocation13 + $0x2d0] sm:$0xff]
    %v10176 = vld [vmem:[#allocation13 + $0x2d8] sm:$0xff]
    %v10177 = vld [vmem:[#allocation13 + $0x2e0] sm:$0xff]
    %v10178 = vld [vmem:[#allocation13 + $0x2e8] sm:$0xff]
    %v10179 = vld [vmem:[#allocation13 + $0x2f0] sm:$0xff]
    %v10180 = vld [vmem:[#allocation13 + $0x2f8] sm:$0xff]
    %v10277 = vunpack.c.l.b16 %v10085
    %v10278 = vunpack.c.h.b16 %v10085
    %v10279 = vunpack.c.l.b16 %v10086
    %v10280 = vunpack.c.h.b16 %v10086
    %v10281 = vunpack.c.l.b16 %v10087
    %v10282 = vunpack.c.h.b16 %v10087
    %v10283 = vunpack.c.l.b16 %v10088
    %v10284 = vunpack.c.h.b16 %v10088
    %v10285 = vunpack.c.l.b16 %v10089
    %v10286 = vunpack.c.h.b16 %v10089
    %v10287 = vunpack.c.l.b16 %v10090
    %v10288 = vunpack.c.h.b16 %v10090
    %v10289 = vunpack.c.l.b16 %v10091
    %v10290 = vunpack.c.h.b16 %v10091
    %v10291 = vunpack.c.l.b16 %v10092
    %v10292 = vunpack.c.h.b16 %v10092
    %v10293 = vunpack.c.l.b16 %v10093
    %v10294 = vunpack.c.h.b16 %v10093
    %v10295 = vunpack.c.l.b16 %v10094
    %v10296 = vunpack.c.h.b16 %v10094
    %v10297 = vunpack.c.l.b16 %v10095
    %v10298 = vunpack.c.h.b16 %v10095
    %v10299 = vunpack.c.l.b16 %v10096
    %v10300 = vunpack.c.h.b16 %v10096
    %v10301 = vunpack.c.l.b16 %v10097
    %v10302 = vunpack.c.h.b16 %v10097
    %v10303 = vunpack.c.l.b16 %v10098
    %v10304 = vunpack.c.h.b16 %v10098
    %v10305 = vunpack.c.l.b16 %v10099
    %v10306 = vunpack.c.h.b16 %v10099
    %v10307 = vunpack.c.l.b16 %v10100
    %v10308 = vunpack.c.h.b16 %v10100
    %v10309 = vunpack.c.l.b16 %v10101
    %v10310 = vunpack.c.h.b16 %v10101
    %v10311 = vunpack.c.l.b16 %v10102
    %v10312 = vunpack.c.h.b16 %v10102
    %v10313 = vunpack.c.l.b16 %v10103
    %v10314 = vunpack.c.h.b16 %v10103
    %v10315 = vunpack.c.l.b16 %v10104
    %v10316 = vunpack.c.h.b16 %v10104
    %v10317 = vunpack.c.l.b16 %v10105
    %v10318 = vunpack.c.h.b16 %v10105
    %v10319 = vunpack.c.l.b16 %v10106
    %v10320 = vunpack.c.h.b16 %v10106
    %v10321 = vunpack.c.l.b16 %v10107
    %v10322 = vunpack.c.h.b16 %v10107
    %v10323 = vunpack.c.l.b16 %v10108
    %v10324 = vunpack.c.h.b16 %v10108
    %v10325 = vunpack.c.l.b16 %v10109
    %v10326 = vunpack.c.h.b16 %v10109
    %v10327 = vunpack.c.l.b16 %v10110
    %v10328 = vunpack.c.h.b16 %v10110
    %v10329 = vunpack.c.l.b16 %v10111
    %v10330 = vunpack.c.h.b16 %v10111
    %v10331 = vunpack.c.l.b16 %v10112
    %v10332 = vunpack.c.h.b16 %v10112
    %v10333 = vunpack.c.l.b16 %v10113
    %v10334 = vunpack.c.h.b16 %v10113
    %v10335 = vunpack.c.l.b16 %v10114
    %v10336 = vunpack.c.h.b16 %v10114
    %v10337 = vunpack.c.l.b16 %v10115
    %v10338 = vunpack.c.h.b16 %v10115
    %v10339 = vunpack.c.l.b16 %v10116
    %v10340 = vunpack.c.h.b16 %v10116
    %v10341 = vunpack.c.l.b16 %v10117
    %v10342 = vunpack.c.h.b16 %v10117
    %v10343 = vunpack.c.l.b16 %v10118
    %v10344 = vunpack.c.h.b16 %v10118
    %v10345 = vunpack.c.l.b16 %v10119
    %v10346 = vunpack.c.h.b16 %v10119
    %v10347 = vunpack.c.l.b16 %v10120
    %v10348 = vunpack.c.h.b16 %v10120
    %v10349 = vunpack.c.l.b16 %v10121
    %v10350 = vunpack.c.h.b16 %v10121
    %v10351 = vunpack.c.l.b16 %v10122
    %v10352 = vunpack.c.h.b16 %v10122
    %v10353 = vunpack.c.l.b16 %v10123
    %v10354 = vunpack.c.h.b16 %v10123
    %v10355 = vunpack.c.l.b16 %v10124
    %v10356 = vunpack.c.h.b16 %v10124
    %v10357 = vunpack.c.l.b16 %v10125
    %v10358 = vunpack.c.h.b16 %v10125
    %v10359 = vunpack.c.l.b16 %v10126
    %v10360 = vunpack.c.h.b16 %v10126
    %v10361 = vunpack.c.l.b16 %v10127
    %v10362 = vunpack.c.h.b16 %v10127
    %v10363 = vunpack.c.l.b16 %v10128
    %v10364 = vunpack.c.h.b16 %v10128
    %v10365 = vunpack.c.l.b16 %v10129
    %v10366 = vunpack.c.h.b16 %v10129
    %v10367 = vunpack.c.l.b16 %v10130
    %v10368 = vunpack.c.h.b16 %v10130
    %v10369 = vunpack.c.l.b16 %v10131
    %v10370 = vunpack.c.h.b16 %v10131
    %v10371 = vunpack.c.l.b16 %v10132
    %v10372 = vunpack.c.h.b16 %v10132
    %v10373 = vunpack.c.l.b16 %v10133
    %v10374 = vunpack.c.h.b16 %v10133
    %v10375 = vunpack.c.l.b16 %v10134
    %v10376 = vunpack.c.h.b16 %v10134
    %v10377 = vunpack.c.l.b16 %v10135
    %v10378 = vunpack.c.h.b16 %v10135
    %v10379 = vunpack.c.l.b16 %v10136
    %v10380 = vunpack.c.h.b16 %v10136
    %v10381 = vunpack.c.l.b16 %v10137
    %v10382 = vunpack.c.h.b16 %v10137
    %v10383 = vunpack.c.l.b16 %v10138
    %v10384 = vunpack.c.h.b16 %v10138
    %v10385 = vunpack.c.l.b16 %v10139
    %v10386 = vunpack.c.h.b16 %v10139
    %v10387 = vunpack.c.l.b16 %v10140
    %v10388 = vunpack.c.h.b16 %v10140
    %v10389 = vunpack.c.l.b16 %v10141
    %v10390 = vunpack.c.h.b16 %v10141
    %v10391 = vunpack.c.l.b16 %v10142
    %v10392 = vunpack.c.h.b16 %v10142
    %v10393 = vunpack.c.l.b16 %v10143
    %v10394 = vunpack.c.h.b16 %v10143
    %v10395 = vunpack.c.l.b16 %v10144
    %v10396 = vunpack.c.h.b16 %v10144
    %v10397 = vunpack.c.l.b16 %v10145
    %v10398 = vunpack.c.h.b16 %v10145
    %v10399 = vunpack.c.l.b16 %v10146
    %v10400 = vunpack.c.h.b16 %v10146
    %v10401 = vunpack.c.l.b16 %v10147
    %v10402 = vunpack.c.h.b16 %v10147
    %v10403 = vunpack.c.l.b16 %v10148
    %v10404 = vunpack.c.h.b16 %v10148
    %v10405 = vunpack.c.l.b16 %v10149
    %v10406 = vunpack.c.h.b16 %v10149
    %v10407 = vunpack.c.l.b16 %v10150
    %v10408 = vunpack.c.h.b16 %v10150
    %v10409 = vunpack.c.l.b16 %v10151
    %v10410 = vunpack.c.h.b16 %v10151
    %v10411 = vunpack.c.l.b16 %v10152
    %v10412 = vunpack.c.h.b16 %v10152
    %v10413 = vunpack.c.l.b16 %v10153
    %v10414 = vunpack.c.h.b16 %v10153
    %v10415 = vunpack.c.l.b16 %v10154
    %v10416 = vunpack.c.h.b16 %v10154
    %v10417 = vunpack.c.l.b16 %v10155
    %v10418 = vunpack.c.h.b16 %v10155
    %v10419 = vunpack.c.l.b16 %v10156
    %v10420 = vunpack.c.h.b16 %v10156
    %v10421 = vunpack.c.l.b16 %v10157
    %v10422 = vunpack.c.h.b16 %v10157
    %v10423 = vunpack.c.l.b16 %v10158
    %v10424 = vunpack.c.h.b16 %v10158
    %v10425 = vunpack.c.l.b16 %v10159
    %v10426 = vunpack.c.h.b16 %v10159
    %v10427 = vunpack.c.l.b16 %v10160
    %v10428 = vunpack.c.h.b16 %v10160
    %v10429 = vunpack.c.l.b16 %v10161
    %v10430 = vunpack.c.h.b16 %v10161
    %v10431 = vunpack.c.l.b16 %v10162
    %v10432 = vunpack.c.h.b16 %v10162
    %v10433 = vunpack.c.l.b16 %v10163
    %v10434 = vunpack.c.h.b16 %v10163
    %v10435 = vunpack.c.l.b16 %v10164
    %v10436 = vunpack.c.h.b16 %v10164
    %v10437 = vunpack.c.l.b16 %v10165
    %v10438 = vunpack.c.h.b16 %v10165
    %v10439 = vunpack.c.l.b16 %v10166
    %v10440 = vunpack.c.h.b16 %v10166
    %v10441 = vunpack.c.l.b16 %v10167
    %v10442 = vunpack.c.h.b16 %v10167
    %v10443 = vunpack.c.l.b16 %v10168
    %v10444 = vunpack.c.h.b16 %v10168
    %v10445 = vunpack.c.l.b16 %v10169
    %v10446 = vunpack.c.h.b16 %v10169
    %v10447 = vunpack.c.l.b16 %v10170
    %v10448 = vunpack.c.h.b16 %v10170
    %v10449 = vunpack.c.l.b16 %v10171
    %v10450 = vunpack.c.h.b16 %v10171
    %v10451 = vunpack.c.l.b16 %v10172
    %v10452 = vunpack.c.h.b16 %v10172
    %v10453 = vunpack.c.l.b16 %v10173
    %v10454 = vunpack.c.h.b16 %v10173
    %v10455 = vunpack.c.l.b16 %v10174
    %v10456 = vunpack.c.h.b16 %v10174
    %v10457 = vunpack.c.l.b16 %v10175
    %v10458 = vunpack.c.h.b16 %v10175
    %v10459 = vunpack.c.l.b16 %v10176
    %v10460 = vunpack.c.h.b16 %v10176
    %v10461 = vunpack.c.l.b16 %v10177
    %v10462 = vunpack.c.h.b16 %v10177
    %v10463 = vunpack.c.l.b16 %v10178
    %v10464 = vunpack.c.h.b16 %v10178
    %v10465 = vunpack.c.l.b16 %v10179
    %v10466 = vunpack.c.h.b16 %v10179
    %v10467 = vunpack.c.l.b16 %v10180
    %v10468 = vunpack.c.h.b16 %v10180
    %v10469 = vpack.c.b16 %v10283, %v10277
    %v10470 = vpack.c.b16 %v10284, %v10278
    %v10471 = vpack.c.b16 %v10285, %v10279
    %v10472 = vpack.c.b16 %v10286, %v10280
    %v10473 = vpack.c.b16 %v10287, %v10281
    %v10474 = vpack.c.b16 %v10288, %v10282
    %v10475 = vpack.c.b16 %v10295, %v10289
    %v10476 = vpack.c.b16 %v10296, %v10290
    %v10477 = vpack.c.b16 %v10297, %v10291
    %v10478 = vpack.c.b16 %v10298, %v10292
    %v10479 = vpack.c.b16 %v10299, %v10293
    %v10480 = vpack.c.b16 %v10300, %v10294
    %v10481 = vpack.c.b16 %v10307, %v10301
    %v10482 = vpack.c.b16 %v10308, %v10302
    %v10483 = vpack.c.b16 %v10309, %v10303
    %v10484 = vpack.c.b16 %v10310, %v10304
    %v10485 = vpack.c.b16 %v10311, %v10305
    %v10486 = vpack.c.b16 %v10312, %v10306
    %v10487 = vpack.c.b16 %v10319, %v10313
    %v10488 = vpack.c.b16 %v10320, %v10314
    %v10489 = vpack.c.b16 %v10321, %v10315
    %v10490 = vpack.c.b16 %v10322, %v10316
    %v10491 = vpack.c.b16 %v10323, %v10317
    %v10492 = vpack.c.b16 %v10324, %v10318
    %v10493 = vpack.c.b16 %v10331, %v10325
    %v10494 = vpack.c.b16 %v10332, %v10326
    %v10495 = vpack.c.b16 %v10333, %v10327
    %v10496 = vpack.c.b16 %v10334, %v10328
    %v10497 = vpack.c.b16 %v10335, %v10329
    %v10498 = vpack.c.b16 %v10336, %v10330
    %v10499 = vpack.c.b16 %v10343, %v10337
    %v10500 = vpack.c.b16 %v10344, %v10338
    %v10501 = vpack.c.b16 %v10345, %v10339
    %v10502 = vpack.c.b16 %v10346, %v10340
    %v10503 = vpack.c.b16 %v10347, %v10341
    %v10504 = vpack.c.b16 %v10348, %v10342
    %v10505 = vpack.c.b16 %v10355, %v10349
    %v10506 = vpack.c.b16 %v10356, %v10350
    %v10507 = vpack.c.b16 %v10357, %v10351
    %v10508 = vpack.c.b16 %v10358, %v10352
    %v10509 = vpack.c.b16 %v10359, %v10353
    %v10510 = vpack.c.b16 %v10360, %v10354
    %v10511 = vpack.c.b16 %v10367, %v10361
    %v10512 = vpack.c.b16 %v10368, %v10362
    %v10513 = vpack.c.b16 %v10369, %v10363
    %v10514 = vpack.c.b16 %v10370, %v10364
    %v10515 = vpack.c.b16 %v10371, %v10365
    %v10516 = vpack.c.b16 %v10372, %v10366
    %v10517 = vpack.c.b16 %v10379, %v10373
    %v10518 = vpack.c.b16 %v10380, %v10374
    %v10519 = vpack.c.b16 %v10381, %v10375
    %v10520 = vpack.c.b16 %v10382, %v10376
    %v10521 = vpack.c.b16 %v10383, %v10377
    %v10522 = vpack.c.b16 %v10384, %v10378
    %v10523 = vpack.c.b16 %v10391, %v10385
    %v10524 = vpack.c.b16 %v10392, %v10386
    %v10525 = vpack.c.b16 %v10393, %v10387
    %v10526 = vpack.c.b16 %v10394, %v10388
    %v10527 = vpack.c.b16 %v10395, %v10389
    %v10528 = vpack.c.b16 %v10396, %v10390
    %v10529 = vpack.c.b16 %v10403, %v10397
    %v10530 = vpack.c.b16 %v10404, %v10398
    %v10531 = vpack.c.b16 %v10405, %v10399
    %v10532 = vpack.c.b16 %v10406, %v10400
    %v10533 = vpack.c.b16 %v10407, %v10401
    %v10534 = vpack.c.b16 %v10408, %v10402
    %v10535 = vpack.c.b16 %v10415, %v10409
    %v10536 = vpack.c.b16 %v10416, %v10410
    %v10537 = vpack.c.b16 %v10417, %v10411
    %v10538 = vpack.c.b16 %v10418, %v10412
    %v10539 = vpack.c.b16 %v10419, %v10413
    %v10540 = vpack.c.b16 %v10420, %v10414
    %v10541 = vpack.c.b16 %v10427, %v10421
    %v10542 = vpack.c.b16 %v10428, %v10422
    %v10543 = vpack.c.b16 %v10429, %v10423
    %v10544 = vpack.c.b16 %v10430, %v10424
    %v10545 = vpack.c.b16 %v10431, %v10425
    %v10546 = vpack.c.b16 %v10432, %v10426
    %v10547 = vpack.c.b16 %v10439, %v10433
    %v10548 = vpack.c.b16 %v10440, %v10434
    %v10549 = vpack.c.b16 %v10441, %v10435
    %v10550 = vpack.c.b16 %v10442, %v10436
    %v10551 = vpack.c.b16 %v10443, %v10437
    %v10552 = vpack.c.b16 %v10444, %v10438
    %v10553 = vpack.c.b16 %v10451, %v10445
    %v10554 = vpack.c.b16 %v10452, %v10446
    %v10555 = vpack.c.b16 %v10453, %v10447
    %v10556 = vpack.c.b16 %v10454, %v10448
    %v10557 = vpack.c.b16 %v10455, %v10449
    %v10558 = vpack.c.b16 %v10456, %v10450
    %v10559 = vpack.c.b16 %v10463, %v10457
    %v10560 = vpack.c.b16 %v10464, %v10458
    %v10561 = vpack.c.b16 %v10465, %v10459
    %v10562 = vpack.c.b16 %v10466, %v10460
    %v10563 = vpack.c.b16 %v10467, %v10461
    %v10564 = vpack.c.b16 %v10468, %v10462
    %10661 = vmatprep.subr.bf16.mxu0 %v10470
    %10662 = vmatpush1.bf16.msra.mxu0 %v10469
    %10663 = vmatprep.subr.bf16.mxu0 %v10476
    %10664 = vmatpush1.bf16.msra.mxu0 %v10475
    %10665 = vmatprep.subr.bf16.mxu0 %v10482
    %10666 = vmatpush1.bf16.msra.mxu0 %v10481
    %10667 = vmatprep.subr.bf16.mxu0 %v10488
    %10668 = vmatpush1.bf16.msra.mxu0 %v10487
    %10669 = vmatprep.subr.bf16.mxu0 %v10494
    %10670 = vmatpush1.bf16.msra.mxu0 %v10493
    %10671 = vmatprep.subr.bf16.mxu0 %v10500
    %10672 = vmatpush1.bf16.msra.mxu0 %v10499
    %10673 = vmatprep.subr.bf16.mxu0 %v10506
    %10674 = vmatpush1.bf16.msra.mxu0 %v10505
    %10675 = vmatprep.subr.bf16.mxu0 %v10512
    %10676 = vmatpush1.bf16.msra.mxu0 %v10511
    %10677 = vmatprep.subr.bf16.mxu0 %v10518
    %10678 = vmatpush1.bf16.msra.mxu0 %v10517
    %10679 = vmatprep.subr.bf16.mxu0 %v10524
    %10680 = vmatpush1.bf16.msra.mxu0 %v10523
    %10681 = vmatprep.subr.bf16.mxu0 %v10530
    %10682 = vmatpush1.bf16.msra.mxu0 %v10529
    %10683 = vmatprep.subr.bf16.mxu0 %v10536
    %10684 = vmatpush1.bf16.msra.mxu0 %v10535
    %10685 = vmatprep.subr.bf16.mxu0 %v10542
    %10686 = vmatpush1.bf16.msra.mxu0 %v10541
    %10687 = vmatprep.subr.bf16.mxu0 %v10548
    %10688 = vmatpush1.bf16.msra.mxu0 %v10547
    %10689 = vmatprep.subr.bf16.mxu0 %v10554
    %10690 = vmatpush1.bf16.msra.mxu0 %v10553
    %10691 = vmatprep.subr.bf16.mxu0 %v10560
    %10692 = vmatpush1.bf16.msra.mxu0 %v10559
    %10693 = vmatprep.mubr.bf16.mxu0 %v10084
    %10694 = vmatmul.mubr.bf16.gmra.mrb[0].mxu0 %v10083
    %v10695 = vpop.f32.mrb[0].mxu0
    %v10696 = vadd.f32 %v2435, %v10695
    %v10697 = vpop.f32.mrb[0].mxu0
    %v10698 = vadd.f32 %v2439, %v10697
    %v10699 = vpop.f32.mrb[0].mxu0
    %v10700 = vpop.f32.mrb[0].mxu0
    %10701 = vdwg.mxu0
    %10702 = vmatprep.subr.bf16.mxu0 %v10472
    %10703 = vmatpush1.bf16.msra.mxu0 %v10471
    %10704 = vmatprep.subr.bf16.mxu0 %v10478
    %10705 = vmatpush1.bf16.msra.mxu0 %v10477
    %10706 = vmatprep.subr.bf16.mxu0 %v10484
    %10707 = vmatpush1.bf16.msra.mxu0 %v10483
    %10708 = vmatprep.subr.bf16.mxu0 %v10490
    %10709 = vmatpush1.bf16.msra.mxu0 %v10489
    %10710 = vmatprep.subr.bf16.mxu0 %v10496
    %10711 = vmatpush1.bf16.msra.mxu0 %v10495
    %10712 = vmatprep.subr.bf16.mxu0 %v10502
    %10713 = vmatpush1.bf16.msra.mxu0 %v10501
    %10714 = vmatprep.subr.bf16.mxu0 %v10508
    %10715 = vmatpush1.bf16.msra.mxu0 %v10507
    %10716 = vmatprep.subr.bf16.mxu0 %v10514
    %10717 = vmatpush1.bf16.msra.mxu0 %v10513
    %10718 = vmatprep.subr.bf16.mxu0 %v10520
    %10719 = vmatpush1.bf16.msra.mxu0 %v10519
    %10720 = vmatprep.subr.bf16.mxu0 %v10526
    %10721 = vmatpush1.bf16.msra.mxu0 %v10525
    %10722 = vmatprep.subr.bf16.mxu0 %v10532
    %10723 = vmatpush1.bf16.msra.mxu0 %v10531
    %10724 = vmatprep.subr.bf16.mxu0 %v10538
    %10725 = vmatpush1.bf16.msra.mxu0 %v10537
    %10726 = vmatprep.subr.bf16.mxu0 %v10544
    %10727 = vmatpush1.bf16.msra.mxu0 %v10543
    %10728 = vmatprep.subr.bf16.mxu0 %v10550
    %10729 = vmatpush1.bf16.msra.mxu0 %v10549
    %10730 = vmatprep.subr.bf16.mxu0 %v10556
    %10731 = vmatpush1.bf16.msra.mxu0 %v10555
    %10732 = vmatprep.subr.bf16.mxu0 %v10562
    %10733 = vmatpush1.bf16.msra.mxu0 %v10561
    %10734 = vmatprep.mubr.bf16.mxu0 %v10084
    %10735 = vmatmul.mubr.bf16.gmra.mrb[0].mxu0 %v10083
    %v10736 = vpop.f32.mrb[0].mxu0
    %v10737 = vadd.f32 %v2443, %v10736
    %v10738 = vpop.f32.mrb[0].mxu0
    %v10739 = vadd.f32 %v2447, %v10738
    %v10740 = vpop.f32.mrb[0].mxu0
    %v10741 = vpop.f32.mrb[0].mxu0
    %10742 = vdwg.mxu0
    %10743 = vmatprep.subr.bf16.mxu0 %v10474
    %10744 = vmatpush1.bf16.msra.mxu0 %v10473
    %10745 = vmatprep.subr.bf16.mxu0 %v10480
    %10746 = vmatpush1.bf16.msra.mxu0 %v10479
    %10747 = vmatprep.subr.bf16.mxu0 %v10486
    %10748 = vmatpush1.bf16.msra.mxu0 %v10485
    %10749 = vmatprep.subr.bf16.mxu0 %v10492
    %10750 = vmatpush1.bf16.msra.mxu0 %v10491
    %10751 = vmatprep.subr.bf16.mxu0 %v10498
    %10752 = vmatpush1.bf16.msra.mxu0 %v10497
    %10753 = vmatprep.subr.bf16.mxu0 %v10504
    %10754 = vmatpush1.bf16.msra.mxu0 %v10503
    %10755 = vmatprep.subr.bf16.mxu0 %v10510
    %10756 = vmatpush1.bf16.msra.mxu0 %v10509
    %10757 = vmatprep.subr.bf16.mxu0 %v10516
    %10758 = vmatpush1.bf16.msra.mxu0 %v10515
    %10759 = vmatprep.subr.bf16.mxu0 %v10522
    %10760 = vmatpush1.bf16.msra.mxu0 %v10521
    %10761 = vmatprep.subr.bf16.mxu0 %v10528
    %10762 = vmatpush1.bf16.msra.mxu0 %v10527
    %10763 = vmatprep.subr.bf16.mxu0 %v10534
    %10764 = vmatpush1.bf16.msra.mxu0 %v10533
    %10765 = vmatprep.subr.bf16.mxu0 %v10540
    %10766 = vmatpush1.bf16.msra.mxu0 %v10539
    %10767 = vmatprep.subr.bf16.mxu0 %v10546
    %10768 = vmatpush1.bf16.msra.mxu0 %v10545
    %10769 = vmatprep.subr.bf16.mxu0 %v10552
    %10770 = vmatpush1.bf16.msra.mxu0 %v10551
    %10771 = vmatprep.subr.bf16.mxu0 %v10558
    %10772 = vmatpush1.bf16.msra.mxu0 %v10557
    %10773 = vmatprep.subr.bf16.mxu0 %v10564
    %10774 = vmatpush1.bf16.msra.mxu0 %v10563
    %10775 = vmatprep.mubr.bf16.mxu0 %v10084
    %10776 = vmatmul.mubr.bf16.gmra.mrb[0].mxu0 %v10083
    %v10777 = vpop.f32.mrb[0].mxu0
    %v10778 = vadd.f32 %v2451, %v10777
    %v10779 = vpop.f32.mrb[0].mxu0
    %v10780 = vadd.f32 %v2455, %v10779
    %v10781 = vpop.f32.mrb[0].mxu0
    %v10782 = vpop.f32.mrb[0].mxu0
    %10783 = vdwg.mxu0
    %v10784 = vadd.f32 %v10696, %v9563
    %v10785 = vadd.f32 %v10698, %v9602
    %v10786 = vxor.u32 %v10784, 2147483648
    %v10787 = vxor.u32 %v10785, 2147483648
    %v10788 = vmul.f32 %v10786, 1.442695
    %v10789 = vpow.pop %v10788
    %v10790 = vmul.f32 %v10787, 1.442695
    %v10791 = vpow.pop %v10790
    %v10792 = vadd.f32 %v10789, 1.0
    %v10793 = vadd.f32 %v10791, 1.0
    %v10794 = vrcp.pop %v10792
    %v10795 = vmul.f32 1.0, %v10794
    %v10796 = vrcp.pop %v10793
    %v10797 = vmul.f32 1.0, %v10796
    %v10798 = vadd.f32 %v10737, %v9604
    %v10799 = vadd.f32 %v10739, %v9643
    %v10800 = vxor.u32 %v10798, 2147483648
    %v10801 = vxor.u32 %v10799, 2147483648
    %v10802 = vmul.f32 %v10800, 1.442695
    %v10803 = vpow.pop %v10802
    %v10804 = vmul.f32 %v10801, 1.442695
    %v10805 = vpow.pop %v10804
    %v10806 = vadd.f32 %v10803, 1.0
    %v10807 = vadd.f32 %v10805, 1.0
    %v10808 = vrcp.pop %v10806
    %v10809 = vmul.f32 1.0, %v10808
    %v10810 = vrcp.pop %v10807
    %v10811 = vmul.f32 1.0, %v10810
    %v10812 = vadd.f32 %v9645, %v2617
    %v10813 = vadd.f32 %v9684, %v2621
    %v10814 = vmul.f32 %v10795, %v10812
    %v10815 = vmul.f32 %v10797, %v10813
    %v10816 = vadd.f32 %v10778, %v10814
    %v10817 = vadd.f32 %v10780, %v10815
    %v10818 = vtanh.pop %v10816
    %v10819 = vtanh.pop %v10817
    %v10820 = vsub.f32 1.0, %v10809
    %v10821 = vsub.f32 1.0, %v10811
    %v10822 = vmul.f32 %v10820, %v10818
    %v10823 = vmul.f32 %v10821, %v10819
    %v10824 = vmul.f32 %v10809, %v8101
    %v10825 = vmul.f32 %v10811, %v8102
    %v10826 = vadd.f32 %v10822, %v10824
    %v10827 = vadd.f32 %v10823, %v10825
    %v10830 = vcombine.low %v10826, %v10827
    %v10832 = vunpack.c.l.s4 1966171168
    %v10833 = vunpack.c.0.s8 %v10832
    %v10834 = vlaneseq
    %v10835 = vshrl.u32 %v10834, 7
    %v10836 = vsub.s32 %v10833, %v10835
    %v10837 = vrot.slane %v10830, %v10836
    %v10839 = vunpack.c.l.s4 1966171168
    %v10840 = vunpack.c.0.s8 %v10839
    %v10841 = vlaneseq
    %v10842 = vshrl.u32 %v10841, 7
    %v10843 = vsub.s32 %v10840, %v10842
    %v10844 = vrot.slane %v10837, %v10843
    %s10846 = scalar_lea.vmem [#allocation17], 6
    %10847 = vst.msk [vmem:[%s10846] sm:$0x3] %vm2661, %v10844
    %v10848 = vpack.c.bf16 %v10826, %v10826
    %v10849 = vpack.c.bf16 %v10827, %v10827
    %v10850 = vld [vmem:[#allocation15] sm:$0xff]
    %v10851 = vld [vmem:[#allocation15 + $0x8] sm:$0xff]
    %v10852 = vld [vmem:[#allocation15 + $0x10] sm:$0xff]
    %v10853 = vld [vmem:[#allocation15 + $0x18] sm:$0xff]
    %v10854 = vld [vmem:[#allocation15 + $0x20] sm:$0xff]
    %v10855 = vld [vmem:[#allocation15 + $0x28] sm:$0xff]
    %v10856 = vld [vmem:[#allocation15 + $0x30] sm:$0xff]
    %v10857 = vld [vmem:[#allocation15 + $0x38] sm:$0xff]
    %v10858 = vld [vmem:[#allocation15 + $0x40] sm:$0xff]
    %v10859 = vld [vmem:[#allocation15 + $0x48] sm:$0xff]
    %v10860 = vld [vmem:[#allocation15 + $0x50] sm:$0xff]
    %v10861 = vld [vmem:[#allocation15 + $0x58] sm:$0xff]
    %v10862 = vld [vmem:[#allocation15 + $0x60] sm:$0xff]
    %v10863 = vld [vmem:[#allocation15 + $0x68] sm:$0xff]
    %v10864 = vld [vmem:[#allocation15 + $0x70] sm:$0xff]
    %v10865 = vld [vmem:[#allocation15 + $0x78] sm:$0xff]
    %v10866 = vld [vmem:[#allocation15 + $0x80] sm:$0xff]
    %v10867 = vld [vmem:[#allocation15 + $0x88] sm:$0xff]
    %v10868 = vld [vmem:[#allocation15 + $0x90] sm:$0xff]
    %v10869 = vld [vmem:[#allocation15 + $0x98] sm:$0xff]
    %v10870 = vld [vmem:[#allocation15 + $0xa0] sm:$0xff]
    %v10871 = vld [vmem:[#allocation15 + $0xa8] sm:$0xff]
    %v10872 = vld [vmem:[#allocation15 + $0xb0] sm:$0xff]
    %v10873 = vld [vmem:[#allocation15 + $0xb8] sm:$0xff]
    %v10874 = vld [vmem:[#allocation15 + $0xc0] sm:$0xff]
    %v10875 = vld [vmem:[#allocation15 + $0xc8] sm:$0xff]
    %v10876 = vld [vmem:[#allocation15 + $0xd0] sm:$0xff]
    %v10877 = vld [vmem:[#allocation15 + $0xd8] sm:$0xff]
    %v10878 = vld [vmem:[#allocation15 + $0xe0] sm:$0xff]
    %v10879 = vld [vmem:[#allocation15 + $0xe8] sm:$0xff]
    %v10880 = vld [vmem:[#allocation15 + $0xf0] sm:$0xff]
    %v10881 = vld [vmem:[#allocation15 + $0xf8] sm:$0xff]
    %v10914 = vunpack.c.l.b16 %v10850
    %v10915 = vunpack.c.h.b16 %v10850
    %v10916 = vunpack.c.l.b16 %v10851
    %v10917 = vunpack.c.h.b16 %v10851
    %v10918 = vunpack.c.l.b16 %v10852
    %v10919 = vunpack.c.h.b16 %v10852
    %v10920 = vunpack.c.l.b16 %v10853
    %v10921 = vunpack.c.h.b16 %v10853
    %v10922 = vunpack.c.l.b16 %v10854
    %v10923 = vunpack.c.h.b16 %v10854
    %v10924 = vunpack.c.l.b16 %v10855
    %v10925 = vunpack.c.h.b16 %v10855
    %v10926 = vunpack.c.l.b16 %v10856
    %v10927 = vunpack.c.h.b16 %v10856
    %v10928 = vunpack.c.l.b16 %v10857
    %v10929 = vunpack.c.h.b16 %v10857
    %v10930 = vunpack.c.l.b16 %v10858
    %v10931 = vunpack.c.h.b16 %v10858
    %v10932 = vunpack.c.l.b16 %v10859
    %v10933 = vunpack.c.h.b16 %v10859
    %v10934 = vunpack.c.l.b16 %v10860
    %v10935 = vunpack.c.h.b16 %v10860
    %v10936 = vunpack.c.l.b16 %v10861
    %v10937 = vunpack.c.h.b16 %v10861
    %v10938 = vunpack.c.l.b16 %v10862
    %v10939 = vunpack.c.h.b16 %v10862
    %v10940 = vunpack.c.l.b16 %v10863
    %v10941 = vunpack.c.h.b16 %v10863
    %v10942 = vunpack.c.l.b16 %v10864
    %v10943 = vunpack.c.h.b16 %v10864
    %v10944 = vunpack.c.l.b16 %v10865
    %v10945 = vunpack.c.h.b16 %v10865
    %v10946 = vunpack.c.l.b16 %v10866
    %v10947 = vunpack.c.h.b16 %v10866
    %v10948 = vunpack.c.l.b16 %v10867
    %v10949 = vunpack.c.h.b16 %v10867
    %v10950 = vunpack.c.l.b16 %v10868
    %v10951 = vunpack.c.h.b16 %v10868
    %v10952 = vunpack.c.l.b16 %v10869
    %v10953 = vunpack.c.h.b16 %v10869
    %v10954 = vunpack.c.l.b16 %v10870
    %v10955 = vunpack.c.h.b16 %v10870
    %v10956 = vunpack.c.l.b16 %v10871
    %v10957 = vunpack.c.h.b16 %v10871
    %v10958 = vunpack.c.l.b16 %v10872
    %v10959 = vunpack.c.h.b16 %v10872
    %v10960 = vunpack.c.l.b16 %v10873
    %v10961 = vunpack.c.h.b16 %v10873
    %v10962 = vunpack.c.l.b16 %v10874
    %v10963 = vunpack.c.h.b16 %v10874
    %v10964 = vunpack.c.l.b16 %v10875
    %v10965 = vunpack.c.h.b16 %v10875
    %v10966 = vunpack.c.l.b16 %v10876
    %v10967 = vunpack.c.h.b16 %v10876
    %v10968 = vunpack.c.l.b16 %v10877
    %v10969 = vunpack.c.h.b16 %v10877
    %v10970 = vunpack.c.l.b16 %v10878
    %v10971 = vunpack.c.h.b16 %v10878
    %v10972 = vunpack.c.l.b16 %v10879
    %v10973 = vunpack.c.h.b16 %v10879
    %v10974 = vunpack.c.l.b16 %v10880
    %v10975 = vunpack.c.h.b16 %v10880
    %v10976 = vunpack.c.l.b16 %v10881
    %v10977 = vunpack.c.h.b16 %v10881
    %v10978 = vpack.c.b16 %v10916, %v10914
    %v10979 = vpack.c.b16 %v10917, %v10915
    %v10980 = vpack.c.b16 %v10920, %v10918
    %v10981 = vpack.c.b16 %v10921, %v10919
    %v10982 = vpack.c.b16 %v10924, %v10922
    %v10983 = vpack.c.b16 %v10925, %v10923
    %v10984 = vpack.c.b16 %v10928, %v10926
    %v10985 = vpack.c.b16 %v10929, %v10927
    %v10986 = vpack.c.b16 %v10932, %v10930
    %v10987 = vpack.c.b16 %v10933, %v10931
    %v10988 = vpack.c.b16 %v10936, %v10934
    %v10989 = vpack.c.b16 %v10937, %v10935
    %v10990 = vpack.c.b16 %v10940, %v10938
    %v10991 = vpack.c.b16 %v10941, %v10939
    %v10992 = vpack.c.b16 %v10944, %v10942
    %v10993 = vpack.c.b16 %v10945, %v10943
    %v10994 = vpack.c.b16 %v10948, %v10946
    %v10995 = vpack.c.b16 %v10949, %v10947
    %v10996 = vpack.c.b16 %v10952, %v10950
    %v10997 = vpack.c.b16 %v10953, %v10951
    %v10998 = vpack.c.b16 %v10956, %v10954
    %v10999 = vpack.c.b16 %v10957, %v10955
    %v11000 = vpack.c.b16 %v10960, %v10958
    %v11001 = vpack.c.b16 %v10961, %v10959
    %v11002 = vpack.c.b16 %v10964, %v10962
    %v11003 = vpack.c.b16 %v10965, %v10963
    %v11004 = vpack.c.b16 %v10968, %v10966
    %v11005 = vpack.c.b16 %v10969, %v10967
    %v11006 = vpack.c.b16 %v10972, %v10970
    %v11007 = vpack.c.b16 %v10973, %v10971
    %v11008 = vpack.c.b16 %v10976, %v10974
    %v11009 = vpack.c.b16 %v10977, %v10975
    %11042 = vmatprep.subr.bf16.mxu0 %v10979
    %11043 = vmatpush1.bf16.msra.mxu0 %v10978
    %11044 = vmatprep.subr.bf16.mxu0 %v10981
    %11045 = vmatpush1.bf16.msra.mxu0 %v10980
    %11046 = vmatprep.subr.bf16.mxu0 %v10983
    %11047 = vmatpush1.bf16.msra.mxu0 %v10982
    %11048 = vmatprep.subr.bf16.mxu0 %v10985
    %11049 = vmatpush1.bf16.msra.mxu0 %v10984
    %11050 = vmatprep.subr.bf16.mxu0 %v10987
    %11051 = vmatpush1.bf16.msra.mxu0 %v10986
    %11052 = vmatprep.subr.bf16.mxu0 %v10989
    %11053 = vmatpush1.bf16.msra.mxu0 %v10988
    %11054 = vmatprep.subr.bf16.mxu0 %v10991
    %11055 = vmatpush1.bf16.msra.mxu0 %v10990
    %11056 = vmatprep.subr.bf16.mxu0 %v10993
    %11057 = vmatpush1.bf16.msra.mxu0 %v10992
    %11058 = vmatprep.subr.bf16.mxu0 %v10995
    %11059 = vmatpush1.bf16.msra.mxu0 %v10994
    %11060 = vmatprep.subr.bf16.mxu0 %v10997
    %11061 = vmatpush1.bf16.msra.mxu0 %v10996
    %11062 = vmatprep.subr.bf16.mxu0 %v10999
    %11063 = vmatpush1.bf16.msra.mxu0 %v10998
    %11064 = vmatprep.subr.bf16.mxu0 %v11001
    %11065 = vmatpush1.bf16.msra.mxu0 %v11000
    %11066 = vmatprep.subr.bf16.mxu0 %v11003
    %11067 = vmatpush1.bf16.msra.mxu0 %v11002
    %11068 = vmatprep.subr.bf16.mxu0 %v11005
    %11069 = vmatpush1.bf16.msra.mxu0 %v11004
    %11070 = vmatprep.subr.bf16.mxu0 %v11007
    %11071 = vmatpush1.bf16.msra.mxu0 %v11006
    %11072 = vmatprep.subr.bf16.mxu0 %v11009
    %11073 = vmatpush1.bf16.msra.mxu0 %v11008
    %11074 = vmatprep.mubr.bf16.mxu0 %v10849
    %11075 = vmatmul.mubr.bf16.gmra.mrb[0].mxu0 %v10848
    %v11076 = vpop.f32.mrb[0].mxu0
    %v11077 = vadd.f32 %v2861, %v11076
    %v11078 = vpop.f32.mrb[0].mxu0
    %v11079 = vadd.f32 %v2865, %v11078
    %v11080 = vpop.f32.mrb[0].mxu0
    %v11081 = vpop.f32.mrb[0].mxu0
    %11082 = vdwg.mxu0
    %v11083 = vsel %vm1450, %v11077, -inf
    %v11084 = vsel %vm1450, %v11079, -inf
    %v11085 = vmax.f32 %v11083, %v11084
    %11086 = vmax.xlane.f32.xlu0 %v11085
    %v11087 = vpop.xlane.xlu0 %11086
    %v11088 = vsub.f32 %v11077, %v11087
    %v11089 = vsub.f32 %v11079, %v11087
    %v11090 = vmul.f32 %v11088, 1.442695
    %v11091 = vpow.pop %v11090
    %v11092 = vmul.f32 %v11089, 1.442695
    %v11093 = vpow.pop %v11092
    %v11094 = vsel %vm1450, %v11091, 0.0
    %v11095 = vsel %vm1450, %v11093, 0.0
    %v11096 = vadd.f32 %v11094, %v11095
    %11097 = vadd.xlane.f32.xlu0 %v11096
    %v11098 = vpop.xlane.xlu0 %11097
    %v11099 = vlog2.pop %v11098
    %v11100 = vmul.f32 %v11099, 0.6931472
    %v11101 = vsub.f32 %v11088, %v11100
    %v11102 = vsub.f32 %v11089, %v11100
    %v11105 = vcombine.low %v11101, %v11102
    %v11107 = vunpack.c.l.s4 1966171168
    %v11108 = vunpack.c.0.s8 %v11107
    %v11109 = vlaneseq
    %v11110 = vshrl.u32 %v11109, 7
    %v11111 = vsub.s32 %v11108, %v11110
    %v11112 = vrot.slane %v11105, %v11111
    %v11114 = vunpack.c.l.s4 1966171168
    %v11115 = vunpack.c.0.s8 %v11114
    %v11116 = vlaneseq
    %v11117 = vshrl.u32 %v11116, 7
    %v11118 = vsub.s32 %v11115, %v11117
    %v11119 = vrot.slane %v11112, %v11118
    %s11121 = scalar_lea.vmem [#allocation16], 6
    %11122 = vst.msk [vmem:[%s11121] sm:$0x3] %vm2661, %v11119
    // Predicated region
    $region66: #{tpu_custom_call.1} parent=1 // pred_check
      _
    $region67: #{tpu_custom_call.1} parent=1 // pred_check_branch
      %11124 = sbr.rel (0) target = $region69
    $region68: #{tpu_custom_call.1} parent=1 // pred_region
      %s11126 = ssub.s32 128, 128
      %11127 = vsyncadd [#allocation6], %s11126
      %s11128 = sshll.u32 [#allocation16], 4
      %s11129 = int_to_ptr.vmem [resolvable:$true] %s11128
      %11134 = dma.vmem_to_hbm [thread:$0]  %s11129, 128, %s10, [#allocation6], 32, 32, 2
    $region69: #{tpu_custom_call.1} parent=1 // pred_fallthru
      _
    // Predicated region
    $region70: #{tpu_custom_call.1} parent=1 // pred_check
      _
    $region71: #{tpu_custom_call.1} parent=1 // pred_check_branch
      %11136 = sbr.rel (0) target = $region73
    $region72: #{tpu_custom_call.1} parent=1 // pred_region
      %s11138 = ssub.s32 128, 128
      %11139 = vsyncadd [#allocation18], %s11138
      %s11140 = sshll.u32 [#allocation17], 4
      %s11141 = int_to_ptr.vmem [resolvable:$true] %s11140
      %11146 = dma.vmem_to_hbm [thread:$0]  %s11141, 128, %s11, [#allocation18], 32, 32, 2
    $region73: #{tpu_custom_call.1} parent=1 // pred_fallthru
      _
    // Predicated region
    $region74: #{tpu_custom_call.1} parent=1 // pred_check
      _
    $region75: #{tpu_custom_call.1} parent=1 // pred_check_branch
      %11148 = sbr.rel (0) target = $region77
    $region76: #{tpu_custom_call.1} parent=1 // pred_region
      %s11150 = ssub.s32 64, 64
      %11151 = vsyncadd [#allocation18], %s11150
      %s11152 = sshll.u32 [#allocation19], 4
      %s11153 = int_to_ptr.vmem [resolvable:$true] %s11152
      %11158 = dma.vmem_to_hbm [thread:$0]  %s11153, 64, %s12, [#allocation18], 16, 16, 1
    $region77: #{tpu_custom_call.1} parent=1 // pred_fallthru
      _
    // Predicated region
    $region78: #{tpu_custom_call.1} parent=1 // pred_check
      _
    $region79: #{tpu_custom_call.1} parent=1 // pred_check_branch
      %11160 = sbr.rel (0) target = $region81
    $region80: #{tpu_custom_call.1} parent=1 // pred_region
      %11161 = dma.done [#allocation6], 128
    $region81: #{tpu_custom_call.1} parent=1 // pred_fallthru
      _
    // Predicated region
    $region82: #{tpu_custom_call.1} parent=1 // pred_check
      _
    $region83: #{tpu_custom_call.1} parent=1 // pred_check_branch
      %11163 = sbr.rel (0) target = $region85
    $region84: #{tpu_custom_call.1} parent=1 // pred_region
      %11164 = dma.done [#allocation18], 128
    $region85: #{tpu_custom_call.1} parent=1 // pred_fallthru
      _
    // Predicated region
    $region86: #{tpu_custom_call.1} parent=1 // pred_check
      _
    $region87: #{tpu_custom_call.1} parent=1 // pred_check_branch
      %11166 = sbr.rel (0) target = $region89
    $region88: #{tpu_custom_call.1} parent=1 // pred_region
      %11167 = dma.done [#allocation18], 64
    $region89: #{tpu_custom_call.1} parent=1 // pred_fallthru
      _
    %11168 = vsyncpa [#allocation5], 1
    %11169 = vsyncpa [#allocation8], 1
    %11170 = vsyncpa [#allocation11], 1
    %11171 = vsyncpa [#allocation14], 1
    %11172 = vsyncpa [#allocation6], 1
    %11173 = vsyncpa [#allocation18], 1

</llo_original>
